<compile_context>
chip_gen: v7x
topology: tpu7x:2x2x1
jax: 0.10.0
libtpu: 0.0.40
codegen_flags: <defaults>
</compile_context>

<pallas_src>
import functools

import jax
import jax.numpy as jnp
from jax import lax
from jax.experimental import pallas as pl
from jax.experimental.pallas import tpu as pltpu

H_PAD = 128    # per-gate lane padding (gate slices stay 128-lane aligned)
O_PAD = 128    # target-vocab (logits) padded to one full lane group
B_MIN_PAD = 8  # batch padded to a sublane multiple
NEG_BIG = -1e30


# ----------------------------------------------------------------------------
# Pallas kernel: full encoder + greedy decoder, fused
# ----------------------------------------------------------------------------
def _full_spec(shape):
  """Whole-array block for a grid=(1,) pallas_call."""
  nd = len(shape)
  return pl.BlockSpec(shape, lambda i, _nd=nd: (0,) * _nd)


def _seq2seq_kernel(xg0_ref, enc_whh_ref, enc_wih_ref, enc_b_ref,
                    dec_whh_ref, dec_wih_ref, dec_b_ref, emb_proj_ref,
                    fc_w_ref, fc_b_ref, x0g_ref, out_ref):
  f32 = jnp.float32
  bf16 = jnp.bfloat16
  T_src, B, G = xg0_ref.shape
  Hp = G // 4                       # 128: per-gate lane width
  H = enc_whh_ref.shape[1]          # 32: real hidden size (compact K)
  L = dec_whh_ref.shape[0]
  T_tgt, _, Op = out_ref.shape

  def cell(gates, c_prev):
    """PyTorch LSTM gate order i, f, g, o; gate slices are 128-lane aligned.

    Padded lanes of every gate are exactly 0 (zero weight cols / bias), so the
    padded lanes of c stay exactly 0."""
    i = jax.nn.sigmoid(gates[:, 0 * Hp:1 * Hp])
    f = jax.nn.sigmoid(gates[:, 1 * Hp:2 * Hp])
    g = jnp.tanh(gates[:, 2 * Hp:3 * Hp])
    o = jax.nn.sigmoid(gates[:, 3 * Hp:4 * Hp])
    c_new = f * c_prev + i * g
    h_new = o * jnp.tanh(c_new)
    return h_new, c_new             # both (B, Hp)

  # ---- encoder: state in vreg carries, weights resident in VMEM ----
  # (encoder_outputs are never consumed by this attention-free decoder.)
  def enc_step(t, carry):
    h, c = carry                    # tuples: h[l] (B,H) f32, c[l] (B,Hp) f32
    # layer 0: input projection (emb @ W_ih0 + b0) precomputed outside.
    gates = xg0_ref[t] + jnp.dot(h[0].astype(bf16), enc_whh_ref[0],
                                 preferred_element_type=f32)
    h_full, c_new = cell(gates, c[0])
    x = h_full[:, :H]
    new_h, new_c = [x], [c_new]
    for l in range(1, L):
      gates = (jnp.dot(x.astype(bf16), enc_wih_ref[l - 1],
                       preferred_element_type=f32)
               + jnp.dot(h[l].astype(bf16), enc_whh_ref[l],
                         preferred_element_type=f32)
               + enc_b_ref[l - 1])
      h_full, c_new = cell(gates, c[l])
      x = h_full[:, :H]
      new_h.append(x)
      new_c.append(c_new)
    return tuple(new_h), tuple(new_c)

  h_init = tuple(jnp.zeros((B, H), f32) for _ in range(L))
  c_init = tuple(jnp.zeros((B, Hp), f32) for _ in range(L))
  h_enc, c_enc = lax.fori_loop(0, T_src, enc_step, (h_init, c_init),
                               unroll=True)

  # ---- decoder: greedy-feedback loop, argmax + embedding fold on-chip ----
  out_ref[0] = jnp.zeros((B, Op), f32)          # outputs[:, 0] stays zero
  col = lax.broadcasted_iota(jnp.int32, (B, Op), 1).astype(f32)   # hoisted

  def dec_step(t, carry):
    h, c, xg = carry                # xg: (B, G) f32 = x@W_ih_dec0 + b_dec0
    new_h, new_c = [], []
    x = None
    for l in range(L):
      if l == 0:
        gates = xg + jnp.dot(h[0].astype(bf16), dec_whh_ref[0],
                             preferred_element_type=f32)
      else:
        gates = (jnp.dot(x, dec_wih_ref[l - 1], preferred_element_type=f32)
                 + jnp.dot(h[l].astype(bf16), dec_whh_ref[l],
                           preferred_element_type=f32)
                 + dec_b_ref[l - 1])
      h_full, c_new = cell(gates, c[l])
      hc = h_full[:, :H]
      x = hc.astype(bf16)
      new_h.append(hc)
      new_c.append(c_new)

    # fc_out; padded vocab lanes carry -1e30 via fc_b so no per-step mask.
    logits = jnp.dot(x, fc_w_ref[...], preferred_element_type=f32) + fc_b_ref[...]
    out_ref[t] = logits                                   # lane-dense store

    # first-occurrence argmax, then next-token gate contribution via a
    # one-hot matmul against the resident (emb @ W_ih_dec0 + b_dec0) table.
    maxv = jnp.max(logits, axis=-1, keepdims=True)
    idx = jnp.min(jnp.where(logits >= maxv, col, float(Op)),
                  axis=-1, keepdims=True)
    onehot = (col == idx).astype(bf16)                    # (B, Op)
    xg_new = jnp.dot(onehot, emb_proj_ref[...], preferred_element_type=f32)
    return tuple(new_h), tuple(new_c), xg_new

  lax.fori_loop(1, T_tgt, dec_step, (h_enc, c_enc, x0g_ref[...]), unroll=True)


# ----------------------------------------------------------------------------
# Parameter init (PyTorch-style U(-1/sqrt(H), 1/sqrt(H))), packed + padded
# into the lane-dense kernel layout with compact (H-row) contraction dims.
# ----------------------------------------------------------------------------
def _uniform(key, shape, k):
  return jax.random.uniform(key, shape, jnp.float32, minval=-k, maxval=k)


def _pack_gate_weight_t(w, H, Hp):
  """(4H, In) PyTorch LSTM weight -> (In, 4*Hp), transposed, per-gate padded."""
  In = w.shape[1]
  w4 = w.reshape(4, H, In)
  w4p = jnp.zeros((4, Hp, In), w.dtype).at[:, :H, :].set(w4)
  return jnp.transpose(w4p, (2, 0, 1)).reshape(In, 4 * Hp)


def _pack_gate_bias(b, H, Hp):
  b4 = b.reshape(4, H)
  b4p = jnp.zeros((4, Hp), b.dtype).at[:, :H].set(b4)
  return b4p.reshape(1, 4 * Hp)


def init_params(key, input_size, output_size, hidden_size, num_layers):
  H, Hp, Op = hidden_size, H_PAD, O_PAD
  G = 4 * Hp
  k = 1.0 / (H ** 0.5)
  keys = iter(jax.random.split(key, 4 + 8 * num_layers))

  def lstm_layer():
    w_ih = _uniform(next(keys), (4 * H, H), k)
    w_hh = _uniform(next(keys), (4 * H, H), k)
    b_ih = _uniform(next(keys), (4 * H,), k)
    b_hh = _uniform(next(keys), (4 * H,), k)
    return (_pack_gate_weight_t(w_ih, H, Hp),     # (H, G)
            _pack_gate_weight_t(w_hh, H, Hp),     # (H, G)
            _pack_gate_bias(b_ih + b_hh, H, Hp))  # (1, G)

  # ---- encoder ----
  enc_emb = _uniform(next(keys), (input_size, H), 1.0)
  enc_layers = [lstm_layer() for _ in range(num_layers)]
  wih0_t, _, b0 = enc_layers[0]
  enc_whh = jnp.stack([wh for _, wh, _ in enc_layers]).astype(jnp.bfloat16)
  if num_layers > 1:
    enc_wih = jnp.stack([wi for wi, _, _ in enc_layers[1:]]).astype(jnp.bfloat16)
    enc_b = jnp.stack([b for _, _, b in enc_layers[1:]])
  else:  # dummies (never indexed) keep the kernel signature fixed
    enc_wih = jnp.zeros((1, H, G), jnp.bfloat16)
    enc_b = jnp.zeros((1, 1, G), jnp.float32)
  encoder = {"emb": enc_emb, "wih0_t": wih0_t, "b0": b0,
             "whh": enc_whh, "wih": enc_wih, "b": enc_b}

  # ---- decoder ----
  dec_emb = _uniform(next(keys), (output_size, H), 1.0)
  dec_layers = [lstm_layer() for _ in range(num_layers)]
  dec_wih0_t, _, dec_b0 = dec_layers[0]
  dec_emb_p = jnp.zeros((Op, H), jnp.float32).at[:output_size, :].set(dec_emb)
  # Fold decoder layer-0 input projection + bias into the embedding table.
  emb_proj = dec_emb_p @ dec_wih0_t + dec_b0              # (Op, G) f32
  dec_whh = jnp.stack([wh for _, wh, _ in dec_layers]).astype(jnp.bfloat16)
  if num_layers > 1:
    dec_wih = jnp.stack([wi for wi, _, _ in dec_layers[1:]]).astype(jnp.bfloat16)
    dec_b = jnp.stack([b for _, _, b in dec_layers[1:]])
  else:
    dec_wih = jnp.zeros((1, H, G), jnp.bfloat16)
    dec_b = jnp.zeros((1, 1, G), jnp.float32)
  fc_w = _uniform(next(keys), (output_size, H), k)
  fc_b = _uniform(next(keys), (output_size,), k)
  fc_w_t = jnp.zeros((H, Op), jnp.float32).at[:, :output_size].set(
      jnp.transpose(fc_w)).astype(jnp.bfloat16)
  # Padded vocab lanes get -1e30 so the in-kernel argmax never picks them
  # (harmless in out_ref: the wrapper crops to output_size).
  fc_b_p = jnp.full((1, Op), NEG_BIG, jnp.float32).at[0, :output_size].set(fc_b)
  decoder = {"emb_proj": emb_proj, "whh": dec_whh, "wih": dec_wih, "b": dec_b,
             "fc_w_t": fc_w_t, "fc_b": fc_b_p}
  return {"encoder": encoder, "decoder": decoder}


# ----------------------------------------------------------------------------
# Forward: thin JAX wrapper (token padding, embedding gathers, layer-0 input
# GEMMs) around a single fused Pallas kernel.
# ----------------------------------------------------------------------------
@functools.partial(jax.jit, static_argnames=("output_size",))
def seq2seq_forward(params, source, target, *, output_size):
  enc = params["encoder"]
  dec = params["decoder"]
  Op = dec["fc_b"].shape[1]
  B, T_src = source.shape
  T_tgt = target.shape[1]
  Bp = max(B_MIN_PAD, ((B + 7) // 8) * 8)

  # pad batch of token ids to a sublane multiple (extra rows use token 0)
  src_p = jnp.zeros((Bp, T_src), source.dtype).at[:B, :].set(source)
  tok0_p = jnp.zeros((Bp,), target.dtype).at[:B].set(target[:, 0])

  # non-recurrent work hoisted out of the sequential loops
  emb_src = jnp.take(enc["emb"], src_p, axis=0)           # (Bp, T_src, H)
  emb_src = jnp.transpose(emb_src, (1, 0, 2))             # (T_src, Bp, H)
  xg0 = jnp.einsum("tbh,hg->tbg", emb_src, enc["wih0_t"]) + enc["b0"]
  x0g = jnp.take(dec["emb_proj"], tok0_p, axis=0)         # (Bp, G) f32

  args = (xg0.astype(jnp.float32),
          enc["whh"], enc["wih"], enc["b"],
          dec["whh"], dec["wih"], dec["b"],
          dec["emb_proj"].astype(jnp.bfloat16),
          dec["fc_w_t"], dec["fc_b"], x0g)

  out_padded = pl.pallas_call(
      _seq2seq_kernel,
      grid=(1,),
      in_specs=[_full_spec(a.shape) for a in args],
      out_specs=_full_spec((T_tgt, Bp, Op)),
      out_shape=jax.ShapeDtypeStruct((T_tgt, Bp, Op), jnp.float32),
      compiler_params=pltpu.CompilerParams(
          dimension_semantics=("arbitrary",),
          vmem_limit_bytes=16 * 1024 * 1024),
  )(*args)

  # (T_tgt, Bp, Op) -> (B, T_tgt, output_size), crop the padding
  return jnp.transpose(out_padded, (1, 0, 2))[:B, :, :output_size]


# ----------------------------------------------------------------------------
if __name__ == "__main__":
  INPUT_SIZE = 16     # source vocab
  OUTPUT_SIZE = 12    # target vocab
  HIDDEN = 32
  NUM_LAYERS = 2
  BATCH = 2
  SRC_LEN = 8
  TGT_LEN = 8

  root = jax.random.PRNGKey(0)
  k_param, k_src, k_tgt = jax.random.split(root, 3)
  params = init_params(k_param, INPUT_SIZE, OUTPUT_SIZE, HIDDEN, NUM_LAYERS)

  source = jax.random.randint(k_src, (BATCH, SRC_LEN), 0, INPUT_SIZE,
                              dtype=jnp.int32)
  target = jax.random.randint(k_tgt, (BATCH, TGT_LEN), 0, OUTPUT_SIZE,
                              dtype=jnp.int32)

  out = seq2seq_forward(params, source, target, output_size=OUTPUT_SIZE)
  jax.block_until_ready(out)
  assert out.shape == (BATCH, TGT_LEN, OUTPUT_SIZE)
  assert bool(jnp.all(jnp.isfinite(out)))
  print("KERNEL_OK")
</pallas_src>

<mosaic_0001>
module attributes {stable_mosaic.version = 11 : i64} {
  func.func @_seq2seq_kernel(%arg0: i32, %arg1: memref<8x8x512xf32, #tpu.memory_space<vmem>>, %arg2: memref<2x32x512xbf16, #tpu.memory_space<vmem>>, %arg3: memref<1x32x512xbf16, #tpu.memory_space<vmem>>, %arg4: memref<1x1x512xf32, #tpu.memory_space<vmem>>, %arg5: memref<2x32x512xbf16, #tpu.memory_space<vmem>>, %arg6: memref<1x32x512xbf16, #tpu.memory_space<vmem>>, %arg7: memref<1x1x512xf32, #tpu.memory_space<vmem>>, %arg8: memref<128x512xbf16, #tpu.memory_space<vmem>>, %arg9: memref<32x128xbf16, #tpu.memory_space<vmem>>, %arg10: memref<1x128xf32, #tpu.memory_space<vmem>>, %arg11: memref<8x512xf32, #tpu.memory_space<vmem>>, %arg12: memref<8x8x128xf32, #tpu.memory_space<vmem>>) attributes {dimension_semantics = [#tpu.dimension_semantics<arbitrary>], iteration_bounds = array<i64: 1>, scalar_prefetch = 0 : i64, scratch_operands = 0 : i64, tpu.core_type = #tpu.core_type<tc>, window_params = [{pipeline_mode = #tpu.pipeline_mode<synchronous>, transform_indices = @transform_0, window_bounds = array<i64: 8, 8, 512>}, {pipeline_mode = #tpu.pipeline_mode<synchronous>, transform_indices = @transform_1, window_bounds = array<i64: 2, 32, 512>}, {pipeline_mode = #tpu.pipeline_mode<synchronous>, transform_indices = @transform_2, window_bounds = array<i64: 1, 32, 512>}, {pipeline_mode = #tpu.pipeline_mode<synchronous>, transform_indices = @transform_3, window_bounds = array<i64: 1, 1, 512>}, {pipeline_mode = #tpu.pipeline_mode<synchronous>, transform_indices = @transform_4, window_bounds = array<i64: 2, 32, 512>}, {pipeline_mode = #tpu.pipeline_mode<synchronous>, transform_indices = @transform_5, window_bounds = array<i64: 1, 32, 512>}, {pipeline_mode = #tpu.pipeline_mode<synchronous>, transform_indices = @transform_6, window_bounds = array<i64: 1, 1, 512>}, {pipeline_mode = #tpu.pipeline_mode<synchronous>, transform_indices = @transform_7, window_bounds = array<i64: 128, 512>}, {pipeline_mode = #tpu.pipeline_mode<synchronous>, transform_indices = @transform_8, window_bounds = array<i64: 32, 128>}, {pipeline_mode = #tpu.pipeline_mode<synchronous>, transform_indices = @transform_9, window_bounds = array<i64: 1, 128>}, {pipeline_mode = #tpu.pipeline_mode<synchronous>, transform_indices = @transform_10, window_bounds = array<i64: 8, 512>}, {pipeline_mode = #tpu.pipeline_mode<synchronous>, transform_indices = @transform_11, window_bounds = array<i64: 8, 8, 128>}]} {
    %cst = arith.constant 0.000000e+00 : f32
    %0 = vector.broadcast %cst : f32 to vector<8x32xf32>
    %cst_0 = arith.constant 0.000000e+00 : f32
    %1 = vector.broadcast %cst_0 : f32 to vector<8x32xf32>
    %cst_1 = arith.constant 0.000000e+00 : f32
    %2 = vector.broadcast %cst_1 : f32 to vector<8x128xf32>
    %cst_2 = arith.constant 0.000000e+00 : f32
    %3 = vector.broadcast %cst_2 : f32 to vector<8x128xf32>
    %c0_i32 = arith.constant 0 : i32
    %4 = arith.index_cast %c0_i32 : i32 to index
    %c0 = arith.constant 0 : index
    %c0_3 = arith.constant 0 : index
    %5 = vector.load %arg1[%4, %c0, %c0_3] : memref<8x8x512xf32, #tpu.memory_space<vmem>>, vector<1x8x512xf32>
    %6 = vector.shape_cast %5 : vector<1x8x512xf32> to vector<8x512xf32>
    %7 = arith.truncf %0 : vector<8x32xf32> to vector<8x32xbf16>
    %c0_4 = arith.constant 0 : index
    %c0_5 = arith.constant 0 : index
    %c0_6 = arith.constant 0 : index
    %8 = vector.load %arg2[%c0_4, %c0_5, %c0_6] : memref<2x32x512xbf16, #tpu.memory_space<vmem>>, vector<1x32x512xbf16>
    %9 = vector.shape_cast %8 : vector<1x32x512xbf16> to vector<32x512xbf16>
    %cst_7 = arith.constant dense<0.000000e+00> : vector<8x512xf32>
    %10 = tpu.matmul %7, %9, %cst_7 {dimension_numbers = #tpu.dot_dimension_numbers<[1], [0], [0], [1], [0, 0, 1, 1], [], []>} : vector<8x32xbf16>, vector<32x512xbf16>, vector<8x512xf32> -> vector<8x512xf32>
    %11 = arith.addf %6, %10 : vector<8x512xf32>
    %12 = vector.extract_strided_slice %11 {offsets = [0, 0], sizes = [8, 128], strides = [1, 1]} : vector<8x512xf32> to vector<8x128xf32>
    %13 = arith.negf %12 : vector<8x128xf32>
    %14 = math.exp %13 : vector<8x128xf32>
    %cst_8 = arith.constant 1.000000e+00 : f32
    %15 = vector.broadcast %cst_8 : f32 to vector<8x128xf32>
    %16 = arith.addf %15, %14 : vector<8x128xf32>
    %17 = arith.divf %15, %16 : vector<8x128xf32>
    %18 = vector.extract_strided_slice %11 {offsets = [0, 128], sizes = [8, 128], strides = [1, 1]} : vector<8x512xf32> to vector<8x128xf32>
    %19 = arith.negf %18 : vector<8x128xf32>
    %20 = math.exp %19 : vector<8x128xf32>
    %cst_9 = arith.constant 1.000000e+00 : f32
    %21 = vector.broadcast %cst_9 : f32 to vector<8x128xf32>
    %22 = arith.addf %21, %20 : vector<8x128xf32>
    %23 = arith.divf %21, %22 : vector<8x128xf32>
    %24 = vector.extract_strided_slice %11 {offsets = [0, 256], sizes = [8, 128], strides = [1, 1]} : vector<8x512xf32> to vector<8x128xf32>
    %25 = math.tanh %24 : vector<8x128xf32>
    %26 = vector.extract_strided_slice %11 {offsets = [0, 384], sizes = [8, 128], strides = [1, 1]} : vector<8x512xf32> to vector<8x128xf32>
    %27 = arith.negf %26 : vector<8x128xf32>
    %28 = math.exp %27 : vector<8x128xf32>
    %cst_10 = arith.constant 1.000000e+00 : f32
    %29 = vector.broadcast %cst_10 : f32 to vector<8x128xf32>
    %30 = arith.addf %29, %28 : vector<8x128xf32>
    %31 = arith.divf %29, %30 : vector<8x128xf32>
    %32 = arith.mulf %23, %2 : vector<8x128xf32>
    %33 = arith.mulf %17, %25 : vector<8x128xf32>
    %34 = arith.addf %32, %33 : vector<8x128xf32>
    %35 = math.tanh %34 : vector<8x128xf32>
    %36 = arith.mulf %31, %35 : vector<8x128xf32>
    %37 = vector.extract_strided_slice %36 {offsets = [0, 0], sizes = [8, 32], strides = [1, 1]} : vector<8x128xf32> to vector<8x32xf32>
    %38 = arith.truncf %37 : vector<8x32xf32> to vector<8x32xbf16>
    %c0_11 = arith.constant 0 : index
    %c0_12 = arith.constant 0 : index
    %c0_13 = arith.constant 0 : index
    %39 = vector.load %arg3[%c0_11, %c0_12, %c0_13] : memref<1x32x512xbf16, #tpu.memory_space<vmem>>, vector<1x32x512xbf16>
    %40 = vector.shape_cast %39 : vector<1x32x512xbf16> to vector<32x512xbf16>
    %cst_14 = arith.constant dense<0.000000e+00> : vector<8x512xf32>
    %41 = tpu.matmul %38, %40, %cst_14 {dimension_numbers = #tpu.dot_dimension_numbers<[1], [0], [0], [1], [0, 0, 1, 1], [], []>} : vector<8x32xbf16>, vector<32x512xbf16>, vector<8x512xf32> -> vector<8x512xf32>
    %42 = arith.truncf %1 : vector<8x32xf32> to vector<8x32xbf16>
    %c1 = arith.constant 1 : index
    %c0_15 = arith.constant 0 : index
    %c0_16 = arith.constant 0 : index
    %43 = vector.load %arg2[%c1, %c0_15, %c0_16] : memref<2x32x512xbf16, #tpu.memory_space<vmem>>, vector<1x32x512xbf16>
    %44 = vector.shape_cast %43 : vector<1x32x512xbf16> to vector<32x512xbf16>
    %cst_17 = arith.constant dense<0.000000e+00> : vector<8x512xf32>
    %45 = tpu.matmul %42, %44, %cst_17 {dimension_numbers = #tpu.dot_dimension_numbers<[1], [0], [0], [1], [0, 0, 1, 1], [], []>} : vector<8x32xbf16>, vector<32x512xbf16>, vector<8x512xf32> -> vector<8x512xf32>
    %46 = arith.addf %41, %45 : vector<8x512xf32>
    %c0_18 = arith.constant 0 : index
    %c0_19 = arith.constant 0 : index
    %c0_20 = arith.constant 0 : index
    %47 = vector.load %arg4[%c0_18, %c0_19, %c0_20] : memref<1x1x512xf32, #tpu.memory_space<vmem>>, vector<1x1x512xf32>
    %48 = vector.shape_cast %47 : vector<1x1x512xf32> to vector<1x512xf32>
    %49 = vector.broadcast %48 : vector<1x512xf32> to vector<8x512xf32>
    %50 = arith.addf %46, %49 : vector<8x512xf32>
    %51 = vector.extract_strided_slice %50 {offsets = [0, 0], sizes = [8, 128], strides = [1, 1]} : vector<8x512xf32> to vector<8x128xf32>
    %52 = arith.negf %51 : vector<8x128xf32>
    %53 = math.exp %52 : vector<8x128xf32>
    %cst_21 = arith.constant 1.000000e+00 : f32
    %54 = vector.broadcast %cst_21 : f32 to vector<8x128xf32>
    %55 = arith.addf %54, %53 : vector<8x128xf32>
    %56 = arith.divf %54, %55 : vector<8x128xf32>
    %57 = vector.extract_strided_slice %50 {offsets = [0, 128], sizes = [8, 128], strides = [1, 1]} : vector<8x512xf32> to vector<8x128xf32>
    %58 = arith.negf %57 : vector<8x128xf32>
    %59 = math.exp %58 : vector<8x128xf32>
    %cst_22 = arith.constant 1.000000e+00 : f32
    %60 = vector.broadcast %cst_22 : f32 to vector<8x128xf32>
    %61 = arith.addf %60, %59 : vector<8x128xf32>
    %62 = arith.divf %60, %61 : vector<8x128xf32>
    %63 = vector.extract_strided_slice %50 {offsets = [0, 256], sizes = [8, 128], strides = [1, 1]} : vector<8x512xf32> to vector<8x128xf32>
    %64 = math.tanh %63 : vector<8x128xf32>
    %65 = vector.extract_strided_slice %50 {offsets = [0, 384], sizes = [8, 128], strides = [1, 1]} : vector<8x512xf32> to vector<8x128xf32>
    %66 = arith.negf %65 : vector<8x128xf32>
    %67 = math.exp %66 : vector<8x128xf32>
    %cst_23 = arith.constant 1.000000e+00 : f32
    %68 = vector.broadcast %cst_23 : f32 to vector<8x128xf32>
    %69 = arith.addf %68, %67 : vector<8x128xf32>
    %70 = arith.divf %68, %69 : vector<8x128xf32>
    %71 = arith.mulf %62, %3 : vector<8x128xf32>
    %72 = arith.mulf %56, %64 : vector<8x128xf32>
    %73 = arith.addf %71, %72 : vector<8x128xf32>
    %74 = math.tanh %73 : vector<8x128xf32>
    %75 = arith.mulf %70, %74 : vector<8x128xf32>
    %76 = vector.extract_strided_slice %75 {offsets = [0, 0], sizes = [8, 32], strides = [1, 1]} : vector<8x128xf32> to vector<8x32xf32>
    %c1_i32 = arith.constant 1 : i32
    %77 = arith.index_cast %c1_i32 : i32 to index
    %c0_24 = arith.constant 0 : index
    %c0_25 = arith.constant 0 : index
    %78 = vector.load %arg1[%77, %c0_24, %c0_25] : memref<8x8x512xf32, #tpu.memory_space<vmem>>, vector<1x8x512xf32>
    %79 = vector.shape_cast %78 : vector<1x8x512xf32> to vector<8x512xf32>
    %80 = arith.truncf %37 : vector<8x32xf32> to vector<8x32xbf16>
    %c0_26 = arith.constant 0 : index
    %c0_27 = arith.constant 0 : index
    %c0_28 = arith.constant 0 : index
    %81 = vector.load %arg2[%c0_26, %c0_27, %c0_28] : memref<2x32x512xbf16, #tpu.memory_space<vmem>>, vector<1x32x512xbf16>
    %82 = vector.shape_cast %81 : vector<1x32x512xbf16> to vector<32x512xbf16>
    %cst_29 = arith.constant dense<0.000000e+00> : vector<8x512xf32>
    %83 = tpu.matmul %80, %82, %cst_29 {dimension_numbers = #tpu.dot_dimension_numbers<[1], [0], [0], [1], [0, 0, 1, 1], [], []>} : vector<8x32xbf16>, vector<32x512xbf16>, vector<8x512xf32> -> vector<8x512xf32>
    %84 = arith.addf %79, %83 : vector<8x512xf32>
    %85 = vector.extract_strided_slice %84 {offsets = [0, 0], sizes = [8, 128], strides = [1, 1]} : vector<8x512xf32> to vector<8x128xf32>
    %86 = arith.negf %85 : vector<8x128xf32>
    %87 = math.exp %86 : vector<8x128xf32>
    %cst_30 = arith.constant 1.000000e+00 : f32
    %88 = vector.broadcast %cst_30 : f32 to vector<8x128xf32>
    %89 = arith.addf %88, %87 : vector<8x128xf32>
    %90 = arith.divf %88, %89 : vector<8x128xf32>
    %91 = vector.extract_strided_slice %84 {offsets = [0, 128], sizes = [8, 128], strides = [1, 1]} : vector<8x512xf32> to vector<8x128xf32>
    %92 = arith.negf %91 : vector<8x128xf32>
    %93 = math.exp %92 : vector<8x128xf32>
    %cst_31 = arith.constant 1.000000e+00 : f32
    %94 = vector.broadcast %cst_31 : f32 to vector<8x128xf32>
    %95 = arith.addf %94, %93 : vector<8x128xf32>
    %96 = arith.divf %94, %95 : vector<8x128xf32>
    %97 = vector.extract_strided_slice %84 {offsets = [0, 256], sizes = [8, 128], strides = [1, 1]} : vector<8x512xf32> to vector<8x128xf32>
    %98 = math.tanh %97 : vector<8x128xf32>
    %99 = vector.extract_strided_slice %84 {offsets = [0, 384], sizes = [8, 128], strides = [1, 1]} : vector<8x512xf32> to vector<8x128xf32>
    %100 = arith.negf %99 : vector<8x128xf32>
    %101 = math.exp %100 : vector<8x128xf32>
    %cst_32 = arith.constant 1.000000e+00 : f32
    %102 = vector.broadcast %cst_32 : f32 to vector<8x128xf32>
    %103 = arith.addf %102, %101 : vector<8x128xf32>
    %104 = arith.divf %102, %103 : vector<8x128xf32>
    %105 = arith.mulf %96, %34 : vector<8x128xf32>
    %106 = arith.mulf %90, %98 : vector<8x128xf32>
    %107 = arith.addf %105, %106 : vector<8x128xf32>
    %108 = math.tanh %107 : vector<8x128xf32>
    %109 = arith.mulf %104, %108 : vector<8x128xf32>
    %110 = vector.extract_strided_slice %109 {offsets = [0, 0], sizes = [8, 32], strides = [1, 1]} : vector<8x128xf32> to vector<8x32xf32>
    %111 = arith.truncf %110 : vector<8x32xf32> to vector<8x32xbf16>
    %c0_33 = arith.constant 0 : index
    %c0_34 = arith.constant 0 : index
    %c0_35 = arith.constant 0 : index
    %112 = vector.load %arg3[%c0_33, %c0_34, %c0_35] : memref<1x32x512xbf16, #tpu.memory_space<vmem>>, vector<1x32x512xbf16>
    %113 = vector.shape_cast %112 : vector<1x32x512xbf16> to vector<32x512xbf16>
    %cst_36 = arith.constant dense<0.000000e+00> : vector<8x512xf32>
    %114 = tpu.matmul %111, %113, %cst_36 {dimension_numbers = #tpu.dot_dimension_numbers<[1], [0], [0], [1], [0, 0, 1, 1], [], []>} : vector<8x32xbf16>, vector<32x512xbf16>, vector<8x512xf32> -> vector<8x512xf32>
    %115 = arith.truncf %76 : vector<8x32xf32> to vector<8x32xbf16>
    %c1_37 = arith.constant 1 : index
    %c0_38 = arith.constant 0 : index
    %c0_39 = arith.constant 0 : index
    %116 = vector.load %arg2[%c1_37, %c0_38, %c0_39] : memref<2x32x512xbf16, #tpu.memory_space<vmem>>, vector<1x32x512xbf16>
    %117 = vector.shape_cast %116 : vector<1x32x512xbf16> to vector<32x512xbf16>
    %cst_40 = arith.constant dense<0.000000e+00> : vector<8x512xf32>
    %118 = tpu.matmul %115, %117, %cst_40 {dimension_numbers = #tpu.dot_dimension_numbers<[1], [0], [0], [1], [0, 0, 1, 1], [], []>} : vector<8x32xbf16>, vector<32x512xbf16>, vector<8x512xf32> -> vector<8x512xf32>
    %119 = arith.addf %114, %118 : vector<8x512xf32>
    %c0_41 = arith.constant 0 : index
    %c0_42 = arith.constant 0 : index
    %c0_43 = arith.constant 0 : index
    %120 = vector.load %arg4[%c0_41, %c0_42, %c0_43] : memref<1x1x512xf32, #tpu.memory_space<vmem>>, vector<1x1x512xf32>
    %121 = vector.shape_cast %120 : vector<1x1x512xf32> to vector<1x512xf32>
    %122 = vector.broadcast %121 : vector<1x512xf32> to vector<8x512xf32>
    %123 = arith.addf %119, %122 : vector<8x512xf32>
    %124 = vector.extract_strided_slice %123 {offsets = [0, 0], sizes = [8, 128], strides = [1, 1]} : vector<8x512xf32> to vector<8x128xf32>
    %125 = arith.negf %124 : vector<8x128xf32>
    %126 = math.exp %125 : vector<8x128xf32>
    %cst_44 = arith.constant 1.000000e+00 : f32
    %127 = vector.broadcast %cst_44 : f32 to vector<8x128xf32>
    %128 = arith.addf %127, %126 : vector<8x128xf32>
    %129 = arith.divf %127, %128 : vector<8x128xf32>
    %130 = vector.extract_strided_slice %123 {offsets = [0, 128], sizes = [8, 128], strides = [1, 1]} : vector<8x512xf32> to vector<8x128xf32>
    %131 = arith.negf %130 : vector<8x128xf32>
    %132 = math.exp %131 : vector<8x128xf32>
    %cst_45 = arith.constant 1.000000e+00 : f32
    %133 = vector.broadcast %cst_45 : f32 to vector<8x128xf32>
    %134 = arith.addf %133, %132 : vector<8x128xf32>
    %135 = arith.divf %133, %134 : vector<8x128xf32>
    %136 = vector.extract_strided_slice %123 {offsets = [0, 256], sizes = [8, 128], strides = [1, 1]} : vector<8x512xf32> to vector<8x128xf32>
    %137 = math.tanh %136 : vector<8x128xf32>
    %138 = vector.extract_strided_slice %123 {offsets = [0, 384], sizes = [8, 128], strides = [1, 1]} : vector<8x512xf32> to vector<8x128xf32>
    %139 = arith.negf %138 : vector<8x128xf32>
    %140 = math.exp %139 : vector<8x128xf32>
    %cst_46 = arith.constant 1.000000e+00 : f32
    %141 = vector.broadcast %cst_46 : f32 to vector<8x128xf32>
    %142 = arith.addf %141, %140 : vector<8x128xf32>
    %143 = arith.divf %141, %142 : vector<8x128xf32>
    %144 = arith.mulf %135, %73 : vector<8x128xf32>
    %145 = arith.mulf %129, %137 : vector<8x128xf32>
    %146 = arith.addf %144, %145 : vector<8x128xf32>
    %147 = math.tanh %146 : vector<8x128xf32>
    %148 = arith.mulf %143, %147 : vector<8x128xf32>
    %149 = vector.extract_strided_slice %148 {offsets = [0, 0], sizes = [8, 32], strides = [1, 1]} : vector<8x128xf32> to vector<8x32xf32>
    %c2_i32 = arith.constant 2 : i32
    %150 = arith.index_cast %c2_i32 : i32 to index
    %c0_47 = arith.constant 0 : index
    %c0_48 = arith.constant 0 : index
    %151 = vector.load %arg1[%150, %c0_47, %c0_48] : memref<8x8x512xf32, #tpu.memory_space<vmem>>, vector<1x8x512xf32>
    %152 = vector.shape_cast %151 : vector<1x8x512xf32> to vector<8x512xf32>
    %153 = arith.truncf %110 : vector<8x32xf32> to vector<8x32xbf16>
    %c0_49 = arith.constant 0 : index
    %c0_50 = arith.constant 0 : index
    %c0_51 = arith.constant 0 : index
    %154 = vector.load %arg2[%c0_49, %c0_50, %c0_51] : memref<2x32x512xbf16, #tpu.memory_space<vmem>>, vector<1x32x512xbf16>
    %155 = vector.shape_cast %154 : vector<1x32x512xbf16> to vector<32x512xbf16>
    %cst_52 = arith.constant dense<0.000000e+00> : vector<8x512xf32>
    %156 = tpu.matmul %153, %155, %cst_52 {dimension_numbers = #tpu.dot_dimension_numbers<[1], [0], [0], [1], [0, 0, 1, 1], [], []>} : vector<8x32xbf16>, vector<32x512xbf16>, vector<8x512xf32> -> vector<8x512xf32>
    %157 = arith.addf %152, %156 : vector<8x512xf32>
    %158 = vector.extract_strided_slice %157 {offsets = [0, 0], sizes = [8, 128], strides = [1, 1]} : vector<8x512xf32> to vector<8x128xf32>
    %159 = arith.negf %158 : vector<8x128xf32>
    %160 = math.exp %159 : vector<8x128xf32>
    %cst_53 = arith.constant 1.000000e+00 : f32
    %161 = vector.broadcast %cst_53 : f32 to vector<8x128xf32>
    %162 = arith.addf %161, %160 : vector<8x128xf32>
    %163 = arith.divf %161, %162 : vector<8x128xf32>
    %164 = vector.extract_strided_slice %157 {offsets = [0, 128], sizes = [8, 128], strides = [1, 1]} : vector<8x512xf32> to vector<8x128xf32>
    %165 = arith.negf %164 : vector<8x128xf32>
    %166 = math.exp %165 : vector<8x128xf32>
    %cst_54 = arith.constant 1.000000e+00 : f32
    %167 = vector.broadcast %cst_54 : f32 to vector<8x128xf32>
    %168 = arith.addf %167, %166 : vector<8x128xf32>
    %169 = arith.divf %167, %168 : vector<8x128xf32>
    %170 = vector.extract_strided_slice %157 {offsets = [0, 256], sizes = [8, 128], strides = [1, 1]} : vector<8x512xf32> to vector<8x128xf32>
    %171 = math.tanh %170 : vector<8x128xf32>
    %172 = vector.extract_strided_slice %157 {offsets = [0, 384], sizes = [8, 128], strides = [1, 1]} : vector<8x512xf32> to vector<8x128xf32>
    %173 = arith.negf %172 : vector<8x128xf32>
    %174 = math.exp %173 : vector<8x128xf32>
    %cst_55 = arith.constant 1.000000e+00 : f32
    %175 = vector.broadcast %cst_55 : f32 to vector<8x128xf32>
    %176 = arith.addf %175, %174 : vector<8x128xf32>
    %177 = arith.divf %175, %176 : vector<8x128xf32>
    %178 = arith.mulf %169, %107 : vector<8x128xf32>
    %179 = arith.mulf %163, %171 : vector<8x128xf32>
    %180 = arith.addf %178, %179 : vector<8x128xf32>
    %181 = math.tanh %180 : vector<8x128xf32>
    %182 = arith.mulf %177, %181 : vector<8x128xf32>
    %183 = vector.extract_strided_slice %182 {offsets = [0, 0], sizes = [8, 32], strides = [1, 1]} : vector<8x128xf32> to vector<8x32xf32>
    %184 = arith.truncf %183 : vector<8x32xf32> to vector<8x32xbf16>
    %c0_56 = arith.constant 0 : index
    %c0_57 = arith.constant 0 : index
    %c0_58 = arith.constant 0 : index
    %185 = vector.load %arg3[%c0_56, %c0_57, %c0_58] : memref<1x32x512xbf16, #tpu.memory_space<vmem>>, vector<1x32x512xbf16>
    %186 = vector.shape_cast %185 : vector<1x32x512xbf16> to vector<32x512xbf16>
    %cst_59 = arith.constant dense<0.000000e+00> : vector<8x512xf32>
    %187 = tpu.matmul %184, %186, %cst_59 {dimension_numbers = #tpu.dot_dimension_numbers<[1], [0], [0], [1], [0, 0, 1, 1], [], []>} : vector<8x32xbf16>, vector<32x512xbf16>, vector<8x512xf32> -> vector<8x512xf32>
    %188 = arith.truncf %149 : vector<8x32xf32> to vector<8x32xbf16>
    %c1_60 = arith.constant 1 : index
    %c0_61 = arith.constant 0 : index
    %c0_62 = arith.constant 0 : index
    %189 = vector.load %arg2[%c1_60, %c0_61, %c0_62] : memref<2x32x512xbf16, #tpu.memory_space<vmem>>, vector<1x32x512xbf16>
    %190 = vector.shape_cast %189 : vector<1x32x512xbf16> to vector<32x512xbf16>
    %cst_63 = arith.constant dense<0.000000e+00> : vector<8x512xf32>
    %191 = tpu.matmul %188, %190, %cst_63 {dimension_numbers = #tpu.dot_dimension_numbers<[1], [0], [0], [1], [0, 0, 1, 1], [], []>} : vector<8x32xbf16>, vector<32x512xbf16>, vector<8x512xf32> -> vector<8x512xf32>
    %192 = arith.addf %187, %191 : vector<8x512xf32>
    %c0_64 = arith.constant 0 : index
    %c0_65 = arith.constant 0 : index
    %c0_66 = arith.constant 0 : index
    %193 = vector.load %arg4[%c0_64, %c0_65, %c0_66] : memref<1x1x512xf32, #tpu.memory_space<vmem>>, vector<1x1x512xf32>
    %194 = vector.shape_cast %193 : vector<1x1x512xf32> to vector<1x512xf32>
    %195 = vector.broadcast %194 : vector<1x512xf32> to vector<8x512xf32>
    %196 = arith.addf %192, %195 : vector<8x512xf32>
    %197 = vector.extract_strided_slice %196 {offsets = [0, 0], sizes = [8, 128], strides = [1, 1]} : vector<8x512xf32> to vector<8x128xf32>
    %198 = arith.negf %197 : vector<8x128xf32>
    %199 = math.exp %198 : vector<8x128xf32>
    %cst_67 = arith.constant 1.000000e+00 : f32
    %200 = vector.broadcast %cst_67 : f32 to vector<8x128xf32>
    %201 = arith.addf %200, %199 : vector<8x128xf32>
    %202 = arith.divf %200, %201 : vector<8x128xf32>
    %203 = vector.extract_strided_slice %196 {offsets = [0, 128], sizes = [8, 128], strides = [1, 1]} : vector<8x512xf32> to vector<8x128xf32>
    %204 = arith.negf %203 : vector<8x128xf32>
    %205 = math.exp %204 : vector<8x128xf32>
    %cst_68 = arith.constant 1.000000e+00 : f32
    %206 = vector.broadcast %cst_68 : f32 to vector<8x128xf32>
    %207 = arith.addf %206, %205 : vector<8x128xf32>
    %208 = arith.divf %206, %207 : vector<8x128xf32>
    %209 = vector.extract_strided_slice %196 {offsets = [0, 256], sizes = [8, 128], strides = [1, 1]} : vector<8x512xf32> to vector<8x128xf32>
    %210 = math.tanh %209 : vector<8x128xf32>
    %211 = vector.extract_strided_slice %196 {offsets = [0, 384], sizes = [8, 128], strides = [1, 1]} : vector<8x512xf32> to vector<8x128xf32>
    %212 = arith.negf %211 : vector<8x128xf32>
    %213 = math.exp %212 : vector<8x128xf32>
    %cst_69 = arith.constant 1.000000e+00 : f32
    %214 = vector.broadcast %cst_69 : f32 to vector<8x128xf32>
    %215 = arith.addf %214, %213 : vector<8x128xf32>
    %216 = arith.divf %214, %215 : vector<8x128xf32>
    %217 = arith.mulf %208, %146 : vector<8x128xf32>
    %218 = arith.mulf %202, %210 : vector<8x128xf32>
    %219 = arith.addf %217, %218 : vector<8x128xf32>
    %220 = math.tanh %219 : vector<8x128xf32>
    %221 = arith.mulf %216, %220 : vector<8x128xf32>
    %222 = vector.extract_strided_slice %221 {offsets = [0, 0], sizes = [8, 32], strides = [1, 1]} : vector<8x128xf32> to vector<8x32xf32>
    %c3_i32 = arith.constant 3 : i32
    %223 = arith.index_cast %c3_i32 : i32 to index
    %c0_70 = arith.constant 0 : index
    %c0_71 = arith.constant 0 : index
    %224 = vector.load %arg1[%223, %c0_70, %c0_71] : memref<8x8x512xf32, #tpu.memory_space<vmem>>, vector<1x8x512xf32>
    %225 = vector.shape_cast %224 : vector<1x8x512xf32> to vector<8x512xf32>
    %226 = arith.truncf %183 : vector<8x32xf32> to vector<8x32xbf16>
    %c0_72 = arith.constant 0 : index
    %c0_73 = arith.constant 0 : index
    %c0_74 = arith.constant 0 : index
    %227 = vector.load %arg2[%c0_72, %c0_73, %c0_74] : memref<2x32x512xbf16, #tpu.memory_space<vmem>>, vector<1x32x512xbf16>
    %228 = vector.shape_cast %227 : vector<1x32x512xbf16> to vector<32x512xbf16>
    %cst_75 = arith.constant dense<0.000000e+00> : vector<8x512xf32>
    %229 = tpu.matmul %226, %228, %cst_75 {dimension_numbers = #tpu.dot_dimension_numbers<[1], [0], [0], [1], [0, 0, 1, 1], [], []>} : vector<8x32xbf16>, vector<32x512xbf16>, vector<8x512xf32> -> vector<8x512xf32>
    %230 = arith.addf %225, %229 : vector<8x512xf32>
    %231 = vector.extract_strided_slice %230 {offsets = [0, 0], sizes = [8, 128], strides = [1, 1]} : vector<8x512xf32> to vector<8x128xf32>
    %232 = arith.negf %231 : vector<8x128xf32>
    %233 = math.exp %232 : vector<8x128xf32>
    %cst_76 = arith.constant 1.000000e+00 : f32
    %234 = vector.broadcast %cst_76 : f32 to vector<8x128xf32>
    %235 = arith.addf %234, %233 : vector<8x128xf32>
    %236 = arith.divf %234, %235 : vector<8x128xf32>
    %237 = vector.extract_strided_slice %230 {offsets = [0, 128], sizes = [8, 128], strides = [1, 1]} : vector<8x512xf32> to vector<8x128xf32>
    %238 = arith.negf %237 : vector<8x128xf32>
    %239 = math.exp %238 : vector<8x128xf32>
    %cst_77 = arith.constant 1.000000e+00 : f32
    %240 = vector.broadcast %cst_77 : f32 to vector<8x128xf32>
    %241 = arith.addf %240, %239 : vector<8x128xf32>
    %242 = arith.divf %240, %241 : vector<8x128xf32>
    %243 = vector.extract_strided_slice %230 {offsets = [0, 256], sizes = [8, 128], strides = [1, 1]} : vector<8x512xf32> to vector<8x128xf32>
    %244 = math.tanh %243 : vector<8x128xf32>
    %245 = vector.extract_strided_slice %230 {offsets = [0, 384], sizes = [8, 128], strides = [1, 1]} : vector<8x512xf32> to vector<8x128xf32>
    %246 = arith.negf %245 : vector<8x128xf32>
    %247 = math.exp %246 : vector<8x128xf32>
    %cst_78 = arith.constant 1.000000e+00 : f32
    %248 = vector.broadcast %cst_78 : f32 to vector<8x128xf32>
    %249 = arith.addf %248, %247 : vector<8x128xf32>
    %250 = arith.divf %248, %249 : vector<8x128xf32>
    %251 = arith.mulf %242, %180 : vector<8x128xf32>
    %252 = arith.mulf %236, %244 : vector<8x128xf32>
    %253 = arith.addf %251, %252 : vector<8x128xf32>
    %254 = math.tanh %253 : vector<8x128xf32>
    %255 = arith.mulf %250, %254 : vector<8x128xf32>
    %256 = vector.extract_strided_slice %255 {offsets = [0, 0], sizes = [8, 32], strides = [1, 1]} : vector<8x128xf32> to vector<8x32xf32>
    %257 = arith.truncf %256 : vector<8x32xf32> to vector<8x32xbf16>
    %c0_79 = arith.constant 0 : index
    %c0_80 = arith.constant 0 : index
    %c0_81 = arith.constant 0 : index
    %258 = vector.load %arg3[%c0_79, %c0_80, %c0_81] : memref<1x32x512xbf16, #tpu.memory_space<vmem>>, vector<1x32x512xbf16>
    %259 = vector.shape_cast %258 : vector<1x32x512xbf16> to vector<32x512xbf16>
    %cst_82 = arith.constant dense<0.000000e+00> : vector<8x512xf32>
    %260 = tpu.matmul %257, %259, %cst_82 {dimension_numbers = #tpu.dot_dimension_numbers<[1], [0], [0], [1], [0, 0, 1, 1], [], []>} : vector<8x32xbf16>, vector<32x512xbf16>, vector<8x512xf32> -> vector<8x512xf32>
    %261 = arith.truncf %222 : vector<8x32xf32> to vector<8x32xbf16>
    %c1_83 = arith.constant 1 : index
    %c0_84 = arith.constant 0 : index
    %c0_85 = arith.constant 0 : index
    %262 = vector.load %arg2[%c1_83, %c0_84, %c0_85] : memref<2x32x512xbf16, #tpu.memory_space<vmem>>, vector<1x32x512xbf16>
    %263 = vector.shape_cast %262 : vector<1x32x512xbf16> to vector<32x512xbf16>
    %cst_86 = arith.constant dense<0.000000e+00> : vector<8x512xf32>
    %264 = tpu.matmul %261, %263, %cst_86 {dimension_numbers = #tpu.dot_dimension_numbers<[1], [0], [0], [1], [0, 0, 1, 1], [], []>} : vector<8x32xbf16>, vector<32x512xbf16>, vector<8x512xf32> -> vector<8x512xf32>
    %265 = arith.addf %260, %264 : vector<8x512xf32>
    %c0_87 = arith.constant 0 : index
    %c0_88 = arith.constant 0 : index
    %c0_89 = arith.constant 0 : index
    %266 = vector.load %arg4[%c0_87, %c0_88, %c0_89] : memref<1x1x512xf32, #tpu.memory_space<vmem>>, vector<1x1x512xf32>
    %267 = vector.shape_cast %266 : vector<1x1x512xf32> to vector<1x512xf32>
    %268 = vector.broadcast %267 : vector<1x512xf32> to vector<8x512xf32>
    %269 = arith.addf %265, %268 : vector<8x512xf32>
    %270 = vector.extract_strided_slice %269 {offsets = [0, 0], sizes = [8, 128], strides = [1, 1]} : vector<8x512xf32> to vector<8x128xf32>
    %271 = arith.negf %270 : vector<8x128xf32>
    %272 = math.exp %271 : vector<8x128xf32>
    %cst_90 = arith.constant 1.000000e+00 : f32
    %273 = vector.broadcast %cst_90 : f32 to vector<8x128xf32>
    %274 = arith.addf %273, %272 : vector<8x128xf32>
    %275 = arith.divf %273, %274 : vector<8x128xf32>
    %276 = vector.extract_strided_slice %269 {offsets = [0, 128], sizes = [8, 128], strides = [1, 1]} : vector<8x512xf32> to vector<8x128xf32>
    %277 = arith.negf %276 : vector<8x128xf32>
    %278 = math.exp %277 : vector<8x128xf32>
    %cst_91 = arith.constant 1.000000e+00 : f32
    %279 = vector.broadcast %cst_91 : f32 to vector<8x128xf32>
    %280 = arith.addf %279, %278 : vector<8x128xf32>
    %281 = arith.divf %279, %280 : vector<8x128xf32>
    %282 = vector.extract_strided_slice %269 {offsets = [0, 256], sizes = [8, 128], strides = [1, 1]} : vector<8x512xf32> to vector<8x128xf32>
    %283 = math.tanh %282 : vector<8x128xf32>
    %284 = vector.extract_strided_slice %269 {offsets = [0, 384], sizes = [8, 128], strides = [1, 1]} : vector<8x512xf32> to vector<8x128xf32>
    %285 = arith.negf %284 : vector<8x128xf32>
    %286 = math.exp %285 : vector<8x128xf32>
    %cst_92 = arith.constant 1.000000e+00 : f32
    %287 = vector.broadcast %cst_92 : f32 to vector<8x128xf32>
    %288 = arith.addf %287, %286 : vector<8x128xf32>
    %289 = arith.divf %287, %288 : vector<8x128xf32>
    %290 = arith.mulf %281, %219 : vector<8x128xf32>
    %291 = arith.mulf %275, %283 : vector<8x128xf32>
    %292 = arith.addf %290, %291 : vector<8x128xf32>
    %293 = math.tanh %292 : vector<8x128xf32>
    %294 = arith.mulf %289, %293 : vector<8x128xf32>
    %295 = vector.extract_strided_slice %294 {offsets = [0, 0], sizes = [8, 32], strides = [1, 1]} : vector<8x128xf32> to vector<8x32xf32>
    %c4_i32 = arith.constant 4 : i32
    %296 = arith.index_cast %c4_i32 : i32 to index
    %c0_93 = arith.constant 0 : index
    %c0_94 = arith.constant 0 : index
    %297 = vector.load %arg1[%296, %c0_93, %c0_94] : memref<8x8x512xf32, #tpu.memory_space<vmem>>, vector<1x8x512xf32>
    %298 = vector.shape_cast %297 : vector<1x8x512xf32> to vector<8x512xf32>
    %299 = arith.truncf %256 : vector<8x32xf32> to vector<8x32xbf16>
    %c0_95 = arith.constant 0 : index
    %c0_96 = arith.constant 0 : index
    %c0_97 = arith.constant 0 : index
    %300 = vector.load %arg2[%c0_95, %c0_96, %c0_97] : memref<2x32x512xbf16, #tpu.memory_space<vmem>>, vector<1x32x512xbf16>
    %301 = vector.shape_cast %300 : vector<1x32x512xbf16> to vector<32x512xbf16>
    %cst_98 = arith.constant dense<0.000000e+00> : vector<8x512xf32>
    %302 = tpu.matmul %299, %301, %cst_98 {dimension_numbers = #tpu.dot_dimension_numbers<[1], [0], [0], [1], [0, 0, 1, 1], [], []>} : vector<8x32xbf16>, vector<32x512xbf16>, vector<8x512xf32> -> vector<8x512xf32>
    %303 = arith.addf %298, %302 : vector<8x512xf32>
    %304 = vector.extract_strided_slice %303 {offsets = [0, 0], sizes = [8, 128], strides = [1, 1]} : vector<8x512xf32> to vector<8x128xf32>
    %305 = arith.negf %304 : vector<8x128xf32>
    %306 = math.exp %305 : vector<8x128xf32>
    %cst_99 = arith.constant 1.000000e+00 : f32
    %307 = vector.broadcast %cst_99 : f32 to vector<8x128xf32>
    %308 = arith.addf %307, %306 : vector<8x128xf32>
    %309 = arith.divf %307, %308 : vector<8x128xf32>
    %310 = vector.extract_strided_slice %303 {offsets = [0, 128], sizes = [8, 128], strides = [1, 1]} : vector<8x512xf32> to vector<8x128xf32>
    %311 = arith.negf %310 : vector<8x128xf32>
    %312 = math.exp %311 : vector<8x128xf32>
    %cst_100 = arith.constant 1.000000e+00 : f32
    %313 = vector.broadcast %cst_100 : f32 to vector<8x128xf32>
    %314 = arith.addf %313, %312 : vector<8x128xf32>
    %315 = arith.divf %313, %314 : vector<8x128xf32>
    %316 = vector.extract_strided_slice %303 {offsets = [0, 256], sizes = [8, 128], strides = [1, 1]} : vector<8x512xf32> to vector<8x128xf32>
    %317 = math.tanh %316 : vector<8x128xf32>
    %318 = vector.extract_strided_slice %303 {offsets = [0, 384], sizes = [8, 128], strides = [1, 1]} : vector<8x512xf32> to vector<8x128xf32>
    %319 = arith.negf %318 : vector<8x128xf32>
    %320 = math.exp %319 : vector<8x128xf32>
    %cst_101 = arith.constant 1.000000e+00 : f32
    %321 = vector.broadcast %cst_101 : f32 to vector<8x128xf32>
    %322 = arith.addf %321, %320 : vector<8x128xf32>
    %323 = arith.divf %321, %322 : vector<8x128xf32>
    %324 = arith.mulf %315, %253 : vector<8x128xf32>
    %325 = arith.mulf %309, %317 : vector<8x128xf32>
    %326 = arith.addf %324, %325 : vector<8x128xf32>
    %327 = math.tanh %326 : vector<8x128xf32>
    %328 = arith.mulf %323, %327 : vector<8x128xf32>
    %329 = vector.extract_strided_slice %328 {offsets = [0, 0], sizes = [8, 32], strides = [1, 1]} : vector<8x128xf32> to vector<8x32xf32>
    %330 = arith.truncf %329 : vector<8x32xf32> to vector<8x32xbf16>
    %c0_102 = arith.constant 0 : index
    %c0_103 = arith.constant 0 : index
    %c0_104 = arith.constant 0 : index
    %331 = vector.load %arg3[%c0_102, %c0_103, %c0_104] : memref<1x32x512xbf16, #tpu.memory_space<vmem>>, vector<1x32x512xbf16>
    %332 = vector.shape_cast %331 : vector<1x32x512xbf16> to vector<32x512xbf16>
    %cst_105 = arith.constant dense<0.000000e+00> : vector<8x512xf32>
    %333 = tpu.matmul %330, %332, %cst_105 {dimension_numbers = #tpu.dot_dimension_numbers<[1], [0], [0], [1], [0, 0, 1, 1], [], []>} : vector<8x32xbf16>, vector<32x512xbf16>, vector<8x512xf32> -> vector<8x512xf32>
    %334 = arith.truncf %295 : vector<8x32xf32> to vector<8x32xbf16>
    %c1_106 = arith.constant 1 : index
    %c0_107 = arith.constant 0 : index
    %c0_108 = arith.constant 0 : index
    %335 = vector.load %arg2[%c1_106, %c0_107, %c0_108] : memref<2x32x512xbf16, #tpu.memory_space<vmem>>, vector<1x32x512xbf16>
    %336 = vector.shape_cast %335 : vector<1x32x512xbf16> to vector<32x512xbf16>
    %cst_109 = arith.constant dense<0.000000e+00> : vector<8x512xf32>
    %337 = tpu.matmul %334, %336, %cst_109 {dimension_numbers = #tpu.dot_dimension_numbers<[1], [0], [0], [1], [0, 0, 1, 1], [], []>} : vector<8x32xbf16>, vector<32x512xbf16>, vector<8x512xf32> -> vector<8x512xf32>
    %338 = arith.addf %333, %337 : vector<8x512xf32>
    %c0_110 = arith.constant 0 : index
    %c0_111 = arith.constant 0 : index
    %c0_112 = arith.constant 0 : index
    %339 = vector.load %arg4[%c0_110, %c0_111, %c0_112] : memref<1x1x512xf32, #tpu.memory_space<vmem>>, vector<1x1x512xf32>
    %340 = vector.shape_cast %339 : vector<1x1x512xf32> to vector<1x512xf32>
    %341 = vector.broadcast %340 : vector<1x512xf32> to vector<8x512xf32>
    %342 = arith.addf %338, %341 : vector<8x512xf32>
    %343 = vector.extract_strided_slice %342 {offsets = [0, 0], sizes = [8, 128], strides = [1, 1]} : vector<8x512xf32> to vector<8x128xf32>
    %344 = arith.negf %343 : vector<8x128xf32>
    %345 = math.exp %344 : vector<8x128xf32>
    %cst_113 = arith.constant 1.000000e+00 : f32
    %346 = vector.broadcast %cst_113 : f32 to vector<8x128xf32>
    %347 = arith.addf %346, %345 : vector<8x128xf32>
    %348 = arith.divf %346, %347 : vector<8x128xf32>
    %349 = vector.extract_strided_slice %342 {offsets = [0, 128], sizes = [8, 128], strides = [1, 1]} : vector<8x512xf32> to vector<8x128xf32>
    %350 = arith.negf %349 : vector<8x128xf32>
    %351 = math.exp %350 : vector<8x128xf32>
    %cst_114 = arith.constant 1.000000e+00 : f32
    %352 = vector.broadcast %cst_114 : f32 to vector<8x128xf32>
    %353 = arith.addf %352, %351 : vector<8x128xf32>
    %354 = arith.divf %352, %353 : vector<8x128xf32>
    %355 = vector.extract_strided_slice %342 {offsets = [0, 256], sizes = [8, 128], strides = [1, 1]} : vector<8x512xf32> to vector<8x128xf32>
    %356 = math.tanh %355 : vector<8x128xf32>
    %357 = vector.extract_strided_slice %342 {offsets = [0, 384], sizes = [8, 128], strides = [1, 1]} : vector<8x512xf32> to vector<8x128xf32>
    %358 = arith.negf %357 : vector<8x128xf32>
    %359 = math.exp %358 : vector<8x128xf32>
    %cst_115 = arith.constant 1.000000e+00 : f32
    %360 = vector.broadcast %cst_115 : f32 to vector<8x128xf32>
    %361 = arith.addf %360, %359 : vector<8x128xf32>
    %362 = arith.divf %360, %361 : vector<8x128xf32>
    %363 = arith.mulf %354, %292 : vector<8x128xf32>
    %364 = arith.mulf %348, %356 : vector<8x128xf32>
    %365 = arith.addf %363, %364 : vector<8x128xf32>
    %366 = math.tanh %365 : vector<8x128xf32>
    %367 = arith.mulf %362, %366 : vector<8x128xf32>
    %368 = vector.extract_strided_slice %367 {offsets = [0, 0], sizes = [8, 32], strides = [1, 1]} : vector<8x128xf32> to vector<8x32xf32>
    %c5_i32 = arith.constant 5 : i32
    %369 = arith.index_cast %c5_i32 : i32 to index
    %c0_116 = arith.constant 0 : index
    %c0_117 = arith.constant 0 : index
    %370 = vector.load %arg1[%369, %c0_116, %c0_117] : memref<8x8x512xf32, #tpu.memory_space<vmem>>, vector<1x8x512xf32>
    %371 = vector.shape_cast %370 : vector<1x8x512xf32> to vector<8x512xf32>
    %372 = arith.truncf %329 : vector<8x32xf32> to vector<8x32xbf16>
    %c0_118 = arith.constant 0 : index
    %c0_119 = arith.constant 0 : index
    %c0_120 = arith.constant 0 : index
    %373 = vector.load %arg2[%c0_118, %c0_119, %c0_120] : memref<2x32x512xbf16, #tpu.memory_space<vmem>>, vector<1x32x512xbf16>
    %374 = vector.shape_cast %373 : vector<1x32x512xbf16> to vector<32x512xbf16>
    %cst_121 = arith.constant dense<0.000000e+00> : vector<8x512xf32>
    %375 = tpu.matmul %372, %374, %cst_121 {dimension_numbers = #tpu.dot_dimension_numbers<[1], [0], [0], [1], [0, 0, 1, 1], [], []>} : vector<8x32xbf16>, vector<32x512xbf16>, vector<8x512xf32> -> vector<8x512xf32>
    %376 = arith.addf %371, %375 : vector<8x512xf32>
    %377 = vector.extract_strided_slice %376 {offsets = [0, 0], sizes = [8, 128], strides = [1, 1]} : vector<8x512xf32> to vector<8x128xf32>
    %378 = arith.negf %377 : vector<8x128xf32>
    %379 = math.exp %378 : vector<8x128xf32>
    %cst_122 = arith.constant 1.000000e+00 : f32
    %380 = vector.broadcast %cst_122 : f32 to vector<8x128xf32>
    %381 = arith.addf %380, %379 : vector<8x128xf32>
    %382 = arith.divf %380, %381 : vector<8x128xf32>
    %383 = vector.extract_strided_slice %376 {offsets = [0, 128], sizes = [8, 128], strides = [1, 1]} : vector<8x512xf32> to vector<8x128xf32>
    %384 = arith.negf %383 : vector<8x128xf32>
    %385 = math.exp %384 : vector<8x128xf32>
    %cst_123 = arith.constant 1.000000e+00 : f32
    %386 = vector.broadcast %cst_123 : f32 to vector<8x128xf32>
    %387 = arith.addf %386, %385 : vector<8x128xf32>
    %388 = arith.divf %386, %387 : vector<8x128xf32>
    %389 = vector.extract_strided_slice %376 {offsets = [0, 256], sizes = [8, 128], strides = [1, 1]} : vector<8x512xf32> to vector<8x128xf32>
    %390 = math.tanh %389 : vector<8x128xf32>
    %391 = vector.extract_strided_slice %376 {offsets = [0, 384], sizes = [8, 128], strides = [1, 1]} : vector<8x512xf32> to vector<8x128xf32>
    %392 = arith.negf %391 : vector<8x128xf32>
    %393 = math.exp %392 : vector<8x128xf32>
    %cst_124 = arith.constant 1.000000e+00 : f32
    %394 = vector.broadcast %cst_124 : f32 to vector<8x128xf32>
    %395 = arith.addf %394, %393 : vector<8x128xf32>
    %396 = arith.divf %394, %395 : vector<8x128xf32>
    %397 = arith.mulf %388, %326 : vector<8x128xf32>
    %398 = arith.mulf %382, %390 : vector<8x128xf32>
    %399 = arith.addf %397, %398 : vector<8x128xf32>
    %400 = math.tanh %399 : vector<8x128xf32>
    %401 = arith.mulf %396, %400 : vector<8x128xf32>
    %402 = vector.extract_strided_slice %401 {offsets = [0, 0], sizes = [8, 32], strides = [1, 1]} : vector<8x128xf32> to vector<8x32xf32>
    %403 = arith.truncf %402 : vector<8x32xf32> to vector<8x32xbf16>
    %c0_125 = arith.constant 0 : index
    %c0_126 = arith.constant 0 : index
    %c0_127 = arith.constant 0 : index
    %404 = vector.load %arg3[%c0_125, %c0_126, %c0_127] : memref<1x32x512xbf16, #tpu.memory_space<vmem>>, vector<1x32x512xbf16>
    %405 = vector.shape_cast %404 : vector<1x32x512xbf16> to vector<32x512xbf16>
    %cst_128 = arith.constant dense<0.000000e+00> : vector<8x512xf32>
    %406 = tpu.matmul %403, %405, %cst_128 {dimension_numbers = #tpu.dot_dimension_numbers<[1], [0], [0], [1], [0, 0, 1, 1], [], []>} : vector<8x32xbf16>, vector<32x512xbf16>, vector<8x512xf32> -> vector<8x512xf32>
    %407 = arith.truncf %368 : vector<8x32xf32> to vector<8x32xbf16>
    %c1_129 = arith.constant 1 : index
    %c0_130 = arith.constant 0 : index
    %c0_131 = arith.constant 0 : index
    %408 = vector.load %arg2[%c1_129, %c0_130, %c0_131] : memref<2x32x512xbf16, #tpu.memory_space<vmem>>, vector<1x32x512xbf16>
    %409 = vector.shape_cast %408 : vector<1x32x512xbf16> to vector<32x512xbf16>
    %cst_132 = arith.constant dense<0.000000e+00> : vector<8x512xf32>
    %410 = tpu.matmul %407, %409, %cst_132 {dimension_numbers = #tpu.dot_dimension_numbers<[1], [0], [0], [1], [0, 0, 1, 1], [], []>} : vector<8x32xbf16>, vector<32x512xbf16>, vector<8x512xf32> -> vector<8x512xf32>
    %411 = arith.addf %406, %410 : vector<8x512xf32>
    %c0_133 = arith.constant 0 : index
    %c0_134 = arith.constant 0 : index
    %c0_135 = arith.constant 0 : index
    %412 = vector.load %arg4[%c0_133, %c0_134, %c0_135] : memref<1x1x512xf32, #tpu.memory_space<vmem>>, vector<1x1x512xf32>
    %413 = vector.shape_cast %412 : vector<1x1x512xf32> to vector<1x512xf32>
    %414 = vector.broadcast %413 : vector<1x512xf32> to vector<8x512xf32>
    %415 = arith.addf %411, %414 : vector<8x512xf32>
    %416 = vector.extract_strided_slice %415 {offsets = [0, 0], sizes = [8, 128], strides = [1, 1]} : vector<8x512xf32> to vector<8x128xf32>
    %417 = arith.negf %416 : vector<8x128xf32>
    %418 = math.exp %417 : vector<8x128xf32>
    %cst_136 = arith.constant 1.000000e+00 : f32
    %419 = vector.broadcast %cst_136 : f32 to vector<8x128xf32>
    %420 = arith.addf %419, %418 : vector<8x128xf32>
    %421 = arith.divf %419, %420 : vector<8x128xf32>
    %422 = vector.extract_strided_slice %415 {offsets = [0, 128], sizes = [8, 128], strides = [1, 1]} : vector<8x512xf32> to vector<8x128xf32>
    %423 = arith.negf %422 : vector<8x128xf32>
    %424 = math.exp %423 : vector<8x128xf32>
    %cst_137 = arith.constant 1.000000e+00 : f32
    %425 = vector.broadcast %cst_137 : f32 to vector<8x128xf32>
    %426 = arith.addf %425, %424 : vector<8x128xf32>
    %427 = arith.divf %425, %426 : vector<8x128xf32>
    %428 = vector.extract_strided_slice %415 {offsets = [0, 256], sizes = [8, 128], strides = [1, 1]} : vector<8x512xf32> to vector<8x128xf32>
    %429 = math.tanh %428 : vector<8x128xf32>
    %430 = vector.extract_strided_slice %415 {offsets = [0, 384], sizes = [8, 128], strides = [1, 1]} : vector<8x512xf32> to vector<8x128xf32>
    %431 = arith.negf %430 : vector<8x128xf32>
    %432 = math.exp %431 : vector<8x128xf32>
    %cst_138 = arith.constant 1.000000e+00 : f32
    %433 = vector.broadcast %cst_138 : f32 to vector<8x128xf32>
    %434 = arith.addf %433, %432 : vector<8x128xf32>
    %435 = arith.divf %433, %434 : vector<8x128xf32>
    %436 = arith.mulf %427, %365 : vector<8x128xf32>
    %437 = arith.mulf %421, %429 : vector<8x128xf32>
    %438 = arith.addf %436, %437 : vector<8x128xf32>
    %439 = math.tanh %438 : vector<8x128xf32>
    %440 = arith.mulf %435, %439 : vector<8x128xf32>
    %441 = vector.extract_strided_slice %440 {offsets = [0, 0], sizes = [8, 32], strides = [1, 1]} : vector<8x128xf32> to vector<8x32xf32>
    %c6_i32 = arith.constant 6 : i32
    %442 = arith.index_cast %c6_i32 : i32 to index
    %c0_139 = arith.constant 0 : index
    %c0_140 = arith.constant 0 : index
    %443 = vector.load %arg1[%442, %c0_139, %c0_140] : memref<8x8x512xf32, #tpu.memory_space<vmem>>, vector<1x8x512xf32>
    %444 = vector.shape_cast %443 : vector<1x8x512xf32> to vector<8x512xf32>
    %445 = arith.truncf %402 : vector<8x32xf32> to vector<8x32xbf16>
    %c0_141 = arith.constant 0 : index
    %c0_142 = arith.constant 0 : index
    %c0_143 = arith.constant 0 : index
    %446 = vector.load %arg2[%c0_141, %c0_142, %c0_143] : memref<2x32x512xbf16, #tpu.memory_space<vmem>>, vector<1x32x512xbf16>
    %447 = vector.shape_cast %446 : vector<1x32x512xbf16> to vector<32x512xbf16>
    %cst_144 = arith.constant dense<0.000000e+00> : vector<8x512xf32>
    %448 = tpu.matmul %445, %447, %cst_144 {dimension_numbers = #tpu.dot_dimension_numbers<[1], [0], [0], [1], [0, 0, 1, 1], [], []>} : vector<8x32xbf16>, vector<32x512xbf16>, vector<8x512xf32> -> vector<8x512xf32>
    %449 = arith.addf %444, %448 : vector<8x512xf32>
    %450 = vector.extract_strided_slice %449 {offsets = [0, 0], sizes = [8, 128], strides = [1, 1]} : vector<8x512xf32> to vector<8x128xf32>
    %451 = arith.negf %450 : vector<8x128xf32>
    %452 = math.exp %451 : vector<8x128xf32>
    %cst_145 = arith.constant 1.000000e+00 : f32
    %453 = vector.broadcast %cst_145 : f32 to vector<8x128xf32>
    %454 = arith.addf %453, %452 : vector<8x128xf32>
    %455 = arith.divf %453, %454 : vector<8x128xf32>
    %456 = vector.extract_strided_slice %449 {offsets = [0, 128], sizes = [8, 128], strides = [1, 1]} : vector<8x512xf32> to vector<8x128xf32>
    %457 = arith.negf %456 : vector<8x128xf32>
    %458 = math.exp %457 : vector<8x128xf32>
    %cst_146 = arith.constant 1.000000e+00 : f32
    %459 = vector.broadcast %cst_146 : f32 to vector<8x128xf32>
    %460 = arith.addf %459, %458 : vector<8x128xf32>
    %461 = arith.divf %459, %460 : vector<8x128xf32>
    %462 = vector.extract_strided_slice %449 {offsets = [0, 256], sizes = [8, 128], strides = [1, 1]} : vector<8x512xf32> to vector<8x128xf32>
    %463 = math.tanh %462 : vector<8x128xf32>
    %464 = vector.extract_strided_slice %449 {offsets = [0, 384], sizes = [8, 128], strides = [1, 1]} : vector<8x512xf32> to vector<8x128xf32>
    %465 = arith.negf %464 : vector<8x128xf32>
    %466 = math.exp %465 : vector<8x128xf32>
    %cst_147 = arith.constant 1.000000e+00 : f32
    %467 = vector.broadcast %cst_147 : f32 to vector<8x128xf32>
    %468 = arith.addf %467, %466 : vector<8x128xf32>
    %469 = arith.divf %467, %468 : vector<8x128xf32>
    %470 = arith.mulf %461, %399 : vector<8x128xf32>
    %471 = arith.mulf %455, %463 : vector<8x128xf32>
    %472 = arith.addf %470, %471 : vector<8x128xf32>
    %473 = math.tanh %472 : vector<8x128xf32>
    %474 = arith.mulf %469, %473 : vector<8x128xf32>
    %475 = vector.extract_strided_slice %474 {offsets = [0, 0], sizes = [8, 32], strides = [1, 1]} : vector<8x128xf32> to vector<8x32xf32>
    %476 = arith.truncf %475 : vector<8x32xf32> to vector<8x32xbf16>
    %c0_148 = arith.constant 0 : index
    %c0_149 = arith.constant 0 : index
    %c0_150 = arith.constant 0 : index
    %477 = vector.load %arg3[%c0_148, %c0_149, %c0_150] : memref<1x32x512xbf16, #tpu.memory_space<vmem>>, vector<1x32x512xbf16>
    %478 = vector.shape_cast %477 : vector<1x32x512xbf16> to vector<32x512xbf16>
    %cst_151 = arith.constant dense<0.000000e+00> : vector<8x512xf32>
    %479 = tpu.matmul %476, %478, %cst_151 {dimension_numbers = #tpu.dot_dimension_numbers<[1], [0], [0], [1], [0, 0, 1, 1], [], []>} : vector<8x32xbf16>, vector<32x512xbf16>, vector<8x512xf32> -> vector<8x512xf32>
    %480 = arith.truncf %441 : vector<8x32xf32> to vector<8x32xbf16>
    %c1_152 = arith.constant 1 : index
    %c0_153 = arith.constant 0 : index
    %c0_154 = arith.constant 0 : index
    %481 = vector.load %arg2[%c1_152, %c0_153, %c0_154] : memref<2x32x512xbf16, #tpu.memory_space<vmem>>, vector<1x32x512xbf16>
    %482 = vector.shape_cast %481 : vector<1x32x512xbf16> to vector<32x512xbf16>
    %cst_155 = arith.constant dense<0.000000e+00> : vector<8x512xf32>
    %483 = tpu.matmul %480, %482, %cst_155 {dimension_numbers = #tpu.dot_dimension_numbers<[1], [0], [0], [1], [0, 0, 1, 1], [], []>} : vector<8x32xbf16>, vector<32x512xbf16>, vector<8x512xf32> -> vector<8x512xf32>
    %484 = arith.addf %479, %483 : vector<8x512xf32>
    %c0_156 = arith.constant 0 : index
    %c0_157 = arith.constant 0 : index
    %c0_158 = arith.constant 0 : index
    %485 = vector.load %arg4[%c0_156, %c0_157, %c0_158] : memref<1x1x512xf32, #tpu.memory_space<vmem>>, vector<1x1x512xf32>
    %486 = vector.shape_cast %485 : vector<1x1x512xf32> to vector<1x512xf32>
    %487 = vector.broadcast %486 : vector<1x512xf32> to vector<8x512xf32>
    %488 = arith.addf %484, %487 : vector<8x512xf32>
    %489 = vector.extract_strided_slice %488 {offsets = [0, 0], sizes = [8, 128], strides = [1, 1]} : vector<8x512xf32> to vector<8x128xf32>
    %490 = arith.negf %489 : vector<8x128xf32>
    %491 = math.exp %490 : vector<8x128xf32>
    %cst_159 = arith.constant 1.000000e+00 : f32
    %492 = vector.broadcast %cst_159 : f32 to vector<8x128xf32>
    %493 = arith.addf %492, %491 : vector<8x128xf32>
    %494 = arith.divf %492, %493 : vector<8x128xf32>
    %495 = vector.extract_strided_slice %488 {offsets = [0, 128], sizes = [8, 128], strides = [1, 1]} : vector<8x512xf32> to vector<8x128xf32>
    %496 = arith.negf %495 : vector<8x128xf32>
    %497 = math.exp %496 : vector<8x128xf32>
    %cst_160 = arith.constant 1.000000e+00 : f32
    %498 = vector.broadcast %cst_160 : f32 to vector<8x128xf32>
    %499 = arith.addf %498, %497 : vector<8x128xf32>
    %500 = arith.divf %498, %499 : vector<8x128xf32>
    %501 = vector.extract_strided_slice %488 {offsets = [0, 256], sizes = [8, 128], strides = [1, 1]} : vector<8x512xf32> to vector<8x128xf32>
    %502 = math.tanh %501 : vector<8x128xf32>
    %503 = vector.extract_strided_slice %488 {offsets = [0, 384], sizes = [8, 128], strides = [1, 1]} : vector<8x512xf32> to vector<8x128xf32>
    %504 = arith.negf %503 : vector<8x128xf32>
    %505 = math.exp %504 : vector<8x128xf32>
    %cst_161 = arith.constant 1.000000e+00 : f32
    %506 = vector.broadcast %cst_161 : f32 to vector<8x128xf32>
    %507 = arith.addf %506, %505 : vector<8x128xf32>
    %508 = arith.divf %506, %507 : vector<8x128xf32>
    %509 = arith.mulf %500, %438 : vector<8x128xf32>
    %510 = arith.mulf %494, %502 : vector<8x128xf32>
    %511 = arith.addf %509, %510 : vector<8x128xf32>
    %512 = math.tanh %511 : vector<8x128xf32>
    %513 = arith.mulf %508, %512 : vector<8x128xf32>
    %514 = vector.extract_strided_slice %513 {offsets = [0, 0], sizes = [8, 32], strides = [1, 1]} : vector<8x128xf32> to vector<8x32xf32>
    %c7_i32 = arith.constant 7 : i32
    %515 = arith.index_cast %c7_i32 : i32 to index
    %c0_162 = arith.constant 0 : index
    %c0_163 = arith.constant 0 : index
    %516 = vector.load %arg1[%515, %c0_162, %c0_163] : memref<8x8x512xf32, #tpu.memory_space<vmem>>, vector<1x8x512xf32>
    %517 = vector.shape_cast %516 : vector<1x8x512xf32> to vector<8x512xf32>
    %518 = arith.truncf %475 : vector<8x32xf32> to vector<8x32xbf16>
    %c0_164 = arith.constant 0 : index
    %c0_165 = arith.constant 0 : index
    %c0_166 = arith.constant 0 : index
    %519 = vector.load %arg2[%c0_164, %c0_165, %c0_166] : memref<2x32x512xbf16, #tpu.memory_space<vmem>>, vector<1x32x512xbf16>
    %520 = vector.shape_cast %519 : vector<1x32x512xbf16> to vector<32x512xbf16>
    %cst_167 = arith.constant dense<0.000000e+00> : vector<8x512xf32>
    %521 = tpu.matmul %518, %520, %cst_167 {dimension_numbers = #tpu.dot_dimension_numbers<[1], [0], [0], [1], [0, 0, 1, 1], [], []>} : vector<8x32xbf16>, vector<32x512xbf16>, vector<8x512xf32> -> vector<8x512xf32>
    %522 = arith.addf %517, %521 : vector<8x512xf32>
    %523 = vector.extract_strided_slice %522 {offsets = [0, 0], sizes = [8, 128], strides = [1, 1]} : vector<8x512xf32> to vector<8x128xf32>
    %524 = arith.negf %523 : vector<8x128xf32>
    %525 = math.exp %524 : vector<8x128xf32>
    %cst_168 = arith.constant 1.000000e+00 : f32
    %526 = vector.broadcast %cst_168 : f32 to vector<8x128xf32>
    %527 = arith.addf %526, %525 : vector<8x128xf32>
    %528 = arith.divf %526, %527 : vector<8x128xf32>
    %529 = vector.extract_strided_slice %522 {offsets = [0, 128], sizes = [8, 128], strides = [1, 1]} : vector<8x512xf32> to vector<8x128xf32>
    %530 = arith.negf %529 : vector<8x128xf32>
    %531 = math.exp %530 : vector<8x128xf32>
    %cst_169 = arith.constant 1.000000e+00 : f32
    %532 = vector.broadcast %cst_169 : f32 to vector<8x128xf32>
    %533 = arith.addf %532, %531 : vector<8x128xf32>
    %534 = arith.divf %532, %533 : vector<8x128xf32>
    %535 = vector.extract_strided_slice %522 {offsets = [0, 256], sizes = [8, 128], strides = [1, 1]} : vector<8x512xf32> to vector<8x128xf32>
    %536 = math.tanh %535 : vector<8x128xf32>
    %537 = vector.extract_strided_slice %522 {offsets = [0, 384], sizes = [8, 128], strides = [1, 1]} : vector<8x512xf32> to vector<8x128xf32>
    %538 = arith.negf %537 : vector<8x128xf32>
    %539 = math.exp %538 : vector<8x128xf32>
    %cst_170 = arith.constant 1.000000e+00 : f32
    %540 = vector.broadcast %cst_170 : f32 to vector<8x128xf32>
    %541 = arith.addf %540, %539 : vector<8x128xf32>
    %542 = arith.divf %540, %541 : vector<8x128xf32>
    %543 = arith.mulf %534, %472 : vector<8x128xf32>
    %544 = arith.mulf %528, %536 : vector<8x128xf32>
    %545 = arith.addf %543, %544 : vector<8x128xf32>
    %546 = math.tanh %545 : vector<8x128xf32>
    %547 = arith.mulf %542, %546 : vector<8x128xf32>
    %548 = vector.extract_strided_slice %547 {offsets = [0, 0], sizes = [8, 32], strides = [1, 1]} : vector<8x128xf32> to vector<8x32xf32>
    %549 = arith.truncf %548 : vector<8x32xf32> to vector<8x32xbf16>
    %c0_171 = arith.constant 0 : index
    %c0_172 = arith.constant 0 : index
    %c0_173 = arith.constant 0 : index
    %550 = vector.load %arg3[%c0_171, %c0_172, %c0_173] : memref<1x32x512xbf16, #tpu.memory_space<vmem>>, vector<1x32x512xbf16>
    %551 = vector.shape_cast %550 : vector<1x32x512xbf16> to vector<32x512xbf16>
    %cst_174 = arith.constant dense<0.000000e+00> : vector<8x512xf32>
    %552 = tpu.matmul %549, %551, %cst_174 {dimension_numbers = #tpu.dot_dimension_numbers<[1], [0], [0], [1], [0, 0, 1, 1], [], []>} : vector<8x32xbf16>, vector<32x512xbf16>, vector<8x512xf32> -> vector<8x512xf32>
    %553 = arith.truncf %514 : vector<8x32xf32> to vector<8x32xbf16>
    %c1_175 = arith.constant 1 : index
    %c0_176 = arith.constant 0 : index
    %c0_177 = arith.constant 0 : index
    %554 = vector.load %arg2[%c1_175, %c0_176, %c0_177] : memref<2x32x512xbf16, #tpu.memory_space<vmem>>, vector<1x32x512xbf16>
    %555 = vector.shape_cast %554 : vector<1x32x512xbf16> to vector<32x512xbf16>
    %cst_178 = arith.constant dense<0.000000e+00> : vector<8x512xf32>
    %556 = tpu.matmul %553, %555, %cst_178 {dimension_numbers = #tpu.dot_dimension_numbers<[1], [0], [0], [1], [0, 0, 1, 1], [], []>} : vector<8x32xbf16>, vector<32x512xbf16>, vector<8x512xf32> -> vector<8x512xf32>
    %557 = arith.addf %552, %556 : vector<8x512xf32>
    %c0_179 = arith.constant 0 : index
    %c0_180 = arith.constant 0 : index
    %c0_181 = arith.constant 0 : index
    %558 = vector.load %arg4[%c0_179, %c0_180, %c0_181] : memref<1x1x512xf32, #tpu.memory_space<vmem>>, vector<1x1x512xf32>
    %559 = vector.shape_cast %558 : vector<1x1x512xf32> to vector<1x512xf32>
    %560 = vector.broadcast %559 : vector<1x512xf32> to vector<8x512xf32>
    %561 = arith.addf %557, %560 : vector<8x512xf32>
    %562 = vector.extract_strided_slice %561 {offsets = [0, 0], sizes = [8, 128], strides = [1, 1]} : vector<8x512xf32> to vector<8x128xf32>
    %563 = arith.negf %562 : vector<8x128xf32>
    %564 = math.exp %563 : vector<8x128xf32>
    %cst_182 = arith.constant 1.000000e+00 : f32
    %565 = vector.broadcast %cst_182 : f32 to vector<8x128xf32>
    %566 = arith.addf %565, %564 : vector<8x128xf32>
    %567 = arith.divf %565, %566 : vector<8x128xf32>
    %568 = vector.extract_strided_slice %561 {offsets = [0, 128], sizes = [8, 128], strides = [1, 1]} : vector<8x512xf32> to vector<8x128xf32>
    %569 = arith.negf %568 : vector<8x128xf32>
    %570 = math.exp %569 : vector<8x128xf32>
    %cst_183 = arith.constant 1.000000e+00 : f32
    %571 = vector.broadcast %cst_183 : f32 to vector<8x128xf32>
    %572 = arith.addf %571, %570 : vector<8x128xf32>
    %573 = arith.divf %571, %572 : vector<8x128xf32>
    %574 = vector.extract_strided_slice %561 {offsets = [0, 256], sizes = [8, 128], strides = [1, 1]} : vector<8x512xf32> to vector<8x128xf32>
    %575 = math.tanh %574 : vector<8x128xf32>
    %576 = vector.extract_strided_slice %561 {offsets = [0, 384], sizes = [8, 128], strides = [1, 1]} : vector<8x512xf32> to vector<8x128xf32>
    %577 = arith.negf %576 : vector<8x128xf32>
    %578 = math.exp %577 : vector<8x128xf32>
    %cst_184 = arith.constant 1.000000e+00 : f32
    %579 = vector.broadcast %cst_184 : f32 to vector<8x128xf32>
    %580 = arith.addf %579, %578 : vector<8x128xf32>
    %581 = arith.divf %579, %580 : vector<8x128xf32>
    %582 = arith.mulf %573, %511 : vector<8x128xf32>
    %583 = arith.mulf %567, %575 : vector<8x128xf32>
    %584 = arith.addf %582, %583 : vector<8x128xf32>
    %585 = math.tanh %584 : vector<8x128xf32>
    %586 = arith.mulf %581, %585 : vector<8x128xf32>
    %587 = vector.extract_strided_slice %586 {offsets = [0, 0], sizes = [8, 32], strides = [1, 1]} : vector<8x128xf32> to vector<8x32xf32>
    %c8_i32 = arith.constant 8 : i32
    %cst_185 = arith.constant 0.000000e+00 : f32
    %588 = vector.broadcast %cst_185 : f32 to vector<8x128xf32>
    %c0_186 = arith.constant 0 : index
    %c0_187 = arith.constant 0 : index
    %c0_188 = arith.constant 0 : index
    %589 = vector.load %arg12[%c0_186, %c0_187, %c0_188] : memref<8x8x128xf32, #tpu.memory_space<vmem>>, vector<1x8x128xf32>
    %590 = vector.shape_cast %589 : vector<1x8x128xf32> to vector<8x128xf32>
    %591 = vector.shape_cast %588 : vector<8x128xf32> to vector<1x8x128xf32>
    tpu.vector_store %arg12[%c0_186, %c0_187, %c0_188], %591 {strides = array<i32>} : memref<8x8x128xf32, #tpu.memory_space<vmem>>, vector<1x8x128xf32>,
    %592 = tpu.iota {dimensions = array<i32: 1>} : vector<8x128xi32>
    %593 = arith.sitofp %592 : vector<8x128xi32> to vector<8x128xf32>
    %c0_189 = arith.constant 0 : index
    %c0_190 = arith.constant 0 : index
    %594 = vector.load %arg11[%c0_189, %c0_190] : memref<8x512xf32, #tpu.memory_space<vmem>>, vector<8x512xf32>
    %c1_i32_191 = arith.constant 1 : i32
    %595 = arith.truncf %548 : vector<8x32xf32> to vector<8x32xbf16>
    %c0_192 = arith.constant 0 : index
    %c0_193 = arith.constant 0 : index
    %c0_194 = arith.constant 0 : index
    %596 = vector.load %arg5[%c0_192, %c0_193, %c0_194] : memref<2x32x512xbf16, #tpu.memory_space<vmem>>, vector<1x32x512xbf16>
    %597 = vector.shape_cast %596 : vector<1x32x512xbf16> to vector<32x512xbf16>
    %cst_195 = arith.constant dense<0.000000e+00> : vector<8x512xf32>
    %598 = tpu.matmul %595, %597, %cst_195 {dimension_numbers = #tpu.dot_dimension_numbers<[1], [0], [0], [1], [0, 0, 1, 1], [], []>} : vector<8x32xbf16>, vector<32x512xbf16>, vector<8x512xf32> -> vector<8x512xf32>
    %599 = arith.addf %594, %598 : vector<8x512xf32>
    %600 = vector.extract_strided_slice %599 {offsets = [0, 0], sizes = [8, 128], strides = [1, 1]} : vector<8x512xf32> to vector<8x128xf32>
    %601 = arith.negf %600 : vector<8x128xf32>
    %602 = math.exp %601 : vector<8x128xf32>
    %cst_196 = arith.constant 1.000000e+00 : f32
    %603 = vector.broadcast %cst_196 : f32 to vector<8x128xf32>
    %604 = arith.addf %603, %602 : vector<8x128xf32>
    %605 = arith.divf %603, %604 : vector<8x128xf32>
    %606 = vector.extract_strided_slice %599 {offsets = [0, 128], sizes = [8, 128], strides = [1, 1]} : vector<8x512xf32> to vector<8x128xf32>
    %607 = arith.negf %606 : vector<8x128xf32>
    %608 = math.exp %607 : vector<8x128xf32>
    %cst_197 = arith.constant 1.000000e+00 : f32
    %609 = vector.broadcast %cst_197 : f32 to vector<8x128xf32>
    %610 = arith.addf %609, %608 : vector<8x128xf32>
    %611 = arith.divf %609, %610 : vector<8x128xf32>
    %612 = vector.extract_strided_slice %599 {offsets = [0, 256], sizes = [8, 128], strides = [1, 1]} : vector<8x512xf32> to vector<8x128xf32>
    %613 = math.tanh %612 : vector<8x128xf32>
    %614 = vector.extract_strided_slice %599 {offsets = [0, 384], sizes = [8, 128], strides = [1, 1]} : vector<8x512xf32> to vector<8x128xf32>
    %615 = arith.negf %614 : vector<8x128xf32>
    %616 = math.exp %615 : vector<8x128xf32>
    %cst_198 = arith.constant 1.000000e+00 : f32
    %617 = vector.broadcast %cst_198 : f32 to vector<8x128xf32>
    %618 = arith.addf %617, %616 : vector<8x128xf32>
    %619 = arith.divf %617, %618 : vector<8x128xf32>
    %620 = arith.mulf %611, %545 : vector<8x128xf32>
    %621 = arith.mulf %605, %613 : vector<8x128xf32>
    %622 = arith.addf %620, %621 : vector<8x128xf32>
    %623 = math.tanh %622 : vector<8x128xf32>
    %624 = arith.mulf %619, %623 : vector<8x128xf32>
    %625 = vector.extract_strided_slice %624 {offsets = [0, 0], sizes = [8, 32], strides = [1, 1]} : vector<8x128xf32> to vector<8x32xf32>
    %626 = arith.truncf %625 : vector<8x32xf32> to vector<8x32xbf16>
    %c0_199 = arith.constant 0 : index
    %c0_200 = arith.constant 0 : index
    %c0_201 = arith.constant 0 : index
    %627 = vector.load %arg6[%c0_199, %c0_200, %c0_201] : memref<1x32x512xbf16, #tpu.memory_space<vmem>>, vector<1x32x512xbf16>
    %628 = vector.shape_cast %627 : vector<1x32x512xbf16> to vector<32x512xbf16>
    %cst_202 = arith.constant dense<0.000000e+00> : vector<8x512xf32>
    %629 = tpu.matmul %626, %628, %cst_202 {dimension_numbers = #tpu.dot_dimension_numbers<[1], [0], [0], [1], [0, 0, 1, 1], [], []>} : vector<8x32xbf16>, vector<32x512xbf16>, vector<8x512xf32> -> vector<8x512xf32>
    %630 = arith.truncf %587 : vector<8x32xf32> to vector<8x32xbf16>
    %c1_203 = arith.constant 1 : index
    %c0_204 = arith.constant 0 : index
    %c0_205 = arith.constant 0 : index
    %631 = vector.load %arg5[%c1_203, %c0_204, %c0_205] : memref<2x32x512xbf16, #tpu.memory_space<vmem>>, vector<1x32x512xbf16>
    %632 = vector.shape_cast %631 : vector<1x32x512xbf16> to vector<32x512xbf16>
    %cst_206 = arith.constant dense<0.000000e+00> : vector<8x512xf32>
    %633 = tpu.matmul %630, %632, %cst_206 {dimension_numbers = #tpu.dot_dimension_numbers<[1], [0], [0], [1], [0, 0, 1, 1], [], []>} : vector<8x32xbf16>, vector<32x512xbf16>, vector<8x512xf32> -> vector<8x512xf32>
    %634 = arith.addf %629, %633 : vector<8x512xf32>
    %c0_207 = arith.constant 0 : index
    %c0_208 = arith.constant 0 : index
    %c0_209 = arith.constant 0 : index
    %635 = vector.load %arg7[%c0_207, %c0_208, %c0_209] : memref<1x1x512xf32, #tpu.memory_space<vmem>>, vector<1x1x512xf32>
    %636 = vector.shape_cast %635 : vector<1x1x512xf32> to vector<1x512xf32>
    %637 = vector.broadcast %636 : vector<1x512xf32> to vector<8x512xf32>
    %638 = arith.addf %634, %637 : vector<8x512xf32>
    %639 = vector.extract_strided_slice %638 {offsets = [0, 0], sizes = [8, 128], strides = [1, 1]} : vector<8x512xf32> to vector<8x128xf32>
    %640 = arith.negf %639 : vector<8x128xf32>
    %641 = math.exp %640 : vector<8x128xf32>
    %cst_210 = arith.constant 1.000000e+00 : f32
    %642 = vector.broadcast %cst_210 : f32 to vector<8x128xf32>
    %643 = arith.addf %642, %641 : vector<8x128xf32>
    %644 = arith.divf %642, %643 : vector<8x128xf32>
    %645 = vector.extract_strided_slice %638 {offsets = [0, 128], sizes = [8, 128], strides = [1, 1]} : vector<8x512xf32> to vector<8x128xf32>
    %646 = arith.negf %645 : vector<8x128xf32>
    %647 = math.exp %646 : vector<8x128xf32>
    %cst_211 = arith.constant 1.000000e+00 : f32
    %648 = vector.broadcast %cst_211 : f32 to vector<8x128xf32>
    %649 = arith.addf %648, %647 : vector<8x128xf32>
    %650 = arith.divf %648, %649 : vector<8x128xf32>
    %651 = vector.extract_strided_slice %638 {offsets = [0, 256], sizes = [8, 128], strides = [1, 1]} : vector<8x512xf32> to vector<8x128xf32>
    %652 = math.tanh %651 : vector<8x128xf32>
    %653 = vector.extract_strided_slice %638 {offsets = [0, 384], sizes = [8, 128], strides = [1, 1]} : vector<8x512xf32> to vector<8x128xf32>
    %654 = arith.negf %653 : vector<8x128xf32>
    %655 = math.exp %654 : vector<8x128xf32>
    %cst_212 = arith.constant 1.000000e+00 : f32
    %656 = vector.broadcast %cst_212 : f32 to vector<8x128xf32>
    %657 = arith.addf %656, %655 : vector<8x128xf32>
    %658 = arith.divf %656, %657 : vector<8x128xf32>
    %659 = arith.mulf %650, %584 : vector<8x128xf32>
    %660 = arith.mulf %644, %652 : vector<8x128xf32>
    %661 = arith.addf %659, %660 : vector<8x128xf32>
    %662 = math.tanh %661 : vector<8x128xf32>
    %663 = arith.mulf %658, %662 : vector<8x128xf32>
    %664 = vector.extract_strided_slice %663 {offsets = [0, 0], sizes = [8, 32], strides = [1, 1]} : vector<8x128xf32> to vector<8x32xf32>
    %665 = arith.truncf %664 : vector<8x32xf32> to vector<8x32xbf16>
    %c0_213 = arith.constant 0 : index
    %c0_214 = arith.constant 0 : index
    %666 = vector.load %arg9[%c0_213, %c0_214] : memref<32x128xbf16, #tpu.memory_space<vmem>>, vector<32x128xbf16>
    %cst_215 = arith.constant dense<0.000000e+00> : vector<8x128xf32>
    %667 = tpu.matmul %665, %666, %cst_215 {dimension_numbers = #tpu.dot_dimension_numbers<[1], [0], [0], [1], [0, 0, 1, 1], [], []>} : vector<8x32xbf16>, vector<32x128xbf16>, vector<8x128xf32> -> vector<8x128xf32>
    %c0_216 = arith.constant 0 : index
    %c0_217 = arith.constant 0 : index
    %668 = vector.load %arg10[%c0_216, %c0_217] : memref<1x128xf32, #tpu.memory_space<vmem>>, vector<1x128xf32>
    %669 = vector.broadcast %668 : vector<1x128xf32> to vector<8x128xf32>
    %670 = arith.addf %667, %669 : vector<8x128xf32>
    %671 = arith.index_cast %c1_i32_191 : i32 to index
    %c0_218 = arith.constant 0 : index
    %c0_219 = arith.constant 0 : index
    %672 = vector.load %arg12[%671, %c0_218, %c0_219] : memref<8x8x128xf32, #tpu.memory_space<vmem>>, vector<1x8x128xf32>
    %673 = vector.shape_cast %672 : vector<1x8x128xf32> to vector<8x128xf32>
    %674 = vector.shape_cast %670 : vector<8x128xf32> to vector<1x8x128xf32>
    tpu.vector_store %arg12[%671, %c0_218, %c0_219], %674 {strides = array<i32>} : memref<8x8x128xf32, #tpu.memory_space<vmem>>, vector<1x8x128xf32>,
    %cst_220 = arith.constant dense<0xFF800000> : vector<8xf32>
    %675 = vector.multi_reduction <maximumf>, %670, %cst_220 [1] : vector<8x128xf32> to vector<8xf32>
    %676 = vector.shape_cast %675 : vector<8xf32> to vector<8x1xf32>
    %677 = vector.broadcast %676 : vector<8x1xf32> to vector<8x128xf32>
    %678 = arith.cmpf oge, %670, %677 : vector<8x128xf32>
    %cst_221 = arith.constant 1.280000e+02 : f32
    %679 = vector.broadcast %cst_221 : f32 to vector<8x128xf32>
    %680 = arith.select %678, %593, %679 : vector<8x128xi1>, vector<8x128xf32>
    %cst_222 = arith.constant dense<0x7F800000> : vector<8xf32>
    %681 = vector.multi_reduction <minimumf>, %680, %cst_222 [1] : vector<8x128xf32> to vector<8xf32>
    %682 = vector.shape_cast %681 : vector<8xf32> to vector<8x1xf32>
    %683 = vector.broadcast %682 : vector<8x1xf32> to vector<8x128xf32>
    %684 = arith.cmpf oeq, %593, %683 : vector<8x128xf32>
    %685 = arith.extui %684 : vector<8x128xi1> to vector<8x128xi32>
    %686 = arith.sitofp %685 : vector<8x128xi32> to vector<8x128xf32>
    %687 = arith.truncf %686 : vector<8x128xf32> to vector<8x128xbf16>
    %c0_223 = arith.constant 0 : index
    %c0_224 = arith.constant 0 : index
    %688 = vector.load %arg8[%c0_223, %c0_224] : memref<128x512xbf16, #tpu.memory_space<vmem>>, vector<128x512xbf16>
    %cst_225 = arith.constant dense<0.000000e+00> : vector<8x512xf32>
    %689 = tpu.matmul %687, %688, %cst_225 {dimension_numbers = #tpu.dot_dimension_numbers<[1], [0], [0], [1], [0, 0, 1, 1], [], []>} : vector<8x128xbf16>, vector<128x512xbf16>, vector<8x512xf32> -> vector<8x512xf32>
    %c2_i32_226 = arith.constant 2 : i32
    %690 = arith.truncf %625 : vector<8x32xf32> to vector<8x32xbf16>
    %c0_227 = arith.constant 0 : index
    %c0_228 = arith.constant 0 : index
    %c0_229 = arith.constant 0 : index
    %691 = vector.load %arg5[%c0_227, %c0_228, %c0_229] : memref<2x32x512xbf16, #tpu.memory_space<vmem>>, vector<1x32x512xbf16>
    %692 = vector.shape_cast %691 : vector<1x32x512xbf16> to vector<32x512xbf16>
    %cst_230 = arith.constant dense<0.000000e+00> : vector<8x512xf32>
    %693 = tpu.matmul %690, %692, %cst_230 {dimension_numbers = #tpu.dot_dimension_numbers<[1], [0], [0], [1], [0, 0, 1, 1], [], []>} : vector<8x32xbf16>, vector<32x512xbf16>, vector<8x512xf32> -> vector<8x512xf32>
    %694 = arith.addf %689, %693 : vector<8x512xf32>
    %695 = vector.extract_strided_slice %694 {offsets = [0, 0], sizes = [8, 128], strides = [1, 1]} : vector<8x512xf32> to vector<8x128xf32>
    %696 = arith.negf %695 : vector<8x128xf32>
    %697 = math.exp %696 : vector<8x128xf32>
    %cst_231 = arith.constant 1.000000e+00 : f32
    %698 = vector.broadcast %cst_231 : f32 to vector<8x128xf32>
    %699 = arith.addf %698, %697 : vector<8x128xf32>
    %700 = arith.divf %698, %699 : vector<8x128xf32>
    %701 = vector.extract_strided_slice %694 {offsets = [0, 128], sizes = [8, 128], strides = [1, 1]} : vector<8x512xf32> to vector<8x128xf32>
    %702 = arith.negf %701 : vector<8x128xf32>
    %703 = math.exp %702 : vector<8x128xf32>
    %cst_232 = arith.constant 1.000000e+00 : f32
    %704 = vector.broadcast %cst_232 : f32 to vector<8x128xf32>
    %705 = arith.addf %704, %703 : vector<8x128xf32>
    %706 = arith.divf %704, %705 : vector<8x128xf32>
    %707 = vector.extract_strided_slice %694 {offsets = [0, 256], sizes = [8, 128], strides = [1, 1]} : vector<8x512xf32> to vector<8x128xf32>
    %708 = math.tanh %707 : vector<8x128xf32>
    %709 = vector.extract_strided_slice %694 {offsets = [0, 384], sizes = [8, 128], strides = [1, 1]} : vector<8x512xf32> to vector<8x128xf32>
    %710 = arith.negf %709 : vector<8x128xf32>
    %711 = math.exp %710 : vector<8x128xf32>
    %cst_233 = arith.constant 1.000000e+00 : f32
    %712 = vector.broadcast %cst_233 : f32 to vector<8x128xf32>
    %713 = arith.addf %712, %711 : vector<8x128xf32>
    %714 = arith.divf %712, %713 : vector<8x128xf32>
    %715 = arith.mulf %706, %622 : vector<8x128xf32>
    %716 = arith.mulf %700, %708 : vector<8x128xf32>
    %717 = arith.addf %715, %716 : vector<8x128xf32>
    %718 = math.tanh %717 : vector<8x128xf32>
    %719 = arith.mulf %714, %718 : vector<8x128xf32>
    %720 = vector.extract_strided_slice %719 {offsets = [0, 0], sizes = [8, 32], strides = [1, 1]} : vector<8x128xf32> to vector<8x32xf32>
    %721 = arith.truncf %720 : vector<8x32xf32> to vector<8x32xbf16>
    %c0_234 = arith.constant 0 : index
    %c0_235 = arith.constant 0 : index
    %c0_236 = arith.constant 0 : index
    %722 = vector.load %arg6[%c0_234, %c0_235, %c0_236] : memref<1x32x512xbf16, #tpu.memory_space<vmem>>, vector<1x32x512xbf16>
    %723 = vector.shape_cast %722 : vector<1x32x512xbf16> to vector<32x512xbf16>
    %cst_237 = arith.constant dense<0.000000e+00> : vector<8x512xf32>
    %724 = tpu.matmul %721, %723, %cst_237 {dimension_numbers = #tpu.dot_dimension_numbers<[1], [0], [0], [1], [0, 0, 1, 1], [], []>} : vector<8x32xbf16>, vector<32x512xbf16>, vector<8x512xf32> -> vector<8x512xf32>
    %725 = arith.truncf %664 : vector<8x32xf32> to vector<8x32xbf16>
    %c1_238 = arith.constant 1 : index
    %c0_239 = arith.constant 0 : index
    %c0_240 = arith.constant 0 : index
    %726 = vector.load %arg5[%c1_238, %c0_239, %c0_240] : memref<2x32x512xbf16, #tpu.memory_space<vmem>>, vector<1x32x512xbf16>
    %727 = vector.shape_cast %726 : vector<1x32x512xbf16> to vector<32x512xbf16>
    %cst_241 = arith.constant dense<0.000000e+00> : vector<8x512xf32>
    %728 = tpu.matmul %725, %727, %cst_241 {dimension_numbers = #tpu.dot_dimension_numbers<[1], [0], [0], [1], [0, 0, 1, 1], [], []>} : vector<8x32xbf16>, vector<32x512xbf16>, vector<8x512xf32> -> vector<8x512xf32>
    %729 = arith.addf %724, %728 : vector<8x512xf32>
    %c0_242 = arith.constant 0 : index
    %c0_243 = arith.constant 0 : index
    %c0_244 = arith.constant 0 : index
    %730 = vector.load %arg7[%c0_242, %c0_243, %c0_244] : memref<1x1x512xf32, #tpu.memory_space<vmem>>, vector<1x1x512xf32>
    %731 = vector.shape_cast %730 : vector<1x1x512xf32> to vector<1x512xf32>
    %732 = vector.broadcast %731 : vector<1x512xf32> to vector<8x512xf32>
    %733 = arith.addf %729, %732 : vector<8x512xf32>
    %734 = vector.extract_strided_slice %733 {offsets = [0, 0], sizes = [8, 128], strides = [1, 1]} : vector<8x512xf32> to vector<8x128xf32>
    %735 = arith.negf %734 : vector<8x128xf32>
    %736 = math.exp %735 : vector<8x128xf32>
    %cst_245 = arith.constant 1.000000e+00 : f32
    %737 = vector.broadcast %cst_245 : f32 to vector<8x128xf32>
    %738 = arith.addf %737, %736 : vector<8x128xf32>
    %739 = arith.divf %737, %738 : vector<8x128xf32>
    %740 = vector.extract_strided_slice %733 {offsets = [0, 128], sizes = [8, 128], strides = [1, 1]} : vector<8x512xf32> to vector<8x128xf32>
    %741 = arith.negf %740 : vector<8x128xf32>
    %742 = math.exp %741 : vector<8x128xf32>
    %cst_246 = arith.constant 1.000000e+00 : f32
    %743 = vector.broadcast %cst_246 : f32 to vector<8x128xf32>
    %744 = arith.addf %743, %742 : vector<8x128xf32>
    %745 = arith.divf %743, %744 : vector<8x128xf32>
    %746 = vector.extract_strided_slice %733 {offsets = [0, 256], sizes = [8, 128], strides = [1, 1]} : vector<8x512xf32> to vector<8x128xf32>
    %747 = math.tanh %746 : vector<8x128xf32>
    %748 = vector.extract_strided_slice %733 {offsets = [0, 384], sizes = [8, 128], strides = [1, 1]} : vector<8x512xf32> to vector<8x128xf32>
    %749 = arith.negf %748 : vector<8x128xf32>
    %750 = math.exp %749 : vector<8x128xf32>
    %cst_247 = arith.constant 1.000000e+00 : f32
    %751 = vector.broadcast %cst_247 : f32 to vector<8x128xf32>
    %752 = arith.addf %751, %750 : vector<8x128xf32>
    %753 = arith.divf %751, %752 : vector<8x128xf32>
    %754 = arith.mulf %745, %661 : vector<8x128xf32>
    %755 = arith.mulf %739, %747 : vector<8x128xf32>
    %756 = arith.addf %754, %755 : vector<8x128xf32>
    %757 = math.tanh %756 : vector<8x128xf32>
    %758 = arith.mulf %753, %757 : vector<8x128xf32>
    %759 = vector.extract_strided_slice %758 {offsets = [0, 0], sizes = [8, 32], strides = [1, 1]} : vector<8x128xf32> to vector<8x32xf32>
    %760 = arith.truncf %759 : vector<8x32xf32> to vector<8x32xbf16>
    %c0_248 = arith.constant 0 : index
    %c0_249 = arith.constant 0 : index
    %761 = vector.load %arg9[%c0_248, %c0_249] : memref<32x128xbf16, #tpu.memory_space<vmem>>, vector<32x128xbf16>
    %cst_250 = arith.constant dense<0.000000e+00> : vector<8x128xf32>
    %762 = tpu.matmul %760, %761, %cst_250 {dimension_numbers = #tpu.dot_dimension_numbers<[1], [0], [0], [1], [0, 0, 1, 1], [], []>} : vector<8x32xbf16>, vector<32x128xbf16>, vector<8x128xf32> -> vector<8x128xf32>
    %c0_251 = arith.constant 0 : index
    %c0_252 = arith.constant 0 : index
    %763 = vector.load %arg10[%c0_251, %c0_252] : memref<1x128xf32, #tpu.memory_space<vmem>>, vector<1x128xf32>
    %764 = vector.broadcast %763 : vector<1x128xf32> to vector<8x128xf32>
    %765 = arith.addf %762, %764 : vector<8x128xf32>
    %766 = arith.index_cast %c2_i32_226 : i32 to index
    %c0_253 = arith.constant 0 : index
    %c0_254 = arith.constant 0 : index
    %767 = vector.load %arg12[%766, %c0_253, %c0_254] : memref<8x8x128xf32, #tpu.memory_space<vmem>>, vector<1x8x128xf32>
    %768 = vector.shape_cast %767 : vector<1x8x128xf32> to vector<8x128xf32>
    %769 = vector.shape_cast %765 : vector<8x128xf32> to vector<1x8x128xf32>
    tpu.vector_store %arg12[%766, %c0_253, %c0_254], %769 {strides = array<i32>} : memref<8x8x128xf32, #tpu.memory_space<vmem>>, vector<1x8x128xf32>,
    %cst_255 = arith.constant dense<0xFF800000> : vector<8xf32>
    %770 = vector.multi_reduction <maximumf>, %765, %cst_255 [1] : vector<8x128xf32> to vector<8xf32>
    %771 = vector.shape_cast %770 : vector<8xf32> to vector<8x1xf32>
    %772 = vector.broadcast %771 : vector<8x1xf32> to vector<8x128xf32>
    %773 = arith.cmpf oge, %765, %772 : vector<8x128xf32>
    %cst_256 = arith.constant 1.280000e+02 : f32
    %774 = vector.broadcast %cst_256 : f32 to vector<8x128xf32>
    %775 = arith.select %773, %593, %774 : vector<8x128xi1>, vector<8x128xf32>
    %cst_257 = arith.constant dense<0x7F800000> : vector<8xf32>
    %776 = vector.multi_reduction <minimumf>, %775, %cst_257 [1] : vector<8x128xf32> to vector<8xf32>
    %777 = vector.shape_cast %776 : vector<8xf32> to vector<8x1xf32>
    %778 = vector.broadcast %777 : vector<8x1xf32> to vector<8x128xf32>
    %779 = arith.cmpf oeq, %593, %778 : vector<8x128xf32>
    %780 = arith.extui %779 : vector<8x128xi1> to vector<8x128xi32>
    %781 = arith.sitofp %780 : vector<8x128xi32> to vector<8x128xf32>
    %782 = arith.truncf %781 : vector<8x128xf32> to vector<8x128xbf16>
    %c0_258 = arith.constant 0 : index
    %c0_259 = arith.constant 0 : index
    %783 = vector.load %arg8[%c0_258, %c0_259] : memref<128x512xbf16, #tpu.memory_space<vmem>>, vector<128x512xbf16>
    %cst_260 = arith.constant dense<0.000000e+00> : vector<8x512xf32>
    %784 = tpu.matmul %782, %783, %cst_260 {dimension_numbers = #tpu.dot_dimension_numbers<[1], [0], [0], [1], [0, 0, 1, 1], [], []>} : vector<8x128xbf16>, vector<128x512xbf16>, vector<8x512xf32> -> vector<8x512xf32>
    %c3_i32_261 = arith.constant 3 : i32
    %785 = arith.truncf %720 : vector<8x32xf32> to vector<8x32xbf16>
    %c0_262 = arith.constant 0 : index
    %c0_263 = arith.constant 0 : index
    %c0_264 = arith.constant 0 : index
    %786 = vector.load %arg5[%c0_262, %c0_263, %c0_264] : memref<2x32x512xbf16, #tpu.memory_space<vmem>>, vector<1x32x512xbf16>
    %787 = vector.shape_cast %786 : vector<1x32x512xbf16> to vector<32x512xbf16>
    %cst_265 = arith.constant dense<0.000000e+00> : vector<8x512xf32>
    %788 = tpu.matmul %785, %787, %cst_265 {dimension_numbers = #tpu.dot_dimension_numbers<[1], [0], [0], [1], [0, 0, 1, 1], [], []>} : vector<8x32xbf16>, vector<32x512xbf16>, vector<8x512xf32> -> vector<8x512xf32>
    %789 = arith.addf %784, %788 : vector<8x512xf32>
    %790 = vector.extract_strided_slice %789 {offsets = [0, 0], sizes = [8, 128], strides = [1, 1]} : vector<8x512xf32> to vector<8x128xf32>
    %791 = arith.negf %790 : vector<8x128xf32>
    %792 = math.exp %791 : vector<8x128xf32>
    %cst_266 = arith.constant 1.000000e+00 : f32
    %793 = vector.broadcast %cst_266 : f32 to vector<8x128xf32>
    %794 = arith.addf %793, %792 : vector<8x128xf32>
    %795 = arith.divf %793, %794 : vector<8x128xf32>
    %796 = vector.extract_strided_slice %789 {offsets = [0, 128], sizes = [8, 128], strides = [1, 1]} : vector<8x512xf32> to vector<8x128xf32>
    %797 = arith.negf %796 : vector<8x128xf32>
    %798 = math.exp %797 : vector<8x128xf32>
    %cst_267 = arith.constant 1.000000e+00 : f32
    %799 = vector.broadcast %cst_267 : f32 to vector<8x128xf32>
    %800 = arith.addf %799, %798 : vector<8x128xf32>
    %801 = arith.divf %799, %800 : vector<8x128xf32>
    %802 = vector.extract_strided_slice %789 {offsets = [0, 256], sizes = [8, 128], strides = [1, 1]} : vector<8x512xf32> to vector<8x128xf32>
    %803 = math.tanh %802 : vector<8x128xf32>
    %804 = vector.extract_strided_slice %789 {offsets = [0, 384], sizes = [8, 128], strides = [1, 1]} : vector<8x512xf32> to vector<8x128xf32>
    %805 = arith.negf %804 : vector<8x128xf32>
    %806 = math.exp %805 : vector<8x128xf32>
    %cst_268 = arith.constant 1.000000e+00 : f32
    %807 = vector.broadcast %cst_268 : f32 to vector<8x128xf32>
    %808 = arith.addf %807, %806 : vector<8x128xf32>
    %809 = arith.divf %807, %808 : vector<8x128xf32>
    %810 = arith.mulf %801, %717 : vector<8x128xf32>
    %811 = arith.mulf %795, %803 : vector<8x128xf32>
    %812 = arith.addf %810, %811 : vector<8x128xf32>
    %813 = math.tanh %812 : vector<8x128xf32>
    %814 = arith.mulf %809, %813 : vector<8x128xf32>
    %815 = vector.extract_strided_slice %814 {offsets = [0, 0], sizes = [8, 32], strides = [1, 1]} : vector<8x128xf32> to vector<8x32xf32>
    %816 = arith.truncf %815 : vector<8x32xf32> to vector<8x32xbf16>
    %c0_269 = arith.constant 0 : index
    %c0_270 = arith.constant 0 : index
    %c0_271 = arith.constant 0 : index
    %817 = vector.load %arg6[%c0_269, %c0_270, %c0_271] : memref<1x32x512xbf16, #tpu.memory_space<vmem>>, vector<1x32x512xbf16>
    %818 = vector.shape_cast %817 : vector<1x32x512xbf16> to vector<32x512xbf16>
    %cst_272 = arith.constant dense<0.000000e+00> : vector<8x512xf32>
    %819 = tpu.matmul %816, %818, %cst_272 {dimension_numbers = #tpu.dot_dimension_numbers<[1], [0], [0], [1], [0, 0, 1, 1], [], []>} : vector<8x32xbf16>, vector<32x512xbf16>, vector<8x512xf32> -> vector<8x512xf32>
    %820 = arith.truncf %759 : vector<8x32xf32> to vector<8x32xbf16>
    %c1_273 = arith.constant 1 : index
    %c0_274 = arith.constant 0 : index
    %c0_275 = arith.constant 0 : index
    %821 = vector.load %arg5[%c1_273, %c0_274, %c0_275] : memref<2x32x512xbf16, #tpu.memory_space<vmem>>, vector<1x32x512xbf16>
    %822 = vector.shape_cast %821 : vector<1x32x512xbf16> to vector<32x512xbf16>
    %cst_276 = arith.constant dense<0.000000e+00> : vector<8x512xf32>
    %823 = tpu.matmul %820, %822, %cst_276 {dimension_numbers = #tpu.dot_dimension_numbers<[1], [0], [0], [1], [0, 0, 1, 1], [], []>} : vector<8x32xbf16>, vector<32x512xbf16>, vector<8x512xf32> -> vector<8x512xf32>
    %824 = arith.addf %819, %823 : vector<8x512xf32>
    %c0_277 = arith.constant 0 : index
    %c0_278 = arith.constant 0 : index
    %c0_279 = arith.constant 0 : index
    %825 = vector.load %arg7[%c0_277, %c0_278, %c0_279] : memref<1x1x512xf32, #tpu.memory_space<vmem>>, vector<1x1x512xf32>
    %826 = vector.shape_cast %825 : vector<1x1x512xf32> to vector<1x512xf32>
    %827 = vector.broadcast %826 : vector<1x512xf32> to vector<8x512xf32>
    %828 = arith.addf %824, %827 : vector<8x512xf32>
    %829 = vector.extract_strided_slice %828 {offsets = [0, 0], sizes = [8, 128], strides = [1, 1]} : vector<8x512xf32> to vector<8x128xf32>
    %830 = arith.negf %829 : vector<8x128xf32>
    %831 = math.exp %830 : vector<8x128xf32>
    %cst_280 = arith.constant 1.000000e+00 : f32
    %832 = vector.broadcast %cst_280 : f32 to vector<8x128xf32>
    %833 = arith.addf %832, %831 : vector<8x128xf32>
    %834 = arith.divf %832, %833 : vector<8x128xf32>
    %835 = vector.extract_strided_slice %828 {offsets = [0, 128], sizes = [8, 128], strides = [1, 1]} : vector<8x512xf32> to vector<8x128xf32>
    %836 = arith.negf %835 : vector<8x128xf32>
    %837 = math.exp %836 : vector<8x128xf32>
    %cst_281 = arith.constant 1.000000e+00 : f32
    %838 = vector.broadcast %cst_281 : f32 to vector<8x128xf32>
    %839 = arith.addf %838, %837 : vector<8x128xf32>
    %840 = arith.divf %838, %839 : vector<8x128xf32>
    %841 = vector.extract_strided_slice %828 {offsets = [0, 256], sizes = [8, 128], strides = [1, 1]} : vector<8x512xf32> to vector<8x128xf32>
    %842 = math.tanh %841 : vector<8x128xf32>
    %843 = vector.extract_strided_slice %828 {offsets = [0, 384], sizes = [8, 128], strides = [1, 1]} : vector<8x512xf32> to vector<8x128xf32>
    %844 = arith.negf %843 : vector<8x128xf32>
    %845 = math.exp %844 : vector<8x128xf32>
    %cst_282 = arith.constant 1.000000e+00 : f32
    %846 = vector.broadcast %cst_282 : f32 to vector<8x128xf32>
    %847 = arith.addf %846, %845 : vector<8x128xf32>
    %848 = arith.divf %846, %847 : vector<8x128xf32>
    %849 = arith.mulf %840, %756 : vector<8x128xf32>
    %850 = arith.mulf %834, %842 : vector<8x128xf32>
    %851 = arith.addf %849, %850 : vector<8x128xf32>
    %852 = math.tanh %851 : vector<8x128xf32>
    %853 = arith.mulf %848, %852 : vector<8x128xf32>
    %854 = vector.extract_strided_slice %853 {offsets = [0, 0], sizes = [8, 32], strides = [1, 1]} : vector<8x128xf32> to vector<8x32xf32>
    %855 = arith.truncf %854 : vector<8x32xf32> to vector<8x32xbf16>
    %c0_283 = arith.constant 0 : index
    %c0_284 = arith.constant 0 : index
    %856 = vector.load %arg9[%c0_283, %c0_284] : memref<32x128xbf16, #tpu.memory_space<vmem>>, vector<32x128xbf16>
    %cst_285 = arith.constant dense<0.000000e+00> : vector<8x128xf32>
    %857 = tpu.matmul %855, %856, %cst_285 {dimension_numbers = #tpu.dot_dimension_numbers<[1], [0], [0], [1], [0, 0, 1, 1], [], []>} : vector<8x32xbf16>, vector<32x128xbf16>, vector<8x128xf32> -> vector<8x128xf32>
    %c0_286 = arith.constant 0 : index
    %c0_287 = arith.constant 0 : index
    %858 = vector.load %arg10[%c0_286, %c0_287] : memref<1x128xf32, #tpu.memory_space<vmem>>, vector<1x128xf32>
    %859 = vector.broadcast %858 : vector<1x128xf32> to vector<8x128xf32>
    %860 = arith.addf %857, %859 : vector<8x128xf32>
    %861 = arith.index_cast %c3_i32_261 : i32 to index
    %c0_288 = arith.constant 0 : index
    %c0_289 = arith.constant 0 : index
    %862 = vector.load %arg12[%861, %c0_288, %c0_289] : memref<8x8x128xf32, #tpu.memory_space<vmem>>, vector<1x8x128xf32>
    %863 = vector.shape_cast %862 : vector<1x8x128xf32> to vector<8x128xf32>
    %864 = vector.shape_cast %860 : vector<8x128xf32> to vector<1x8x128xf32>
    tpu.vector_store %arg12[%861, %c0_288, %c0_289], %864 {strides = array<i32>} : memref<8x8x128xf32, #tpu.memory_space<vmem>>, vector<1x8x128xf32>,
    %cst_290 = arith.constant dense<0xFF800000> : vector<8xf32>
    %865 = vector.multi_reduction <maximumf>, %860, %cst_290 [1] : vector<8x128xf32> to vector<8xf32>
    %866 = vector.shape_cast %865 : vector<8xf32> to vector<8x1xf32>
    %867 = vector.broadcast %866 : vector<8x1xf32> to vector<8x128xf32>
    %868 = arith.cmpf oge, %860, %867 : vector<8x128xf32>
    %cst_291 = arith.constant 1.280000e+02 : f32
    %869 = vector.broadcast %cst_291 : f32 to vector<8x128xf32>
    %870 = arith.select %868, %593, %869 : vector<8x128xi1>, vector<8x128xf32>
    %cst_292 = arith.constant dense<0x7F800000> : vector<8xf32>
    %871 = vector.multi_reduction <minimumf>, %870, %cst_292 [1] : vector<8x128xf32> to vector<8xf32>
    %872 = vector.shape_cast %871 : vector<8xf32> to vector<8x1xf32>
    %873 = vector.broadcast %872 : vector<8x1xf32> to vector<8x128xf32>
    %874 = arith.cmpf oeq, %593, %873 : vector<8x128xf32>
    %875 = arith.extui %874 : vector<8x128xi1> to vector<8x128xi32>
    %876 = arith.sitofp %875 : vector<8x128xi32> to vector<8x128xf32>
    %877 = arith.truncf %876 : vector<8x128xf32> to vector<8x128xbf16>
    %c0_293 = arith.constant 0 : index
    %c0_294 = arith.constant 0 : index
    %878 = vector.load %arg8[%c0_293, %c0_294] : memref<128x512xbf16, #tpu.memory_space<vmem>>, vector<128x512xbf16>
    %cst_295 = arith.constant dense<0.000000e+00> : vector<8x512xf32>
    %879 = tpu.matmul %877, %878, %cst_295 {dimension_numbers = #tpu.dot_dimension_numbers<[1], [0], [0], [1], [0, 0, 1, 1], [], []>} : vector<8x128xbf16>, vector<128x512xbf16>, vector<8x512xf32> -> vector<8x512xf32>
    %c4_i32_296 = arith.constant 4 : i32
    %880 = arith.truncf %815 : vector<8x32xf32> to vector<8x32xbf16>
    %c0_297 = arith.constant 0 : index
    %c0_298 = arith.constant 0 : index
    %c0_299 = arith.constant 0 : index
    %881 = vector.load %arg5[%c0_297, %c0_298, %c0_299] : memref<2x32x512xbf16, #tpu.memory_space<vmem>>, vector<1x32x512xbf16>
    %882 = vector.shape_cast %881 : vector<1x32x512xbf16> to vector<32x512xbf16>
    %cst_300 = arith.constant dense<0.000000e+00> : vector<8x512xf32>
    %883 = tpu.matmul %880, %882, %cst_300 {dimension_numbers = #tpu.dot_dimension_numbers<[1], [0], [0], [1], [0, 0, 1, 1], [], []>} : vector<8x32xbf16>, vector<32x512xbf16>, vector<8x512xf32> -> vector<8x512xf32>
    %884 = arith.addf %879, %883 : vector<8x512xf32>
    %885 = vector.extract_strided_slice %884 {offsets = [0, 0], sizes = [8, 128], strides = [1, 1]} : vector<8x512xf32> to vector<8x128xf32>
    %886 = arith.negf %885 : vector<8x128xf32>
    %887 = math.exp %886 : vector<8x128xf32>
    %cst_301 = arith.constant 1.000000e+00 : f32
    %888 = vector.broadcast %cst_301 : f32 to vector<8x128xf32>
    %889 = arith.addf %888, %887 : vector<8x128xf32>
    %890 = arith.divf %888, %889 : vector<8x128xf32>
    %891 = vector.extract_strided_slice %884 {offsets = [0, 128], sizes = [8, 128], strides = [1, 1]} : vector<8x512xf32> to vector<8x128xf32>
    %892 = arith.negf %891 : vector<8x128xf32>
    %893 = math.exp %892 : vector<8x128xf32>
    %cst_302 = arith.constant 1.000000e+00 : f32
    %894 = vector.broadcast %cst_302 : f32 to vector<8x128xf32>
    %895 = arith.addf %894, %893 : vector<8x128xf32>
    %896 = arith.divf %894, %895 : vector<8x128xf32>
    %897 = vector.extract_strided_slice %884 {offsets = [0, 256], sizes = [8, 128], strides = [1, 1]} : vector<8x512xf32> to vector<8x128xf32>
    %898 = math.tanh %897 : vector<8x128xf32>
    %899 = vector.extract_strided_slice %884 {offsets = [0, 384], sizes = [8, 128], strides = [1, 1]} : vector<8x512xf32> to vector<8x128xf32>
    %900 = arith.negf %899 : vector<8x128xf32>
    %901 = math.exp %900 : vector<8x128xf32>
    %cst_303 = arith.constant 1.000000e+00 : f32
    %902 = vector.broadcast %cst_303 : f32 to vector<8x128xf32>
    %903 = arith.addf %902, %901 : vector<8x128xf32>
    %904 = arith.divf %902, %903 : vector<8x128xf32>
    %905 = arith.mulf %896, %812 : vector<8x128xf32>
    %906 = arith.mulf %890, %898 : vector<8x128xf32>
    %907 = arith.addf %905, %906 : vector<8x128xf32>
    %908 = math.tanh %907 : vector<8x128xf32>
    %909 = arith.mulf %904, %908 : vector<8x128xf32>
    %910 = vector.extract_strided_slice %909 {offsets = [0, 0], sizes = [8, 32], strides = [1, 1]} : vector<8x128xf32> to vector<8x32xf32>
    %911 = arith.truncf %910 : vector<8x32xf32> to vector<8x32xbf16>
    %c0_304 = arith.constant 0 : index
    %c0_305 = arith.constant 0 : index
    %c0_306 = arith.constant 0 : index
    %912 = vector.load %arg6[%c0_304, %c0_305, %c0_306] : memref<1x32x512xbf16, #tpu.memory_space<vmem>>, vector<1x32x512xbf16>
    %913 = vector.shape_cast %912 : vector<1x32x512xbf16> to vector<32x512xbf16>
    %cst_307 = arith.constant dense<0.000000e+00> : vector<8x512xf32>
    %914 = tpu.matmul %911, %913, %cst_307 {dimension_numbers = #tpu.dot_dimension_numbers<[1], [0], [0], [1], [0, 0, 1, 1], [], []>} : vector<8x32xbf16>, vector<32x512xbf16>, vector<8x512xf32> -> vector<8x512xf32>
    %915 = arith.truncf %854 : vector<8x32xf32> to vector<8x32xbf16>
    %c1_308 = arith.constant 1 : index
    %c0_309 = arith.constant 0 : index
    %c0_310 = arith.constant 0 : index
    %916 = vector.load %arg5[%c1_308, %c0_309, %c0_310] : memref<2x32x512xbf16, #tpu.memory_space<vmem>>, vector<1x32x512xbf16>
    %917 = vector.shape_cast %916 : vector<1x32x512xbf16> to vector<32x512xbf16>
    %cst_311 = arith.constant dense<0.000000e+00> : vector<8x512xf32>
    %918 = tpu.matmul %915, %917, %cst_311 {dimension_numbers = #tpu.dot_dimension_numbers<[1], [0], [0], [1], [0, 0, 1, 1], [], []>} : vector<8x32xbf16>, vector<32x512xbf16>, vector<8x512xf32> -> vector<8x512xf32>
    %919 = arith.addf %914, %918 : vector<8x512xf32>
    %c0_312 = arith.constant 0 : index
    %c0_313 = arith.constant 0 : index
    %c0_314 = arith.constant 0 : index
    %920 = vector.load %arg7[%c0_312, %c0_313, %c0_314] : memref<1x1x512xf32, #tpu.memory_space<vmem>>, vector<1x1x512xf32>
    %921 = vector.shape_cast %920 : vector<1x1x512xf32> to vector<1x512xf32>
    %922 = vector.broadcast %921 : vector<1x512xf32> to vector<8x512xf32>
    %923 = arith.addf %919, %922 : vector<8x512xf32>
    %924 = vector.extract_strided_slice %923 {offsets = [0, 0], sizes = [8, 128], strides = [1, 1]} : vector<8x512xf32> to vector<8x128xf32>
    %925 = arith.negf %924 : vector<8x128xf32>
    %926 = math.exp %925 : vector<8x128xf32>
    %cst_315 = arith.constant 1.000000e+00 : f32
    %927 = vector.broadcast %cst_315 : f32 to vector<8x128xf32>
    %928 = arith.addf %927, %926 : vector<8x128xf32>
    %929 = arith.divf %927, %928 : vector<8x128xf32>
    %930 = vector.extract_strided_slice %923 {offsets = [0, 128], sizes = [8, 128], strides = [1, 1]} : vector<8x512xf32> to vector<8x128xf32>
    %931 = arith.negf %930 : vector<8x128xf32>
    %932 = math.exp %931 : vector<8x128xf32>
    %cst_316 = arith.constant 1.000000e+00 : f32
    %933 = vector.broadcast %cst_316 : f32 to vector<8x128xf32>
    %934 = arith.addf %933, %932 : vector<8x128xf32>
    %935 = arith.divf %933, %934 : vector<8x128xf32>
    %936 = vector.extract_strided_slice %923 {offsets = [0, 256], sizes = [8, 128], strides = [1, 1]} : vector<8x512xf32> to vector<8x128xf32>
    %937 = math.tanh %936 : vector<8x128xf32>
    %938 = vector.extract_strided_slice %923 {offsets = [0, 384], sizes = [8, 128], strides = [1, 1]} : vector<8x512xf32> to vector<8x128xf32>
    %939 = arith.negf %938 : vector<8x128xf32>
    %940 = math.exp %939 : vector<8x128xf32>
    %cst_317 = arith.constant 1.000000e+00 : f32
    %941 = vector.broadcast %cst_317 : f32 to vector<8x128xf32>
    %942 = arith.addf %941, %940 : vector<8x128xf32>
    %943 = arith.divf %941, %942 : vector<8x128xf32>
    %944 = arith.mulf %935, %851 : vector<8x128xf32>
    %945 = arith.mulf %929, %937 : vector<8x128xf32>
    %946 = arith.addf %944, %945 : vector<8x128xf32>
    %947 = math.tanh %946 : vector<8x128xf32>
    %948 = arith.mulf %943, %947 : vector<8x128xf32>
    %949 = vector.extract_strided_slice %948 {offsets = [0, 0], sizes = [8, 32], strides = [1, 1]} : vector<8x128xf32> to vector<8x32xf32>
    %950 = arith.truncf %949 : vector<8x32xf32> to vector<8x32xbf16>
    %c0_318 = arith.constant 0 : index
    %c0_319 = arith.constant 0 : index
    %951 = vector.load %arg9[%c0_318, %c0_319] : memref<32x128xbf16, #tpu.memory_space<vmem>>, vector<32x128xbf16>
    %cst_320 = arith.constant dense<0.000000e+00> : vector<8x128xf32>
    %952 = tpu.matmul %950, %951, %cst_320 {dimension_numbers = #tpu.dot_dimension_numbers<[1], [0], [0], [1], [0, 0, 1, 1], [], []>} : vector<8x32xbf16>, vector<32x128xbf16>, vector<8x128xf32> -> vector<8x128xf32>
    %c0_321 = arith.constant 0 : index
    %c0_322 = arith.constant 0 : index
    %953 = vector.load %arg10[%c0_321, %c0_322] : memref<1x128xf32, #tpu.memory_space<vmem>>, vector<1x128xf32>
    %954 = vector.broadcast %953 : vector<1x128xf32> to vector<8x128xf32>
    %955 = arith.addf %952, %954 : vector<8x128xf32>
    %956 = arith.index_cast %c4_i32_296 : i32 to index
    %c0_323 = arith.constant 0 : index
    %c0_324 = arith.constant 0 : index
    %957 = vector.load %arg12[%956, %c0_323, %c0_324] : memref<8x8x128xf32, #tpu.memory_space<vmem>>, vector<1x8x128xf32>
    %958 = vector.shape_cast %957 : vector<1x8x128xf32> to vector<8x128xf32>
    %959 = vector.shape_cast %955 : vector<8x128xf32> to vector<1x8x128xf32>
    tpu.vector_store %arg12[%956, %c0_323, %c0_324], %959 {strides = array<i32>} : memref<8x8x128xf32, #tpu.memory_space<vmem>>, vector<1x8x128xf32>,
    %cst_325 = arith.constant dense<0xFF800000> : vector<8xf32>
    %960 = vector.multi_reduction <maximumf>, %955, %cst_325 [1] : vector<8x128xf32> to vector<8xf32>
    %961 = vector.shape_cast %960 : vector<8xf32> to vector<8x1xf32>
    %962 = vector.broadcast %961 : vector<8x1xf32> to vector<8x128xf32>
    %963 = arith.cmpf oge, %955, %962 : vector<8x128xf32>
    %cst_326 = arith.constant 1.280000e+02 : f32
    %964 = vector.broadcast %cst_326 : f32 to vector<8x128xf32>
    %965 = arith.select %963, %593, %964 : vector<8x128xi1>, vector<8x128xf32>
    %cst_327 = arith.constant dense<0x7F800000> : vector<8xf32>
    %966 = vector.multi_reduction <minimumf>, %965, %cst_327 [1] : vector<8x128xf32> to vector<8xf32>
    %967 = vector.shape_cast %966 : vector<8xf32> to vector<8x1xf32>
    %968 = vector.broadcast %967 : vector<8x1xf32> to vector<8x128xf32>
    %969 = arith.cmpf oeq, %593, %968 : vector<8x128xf32>
    %970 = arith.extui %969 : vector<8x128xi1> to vector<8x128xi32>
    %971 = arith.sitofp %970 : vector<8x128xi32> to vector<8x128xf32>
    %972 = arith.truncf %971 : vector<8x128xf32> to vector<8x128xbf16>
    %c0_328 = arith.constant 0 : index
    %c0_329 = arith.constant 0 : index
    %973 = vector.load %arg8[%c0_328, %c0_329] : memref<128x512xbf16, #tpu.memory_space<vmem>>, vector<128x512xbf16>
    %cst_330 = arith.constant dense<0.000000e+00> : vector<8x512xf32>
    %974 = tpu.matmul %972, %973, %cst_330 {dimension_numbers = #tpu.dot_dimension_numbers<[1], [0], [0], [1], [0, 0, 1, 1], [], []>} : vector<8x128xbf16>, vector<128x512xbf16>, vector<8x512xf32> -> vector<8x512xf32>
    %c5_i32_331 = arith.constant 5 : i32
    %975 = arith.truncf %910 : vector<8x32xf32> to vector<8x32xbf16>
    %c0_332 = arith.constant 0 : index
    %c0_333 = arith.constant 0 : index
    %c0_334 = arith.constant 0 : index
    %976 = vector.load %arg5[%c0_332, %c0_333, %c0_334] : memref<2x32x512xbf16, #tpu.memory_space<vmem>>, vector<1x32x512xbf16>
    %977 = vector.shape_cast %976 : vector<1x32x512xbf16> to vector<32x512xbf16>
    %cst_335 = arith.constant dense<0.000000e+00> : vector<8x512xf32>
    %978 = tpu.matmul %975, %977, %cst_335 {dimension_numbers = #tpu.dot_dimension_numbers<[1], [0], [0], [1], [0, 0, 1, 1], [], []>} : vector<8x32xbf16>, vector<32x512xbf16>, vector<8x512xf32> -> vector<8x512xf32>
    %979 = arith.addf %974, %978 : vector<8x512xf32>
    %980 = vector.extract_strided_slice %979 {offsets = [0, 0], sizes = [8, 128], strides = [1, 1]} : vector<8x512xf32> to vector<8x128xf32>
    %981 = arith.negf %980 : vector<8x128xf32>
    %982 = math.exp %981 : vector<8x128xf32>
    %cst_336 = arith.constant 1.000000e+00 : f32
    %983 = vector.broadcast %cst_336 : f32 to vector<8x128xf32>
    %984 = arith.addf %983, %982 : vector<8x128xf32>
    %985 = arith.divf %983, %984 : vector<8x128xf32>
    %986 = vector.extract_strided_slice %979 {offsets = [0, 128], sizes = [8, 128], strides = [1, 1]} : vector<8x512xf32> to vector<8x128xf32>
    %987 = arith.negf %986 : vector<8x128xf32>
    %988 = math.exp %987 : vector<8x128xf32>
    %cst_337 = arith.constant 1.000000e+00 : f32
    %989 = vector.broadcast %cst_337 : f32 to vector<8x128xf32>
    %990 = arith.addf %989, %988 : vector<8x128xf32>
    %991 = arith.divf %989, %990 : vector<8x128xf32>
    %992 = vector.extract_strided_slice %979 {offsets = [0, 256], sizes = [8, 128], strides = [1, 1]} : vector<8x512xf32> to vector<8x128xf32>
    %993 = math.tanh %992 : vector<8x128xf32>
    %994 = vector.extract_strided_slice %979 {offsets = [0, 384], sizes = [8, 128], strides = [1, 1]} : vector<8x512xf32> to vector<8x128xf32>
    %995 = arith.negf %994 : vector<8x128xf32>
    %996 = math.exp %995 : vector<8x128xf32>
    %cst_338 = arith.constant 1.000000e+00 : f32
    %997 = vector.broadcast %cst_338 : f32 to vector<8x128xf32>
    %998 = arith.addf %997, %996 : vector<8x128xf32>
    %999 = arith.divf %997, %998 : vector<8x128xf32>
    %1000 = arith.mulf %991, %907 : vector<8x128xf32>
    %1001 = arith.mulf %985, %993 : vector<8x128xf32>
    %1002 = arith.addf %1000, %1001 : vector<8x128xf32>
    %1003 = math.tanh %1002 : vector<8x128xf32>
    %1004 = arith.mulf %999, %1003 : vector<8x128xf32>
    %1005 = vector.extract_strided_slice %1004 {offsets = [0, 0], sizes = [8, 32], strides = [1, 1]} : vector<8x128xf32> to vector<8x32xf32>
    %1006 = arith.truncf %1005 : vector<8x32xf32> to vector<8x32xbf16>
    %c0_339 = arith.constant 0 : index
    %c0_340 = arith.constant 0 : index
    %c0_341 = arith.constant 0 : index
    %1007 = vector.load %arg6[%c0_339, %c0_340, %c0_341] : memref<1x32x512xbf16, #tpu.memory_space<vmem>>, vector<1x32x512xbf16>
    %1008 = vector.shape_cast %1007 : vector<1x32x512xbf16> to vector<32x512xbf16>
    %cst_342 = arith.constant dense<0.000000e+00> : vector<8x512xf32>
    %1009 = tpu.matmul %1006, %1008, %cst_342 {dimension_numbers = #tpu.dot_dimension_numbers<[1], [0], [0], [1], [0, 0, 1, 1], [], []>} : vector<8x32xbf16>, vector<32x512xbf16>, vector<8x512xf32> -> vector<8x512xf32>
    %1010 = arith.truncf %949 : vector<8x32xf32> to vector<8x32xbf16>
    %c1_343 = arith.constant 1 : index
    %c0_344 = arith.constant 0 : index
    %c0_345 = arith.constant 0 : index
    %1011 = vector.load %arg5[%c1_343, %c0_344, %c0_345] : memref<2x32x512xbf16, #tpu.memory_space<vmem>>, vector<1x32x512xbf16>
    %1012 = vector.shape_cast %1011 : vector<1x32x512xbf16> to vector<32x512xbf16>
    %cst_346 = arith.constant dense<0.000000e+00> : vector<8x512xf32>
    %1013 = tpu.matmul %1010, %1012, %cst_346 {dimension_numbers = #tpu.dot_dimension_numbers<[1], [0], [0], [1], [0, 0, 1, 1], [], []>} : vector<8x32xbf16>, vector<32x512xbf16>, vector<8x512xf32> -> vector<8x512xf32>
    %1014 = arith.addf %1009, %1013 : vector<8x512xf32>
    %c0_347 = arith.constant 0 : index
    %c0_348 = arith.constant 0 : index
    %c0_349 = arith.constant 0 : index
    %1015 = vector.load %arg7[%c0_347, %c0_348, %c0_349] : memref<1x1x512xf32, #tpu.memory_space<vmem>>, vector<1x1x512xf32>
    %1016 = vector.shape_cast %1015 : vector<1x1x512xf32> to vector<1x512xf32>
    %1017 = vector.broadcast %1016 : vector<1x512xf32> to vector<8x512xf32>
    %1018 = arith.addf %1014, %1017 : vector<8x512xf32>
    %1019 = vector.extract_strided_slice %1018 {offsets = [0, 0], sizes = [8, 128], strides = [1, 1]} : vector<8x512xf32> to vector<8x128xf32>
    %1020 = arith.negf %1019 : vector<8x128xf32>
    %1021 = math.exp %1020 : vector<8x128xf32>
    %cst_350 = arith.constant 1.000000e+00 : f32
    %1022 = vector.broadcast %cst_350 : f32 to vector<8x128xf32>
    %1023 = arith.addf %1022, %1021 : vector<8x128xf32>
    %1024 = arith.divf %1022, %1023 : vector<8x128xf32>
    %1025 = vector.extract_strided_slice %1018 {offsets = [0, 128], sizes = [8, 128], strides = [1, 1]} : vector<8x512xf32> to vector<8x128xf32>
    %1026 = arith.negf %1025 : vector<8x128xf32>
    %1027 = math.exp %1026 : vector<8x128xf32>
    %cst_351 = arith.constant 1.000000e+00 : f32
    %1028 = vector.broadcast %cst_351 : f32 to vector<8x128xf32>
    %1029 = arith.addf %1028, %1027 : vector<8x128xf32>
    %1030 = arith.divf %1028, %1029 : vector<8x128xf32>
    %1031 = vector.extract_strided_slice %1018 {offsets = [0, 256], sizes = [8, 128], strides = [1, 1]} : vector<8x512xf32> to vector<8x128xf32>
    %1032 = math.tanh %1031 : vector<8x128xf32>
    %1033 = vector.extract_strided_slice %1018 {offsets = [0, 384], sizes = [8, 128], strides = [1, 1]} : vector<8x512xf32> to vector<8x128xf32>
    %1034 = arith.negf %1033 : vector<8x128xf32>
    %1035 = math.exp %1034 : vector<8x128xf32>
    %cst_352 = arith.constant 1.000000e+00 : f32
    %1036 = vector.broadcast %cst_352 : f32 to vector<8x128xf32>
    %1037 = arith.addf %1036, %1035 : vector<8x128xf32>
    %1038 = arith.divf %1036, %1037 : vector<8x128xf32>
    %1039 = arith.mulf %1030, %946 : vector<8x128xf32>
    %1040 = arith.mulf %1024, %1032 : vector<8x128xf32>
    %1041 = arith.addf %1039, %1040 : vector<8x128xf32>
    %1042 = math.tanh %1041 : vector<8x128xf32>
    %1043 = arith.mulf %1038, %1042 : vector<8x128xf32>
    %1044 = vector.extract_strided_slice %1043 {offsets = [0, 0], sizes = [8, 32], strides = [1, 1]} : vector<8x128xf32> to vector<8x32xf32>
    %1045 = arith.truncf %1044 : vector<8x32xf32> to vector<8x32xbf16>
    %c0_353 = arith.constant 0 : index
    %c0_354 = arith.constant 0 : index
    %1046 = vector.load %arg9[%c0_353, %c0_354] : memref<32x128xbf16, #tpu.memory_space<vmem>>, vector<32x128xbf16>
    %cst_355 = arith.constant dense<0.000000e+00> : vector<8x128xf32>
    %1047 = tpu.matmul %1045, %1046, %cst_355 {dimension_numbers = #tpu.dot_dimension_numbers<[1], [0], [0], [1], [0, 0, 1, 1], [], []>} : vector<8x32xbf16>, vector<32x128xbf16>, vector<8x128xf32> -> vector<8x128xf32>
    %c0_356 = arith.constant 0 : index
    %c0_357 = arith.constant 0 : index
    %1048 = vector.load %arg10[%c0_356, %c0_357] : memref<1x128xf32, #tpu.memory_space<vmem>>, vector<1x128xf32>
    %1049 = vector.broadcast %1048 : vector<1x128xf32> to vector<8x128xf32>
    %1050 = arith.addf %1047, %1049 : vector<8x128xf32>
    %1051 = arith.index_cast %c5_i32_331 : i32 to index
    %c0_358 = arith.constant 0 : index
    %c0_359 = arith.constant 0 : index
    %1052 = vector.load %arg12[%1051, %c0_358, %c0_359] : memref<8x8x128xf32, #tpu.memory_space<vmem>>, vector<1x8x128xf32>
    %1053 = vector.shape_cast %1052 : vector<1x8x128xf32> to vector<8x128xf32>
    %1054 = vector.shape_cast %1050 : vector<8x128xf32> to vector<1x8x128xf32>
    tpu.vector_store %arg12[%1051, %c0_358, %c0_359], %1054 {strides = array<i32>} : memref<8x8x128xf32, #tpu.memory_space<vmem>>, vector<1x8x128xf32>,
    %cst_360 = arith.constant dense<0xFF800000> : vector<8xf32>
    %1055 = vector.multi_reduction <maximumf>, %1050, %cst_360 [1] : vector<8x128xf32> to vector<8xf32>
    %1056 = vector.shape_cast %1055 : vector<8xf32> to vector<8x1xf32>
    %1057 = vector.broadcast %1056 : vector<8x1xf32> to vector<8x128xf32>
    %1058 = arith.cmpf oge, %1050, %1057 : vector<8x128xf32>
    %cst_361 = arith.constant 1.280000e+02 : f32
    %1059 = vector.broadcast %cst_361 : f32 to vector<8x128xf32>
    %1060 = arith.select %1058, %593, %1059 : vector<8x128xi1>, vector<8x128xf32>
    %cst_362 = arith.constant dense<0x7F800000> : vector<8xf32>
    %1061 = vector.multi_reduction <minimumf>, %1060, %cst_362 [1] : vector<8x128xf32> to vector<8xf32>
    %1062 = vector.shape_cast %1061 : vector<8xf32> to vector<8x1xf32>
    %1063 = vector.broadcast %1062 : vector<8x1xf32> to vector<8x128xf32>
    %1064 = arith.cmpf oeq, %593, %1063 : vector<8x128xf32>
    %1065 = arith.extui %1064 : vector<8x128xi1> to vector<8x128xi32>
    %1066 = arith.sitofp %1065 : vector<8x128xi32> to vector<8x128xf32>
    %1067 = arith.truncf %1066 : vector<8x128xf32> to vector<8x128xbf16>
    %c0_363 = arith.constant 0 : index
    %c0_364 = arith.constant 0 : index
    %1068 = vector.load %arg8[%c0_363, %c0_364] : memref<128x512xbf16, #tpu.memory_space<vmem>>, vector<128x512xbf16>
    %cst_365 = arith.constant dense<0.000000e+00> : vector<8x512xf32>
    %1069 = tpu.matmul %1067, %1068, %cst_365 {dimension_numbers = #tpu.dot_dimension_numbers<[1], [0], [0], [1], [0, 0, 1, 1], [], []>} : vector<8x128xbf16>, vector<128x512xbf16>, vector<8x512xf32> -> vector<8x512xf32>
    %c6_i32_366 = arith.constant 6 : i32
    %1070 = arith.truncf %1005 : vector<8x32xf32> to vector<8x32xbf16>
    %c0_367 = arith.constant 0 : index
    %c0_368 = arith.constant 0 : index
    %c0_369 = arith.constant 0 : index
    %1071 = vector.load %arg5[%c0_367, %c0_368, %c0_369] : memref<2x32x512xbf16, #tpu.memory_space<vmem>>, vector<1x32x512xbf16>
    %1072 = vector.shape_cast %1071 : vector<1x32x512xbf16> to vector<32x512xbf16>
    %cst_370 = arith.constant dense<0.000000e+00> : vector<8x512xf32>
    %1073 = tpu.matmul %1070, %1072, %cst_370 {dimension_numbers = #tpu.dot_dimension_numbers<[1], [0], [0], [1], [0, 0, 1, 1], [], []>} : vector<8x32xbf16>, vector<32x512xbf16>, vector<8x512xf32> -> vector<8x512xf32>
    %1074 = arith.addf %1069, %1073 : vector<8x512xf32>
    %1075 = vector.extract_strided_slice %1074 {offsets = [0, 0], sizes = [8, 128], strides = [1, 1]} : vector<8x512xf32> to vector<8x128xf32>
    %1076 = arith.negf %1075 : vector<8x128xf32>
    %1077 = math.exp %1076 : vector<8x128xf32>
    %cst_371 = arith.constant 1.000000e+00 : f32
    %1078 = vector.broadcast %cst_371 : f32 to vector<8x128xf32>
    %1079 = arith.addf %1078, %1077 : vector<8x128xf32>
    %1080 = arith.divf %1078, %1079 : vector<8x128xf32>
    %1081 = vector.extract_strided_slice %1074 {offsets = [0, 128], sizes = [8, 128], strides = [1, 1]} : vector<8x512xf32> to vector<8x128xf32>
    %1082 = arith.negf %1081 : vector<8x128xf32>
    %1083 = math.exp %1082 : vector<8x128xf32>
    %cst_372 = arith.constant 1.000000e+00 : f32
    %1084 = vector.broadcast %cst_372 : f32 to vector<8x128xf32>
    %1085 = arith.addf %1084, %1083 : vector<8x128xf32>
    %1086 = arith.divf %1084, %1085 : vector<8x128xf32>
    %1087 = vector.extract_strided_slice %1074 {offsets = [0, 256], sizes = [8, 128], strides = [1, 1]} : vector<8x512xf32> to vector<8x128xf32>
    %1088 = math.tanh %1087 : vector<8x128xf32>
    %1089 = vector.extract_strided_slice %1074 {offsets = [0, 384], sizes = [8, 128], strides = [1, 1]} : vector<8x512xf32> to vector<8x128xf32>
    %1090 = arith.negf %1089 : vector<8x128xf32>
    %1091 = math.exp %1090 : vector<8x128xf32>
    %cst_373 = arith.constant 1.000000e+00 : f32
    %1092 = vector.broadcast %cst_373 : f32 to vector<8x128xf32>
    %1093 = arith.addf %1092, %1091 : vector<8x128xf32>
    %1094 = arith.divf %1092, %1093 : vector<8x128xf32>
    %1095 = arith.mulf %1086, %1002 : vector<8x128xf32>
    %1096 = arith.mulf %1080, %1088 : vector<8x128xf32>
    %1097 = arith.addf %1095, %1096 : vector<8x128xf32>
    %1098 = math.tanh %1097 : vector<8x128xf32>
    %1099 = arith.mulf %1094, %1098 : vector<8x128xf32>
    %1100 = vector.extract_strided_slice %1099 {offsets = [0, 0], sizes = [8, 32], strides = [1, 1]} : vector<8x128xf32> to vector<8x32xf32>
    %1101 = arith.truncf %1100 : vector<8x32xf32> to vector<8x32xbf16>
    %c0_374 = arith.constant 0 : index
    %c0_375 = arith.constant 0 : index
    %c0_376 = arith.constant 0 : index
    %1102 = vector.load %arg6[%c0_374, %c0_375, %c0_376] : memref<1x32x512xbf16, #tpu.memory_space<vmem>>, vector<1x32x512xbf16>
    %1103 = vector.shape_cast %1102 : vector<1x32x512xbf16> to vector<32x512xbf16>
    %cst_377 = arith.constant dense<0.000000e+00> : vector<8x512xf32>
    %1104 = tpu.matmul %1101, %1103, %cst_377 {dimension_numbers = #tpu.dot_dimension_numbers<[1], [0], [0], [1], [0, 0, 1, 1], [], []>} : vector<8x32xbf16>, vector<32x512xbf16>, vector<8x512xf32> -> vector<8x512xf32>
    %1105 = arith.truncf %1044 : vector<8x32xf32> to vector<8x32xbf16>
    %c1_378 = arith.constant 1 : index
    %c0_379 = arith.constant 0 : index
    %c0_380 = arith.constant 0 : index
    %1106 = vector.load %arg5[%c1_378, %c0_379, %c0_380] : memref<2x32x512xbf16, #tpu.memory_space<vmem>>, vector<1x32x512xbf16>
    %1107 = vector.shape_cast %1106 : vector<1x32x512xbf16> to vector<32x512xbf16>
    %cst_381 = arith.constant dense<0.000000e+00> : vector<8x512xf32>
    %1108 = tpu.matmul %1105, %1107, %cst_381 {dimension_numbers = #tpu.dot_dimension_numbers<[1], [0], [0], [1], [0, 0, 1, 1], [], []>} : vector<8x32xbf16>, vector<32x512xbf16>, vector<8x512xf32> -> vector<8x512xf32>
    %1109 = arith.addf %1104, %1108 : vector<8x512xf32>
    %c0_382 = arith.constant 0 : index
    %c0_383 = arith.constant 0 : index
    %c0_384 = arith.constant 0 : index
    %1110 = vector.load %arg7[%c0_382, %c0_383, %c0_384] : memref<1x1x512xf32, #tpu.memory_space<vmem>>, vector<1x1x512xf32>
    %1111 = vector.shape_cast %1110 : vector<1x1x512xf32> to vector<1x512xf32>
    %1112 = vector.broadcast %1111 : vector<1x512xf32> to vector<8x512xf32>
    %1113 = arith.addf %1109, %1112 : vector<8x512xf32>
    %1114 = vector.extract_strided_slice %1113 {offsets = [0, 0], sizes = [8, 128], strides = [1, 1]} : vector<8x512xf32> to vector<8x128xf32>
    %1115 = arith.negf %1114 : vector<8x128xf32>
    %1116 = math.exp %1115 : vector<8x128xf32>
    %cst_385 = arith.constant 1.000000e+00 : f32
    %1117 = vector.broadcast %cst_385 : f32 to vector<8x128xf32>
    %1118 = arith.addf %1117, %1116 : vector<8x128xf32>
    %1119 = arith.divf %1117, %1118 : vector<8x128xf32>
    %1120 = vector.extract_strided_slice %1113 {offsets = [0, 128], sizes = [8, 128], strides = [1, 1]} : vector<8x512xf32> to vector<8x128xf32>
    %1121 = arith.negf %1120 : vector<8x128xf32>
    %1122 = math.exp %1121 : vector<8x128xf32>
    %cst_386 = arith.constant 1.000000e+00 : f32
    %1123 = vector.broadcast %cst_386 : f32 to vector<8x128xf32>
    %1124 = arith.addf %1123, %1122 : vector<8x128xf32>
    %1125 = arith.divf %1123, %1124 : vector<8x128xf32>
    %1126 = vector.extract_strided_slice %1113 {offsets = [0, 256], sizes = [8, 128], strides = [1, 1]} : vector<8x512xf32> to vector<8x128xf32>
    %1127 = math.tanh %1126 : vector<8x128xf32>
    %1128 = vector.extract_strided_slice %1113 {offsets = [0, 384], sizes = [8, 128], strides = [1, 1]} : vector<8x512xf32> to vector<8x128xf32>
    %1129 = arith.negf %1128 : vector<8x128xf32>
    %1130 = math.exp %1129 : vector<8x128xf32>
    %cst_387 = arith.constant 1.000000e+00 : f32
    %1131 = vector.broadcast %cst_387 : f32 to vector<8x128xf32>
    %1132 = arith.addf %1131, %1130 : vector<8x128xf32>
    %1133 = arith.divf %1131, %1132 : vector<8x128xf32>
    %1134 = arith.mulf %1125, %1041 : vector<8x128xf32>
    %1135 = arith.mulf %1119, %1127 : vector<8x128xf32>
    %1136 = arith.addf %1134, %1135 : vector<8x128xf32>
    %1137 = math.tanh %1136 : vector<8x128xf32>
    %1138 = arith.mulf %1133, %1137 : vector<8x128xf32>
    %1139 = vector.extract_strided_slice %1138 {offsets = [0, 0], sizes = [8, 32], strides = [1, 1]} : vector<8x128xf32> to vector<8x32xf32>
    %1140 = arith.truncf %1139 : vector<8x32xf32> to vector<8x32xbf16>
    %c0_388 = arith.constant 0 : index
    %c0_389 = arith.constant 0 : index
    %1141 = vector.load %arg9[%c0_388, %c0_389] : memref<32x128xbf16, #tpu.memory_space<vmem>>, vector<32x128xbf16>
    %cst_390 = arith.constant dense<0.000000e+00> : vector<8x128xf32>
    %1142 = tpu.matmul %1140, %1141, %cst_390 {dimension_numbers = #tpu.dot_dimension_numbers<[1], [0], [0], [1], [0, 0, 1, 1], [], []>} : vector<8x32xbf16>, vector<32x128xbf16>, vector<8x128xf32> -> vector<8x128xf32>
    %c0_391 = arith.constant 0 : index
    %c0_392 = arith.constant 0 : index
    %1143 = vector.load %arg10[%c0_391, %c0_392] : memref<1x128xf32, #tpu.memory_space<vmem>>, vector<1x128xf32>
    %1144 = vector.broadcast %1143 : vector<1x128xf32> to vector<8x128xf32>
    %1145 = arith.addf %1142, %1144 : vector<8x128xf32>
    %1146 = arith.index_cast %c6_i32_366 : i32 to index
    %c0_393 = arith.constant 0 : index
    %c0_394 = arith.constant 0 : index
    %1147 = vector.load %arg12[%1146, %c0_393, %c0_394] : memref<8x8x128xf32, #tpu.memory_space<vmem>>, vector<1x8x128xf32>
    %1148 = vector.shape_cast %1147 : vector<1x8x128xf32> to vector<8x128xf32>
    %1149 = vector.shape_cast %1145 : vector<8x128xf32> to vector<1x8x128xf32>
    tpu.vector_store %arg12[%1146, %c0_393, %c0_394], %1149 {strides = array<i32>} : memref<8x8x128xf32, #tpu.memory_space<vmem>>, vector<1x8x128xf32>,
    %cst_395 = arith.constant dense<0xFF800000> : vector<8xf32>
    %1150 = vector.multi_reduction <maximumf>, %1145, %cst_395 [1] : vector<8x128xf32> to vector<8xf32>
    %1151 = vector.shape_cast %1150 : vector<8xf32> to vector<8x1xf32>
    %1152 = vector.broadcast %1151 : vector<8x1xf32> to vector<8x128xf32>
    %1153 = arith.cmpf oge, %1145, %1152 : vector<8x128xf32>
    %cst_396 = arith.constant 1.280000e+02 : f32
    %1154 = vector.broadcast %cst_396 : f32 to vector<8x128xf32>
    %1155 = arith.select %1153, %593, %1154 : vector<8x128xi1>, vector<8x128xf32>
    %cst_397 = arith.constant dense<0x7F800000> : vector<8xf32>
    %1156 = vector.multi_reduction <minimumf>, %1155, %cst_397 [1] : vector<8x128xf32> to vector<8xf32>
    %1157 = vector.shape_cast %1156 : vector<8xf32> to vector<8x1xf32>
    %1158 = vector.broadcast %1157 : vector<8x1xf32> to vector<8x128xf32>
    %1159 = arith.cmpf oeq, %593, %1158 : vector<8x128xf32>
    %1160 = arith.extui %1159 : vector<8x128xi1> to vector<8x128xi32>
    %1161 = arith.sitofp %1160 : vector<8x128xi32> to vector<8x128xf32>
    %1162 = arith.truncf %1161 : vector<8x128xf32> to vector<8x128xbf16>
    %c0_398 = arith.constant 0 : index
    %c0_399 = arith.constant 0 : index
    %1163 = vector.load %arg8[%c0_398, %c0_399] : memref<128x512xbf16, #tpu.memory_space<vmem>>, vector<128x512xbf16>
    %cst_400 = arith.constant dense<0.000000e+00> : vector<8x512xf32>
    %1164 = tpu.matmul %1162, %1163, %cst_400 {dimension_numbers = #tpu.dot_dimension_numbers<[1], [0], [0], [1], [0, 0, 1, 1], [], []>} : vector<8x128xbf16>, vector<128x512xbf16>, vector<8x512xf32> -> vector<8x512xf32>
    %c7_i32_401 = arith.constant 7 : i32
    %1165 = arith.truncf %1100 : vector<8x32xf32> to vector<8x32xbf16>
    %c0_402 = arith.constant 0 : index
    %c0_403 = arith.constant 0 : index
    %c0_404 = arith.constant 0 : index
    %1166 = vector.load %arg5[%c0_402, %c0_403, %c0_404] : memref<2x32x512xbf16, #tpu.memory_space<vmem>>, vector<1x32x512xbf16>
    %1167 = vector.shape_cast %1166 : vector<1x32x512xbf16> to vector<32x512xbf16>
    %cst_405 = arith.constant dense<0.000000e+00> : vector<8x512xf32>
    %1168 = tpu.matmul %1165, %1167, %cst_405 {dimension_numbers = #tpu.dot_dimension_numbers<[1], [0], [0], [1], [0, 0, 1, 1], [], []>} : vector<8x32xbf16>, vector<32x512xbf16>, vector<8x512xf32> -> vector<8x512xf32>
    %1169 = arith.addf %1164, %1168 : vector<8x512xf32>
    %1170 = vector.extract_strided_slice %1169 {offsets = [0, 0], sizes = [8, 128], strides = [1, 1]} : vector<8x512xf32> to vector<8x128xf32>
    %1171 = arith.negf %1170 : vector<8x128xf32>
    %1172 = math.exp %1171 : vector<8x128xf32>
    %cst_406 = arith.constant 1.000000e+00 : f32
    %1173 = vector.broadcast %cst_406 : f32 to vector<8x128xf32>
    %1174 = arith.addf %1173, %1172 : vector<8x128xf32>
    %1175 = arith.divf %1173, %1174 : vector<8x128xf32>
    %1176 = vector.extract_strided_slice %1169 {offsets = [0, 128], sizes = [8, 128], strides = [1, 1]} : vector<8x512xf32> to vector<8x128xf32>
    %1177 = arith.negf %1176 : vector<8x128xf32>
    %1178 = math.exp %1177 : vector<8x128xf32>
    %cst_407 = arith.constant 1.000000e+00 : f32
    %1179 = vector.broadcast %cst_407 : f32 to vector<8x128xf32>
    %1180 = arith.addf %1179, %1178 : vector<8x128xf32>
    %1181 = arith.divf %1179, %1180 : vector<8x128xf32>
    %1182 = vector.extract_strided_slice %1169 {offsets = [0, 256], sizes = [8, 128], strides = [1, 1]} : vector<8x512xf32> to vector<8x128xf32>
    %1183 = math.tanh %1182 : vector<8x128xf32>
    %1184 = vector.extract_strided_slice %1169 {offsets = [0, 384], sizes = [8, 128], strides = [1, 1]} : vector<8x512xf32> to vector<8x128xf32>
    %1185 = arith.negf %1184 : vector<8x128xf32>
    %1186 = math.exp %1185 : vector<8x128xf32>
    %cst_408 = arith.constant 1.000000e+00 : f32
    %1187 = vector.broadcast %cst_408 : f32 to vector<8x128xf32>
    %1188 = arith.addf %1187, %1186 : vector<8x128xf32>
    %1189 = arith.divf %1187, %1188 : vector<8x128xf32>
    %1190 = arith.mulf %1181, %1097 : vector<8x128xf32>
    %1191 = arith.mulf %1175, %1183 : vector<8x128xf32>
    %1192 = arith.addf %1190, %1191 : vector<8x128xf32>
    %1193 = math.tanh %1192 : vector<8x128xf32>
    %1194 = arith.mulf %1189, %1193 : vector<8x128xf32>
    %1195 = vector.extract_strided_slice %1194 {offsets = [0, 0], sizes = [8, 32], strides = [1, 1]} : vector<8x128xf32> to vector<8x32xf32>
    %1196 = arith.truncf %1195 : vector<8x32xf32> to vector<8x32xbf16>
    %c0_409 = arith.constant 0 : index
    %c0_410 = arith.constant 0 : index
    %c0_411 = arith.constant 0 : index
    %1197 = vector.load %arg6[%c0_409, %c0_410, %c0_411] : memref<1x32x512xbf16, #tpu.memory_space<vmem>>, vector<1x32x512xbf16>
    %1198 = vector.shape_cast %1197 : vector<1x32x512xbf16> to vector<32x512xbf16>
    %cst_412 = arith.constant dense<0.000000e+00> : vector<8x512xf32>
    %1199 = tpu.matmul %1196, %1198, %cst_412 {dimension_numbers = #tpu.dot_dimension_numbers<[1], [0], [0], [1], [0, 0, 1, 1], [], []>} : vector<8x32xbf16>, vector<32x512xbf16>, vector<8x512xf32> -> vector<8x512xf32>
    %1200 = arith.truncf %1139 : vector<8x32xf32> to vector<8x32xbf16>
    %c1_413 = arith.constant 1 : index
    %c0_414 = arith.constant 0 : index
    %c0_415 = arith.constant 0 : index
    %1201 = vector.load %arg5[%c1_413, %c0_414, %c0_415] : memref<2x32x512xbf16, #tpu.memory_space<vmem>>, vector<1x32x512xbf16>
    %1202 = vector.shape_cast %1201 : vector<1x32x512xbf16> to vector<32x512xbf16>
    %cst_416 = arith.constant dense<0.000000e+00> : vector<8x512xf32>
    %1203 = tpu.matmul %1200, %1202, %cst_416 {dimension_numbers = #tpu.dot_dimension_numbers<[1], [0], [0], [1], [0, 0, 1, 1], [], []>} : vector<8x32xbf16>, vector<32x512xbf16>, vector<8x512xf32> -> vector<8x512xf32>
    %1204 = arith.addf %1199, %1203 : vector<8x512xf32>
    %c0_417 = arith.constant 0 : index
    %c0_418 = arith.constant 0 : index
    %c0_419 = arith.constant 0 : index
    %1205 = vector.load %arg7[%c0_417, %c0_418, %c0_419] : memref<1x1x512xf32, #tpu.memory_space<vmem>>, vector<1x1x512xf32>
    %1206 = vector.shape_cast %1205 : vector<1x1x512xf32> to vector<1x512xf32>
    %1207 = vector.broadcast %1206 : vector<1x512xf32> to vector<8x512xf32>
    %1208 = arith.addf %1204, %1207 : vector<8x512xf32>
    %1209 = vector.extract_strided_slice %1208 {offsets = [0, 0], sizes = [8, 128], strides = [1, 1]} : vector<8x512xf32> to vector<8x128xf32>
    %1210 = arith.negf %1209 : vector<8x128xf32>
    %1211 = math.exp %1210 : vector<8x128xf32>
    %cst_420 = arith.constant 1.000000e+00 : f32
    %1212 = vector.broadcast %cst_420 : f32 to vector<8x128xf32>
    %1213 = arith.addf %1212, %1211 : vector<8x128xf32>
    %1214 = arith.divf %1212, %1213 : vector<8x128xf32>
    %1215 = vector.extract_strided_slice %1208 {offsets = [0, 128], sizes = [8, 128], strides = [1, 1]} : vector<8x512xf32> to vector<8x128xf32>
    %1216 = arith.negf %1215 : vector<8x128xf32>
    %1217 = math.exp %1216 : vector<8x128xf32>
    %cst_421 = arith.constant 1.000000e+00 : f32
    %1218 = vector.broadcast %cst_421 : f32 to vector<8x128xf32>
    %1219 = arith.addf %1218, %1217 : vector<8x128xf32>
    %1220 = arith.divf %1218, %1219 : vector<8x128xf32>
    %1221 = vector.extract_strided_slice %1208 {offsets = [0, 256], sizes = [8, 128], strides = [1, 1]} : vector<8x512xf32> to vector<8x128xf32>
    %1222 = math.tanh %1221 : vector<8x128xf32>
    %1223 = vector.extract_strided_slice %1208 {offsets = [0, 384], sizes = [8, 128], strides = [1, 1]} : vector<8x512xf32> to vector<8x128xf32>
    %1224 = arith.negf %1223 : vector<8x128xf32>
    %1225 = math.exp %1224 : vector<8x128xf32>
    %cst_422 = arith.constant 1.000000e+00 : f32
    %1226 = vector.broadcast %cst_422 : f32 to vector<8x128xf32>
    %1227 = arith.addf %1226, %1225 : vector<8x128xf32>
    %1228 = arith.divf %1226, %1227 : vector<8x128xf32>
    %1229 = arith.mulf %1220, %1136 : vector<8x128xf32>
    %1230 = arith.mulf %1214, %1222 : vector<8x128xf32>
    %1231 = arith.addf %1229, %1230 : vector<8x128xf32>
    %1232 = math.tanh %1231 : vector<8x128xf32>
    %1233 = arith.mulf %1228, %1232 : vector<8x128xf32>
    %1234 = vector.extract_strided_slice %1233 {offsets = [0, 0], sizes = [8, 32], strides = [1, 1]} : vector<8x128xf32> to vector<8x32xf32>
    %1235 = arith.truncf %1234 : vector<8x32xf32> to vector<8x32xbf16>
    %c0_423 = arith.constant 0 : index
    %c0_424 = arith.constant 0 : index
    %1236 = vector.load %arg9[%c0_423, %c0_424] : memref<32x128xbf16, #tpu.memory_space<vmem>>, vector<32x128xbf16>
    %cst_425 = arith.constant dense<0.000000e+00> : vector<8x128xf32>
    %1237 = tpu.matmul %1235, %1236, %cst_425 {dimension_numbers = #tpu.dot_dimension_numbers<[1], [0], [0], [1], [0, 0, 1, 1], [], []>} : vector<8x32xbf16>, vector<32x128xbf16>, vector<8x128xf32> -> vector<8x128xf32>
    %c0_426 = arith.constant 0 : index
    %c0_427 = arith.constant 0 : index
    %1238 = vector.load %arg10[%c0_426, %c0_427] : memref<1x128xf32, #tpu.memory_space<vmem>>, vector<1x128xf32>
    %1239 = vector.broadcast %1238 : vector<1x128xf32> to vector<8x128xf32>
    %1240 = arith.addf %1237, %1239 : vector<8x128xf32>
    %1241 = arith.index_cast %c7_i32_401 : i32 to index
    %c0_428 = arith.constant 0 : index
    %c0_429 = arith.constant 0 : index
    %1242 = vector.load %arg12[%1241, %c0_428, %c0_429] : memref<8x8x128xf32, #tpu.memory_space<vmem>>, vector<1x8x128xf32>
    %1243 = vector.shape_cast %1242 : vector<1x8x128xf32> to vector<8x128xf32>
    %1244 = vector.shape_cast %1240 : vector<8x128xf32> to vector<1x8x128xf32>
    tpu.vector_store %arg12[%1241, %c0_428, %c0_429], %1244 {strides = array<i32>} : memref<8x8x128xf32, #tpu.memory_space<vmem>>, vector<1x8x128xf32>,
    %cst_430 = arith.constant dense<0xFF800000> : vector<8xf32>
    %1245 = vector.multi_reduction <maximumf>, %1240, %cst_430 [1] : vector<8x128xf32> to vector<8xf32>
    %1246 = vector.shape_cast %1245 : vector<8xf32> to vector<8x1xf32>
    %1247 = vector.broadcast %1246 : vector<8x1xf32> to vector<8x128xf32>
    %1248 = arith.cmpf oge, %1240, %1247 : vector<8x128xf32>
    %cst_431 = arith.constant 1.280000e+02 : f32
    %1249 = vector.broadcast %cst_431 : f32 to vector<8x128xf32>
    %1250 = arith.select %1248, %593, %1249 : vector<8x128xi1>, vector<8x128xf32>
    %cst_432 = arith.constant dense<0x7F800000> : vector<8xf32>
    %1251 = vector.multi_reduction <minimumf>, %1250, %cst_432 [1] : vector<8x128xf32> to vector<8xf32>
    %1252 = vector.shape_cast %1251 : vector<8xf32> to vector<8x1xf32>
    %1253 = vector.broadcast %1252 : vector<8x1xf32> to vector<8x128xf32>
    %1254 = arith.cmpf oeq, %593, %1253 : vector<8x128xf32>
    %1255 = arith.extui %1254 : vector<8x128xi1> to vector<8x128xi32>
    %1256 = arith.sitofp %1255 : vector<8x128xi32> to vector<8x128xf32>
    %1257 = arith.truncf %1256 : vector<8x128xf32> to vector<8x128xbf16>
    %c0_433 = arith.constant 0 : index
    %c0_434 = arith.constant 0 : index
    %1258 = vector.load %arg8[%c0_433, %c0_434] : memref<128x512xbf16, #tpu.memory_space<vmem>>, vector<128x512xbf16>
    %cst_435 = arith.constant dense<0.000000e+00> : vector<8x512xf32>
    %1259 = tpu.matmul %1257, %1258, %cst_435 {dimension_numbers = #tpu.dot_dimension_numbers<[1], [0], [0], [1], [0, 0, 1, 1], [], []>} : vector<8x128xbf16>, vector<128x512xbf16>, vector<8x512xf32> -> vector<8x512xf32>
    %c7_i32_436 = arith.constant 7 : i32
    return
  }
  func.func @transform_0(%arg0: i32) -> (i32, i32, i32) {
    %c0_i32 = arith.constant 0 : i32
    %c0_i32_0 = arith.constant 0 : i32
    %c0_i32_1 = arith.constant 0 : i32
    %c0_i32_2 = arith.constant 0 : i32
    return %c0_i32, %c0_i32_0, %c0_i32_1 : i32, i32, i32
  }
  func.func @transform_1(%arg0: i32) -> (i32, i32, i32) {
    %c0_i32 = arith.constant 0 : i32
    %c0_i32_0 = arith.constant 0 : i32
    %c0_i32_1 = arith.constant 0 : i32
    %c0_i32_2 = arith.constant 0 : i32
    return %c0_i32, %c0_i32_0, %c0_i32_1 : i32, i32, i32
  }
  func.func @transform_2(%arg0: i32) -> (i32, i32, i32) {
    %c0_i32 = arith.constant 0 : i32
    %c0_i32_0 = arith.constant 0 : i32
    %c0_i32_1 = arith.constant 0 : i32
    %c0_i32_2 = arith.constant 0 : i32
    return %c0_i32, %c0_i32_0, %c0_i32_1 : i32, i32, i32
  }
  func.func @transform_3(%arg0: i32) -> (i32, i32, i32) {
    %c0_i32 = arith.constant 0 : i32
    %c0_i32_0 = arith.constant 0 : i32
    %c0_i32_1 = arith.constant 0 : i32
    %c0_i32_2 = arith.constant 0 : i32
    return %c0_i32, %c0_i32_0, %c0_i32_1 : i32, i32, i32
  }
  func.func @transform_4(%arg0: i32) -> (i32, i32, i32) {
    %c0_i32 = arith.constant 0 : i32
    %c0_i32_0 = arith.constant 0 : i32
    %c0_i32_1 = arith.constant 0 : i32
    %c0_i32_2 = arith.constant 0 : i32
    return %c0_i32, %c0_i32_0, %c0_i32_1 : i32, i32, i32
  }
  func.func @transform_5(%arg0: i32) -> (i32, i32, i32) {
    %c0_i32 = arith.constant 0 : i32
    %c0_i32_0 = arith.constant 0 : i32
    %c0_i32_1 = arith.constant 0 : i32
    %c0_i32_2 = arith.constant 0 : i32
    return %c0_i32, %c0_i32_0, %c0_i32_1 : i32, i32, i32
  }
  func.func @transform_6(%arg0: i32) -> (i32, i32, i32) {
    %c0_i32 = arith.constant 0 : i32
    %c0_i32_0 = arith.constant 0 : i32
    %c0_i32_1 = arith.constant 0 : i32
    %c0_i32_2 = arith.constant 0 : i32
    return %c0_i32, %c0_i32_0, %c0_i32_1 : i32, i32, i32
  }
  func.func @transform_7(%arg0: i32) -> (i32, i32) {
    %c0_i32 = arith.constant 0 : i32
    %c0_i32_0 = arith.constant 0 : i32
    %c0_i32_1 = arith.constant 0 : i32
    return %c0_i32, %c0_i32_0 : i32, i32
  }
  func.func @transform_8(%arg0: i32) -> (i32, i32) {
    %c0_i32 = arith.constant 0 : i32
    %c0_i32_0 = arith.constant 0 : i32
    %c0_i32_1 = arith.constant 0 : i32
    return %c0_i32, %c0_i32_0 : i32, i32
  }
  func.func @transform_9(%arg0: i32) -> (i32, i32) {
    %c0_i32 = arith.constant 0 : i32
    %c0_i32_0 = arith.constant 0 : i32
    %c0_i32_1 = arith.constant 0 : i32
    return %c0_i32, %c0_i32_0 : i32, i32
  }
  func.func @transform_10(%arg0: i32) -> (i32, i32) {
    %c0_i32 = arith.constant 0 : i32
    %c0_i32_0 = arith.constant 0 : i32
    %c0_i32_1 = arith.constant 0 : i32
    return %c0_i32, %c0_i32_0 : i32, i32
  }
  func.func @transform_11(%arg0: i32) -> (i32, i32, i32) {
    %c0_i32 = arith.constant 0 : i32
    %c0_i32_0 = arith.constant 0 : i32
    %c0_i32_1 = arith.constant 0 : i32
    %c0_i32_2 = arith.constant 0 : i32
    return %c0_i32, %c0_i32_0, %c0_i32_1 : i32, i32, i32
  }
}

</mosaic_0001>

<llo_original>
// kernel: seq2seq_forward.1
$region0: #{seq2seq_forward.1}
  #allocation0 [shape = 'u32[]', space=smem, size = 0x4, offset = 0x4, fixed_abs, tag = 'smem constant byte address 0x4 - core index']
  #allocation1 [shape = 'u32[144,128]{1,0:T(1,128)}', space=vmem, size = 0x12000, scoped, tag = 'internal scratch']
  %s0 = inlined_call_operand.vmem [shape: f32[8,8,512], index: 0, kind: input, shape index: {}]
  %s1 = inlined_call_operand.vmem [shape: bf16[2,32,512], index: 1, kind: input, shape index: {}]
  %s2 = inlined_call_operand.vmem [shape: bf16[1,32,512], index: 2, kind: input, shape index: {}]
  %s3 = inlined_call_operand.vmem [shape: f32[1,1,512], index: 3, kind: input, shape index: {}]
  %s4 = inlined_call_operand.vmem [shape: bf16[2,32,512], index: 4, kind: input, shape index: {}]
  %s5 = inlined_call_operand.vmem [shape: bf16[1,32,512], index: 5, kind: input, shape index: {}]
  %s6 = inlined_call_operand.vmem [shape: f32[1,1,512], index: 6, kind: input, shape index: {}]
  %s7 = inlined_call_operand.vmem [shape: bf16[128,512], index: 7, kind: input, shape index: {}]
  %s8 = inlined_call_operand.vmem [shape: bf16[32,128], index: 8, kind: input, shape index: {}]
  %s9 = inlined_call_operand.vmem [shape: f32[1,128], index: 9, kind: input, shape index: {}]
  %s10 = inlined_call_operand.vmem [shape: f32[8,512], index: 10, kind: input, shape index: {}]
  %s11 = inlined_call_operand.vmem [shape: f32[8,8,128], index: 11, kind: output, shape index: {}]
  %s12 = sld [smem:[#allocation0]]
  $region54: #{seq2seq_forward.1} parent=0
    _
  %s14 = ssub.s32 1, %s12
  %s15 = scalar_select 0, %s14, %s12
  // Predicated region
  $region2: #{seq2seq_forward.1} parent=0 // pred_check
    _
  $region3: #{seq2seq_forward.1} parent=0 // pred_check_branch
    %17 = sbr.rel (0) target = $region5
  $region4: #{seq2seq_forward.1} parent=0 // pred_region
    _
  $region5: #{seq2seq_forward.1} parent=0 // pred_fallthru
    _
  // Predicated region
  $region6: #{seq2seq_forward.1} parent=0 // pred_check
    _
  $region7: #{seq2seq_forward.1} parent=0 // pred_check_branch
    %19 = sbr.rel (0) target = $region9
  $region8: #{seq2seq_forward.1} parent=0 // pred_region
    _
  $region9: #{seq2seq_forward.1} parent=0 // pred_fallthru
    _
  // Predicated region
  $region10: #{seq2seq_forward.1} parent=0 // pred_check
    _
  $region11: #{seq2seq_forward.1} parent=0 // pred_check_branch
    %21 = sbr.rel (0) target = $region13
  $region12: #{seq2seq_forward.1} parent=0 // pred_region
    _
  $region13: #{seq2seq_forward.1} parent=0 // pred_fallthru
    _
  // Predicated region
  $region14: #{seq2seq_forward.1} parent=0 // pred_check
    _
  $region15: #{seq2seq_forward.1} parent=0 // pred_check_branch
    %23 = sbr.rel (0) target = $region17
  $region16: #{seq2seq_forward.1} parent=0 // pred_region
    _
  $region17: #{seq2seq_forward.1} parent=0 // pred_fallthru
    _
  // Predicated region
  $region18: #{seq2seq_forward.1} parent=0 // pred_check
    _
  $region19: #{seq2seq_forward.1} parent=0 // pred_check_branch
    %25 = sbr.rel (0) target = $region21
  $region20: #{seq2seq_forward.1} parent=0 // pred_region
    _
  $region21: #{seq2seq_forward.1} parent=0 // pred_fallthru
    _
  // Predicated region
  $region22: #{seq2seq_forward.1} parent=0 // pred_check
    _
  $region23: #{seq2seq_forward.1} parent=0 // pred_check_branch
    %27 = sbr.rel (0) target = $region25
  $region24: #{seq2seq_forward.1} parent=0 // pred_region
    _
  $region25: #{seq2seq_forward.1} parent=0 // pred_fallthru
    _
  // Predicated region
  $region26: #{seq2seq_forward.1} parent=0 // pred_check
    _
  $region27: #{seq2seq_forward.1} parent=0 // pred_check_branch
    %29 = sbr.rel (0) target = $region29
  $region28: #{seq2seq_forward.1} parent=0 // pred_region
    _
  $region29: #{seq2seq_forward.1} parent=0 // pred_fallthru
    _
  // Predicated region
  $region30: #{seq2seq_forward.1} parent=0 // pred_check
    _
  $region31: #{seq2seq_forward.1} parent=0 // pred_check_branch
    %31 = sbr.rel (0) target = $region33
  $region32: #{seq2seq_forward.1} parent=0 // pred_region
    _
  $region33: #{seq2seq_forward.1} parent=0 // pred_fallthru
    _
  // Predicated region
  $region34: #{seq2seq_forward.1} parent=0 // pred_check
    _
  $region35: #{seq2seq_forward.1} parent=0 // pred_check_branch
    %33 = sbr.rel (0) target = $region37
  $region36: #{seq2seq_forward.1} parent=0 // pred_region
    _
  $region37: #{seq2seq_forward.1} parent=0 // pred_fallthru
    _
  // Predicated region
  $region38: #{seq2seq_forward.1} parent=0 // pred_check
    _
  $region39: #{seq2seq_forward.1} parent=0 // pred_check_branch
    %35 = sbr.rel (0) target = $region41
  $region40: #{seq2seq_forward.1} parent=0 // pred_region
    _
  $region41: #{seq2seq_forward.1} parent=0 // pred_fallthru
    _
  // Predicated region
  $region42: #{seq2seq_forward.1} parent=0 // pred_check
    _
  $region43: #{seq2seq_forward.1} parent=0 // pred_check_branch
    %37 = sbr.rel (0) target = $region45
  $region44: #{seq2seq_forward.1} parent=0 // pred_region
    _
  $region45: #{seq2seq_forward.1} parent=0 // pred_fallthru
    _
  %v39 = vld [vmem:[%s0] sm:$0xff]
  %v40 = vld [vmem:[%s0 + $0x8] sm:$0xff]
  %v41 = vld [vmem:[%s0 + $0x10] sm:$0xff]
  %v42 = vld [vmem:[%s0 + $0x18] sm:$0xff]
  %v43 = vld [vmem:[%s1] sm:$0xff]
  %v44 = vld [vmem:[%s1 + $0x8] sm:$0xff]
  %v45 = vld [vmem:[%s1 + $0x10] sm:$0xff]
  %v46 = vld [vmem:[%s1 + $0x18] sm:$0xff]
  %v47 = vld [vmem:[%s1 + $0x20] sm:$0xff]
  %v48 = vld [vmem:[%s1 + $0x28] sm:$0xff]
  %v49 = vld [vmem:[%s1 + $0x30] sm:$0xff]
  %v50 = vld [vmem:[%s1 + $0x38] sm:$0xff]
  %v59 = vunpack.c.l.b16 %v43
  %v60 = vunpack.c.h.b16 %v43
  %v61 = vunpack.c.l.b16 %v44
  %v62 = vunpack.c.h.b16 %v44
  %v63 = vunpack.c.l.b16 %v45
  %v64 = vunpack.c.h.b16 %v45
  %v65 = vunpack.c.l.b16 %v46
  %v66 = vunpack.c.h.b16 %v46
  %v67 = vunpack.c.l.b16 %v47
  %v68 = vunpack.c.h.b16 %v47
  %v69 = vunpack.c.l.b16 %v48
  %v70 = vunpack.c.h.b16 %v48
  %v71 = vunpack.c.l.b16 %v49
  %v72 = vunpack.c.h.b16 %v49
  %v73 = vunpack.c.l.b16 %v50
  %v74 = vunpack.c.h.b16 %v50
  %v75 = vpack.c.b16 %v63, %v59
  %v76 = vpack.c.b16 %v64, %v60
  %v77 = vpack.c.b16 %v65, %v61
  %v78 = vpack.c.b16 %v66, %v62
  %v79 = vpack.c.b16 %v71, %v67
  %v80 = vpack.c.b16 %v72, %v68
  %v81 = vpack.c.b16 %v73, %v69
  %v82 = vpack.c.b16 %v74, %v70
  %vm91 = vcmask 261120
  %v93 = vsel %vm91, 0, 0
  %95 = vmatprep.subr.bf16.mxu0 %v76
  %96 = vmatpush1.bf16.msra.mxu0 %v75
  %97 = vmatprep.subr.bf16.mxu0 %v80
  %98 = vmatpush1.bf16.msra.mxu0 %v79
  %99 = vmatprep.subr.bf16.mxu0 0
  %100 = vmatpush1.bf16.msra.mxu0 0
  %101 = vmatprep.subr.bf16.mxu0 0
  %102 = vmatpush1.bf16.msra.mxu0 0
  %103 = vmatprep.subr.bf16.mxu0 0
  %104 = vmatpush1.bf16.msra.mxu0 0
  %105 = vmatprep.subr.bf16.mxu0 0
  %106 = vmatpush1.bf16.msra.mxu0 0
  %107 = vmatprep.subr.bf16.mxu0 0
  %108 = vmatpush1.bf16.msra.mxu0 0
  %109 = vmatprep.subr.bf16.mxu0 0
  %110 = vmatpush1.bf16.msra.mxu0 0
  %111 = vmatprep.subr.bf16.mxu0 0
  %112 = vmatpush1.bf16.msra.mxu0 0
  %113 = vmatprep.subr.bf16.mxu0 0
  %114 = vmatpush1.bf16.msra.mxu0 0
  %115 = vmatprep.subr.bf16.mxu0 0
  %116 = vmatpush1.bf16.msra.mxu0 0
  %117 = vmatprep.subr.bf16.mxu0 0
  %118 = vmatpush1.bf16.msra.mxu0 0
  %119 = vmatprep.subr.bf16.mxu0 0
  %120 = vmatpush1.bf16.msra.mxu0 0
  %121 = vmatprep.subr.bf16.mxu0 0
  %122 = vmatpush1.bf16.msra.mxu0 0
  %123 = vmatprep.subr.bf16.mxu0 0
  %124 = vmatpush1.bf16.msra.mxu0 0
  %125 = vmatprep.subr.bf16.mxu0 0
  %126 = vmatpush1.bf16.msra.mxu0 0
  %127 = vmatprep.mubr.bf16.mxu0 0
  %128 = vmatmul.mubr.bf16.gmra.mrb[0].mxu0 %v93
  %v129 = vpop.f32.mrb[0].mxu0
  %v130 = vadd.f32 0.0, %v129
  %v131 = vpop.f32.mrb[0].mxu0
  %v132 = vadd.f32 0.0, %v131
  %v133 = vpop.f32.mrb[0].mxu0
  %v134 = vpop.f32.mrb[0].mxu0
  %135 = vdwg.mxu0
  %136 = vmatprep.subr.bf16.mxu0 %v78
  %137 = vmatpush1.bf16.msra.mxu0 %v77
  %138 = vmatprep.subr.bf16.mxu0 %v82
  %139 = vmatpush1.bf16.msra.mxu0 %v81
  %140 = vmatprep.subr.bf16.mxu0 0
  %141 = vmatpush1.bf16.msra.mxu0 0
  %142 = vmatprep.subr.bf16.mxu0 0
  %143 = vmatpush1.bf16.msra.mxu0 0
  %144 = vmatprep.subr.bf16.mxu0 0
  %145 = vmatpush1.bf16.msra.mxu0 0
  %146 = vmatprep.subr.bf16.mxu0 0
  %147 = vmatpush1.bf16.msra.mxu0 0
  %148 = vmatprep.subr.bf16.mxu0 0
  %149 = vmatpush1.bf16.msra.mxu0 0
  %150 = vmatprep.subr.bf16.mxu0 0
  %151 = vmatpush1.bf16.msra.mxu0 0
  %152 = vmatprep.subr.bf16.mxu0 0
  %153 = vmatpush1.bf16.msra.mxu0 0
  %154 = vmatprep.subr.bf16.mxu0 0
  %155 = vmatpush1.bf16.msra.mxu0 0
  %156 = vmatprep.subr.bf16.mxu0 0
  %157 = vmatpush1.bf16.msra.mxu0 0
  %158 = vmatprep.subr.bf16.mxu0 0
  %159 = vmatpush1.bf16.msra.mxu0 0
  %160 = vmatprep.subr.bf16.mxu0 0
  %161 = vmatpush1.bf16.msra.mxu0 0
  %162 = vmatprep.subr.bf16.mxu0 0
  %163 = vmatpush1.bf16.msra.mxu0 0
  %164 = vmatprep.subr.bf16.mxu0 0
  %165 = vmatpush1.bf16.msra.mxu0 0
  %166 = vmatprep.subr.bf16.mxu0 0
  %167 = vmatpush1.bf16.msra.mxu0 0
  %168 = vmatprep.mubr.bf16.mxu0 0
  %169 = vmatmul.mubr.bf16.gmra.mrb[0].mxu0 %v93
  %v170 = vpop.f32.mrb[0].mxu0
  %v171 = vadd.f32 0.0, %v170
  %v172 = vpop.f32.mrb[0].mxu0
  %v173 = vadd.f32 0.0, %v172
  %v174 = vpop.f32.mrb[0].mxu0
  %v175 = vpop.f32.mrb[0].mxu0
  %176 = vdwg.mxu0
  %v177 = vadd.f32 %v39, %v130
  %v178 = vadd.f32 %v40, %v132
  %v179 = vadd.f32 %v41, %v171
  %v180 = vadd.f32 %v42, %v173
  %v181 = vxor.u32 %v177, 2147483648
  %v182 = vmul.f32 %v181, 1.442695
  %v183 = vpow.pop %v182
  %v184 = vadd.f32 %v183, 1.0
  %v185 = vrcp.pop %v184
  %v186 = vmul.f32 1.0, %v185
  %v187 = vxor.u32 %v178, 2147483648
  %v188 = vmul.f32 %v187, 1.442695
  %v189 = vpow.pop %v188
  %v190 = vadd.f32 %v189, 1.0
  %v191 = vrcp.pop %v190
  %v192 = vmul.f32 1.0, %v191
  %v193 = vtanh.pop %v179
  %v194 = vxor.u32 %v180, 2147483648
  %v195 = vmul.f32 %v194, 1.442695
  %v196 = vpow.pop %v195
  %v197 = vadd.f32 %v196, 1.0
  %v198 = vrcp.pop %v197
  %v199 = vmul.f32 1.0, %v198
  %v200 = vmul.f32 %v192, 0.0
  %v201 = vmul.f32 %v186, %v193
  %v202 = vadd.f32 %v200, %v201
  %v203 = vtanh.pop %v202
  %v204 = vmul.f32 %v199, %v203
  %v205 = vpack.c.bf16 %v204, %v204
  %v206 = vld [vmem:[%s2] sm:$0xff]
  %v207 = vld [vmem:[%s2 + $0x8] sm:$0xff]
  %v208 = vld [vmem:[%s2 + $0x10] sm:$0xff]
  %v209 = vld [vmem:[%s2 + $0x18] sm:$0xff]
  %v210 = vld [vmem:[%s2 + $0x20] sm:$0xff]
  %v211 = vld [vmem:[%s2 + $0x28] sm:$0xff]
  %v212 = vld [vmem:[%s2 + $0x30] sm:$0xff]
  %v213 = vld [vmem:[%s2 + $0x38] sm:$0xff]
  %s214 = scalar_lea.vmem %s1, 64
  %v215 = vld [vmem:[%s214] sm:$0xff]
  %v216 = vld [vmem:[%s214 + $0x8] sm:$0xff]
  %v217 = vld [vmem:[%s214 + $0x10] sm:$0xff]
  %v218 = vld [vmem:[%s214 + $0x18] sm:$0xff]
  %v219 = vld [vmem:[%s214 + $0x20] sm:$0xff]
  %v220 = vld [vmem:[%s214 + $0x28] sm:$0xff]
  %v221 = vld [vmem:[%s214 + $0x30] sm:$0xff]
  %v222 = vld [vmem:[%s214 + $0x38] sm:$0xff]
  %v231 = vunpack.c.l.b16 %v215
  %v232 = vunpack.c.h.b16 %v215
  %v233 = vunpack.c.l.b16 %v216
  %v234 = vunpack.c.h.b16 %v216
  %v235 = vunpack.c.l.b16 %v217
  %v236 = vunpack.c.h.b16 %v217
  %v237 = vunpack.c.l.b16 %v218
  %v238 = vunpack.c.h.b16 %v218
  %v239 = vunpack.c.l.b16 %v219
  %v240 = vunpack.c.h.b16 %v219
  %v241 = vunpack.c.l.b16 %v220
  %v242 = vunpack.c.h.b16 %v220
  %v243 = vunpack.c.l.b16 %v221
  %v244 = vunpack.c.h.b16 %v221
  %v245 = vunpack.c.l.b16 %v222
  %v246 = vunpack.c.h.b16 %v222
  %v247 = vpack.c.b16 %v235, %v231
  %v248 = vpack.c.b16 %v236, %v232
  %v249 = vpack.c.b16 %v237, %v233
  %v250 = vpack.c.b16 %v238, %v234
  %v251 = vpack.c.b16 %v243, %v239
  %v252 = vpack.c.b16 %v244, %v240
  %v253 = vpack.c.b16 %v245, %v241
  %v254 = vpack.c.b16 %v246, %v242
  %263 = vmatprep.subr.bf16.mxu0 %v248
  %264 = vmatpush1.bf16.msra.mxu0 %v247
  %265 = vmatprep.subr.bf16.mxu0 %v252
  %266 = vmatpush1.bf16.msra.mxu0 %v251
  %267 = vmatprep.subr.bf16.mxu0 0
  %268 = vmatpush1.bf16.msra.mxu0 0
  %269 = vmatprep.subr.bf16.mxu0 0
  %270 = vmatpush1.bf16.msra.mxu0 0
  %271 = vmatprep.subr.bf16.mxu0 0
  %272 = vmatpush1.bf16.msra.mxu0 0
  %273 = vmatprep.subr.bf16.mxu0 0
  %274 = vmatpush1.bf16.msra.mxu0 0
  %275 = vmatprep.subr.bf16.mxu0 0
  %276 = vmatpush1.bf16.msra.mxu0 0
  %277 = vmatprep.subr.bf16.mxu0 0
  %278 = vmatpush1.bf16.msra.mxu0 0
  %279 = vmatprep.subr.bf16.mxu0 0
  %280 = vmatpush1.bf16.msra.mxu0 0
  %281 = vmatprep.subr.bf16.mxu0 0
  %282 = vmatpush1.bf16.msra.mxu0 0
  %283 = vmatprep.subr.bf16.mxu0 0
  %284 = vmatpush1.bf16.msra.mxu0 0
  %285 = vmatprep.subr.bf16.mxu0 0
  %286 = vmatpush1.bf16.msra.mxu0 0
  %287 = vmatprep.subr.bf16.mxu0 0
  %288 = vmatpush1.bf16.msra.mxu0 0
  %289 = vmatprep.subr.bf16.mxu0 0
  %290 = vmatpush1.bf16.msra.mxu0 0
  %291 = vmatprep.subr.bf16.mxu0 0
  %292 = vmatpush1.bf16.msra.mxu0 0
  %293 = vmatprep.subr.bf16.mxu0 0
  %294 = vmatpush1.bf16.msra.mxu0 0
  %295 = vmatprep.mubr.bf16.mxu0 0
  %296 = vmatmul.mubr.bf16.gmra.mrb[0].mxu0 %v93
  %v297 = vpop.f32.mrb[0].mxu0
  %v298 = vadd.f32 0.0, %v297
  %v299 = vpop.f32.mrb[0].mxu0
  %v300 = vadd.f32 0.0, %v299
  %v301 = vpop.f32.mrb[0].mxu0
  %v302 = vpop.f32.mrb[0].mxu0
  %303 = vdwg.mxu0
  %304 = vmatprep.subr.bf16.mxu0 %v250
  %305 = vmatpush1.bf16.msra.mxu0 %v249
  %306 = vmatprep.subr.bf16.mxu0 %v254
  %307 = vmatpush1.bf16.msra.mxu0 %v253
  %308 = vmatprep.subr.bf16.mxu0 0
  %309 = vmatpush1.bf16.msra.mxu0 0
  %310 = vmatprep.subr.bf16.mxu0 0
  %311 = vmatpush1.bf16.msra.mxu0 0
  %312 = vmatprep.subr.bf16.mxu0 0
  %313 = vmatpush1.bf16.msra.mxu0 0
  %314 = vmatprep.subr.bf16.mxu0 0
  %315 = vmatpush1.bf16.msra.mxu0 0
  %316 = vmatprep.subr.bf16.mxu0 0
  %317 = vmatpush1.bf16.msra.mxu0 0
  %318 = vmatprep.subr.bf16.mxu0 0
  %319 = vmatpush1.bf16.msra.mxu0 0
  %320 = vmatprep.subr.bf16.mxu0 0
  %321 = vmatpush1.bf16.msra.mxu0 0
  %322 = vmatprep.subr.bf16.mxu0 0
  %323 = vmatpush1.bf16.msra.mxu0 0
  %324 = vmatprep.subr.bf16.mxu0 0
  %325 = vmatpush1.bf16.msra.mxu0 0
  %326 = vmatprep.subr.bf16.mxu0 0
  %327 = vmatpush1.bf16.msra.mxu0 0
  %328 = vmatprep.subr.bf16.mxu0 0
  %329 = vmatpush1.bf16.msra.mxu0 0
  %330 = vmatprep.subr.bf16.mxu0 0
  %331 = vmatpush1.bf16.msra.mxu0 0
  %332 = vmatprep.subr.bf16.mxu0 0
  %333 = vmatpush1.bf16.msra.mxu0 0
  %334 = vmatprep.subr.bf16.mxu0 0
  %335 = vmatpush1.bf16.msra.mxu0 0
  %336 = vmatprep.mubr.bf16.mxu0 0
  %337 = vmatmul.mubr.bf16.gmra.mrb[0].mxu0 %v93
  %v338 = vpop.f32.mrb[0].mxu0
  %v339 = vadd.f32 0.0, %v338
  %v340 = vpop.f32.mrb[0].mxu0
  %v341 = vadd.f32 0.0, %v340
  %v342 = vpop.f32.mrb[0].mxu0
  %v343 = vpop.f32.mrb[0].mxu0
  %344 = vdwg.mxu0
  %v353 = vunpack.c.l.b16 %v206
  %v354 = vunpack.c.h.b16 %v206
  %v355 = vunpack.c.l.b16 %v207
  %v356 = vunpack.c.h.b16 %v207
  %v357 = vunpack.c.l.b16 %v208
  %v358 = vunpack.c.h.b16 %v208
  %v359 = vunpack.c.l.b16 %v209
  %v360 = vunpack.c.h.b16 %v209
  %v361 = vunpack.c.l.b16 %v210
  %v362 = vunpack.c.h.b16 %v210
  %v363 = vunpack.c.l.b16 %v211
  %v364 = vunpack.c.h.b16 %v211
  %v365 = vunpack.c.l.b16 %v212
  %v366 = vunpack.c.h.b16 %v212
  %v367 = vunpack.c.l.b16 %v213
  %v368 = vunpack.c.h.b16 %v213
  %v369 = vpack.c.b16 %v357, %v353
  %v370 = vpack.c.b16 %v358, %v354
  %v371 = vpack.c.b16 %v359, %v355
  %v372 = vpack.c.b16 %v360, %v356
  %v373 = vpack.c.b16 %v365, %v361
  %v374 = vpack.c.b16 %v366, %v362
  %v375 = vpack.c.b16 %v367, %v363
  %v376 = vpack.c.b16 %v368, %v364
  %v386 = vsel %vm91, %v205, 0
  %388 = vmatprep.subr.bf16.mxu0 %v370
  %389 = vmatpush1.bf16.msra.mxu0 %v369
  %390 = vmatprep.subr.bf16.mxu0 %v374
  %391 = vmatpush1.bf16.msra.mxu0 %v373
  %392 = vmatprep.subr.bf16.mxu0 0
  %393 = vmatpush1.bf16.msra.mxu0 0
  %394 = vmatprep.subr.bf16.mxu0 0
  %395 = vmatpush1.bf16.msra.mxu0 0
  %396 = vmatprep.subr.bf16.mxu0 0
  %397 = vmatpush1.bf16.msra.mxu0 0
  %398 = vmatprep.subr.bf16.mxu0 0
  %399 = vmatpush1.bf16.msra.mxu0 0
  %400 = vmatprep.subr.bf16.mxu0 0
  %401 = vmatpush1.bf16.msra.mxu0 0
  %402 = vmatprep.subr.bf16.mxu0 0
  %403 = vmatpush1.bf16.msra.mxu0 0
  %404 = vmatprep.subr.bf16.mxu0 0
  %405 = vmatpush1.bf16.msra.mxu0 0
  %406 = vmatprep.subr.bf16.mxu0 0
  %407 = vmatpush1.bf16.msra.mxu0 0
  %408 = vmatprep.subr.bf16.mxu0 0
  %409 = vmatpush1.bf16.msra.mxu0 0
  %410 = vmatprep.subr.bf16.mxu0 0
  %411 = vmatpush1.bf16.msra.mxu0 0
  %412 = vmatprep.subr.bf16.mxu0 0
  %413 = vmatpush1.bf16.msra.mxu0 0
  %414 = vmatprep.subr.bf16.mxu0 0
  %415 = vmatpush1.bf16.msra.mxu0 0
  %416 = vmatprep.subr.bf16.mxu0 0
  %417 = vmatpush1.bf16.msra.mxu0 0
  %418 = vmatprep.subr.bf16.mxu0 0
  %419 = vmatpush1.bf16.msra.mxu0 0
  %420 = vmatprep.mubr.bf16.mxu0 0
  %421 = vmatmul.mubr.bf16.gmra.mrb[0].mxu0 %v386
  %v422 = vpop.f32.mrb[0].mxu0
  %v423 = vadd.f32 %v298, %v422
  %v424 = vpop.f32.mrb[0].mxu0
  %v425 = vadd.f32 %v300, %v424
  %v426 = vpop.f32.mrb[0].mxu0
  %v427 = vpop.f32.mrb[0].mxu0
  %428 = vdwg.mxu0
  %429 = vmatprep.subr.bf16.mxu0 %v372
  %430 = vmatpush1.bf16.msra.mxu0 %v371
  %431 = vmatprep.subr.bf16.mxu0 %v376
  %432 = vmatpush1.bf16.msra.mxu0 %v375
  %433 = vmatprep.subr.bf16.mxu0 0
  %434 = vmatpush1.bf16.msra.mxu0 0
  %435 = vmatprep.subr.bf16.mxu0 0
  %436 = vmatpush1.bf16.msra.mxu0 0
  %437 = vmatprep.subr.bf16.mxu0 0
  %438 = vmatpush1.bf16.msra.mxu0 0
  %439 = vmatprep.subr.bf16.mxu0 0
  %440 = vmatpush1.bf16.msra.mxu0 0
  %441 = vmatprep.subr.bf16.mxu0 0
  %442 = vmatpush1.bf16.msra.mxu0 0
  %443 = vmatprep.subr.bf16.mxu0 0
  %444 = vmatpush1.bf16.msra.mxu0 0
  %445 = vmatprep.subr.bf16.mxu0 0
  %446 = vmatpush1.bf16.msra.mxu0 0
  %447 = vmatprep.subr.bf16.mxu0 0
  %448 = vmatpush1.bf16.msra.mxu0 0
  %449 = vmatprep.subr.bf16.mxu0 0
  %450 = vmatpush1.bf16.msra.mxu0 0
  %451 = vmatprep.subr.bf16.mxu0 0
  %452 = vmatpush1.bf16.msra.mxu0 0
  %453 = vmatprep.subr.bf16.mxu0 0
  %454 = vmatpush1.bf16.msra.mxu0 0
  %455 = vmatprep.subr.bf16.mxu0 0
  %456 = vmatpush1.bf16.msra.mxu0 0
  %457 = vmatprep.subr.bf16.mxu0 0
  %458 = vmatpush1.bf16.msra.mxu0 0
  %459 = vmatprep.subr.bf16.mxu0 0
  %460 = vmatpush1.bf16.msra.mxu0 0
  %461 = vmatprep.mubr.bf16.mxu0 0
  %462 = vmatmul.mubr.bf16.gmra.mrb[0].mxu0 %v386
  %v463 = vpop.f32.mrb[0].mxu0
  %v464 = vadd.f32 %v339, %v463
  %v465 = vpop.f32.mrb[0].mxu0
  %v466 = vadd.f32 %v341, %v465
  %v467 = vpop.f32.mrb[0].mxu0
  %v468 = vpop.f32.mrb[0].mxu0
  %469 = vdwg.mxu0
  %v470 = vld [vmem:[%s3] sm:$0xf]
  %v472 = vlaneseq
  %v473 = vshrl.u32 %v472, 7
  %v474 = vsub.s32 0, %v473
  %v475 = vrot.slane %v470, %v474
  %v476 = vlaneseq
  %v477 = vshrl.u32 %v476, 7
  %v478 = vsub.s32 1, %v477
  %v479 = vrot.slane %v470, %v478
  %v480 = vlaneseq
  %v481 = vshrl.u32 %v480, 7
  %v482 = vsub.s32 2, %v481
  %v483 = vrot.slane %v470, %v482
  %v484 = vlaneseq
  %v485 = vshrl.u32 %v484, 7
  %v486 = vsub.s32 3, %v485
  %v487 = vrot.slane %v470, %v486
  %v492 = vadd.f32 %v423, %v475
  %v493 = vadd.f32 %v425, %v479
  %v494 = vadd.f32 %v464, %v483
  %v495 = vadd.f32 %v466, %v487
  %v496 = vxor.u32 %v492, 2147483648
  %v497 = vmul.f32 %v496, 1.442695
  %v498 = vpow.pop %v497
  %v499 = vadd.f32 %v498, 1.0
  %v500 = vrcp.pop %v499
  %v501 = vmul.f32 1.0, %v500
  %v502 = vxor.u32 %v493, 2147483648
  %v503 = vmul.f32 %v502, 1.442695
  %v504 = vpow.pop %v503
  %v505 = vadd.f32 %v504, 1.0
  %v506 = vrcp.pop %v505
  %v507 = vmul.f32 1.0, %v506
  %v508 = vtanh.pop %v494
  %v509 = vxor.u32 %v495, 2147483648
  %v510 = vmul.f32 %v509, 1.442695
  %v511 = vpow.pop %v510
  %v512 = vadd.f32 %v511, 1.0
  %v513 = vrcp.pop %v512
  %v514 = vmul.f32 1.0, %v513
  %v515 = vmul.f32 %v507, 0.0
  %v516 = vmul.f32 %v501, %v508
  %v517 = vadd.f32 %v515, %v516
  %v518 = vtanh.pop %v517
  %v519 = vmul.f32 %v514, %v518
  %s520 = scalar_lea.vmem %s0, 32
  %v521 = vld [vmem:[%s520] sm:$0xff]
  %v522 = vld [vmem:[%s520 + $0x8] sm:$0xff]
  %v523 = vld [vmem:[%s520 + $0x10] sm:$0xff]
  %v524 = vld [vmem:[%s520 + $0x18] sm:$0xff]
  %525 = vmatprep.subr.bf16.mxu0 %v76
  %526 = vmatpush1.bf16.msra.mxu0 %v75
  %527 = vmatprep.subr.bf16.mxu0 %v80
  %528 = vmatpush1.bf16.msra.mxu0 %v79
  %529 = vmatprep.subr.bf16.mxu0 0
  %530 = vmatpush1.bf16.msra.mxu0 0
  %531 = vmatprep.subr.bf16.mxu0 0
  %532 = vmatpush1.bf16.msra.mxu0 0
  %533 = vmatprep.subr.bf16.mxu0 0
  %534 = vmatpush1.bf16.msra.mxu0 0
  %535 = vmatprep.subr.bf16.mxu0 0
  %536 = vmatpush1.bf16.msra.mxu0 0
  %537 = vmatprep.subr.bf16.mxu0 0
  %538 = vmatpush1.bf16.msra.mxu0 0
  %539 = vmatprep.subr.bf16.mxu0 0
  %540 = vmatpush1.bf16.msra.mxu0 0
  %541 = vmatprep.subr.bf16.mxu0 0
  %542 = vmatpush1.bf16.msra.mxu0 0
  %543 = vmatprep.subr.bf16.mxu0 0
  %544 = vmatpush1.bf16.msra.mxu0 0
  %545 = vmatprep.subr.bf16.mxu0 0
  %546 = vmatpush1.bf16.msra.mxu0 0
  %547 = vmatprep.subr.bf16.mxu0 0
  %548 = vmatpush1.bf16.msra.mxu0 0
  %549 = vmatprep.subr.bf16.mxu0 0
  %550 = vmatpush1.bf16.msra.mxu0 0
  %551 = vmatprep.subr.bf16.mxu0 0
  %552 = vmatpush1.bf16.msra.mxu0 0
  %553 = vmatprep.subr.bf16.mxu0 0
  %554 = vmatpush1.bf16.msra.mxu0 0
  %555 = vmatprep.subr.bf16.mxu0 0
  %556 = vmatpush1.bf16.msra.mxu0 0
  %557 = vmatprep.mubr.bf16.mxu0 0
  %558 = vmatmul.mubr.bf16.gmra.mrb[0].mxu0 %v386
  %v559 = vpop.f32.mrb[0].mxu0
  %v560 = vadd.f32 0.0, %v559
  %v561 = vpop.f32.mrb[0].mxu0
  %v562 = vadd.f32 0.0, %v561
  %v563 = vpop.f32.mrb[0].mxu0
  %v564 = vpop.f32.mrb[0].mxu0
  %565 = vdwg.mxu0
  %566 = vmatprep.subr.bf16.mxu0 %v78
  %567 = vmatpush1.bf16.msra.mxu0 %v77
  %568 = vmatprep.subr.bf16.mxu0 %v82
  %569 = vmatpush1.bf16.msra.mxu0 %v81
  %570 = vmatprep.subr.bf16.mxu0 0
  %571 = vmatpush1.bf16.msra.mxu0 0
  %572 = vmatprep.subr.bf16.mxu0 0
  %573 = vmatpush1.bf16.msra.mxu0 0
  %574 = vmatprep.subr.bf16.mxu0 0
  %575 = vmatpush1.bf16.msra.mxu0 0
  %576 = vmatprep.subr.bf16.mxu0 0
  %577 = vmatpush1.bf16.msra.mxu0 0
  %578 = vmatprep.subr.bf16.mxu0 0
  %579 = vmatpush1.bf16.msra.mxu0 0
  %580 = vmatprep.subr.bf16.mxu0 0
  %581 = vmatpush1.bf16.msra.mxu0 0
  %582 = vmatprep.subr.bf16.mxu0 0
  %583 = vmatpush1.bf16.msra.mxu0 0
  %584 = vmatprep.subr.bf16.mxu0 0
  %585 = vmatpush1.bf16.msra.mxu0 0
  %586 = vmatprep.subr.bf16.mxu0 0
  %587 = vmatpush1.bf16.msra.mxu0 0
  %588 = vmatprep.subr.bf16.mxu0 0
  %589 = vmatpush1.bf16.msra.mxu0 0
  %590 = vmatprep.subr.bf16.mxu0 0
  %591 = vmatpush1.bf16.msra.mxu0 0
  %592 = vmatprep.subr.bf16.mxu0 0
  %593 = vmatpush1.bf16.msra.mxu0 0
  %594 = vmatprep.subr.bf16.mxu0 0
  %595 = vmatpush1.bf16.msra.mxu0 0
  %596 = vmatprep.subr.bf16.mxu0 0
  %597 = vmatpush1.bf16.msra.mxu0 0
  %598 = vmatprep.mubr.bf16.mxu0 0
  %599 = vmatmul.mubr.bf16.gmra.mrb[0].mxu0 %v386
  %v600 = vpop.f32.mrb[0].mxu0
  %v601 = vadd.f32 0.0, %v600
  %v602 = vpop.f32.mrb[0].mxu0
  %v603 = vadd.f32 0.0, %v602
  %v604 = vpop.f32.mrb[0].mxu0
  %v605 = vpop.f32.mrb[0].mxu0
  %606 = vdwg.mxu0
  %v607 = vadd.f32 %v521, %v560
  %v608 = vadd.f32 %v522, %v562
  %v609 = vadd.f32 %v523, %v601
  %v610 = vadd.f32 %v524, %v603
  %v611 = vxor.u32 %v607, 2147483648
  %v612 = vmul.f32 %v611, 1.442695
  %v613 = vpow.pop %v612
  %v614 = vadd.f32 %v613, 1.0
  %v615 = vrcp.pop %v614
  %v616 = vmul.f32 1.0, %v615
  %v617 = vxor.u32 %v608, 2147483648
  %v618 = vmul.f32 %v617, 1.442695
  %v619 = vpow.pop %v618
  %v620 = vadd.f32 %v619, 1.0
  %v621 = vrcp.pop %v620
  %v622 = vmul.f32 1.0, %v621
  %v623 = vtanh.pop %v609
  %v624 = vxor.u32 %v610, 2147483648
  %v625 = vmul.f32 %v624, 1.442695
  %v626 = vpow.pop %v625
  %v627 = vadd.f32 %v626, 1.0
  %v628 = vrcp.pop %v627
  %v629 = vmul.f32 1.0, %v628
  %v630 = vmul.f32 %v622, %v202
  %v631 = vmul.f32 %v616, %v623
  %v632 = vadd.f32 %v630, %v631
  %v633 = vtanh.pop %v632
  %v634 = vmul.f32 %v629, %v633
  %v635 = vpack.c.bf16 %v634, %v634
  %v636 = vpack.c.bf16 %v519, %v519
  %v638 = vsel %vm91, %v636, 0
  %640 = vmatprep.subr.bf16.mxu0 %v248
  %641 = vmatpush1.bf16.msra.mxu0 %v247
  %642 = vmatprep.subr.bf16.mxu0 %v252
  %643 = vmatpush1.bf16.msra.mxu0 %v251
  %644 = vmatprep.subr.bf16.mxu0 0
  %645 = vmatpush1.bf16.msra.mxu0 0
  %646 = vmatprep.subr.bf16.mxu0 0
  %647 = vmatpush1.bf16.msra.mxu0 0
  %648 = vmatprep.subr.bf16.mxu0 0
  %649 = vmatpush1.bf16.msra.mxu0 0
  %650 = vmatprep.subr.bf16.mxu0 0
  %651 = vmatpush1.bf16.msra.mxu0 0
  %652 = vmatprep.subr.bf16.mxu0 0
  %653 = vmatpush1.bf16.msra.mxu0 0
  %654 = vmatprep.subr.bf16.mxu0 0
  %655 = vmatpush1.bf16.msra.mxu0 0
  %656 = vmatprep.subr.bf16.mxu0 0
  %657 = vmatpush1.bf16.msra.mxu0 0
  %658 = vmatprep.subr.bf16.mxu0 0
  %659 = vmatpush1.bf16.msra.mxu0 0
  %660 = vmatprep.subr.bf16.mxu0 0
  %661 = vmatpush1.bf16.msra.mxu0 0
  %662 = vmatprep.subr.bf16.mxu0 0
  %663 = vmatpush1.bf16.msra.mxu0 0
  %664 = vmatprep.subr.bf16.mxu0 0
  %665 = vmatpush1.bf16.msra.mxu0 0
  %666 = vmatprep.subr.bf16.mxu0 0
  %667 = vmatpush1.bf16.msra.mxu0 0
  %668 = vmatprep.subr.bf16.mxu0 0
  %669 = vmatpush1.bf16.msra.mxu0 0
  %670 = vmatprep.subr.bf16.mxu0 0
  %671 = vmatpush1.bf16.msra.mxu0 0
  %672 = vmatprep.mubr.bf16.mxu0 0
  %673 = vmatmul.mubr.bf16.gmra.mrb[0].mxu0 %v638
  %v674 = vpop.f32.mrb[0].mxu0
  %v675 = vadd.f32 0.0, %v674
  %v676 = vpop.f32.mrb[0].mxu0
  %v677 = vadd.f32 0.0, %v676
  %v678 = vpop.f32.mrb[0].mxu0
  %v679 = vpop.f32.mrb[0].mxu0
  %680 = vdwg.mxu0
  %681 = vmatprep.subr.bf16.mxu0 %v250
  %682 = vmatpush1.bf16.msra.mxu0 %v249
  %683 = vmatprep.subr.bf16.mxu0 %v254
  %684 = vmatpush1.bf16.msra.mxu0 %v253
  %685 = vmatprep.subr.bf16.mxu0 0
  %686 = vmatpush1.bf16.msra.mxu0 0
  %687 = vmatprep.subr.bf16.mxu0 0
  %688 = vmatpush1.bf16.msra.mxu0 0
  %689 = vmatprep.subr.bf16.mxu0 0
  %690 = vmatpush1.bf16.msra.mxu0 0
  %691 = vmatprep.subr.bf16.mxu0 0
  %692 = vmatpush1.bf16.msra.mxu0 0
  %693 = vmatprep.subr.bf16.mxu0 0
  %694 = vmatpush1.bf16.msra.mxu0 0
  %695 = vmatprep.subr.bf16.mxu0 0
  %696 = vmatpush1.bf16.msra.mxu0 0
  %697 = vmatprep.subr.bf16.mxu0 0
  %698 = vmatpush1.bf16.msra.mxu0 0
  %699 = vmatprep.subr.bf16.mxu0 0
  %700 = vmatpush1.bf16.msra.mxu0 0
  %701 = vmatprep.subr.bf16.mxu0 0
  %702 = vmatpush1.bf16.msra.mxu0 0
  %703 = vmatprep.subr.bf16.mxu0 0
  %704 = vmatpush1.bf16.msra.mxu0 0
  %705 = vmatprep.subr.bf16.mxu0 0
  %706 = vmatpush1.bf16.msra.mxu0 0
  %707 = vmatprep.subr.bf16.mxu0 0
  %708 = vmatpush1.bf16.msra.mxu0 0
  %709 = vmatprep.subr.bf16.mxu0 0
  %710 = vmatpush1.bf16.msra.mxu0 0
  %711 = vmatprep.subr.bf16.mxu0 0
  %712 = vmatpush1.bf16.msra.mxu0 0
  %713 = vmatprep.mubr.bf16.mxu0 0
  %714 = vmatmul.mubr.bf16.gmra.mrb[0].mxu0 %v638
  %v715 = vpop.f32.mrb[0].mxu0
  %v716 = vadd.f32 0.0, %v715
  %v717 = vpop.f32.mrb[0].mxu0
  %v718 = vadd.f32 0.0, %v717
  %v719 = vpop.f32.mrb[0].mxu0
  %v720 = vpop.f32.mrb[0].mxu0
  %721 = vdwg.mxu0
  %v723 = vsel %vm91, %v635, 0
  %725 = vmatprep.subr.bf16.mxu0 %v370
  %726 = vmatpush1.bf16.msra.mxu0 %v369
  %727 = vmatprep.subr.bf16.mxu0 %v374
  %728 = vmatpush1.bf16.msra.mxu0 %v373
  %729 = vmatprep.subr.bf16.mxu0 0
  %730 = vmatpush1.bf16.msra.mxu0 0
  %731 = vmatprep.subr.bf16.mxu0 0
  %732 = vmatpush1.bf16.msra.mxu0 0
  %733 = vmatprep.subr.bf16.mxu0 0
  %734 = vmatpush1.bf16.msra.mxu0 0
  %735 = vmatprep.subr.bf16.mxu0 0
  %736 = vmatpush1.bf16.msra.mxu0 0
  %737 = vmatprep.subr.bf16.mxu0 0
  %738 = vmatpush1.bf16.msra.mxu0 0
  %739 = vmatprep.subr.bf16.mxu0 0
  %740 = vmatpush1.bf16.msra.mxu0 0
  %741 = vmatprep.subr.bf16.mxu0 0
  %742 = vmatpush1.bf16.msra.mxu0 0
  %743 = vmatprep.subr.bf16.mxu0 0
  %744 = vmatpush1.bf16.msra.mxu0 0
  %745 = vmatprep.subr.bf16.mxu0 0
  %746 = vmatpush1.bf16.msra.mxu0 0
  %747 = vmatprep.subr.bf16.mxu0 0
  %748 = vmatpush1.bf16.msra.mxu0 0
  %749 = vmatprep.subr.bf16.mxu0 0
  %750 = vmatpush1.bf16.msra.mxu0 0
  %751 = vmatprep.subr.bf16.mxu0 0
  %752 = vmatpush1.bf16.msra.mxu0 0
  %753 = vmatprep.subr.bf16.mxu0 0
  %754 = vmatpush1.bf16.msra.mxu0 0
  %755 = vmatprep.subr.bf16.mxu0 0
  %756 = vmatpush1.bf16.msra.mxu0 0
  %757 = vmatprep.mubr.bf16.mxu0 0
  %758 = vmatmul.mubr.bf16.gmra.mrb[0].mxu0 %v723
  %v759 = vpop.f32.mrb[0].mxu0
  %v760 = vadd.f32 %v675, %v759
  %v761 = vpop.f32.mrb[0].mxu0
  %v762 = vadd.f32 %v677, %v761
  %v763 = vpop.f32.mrb[0].mxu0
  %v764 = vpop.f32.mrb[0].mxu0
  %765 = vdwg.mxu0
  %766 = vmatprep.subr.bf16.mxu0 %v372
  %767 = vmatpush1.bf16.msra.mxu0 %v371
  %768 = vmatprep.subr.bf16.mxu0 %v376
  %769 = vmatpush1.bf16.msra.mxu0 %v375
  %770 = vmatprep.subr.bf16.mxu0 0
  %771 = vmatpush1.bf16.msra.mxu0 0
  %772 = vmatprep.subr.bf16.mxu0 0
  %773 = vmatpush1.bf16.msra.mxu0 0
  %774 = vmatprep.subr.bf16.mxu0 0
  %775 = vmatpush1.bf16.msra.mxu0 0
  %776 = vmatprep.subr.bf16.mxu0 0
  %777 = vmatpush1.bf16.msra.mxu0 0
  %778 = vmatprep.subr.bf16.mxu0 0
  %779 = vmatpush1.bf16.msra.mxu0 0
  %780 = vmatprep.subr.bf16.mxu0 0
  %781 = vmatpush1.bf16.msra.mxu0 0
  %782 = vmatprep.subr.bf16.mxu0 0
  %783 = vmatpush1.bf16.msra.mxu0 0
  %784 = vmatprep.subr.bf16.mxu0 0
  %785 = vmatpush1.bf16.msra.mxu0 0
  %786 = vmatprep.subr.bf16.mxu0 0
  %787 = vmatpush1.bf16.msra.mxu0 0
  %788 = vmatprep.subr.bf16.mxu0 0
  %789 = vmatpush1.bf16.msra.mxu0 0
  %790 = vmatprep.subr.bf16.mxu0 0
  %791 = vmatpush1.bf16.msra.mxu0 0
  %792 = vmatprep.subr.bf16.mxu0 0
  %793 = vmatpush1.bf16.msra.mxu0 0
  %794 = vmatprep.subr.bf16.mxu0 0
  %795 = vmatpush1.bf16.msra.mxu0 0
  %796 = vmatprep.subr.bf16.mxu0 0
  %797 = vmatpush1.bf16.msra.mxu0 0
  %798 = vmatprep.mubr.bf16.mxu0 0
  %799 = vmatmul.mubr.bf16.gmra.mrb[0].mxu0 %v723
  %v800 = vpop.f32.mrb[0].mxu0
  %v801 = vadd.f32 %v716, %v800
  %v802 = vpop.f32.mrb[0].mxu0
  %v803 = vadd.f32 %v718, %v802
  %v804 = vpop.f32.mrb[0].mxu0
  %v805 = vpop.f32.mrb[0].mxu0
  %806 = vdwg.mxu0
  %v807 = vadd.f32 %v760, %v475
  %v808 = vadd.f32 %v762, %v479
  %v809 = vadd.f32 %v801, %v483
  %v810 = vadd.f32 %v803, %v487
  %v811 = vxor.u32 %v807, 2147483648
  %v812 = vmul.f32 %v811, 1.442695
  %v813 = vpow.pop %v812
  %v814 = vadd.f32 %v813, 1.0
  %v815 = vrcp.pop %v814
  %v816 = vmul.f32 1.0, %v815
  %v817 = vxor.u32 %v808, 2147483648
  %v818 = vmul.f32 %v817, 1.442695
  %v819 = vpow.pop %v818
  %v820 = vadd.f32 %v819, 1.0
  %v821 = vrcp.pop %v820
  %v822 = vmul.f32 1.0, %v821
  %v823 = vtanh.pop %v809
  %v824 = vxor.u32 %v810, 2147483648
  %v825 = vmul.f32 %v824, 1.442695
  %v826 = vpow.pop %v825
  %v827 = vadd.f32 %v826, 1.0
  %v828 = vrcp.pop %v827
  %v829 = vmul.f32 1.0, %v828
  %v830 = vmul.f32 %v822, %v517
  %v831 = vmul.f32 %v816, %v823
  %v832 = vadd.f32 %v830, %v831
  %v833 = vtanh.pop %v832
  %v834 = vmul.f32 %v829, %v833
  %s835 = scalar_lea.vmem %s0, 64
  %v836 = vld [vmem:[%s835] sm:$0xff]
  %v837 = vld [vmem:[%s835 + $0x8] sm:$0xff]
  %v838 = vld [vmem:[%s835 + $0x10] sm:$0xff]
  %v839 = vld [vmem:[%s835 + $0x18] sm:$0xff]
  %840 = vmatprep.subr.bf16.mxu0 %v76
  %841 = vmatpush1.bf16.msra.mxu0 %v75
  %842 = vmatprep.subr.bf16.mxu0 %v80
  %843 = vmatpush1.bf16.msra.mxu0 %v79
  %844 = vmatprep.subr.bf16.mxu0 0
  %845 = vmatpush1.bf16.msra.mxu0 0
  %846 = vmatprep.subr.bf16.mxu0 0
  %847 = vmatpush1.bf16.msra.mxu0 0
  %848 = vmatprep.subr.bf16.mxu0 0
  %849 = vmatpush1.bf16.msra.mxu0 0
  %850 = vmatprep.subr.bf16.mxu0 0
  %851 = vmatpush1.bf16.msra.mxu0 0
  %852 = vmatprep.subr.bf16.mxu0 0
  %853 = vmatpush1.bf16.msra.mxu0 0
  %854 = vmatprep.subr.bf16.mxu0 0
  %855 = vmatpush1.bf16.msra.mxu0 0
  %856 = vmatprep.subr.bf16.mxu0 0
  %857 = vmatpush1.bf16.msra.mxu0 0
  %858 = vmatprep.subr.bf16.mxu0 0
  %859 = vmatpush1.bf16.msra.mxu0 0
  %860 = vmatprep.subr.bf16.mxu0 0
  %861 = vmatpush1.bf16.msra.mxu0 0
  %862 = vmatprep.subr.bf16.mxu0 0
  %863 = vmatpush1.bf16.msra.mxu0 0
  %864 = vmatprep.subr.bf16.mxu0 0
  %865 = vmatpush1.bf16.msra.mxu0 0
  %866 = vmatprep.subr.bf16.mxu0 0
  %867 = vmatpush1.bf16.msra.mxu0 0
  %868 = vmatprep.subr.bf16.mxu0 0
  %869 = vmatpush1.bf16.msra.mxu0 0
  %870 = vmatprep.subr.bf16.mxu0 0
  %871 = vmatpush1.bf16.msra.mxu0 0
  %872 = vmatprep.mubr.bf16.mxu0 0
  %873 = vmatmul.mubr.bf16.gmra.mrb[0].mxu0 %v723
  %v874 = vpop.f32.mrb[0].mxu0
  %v875 = vadd.f32 0.0, %v874
  %v876 = vpop.f32.mrb[0].mxu0
  %v877 = vadd.f32 0.0, %v876
  %v878 = vpop.f32.mrb[0].mxu0
  %v879 = vpop.f32.mrb[0].mxu0
  %880 = vdwg.mxu0
  %881 = vmatprep.subr.bf16.mxu0 %v78
  %882 = vmatpush1.bf16.msra.mxu0 %v77
  %883 = vmatprep.subr.bf16.mxu0 %v82
  %884 = vmatpush1.bf16.msra.mxu0 %v81
  %885 = vmatprep.subr.bf16.mxu0 0
  %886 = vmatpush1.bf16.msra.mxu0 0
  %887 = vmatprep.subr.bf16.mxu0 0
  %888 = vmatpush1.bf16.msra.mxu0 0
  %889 = vmatprep.subr.bf16.mxu0 0
  %890 = vmatpush1.bf16.msra.mxu0 0
  %891 = vmatprep.subr.bf16.mxu0 0
  %892 = vmatpush1.bf16.msra.mxu0 0
  %893 = vmatprep.subr.bf16.mxu0 0
  %894 = vmatpush1.bf16.msra.mxu0 0
  %895 = vmatprep.subr.bf16.mxu0 0
  %896 = vmatpush1.bf16.msra.mxu0 0
  %897 = vmatprep.subr.bf16.mxu0 0
  %898 = vmatpush1.bf16.msra.mxu0 0
  %899 = vmatprep.subr.bf16.mxu0 0
  %900 = vmatpush1.bf16.msra.mxu0 0
  %901 = vmatprep.subr.bf16.mxu0 0
  %902 = vmatpush1.bf16.msra.mxu0 0
  %903 = vmatprep.subr.bf16.mxu0 0
  %904 = vmatpush1.bf16.msra.mxu0 0
  %905 = vmatprep.subr.bf16.mxu0 0
  %906 = vmatpush1.bf16.msra.mxu0 0
  %907 = vmatprep.subr.bf16.mxu0 0
  %908 = vmatpush1.bf16.msra.mxu0 0
  %909 = vmatprep.subr.bf16.mxu0 0
  %910 = vmatpush1.bf16.msra.mxu0 0
  %911 = vmatprep.subr.bf16.mxu0 0
  %912 = vmatpush1.bf16.msra.mxu0 0
  %913 = vmatprep.mubr.bf16.mxu0 0
  %914 = vmatmul.mubr.bf16.gmra.mrb[0].mxu0 %v723
  %v915 = vpop.f32.mrb[0].mxu0
  %v916 = vadd.f32 0.0, %v915
  %v917 = vpop.f32.mrb[0].mxu0
  %v918 = vadd.f32 0.0, %v917
  %v919 = vpop.f32.mrb[0].mxu0
  %v920 = vpop.f32.mrb[0].mxu0
  %921 = vdwg.mxu0
  %v922 = vadd.f32 %v836, %v875
  %v923 = vadd.f32 %v837, %v877
  %v924 = vadd.f32 %v838, %v916
  %v925 = vadd.f32 %v839, %v918
  %v926 = vxor.u32 %v922, 2147483648
  %v927 = vmul.f32 %v926, 1.442695
  %v928 = vpow.pop %v927
  %v929 = vadd.f32 %v928, 1.0
  %v930 = vrcp.pop %v929
  %v931 = vmul.f32 1.0, %v930
  %v932 = vxor.u32 %v923, 2147483648
  %v933 = vmul.f32 %v932, 1.442695
  %v934 = vpow.pop %v933
  %v935 = vadd.f32 %v934, 1.0
  %v936 = vrcp.pop %v935
  %v937 = vmul.f32 1.0, %v936
  %v938 = vtanh.pop %v924
  %v939 = vxor.u32 %v925, 2147483648
  %v940 = vmul.f32 %v939, 1.442695
  %v941 = vpow.pop %v940
  %v942 = vadd.f32 %v941, 1.0
  %v943 = vrcp.pop %v942
  %v944 = vmul.f32 1.0, %v943
  %v945 = vmul.f32 %v937, %v632
  %v946 = vmul.f32 %v931, %v938
  %v947 = vadd.f32 %v945, %v946
  %v948 = vtanh.pop %v947
  %v949 = vmul.f32 %v944, %v948
  %v950 = vpack.c.bf16 %v949, %v949
  %v951 = vpack.c.bf16 %v834, %v834
  %v953 = vsel %vm91, %v951, 0
  %955 = vmatprep.subr.bf16.mxu0 %v248
  %956 = vmatpush1.bf16.msra.mxu0 %v247
  %957 = vmatprep.subr.bf16.mxu0 %v252
  %958 = vmatpush1.bf16.msra.mxu0 %v251
  %959 = vmatprep.subr.bf16.mxu0 0
  %960 = vmatpush1.bf16.msra.mxu0 0
  %961 = vmatprep.subr.bf16.mxu0 0
  %962 = vmatpush1.bf16.msra.mxu0 0
  %963 = vmatprep.subr.bf16.mxu0 0
  %964 = vmatpush1.bf16.msra.mxu0 0
  %965 = vmatprep.subr.bf16.mxu0 0
  %966 = vmatpush1.bf16.msra.mxu0 0
  %967 = vmatprep.subr.bf16.mxu0 0
  %968 = vmatpush1.bf16.msra.mxu0 0
  %969 = vmatprep.subr.bf16.mxu0 0
  %970 = vmatpush1.bf16.msra.mxu0 0
  %971 = vmatprep.subr.bf16.mxu0 0
  %972 = vmatpush1.bf16.msra.mxu0 0
  %973 = vmatprep.subr.bf16.mxu0 0
  %974 = vmatpush1.bf16.msra.mxu0 0
  %975 = vmatprep.subr.bf16.mxu0 0
  %976 = vmatpush1.bf16.msra.mxu0 0
  %977 = vmatprep.subr.bf16.mxu0 0
  %978 = vmatpush1.bf16.msra.mxu0 0
  %979 = vmatprep.subr.bf16.mxu0 0
  %980 = vmatpush1.bf16.msra.mxu0 0
  %981 = vmatprep.subr.bf16.mxu0 0
  %982 = vmatpush1.bf16.msra.mxu0 0
  %983 = vmatprep.subr.bf16.mxu0 0
  %984 = vmatpush1.bf16.msra.mxu0 0
  %985 = vmatprep.subr.bf16.mxu0 0
  %986 = vmatpush1.bf16.msra.mxu0 0
  %987 = vmatprep.mubr.bf16.mxu0 0
  %988 = vmatmul.mubr.bf16.gmra.mrb[0].mxu0 %v953
  %v989 = vpop.f32.mrb[0].mxu0
  %v990 = vadd.f32 0.0, %v989
  %v991 = vpop.f32.mrb[0].mxu0
  %v992 = vadd.f32 0.0, %v991
  %v993 = vpop.f32.mrb[0].mxu0
  %v994 = vpop.f32.mrb[0].mxu0
  %995 = vdwg.mxu0
  %996 = vmatprep.subr.bf16.mxu0 %v250
  %997 = vmatpush1.bf16.msra.mxu0 %v249
  %998 = vmatprep.subr.bf16.mxu0 %v254
  %999 = vmatpush1.bf16.msra.mxu0 %v253
  %1000 = vmatprep.subr.bf16.mxu0 0
  %1001 = vmatpush1.bf16.msra.mxu0 0
  %1002 = vmatprep.subr.bf16.mxu0 0
  %1003 = vmatpush1.bf16.msra.mxu0 0
  %1004 = vmatprep.subr.bf16.mxu0 0
  %1005 = vmatpush1.bf16.msra.mxu0 0
  %1006 = vmatprep.subr.bf16.mxu0 0
  %1007 = vmatpush1.bf16.msra.mxu0 0
  %1008 = vmatprep.subr.bf16.mxu0 0
  %1009 = vmatpush1.bf16.msra.mxu0 0
  %1010 = vmatprep.subr.bf16.mxu0 0
  %1011 = vmatpush1.bf16.msra.mxu0 0
  %1012 = vmatprep.subr.bf16.mxu0 0
  %1013 = vmatpush1.bf16.msra.mxu0 0
  %1014 = vmatprep.subr.bf16.mxu0 0
  %1015 = vmatpush1.bf16.msra.mxu0 0
  %1016 = vmatprep.subr.bf16.mxu0 0
  %1017 = vmatpush1.bf16.msra.mxu0 0
  %1018 = vmatprep.subr.bf16.mxu0 0
  %1019 = vmatpush1.bf16.msra.mxu0 0
  %1020 = vmatprep.subr.bf16.mxu0 0
  %1021 = vmatpush1.bf16.msra.mxu0 0
  %1022 = vmatprep.subr.bf16.mxu0 0
  %1023 = vmatpush1.bf16.msra.mxu0 0
  %1024 = vmatprep.subr.bf16.mxu0 0
  %1025 = vmatpush1.bf16.msra.mxu0 0
  %1026 = vmatprep.subr.bf16.mxu0 0
  %1027 = vmatpush1.bf16.msra.mxu0 0
  %1028 = vmatprep.mubr.bf16.mxu0 0
  %1029 = vmatmul.mubr.bf16.gmra.mrb[0].mxu0 %v953
  %v1030 = vpop.f32.mrb[0].mxu0
  %v1031 = vadd.f32 0.0, %v1030
  %v1032 = vpop.f32.mrb[0].mxu0
  %v1033 = vadd.f32 0.0, %v1032
  %v1034 = vpop.f32.mrb[0].mxu0
  %v1035 = vpop.f32.mrb[0].mxu0
  %1036 = vdwg.mxu0
  %v1038 = vsel %vm91, %v950, 0
  %1040 = vmatprep.subr.bf16.mxu0 %v370
  %1041 = vmatpush1.bf16.msra.mxu0 %v369
  %1042 = vmatprep.subr.bf16.mxu0 %v374
  %1043 = vmatpush1.bf16.msra.mxu0 %v373
  %1044 = vmatprep.subr.bf16.mxu0 0
  %1045 = vmatpush1.bf16.msra.mxu0 0
  %1046 = vmatprep.subr.bf16.mxu0 0
  %1047 = vmatpush1.bf16.msra.mxu0 0
  %1048 = vmatprep.subr.bf16.mxu0 0
  %1049 = vmatpush1.bf16.msra.mxu0 0
  %1050 = vmatprep.subr.bf16.mxu0 0
  %1051 = vmatpush1.bf16.msra.mxu0 0
  %1052 = vmatprep.subr.bf16.mxu0 0
  %1053 = vmatpush1.bf16.msra.mxu0 0
  %1054 = vmatprep.subr.bf16.mxu0 0
  %1055 = vmatpush1.bf16.msra.mxu0 0
  %1056 = vmatprep.subr.bf16.mxu0 0
  %1057 = vmatpush1.bf16.msra.mxu0 0
  %1058 = vmatprep.subr.bf16.mxu0 0
  %1059 = vmatpush1.bf16.msra.mxu0 0
  %1060 = vmatprep.subr.bf16.mxu0 0
  %1061 = vmatpush1.bf16.msra.mxu0 0
  %1062 = vmatprep.subr.bf16.mxu0 0
  %1063 = vmatpush1.bf16.msra.mxu0 0
  %1064 = vmatprep.subr.bf16.mxu0 0
  %1065 = vmatpush1.bf16.msra.mxu0 0
  %1066 = vmatprep.subr.bf16.mxu0 0
  %1067 = vmatpush1.bf16.msra.mxu0 0
  %1068 = vmatprep.subr.bf16.mxu0 0
  %1069 = vmatpush1.bf16.msra.mxu0 0
  %1070 = vmatprep.subr.bf16.mxu0 0
  %1071 = vmatpush1.bf16.msra.mxu0 0
  %1072 = vmatprep.mubr.bf16.mxu0 0
  %1073 = vmatmul.mubr.bf16.gmra.mrb[0].mxu0 %v1038
  %v1074 = vpop.f32.mrb[0].mxu0
  %v1075 = vadd.f32 %v990, %v1074
  %v1076 = vpop.f32.mrb[0].mxu0
  %v1077 = vadd.f32 %v992, %v1076
  %v1078 = vpop.f32.mrb[0].mxu0
  %v1079 = vpop.f32.mrb[0].mxu0
  %1080 = vdwg.mxu0
  %1081 = vmatprep.subr.bf16.mxu0 %v372
  %1082 = vmatpush1.bf16.msra.mxu0 %v371
  %1083 = vmatprep.subr.bf16.mxu0 %v376
  %1084 = vmatpush1.bf16.msra.mxu0 %v375
  %1085 = vmatprep.subr.bf16.mxu0 0
  %1086 = vmatpush1.bf16.msra.mxu0 0
  %1087 = vmatprep.subr.bf16.mxu0 0
  %1088 = vmatpush1.bf16.msra.mxu0 0
  %1089 = vmatprep.subr.bf16.mxu0 0
  %1090 = vmatpush1.bf16.msra.mxu0 0
  %1091 = vmatprep.subr.bf16.mxu0 0
  %1092 = vmatpush1.bf16.msra.mxu0 0
  %1093 = vmatprep.subr.bf16.mxu0 0
  %1094 = vmatpush1.bf16.msra.mxu0 0
  %1095 = vmatprep.subr.bf16.mxu0 0
  %1096 = vmatpush1.bf16.msra.mxu0 0
  %1097 = vmatprep.subr.bf16.mxu0 0
  %1098 = vmatpush1.bf16.msra.mxu0 0
  %1099 = vmatprep.subr.bf16.mxu0 0
  %1100 = vmatpush1.bf16.msra.mxu0 0
  %1101 = vmatprep.subr.bf16.mxu0 0
  %1102 = vmatpush1.bf16.msra.mxu0 0
  %1103 = vmatprep.subr.bf16.mxu0 0
  %1104 = vmatpush1.bf16.msra.mxu0 0
  %1105 = vmatprep.subr.bf16.mxu0 0
  %1106 = vmatpush1.bf16.msra.mxu0 0
  %1107 = vmatprep.subr.bf16.mxu0 0
  %1108 = vmatpush1.bf16.msra.mxu0 0
  %1109 = vmatprep.subr.bf16.mxu0 0
  %1110 = vmatpush1.bf16.msra.mxu0 0
  %1111 = vmatprep.subr.bf16.mxu0 0
  %1112 = vmatpush1.bf16.msra.mxu0 0
  %1113 = vmatprep.mubr.bf16.mxu0 0
  %1114 = vmatmul.mubr.bf16.gmra.mrb[0].mxu0 %v1038
  %v1115 = vpop.f32.mrb[0].mxu0
  %v1116 = vadd.f32 %v1031, %v1115
  %v1117 = vpop.f32.mrb[0].mxu0
  %v1118 = vadd.f32 %v1033, %v1117
  %v1119 = vpop.f32.mrb[0].mxu0
  %v1120 = vpop.f32.mrb[0].mxu0
  %1121 = vdwg.mxu0
  %v1122 = vadd.f32 %v1075, %v475
  %v1123 = vadd.f32 %v1077, %v479
  %v1124 = vadd.f32 %v1116, %v483
  %v1125 = vadd.f32 %v1118, %v487
  %v1126 = vxor.u32 %v1122, 2147483648
  %v1127 = vmul.f32 %v1126, 1.442695
  %v1128 = vpow.pop %v1127
  %v1129 = vadd.f32 %v1128, 1.0
  %v1130 = vrcp.pop %v1129
  %v1131 = vmul.f32 1.0, %v1130
  %v1132 = vxor.u32 %v1123, 2147483648
  %v1133 = vmul.f32 %v1132, 1.442695
  %v1134 = vpow.pop %v1133
  %v1135 = vadd.f32 %v1134, 1.0
  %v1136 = vrcp.pop %v1135
  %v1137 = vmul.f32 1.0, %v1136
  %v1138 = vtanh.pop %v1124
  %v1139 = vxor.u32 %v1125, 2147483648
  %v1140 = vmul.f32 %v1139, 1.442695
  %v1141 = vpow.pop %v1140
  %v1142 = vadd.f32 %v1141, 1.0
  %v1143 = vrcp.pop %v1142
  %v1144 = vmul.f32 1.0, %v1143
  %v1145 = vmul.f32 %v1137, %v832
  %v1146 = vmul.f32 %v1131, %v1138
  %v1147 = vadd.f32 %v1145, %v1146
  %v1148 = vtanh.pop %v1147
  %v1149 = vmul.f32 %v1144, %v1148
  %s1150 = scalar_lea.vmem %s0, 96
  %v1151 = vld [vmem:[%s1150] sm:$0xff]
  %v1152 = vld [vmem:[%s1150 + $0x8] sm:$0xff]
  %v1153 = vld [vmem:[%s1150 + $0x10] sm:$0xff]
  %v1154 = vld [vmem:[%s1150 + $0x18] sm:$0xff]
  %1155 = vmatprep.subr.bf16.mxu0 %v76
  %1156 = vmatpush1.bf16.msra.mxu0 %v75
  %1157 = vmatprep.subr.bf16.mxu0 %v80
  %1158 = vmatpush1.bf16.msra.mxu0 %v79
  %1159 = vmatprep.subr.bf16.mxu0 0
  %1160 = vmatpush1.bf16.msra.mxu0 0
  %1161 = vmatprep.subr.bf16.mxu0 0
  %1162 = vmatpush1.bf16.msra.mxu0 0
  %1163 = vmatprep.subr.bf16.mxu0 0
  %1164 = vmatpush1.bf16.msra.mxu0 0
  %1165 = vmatprep.subr.bf16.mxu0 0
  %1166 = vmatpush1.bf16.msra.mxu0 0
  %1167 = vmatprep.subr.bf16.mxu0 0
  %1168 = vmatpush1.bf16.msra.mxu0 0
  %1169 = vmatprep.subr.bf16.mxu0 0
  %1170 = vmatpush1.bf16.msra.mxu0 0
  %1171 = vmatprep.subr.bf16.mxu0 0
  %1172 = vmatpush1.bf16.msra.mxu0 0
  %1173 = vmatprep.subr.bf16.mxu0 0
  %1174 = vmatpush1.bf16.msra.mxu0 0
  %1175 = vmatprep.subr.bf16.mxu0 0
  %1176 = vmatpush1.bf16.msra.mxu0 0
  %1177 = vmatprep.subr.bf16.mxu0 0
  %1178 = vmatpush1.bf16.msra.mxu0 0
  %1179 = vmatprep.subr.bf16.mxu0 0
  %1180 = vmatpush1.bf16.msra.mxu0 0
  %1181 = vmatprep.subr.bf16.mxu0 0
  %1182 = vmatpush1.bf16.msra.mxu0 0
  %1183 = vmatprep.subr.bf16.mxu0 0
  %1184 = vmatpush1.bf16.msra.mxu0 0
  %1185 = vmatprep.subr.bf16.mxu0 0
  %1186 = vmatpush1.bf16.msra.mxu0 0
  %1187 = vmatprep.mubr.bf16.mxu0 0
  %1188 = vmatmul.mubr.bf16.gmra.mrb[0].mxu0 %v1038
  %v1189 = vpop.f32.mrb[0].mxu0
  %v1190 = vadd.f32 0.0, %v1189
  %v1191 = vpop.f32.mrb[0].mxu0
  %v1192 = vadd.f32 0.0, %v1191
  %v1193 = vpop.f32.mrb[0].mxu0
  %v1194 = vpop.f32.mrb[0].mxu0
  %1195 = vdwg.mxu0
  %1196 = vmatprep.subr.bf16.mxu0 %v78
  %1197 = vmatpush1.bf16.msra.mxu0 %v77
  %1198 = vmatprep.subr.bf16.mxu0 %v82
  %1199 = vmatpush1.bf16.msra.mxu0 %v81
  %1200 = vmatprep.subr.bf16.mxu0 0
  %1201 = vmatpush1.bf16.msra.mxu0 0
  %1202 = vmatprep.subr.bf16.mxu0 0
  %1203 = vmatpush1.bf16.msra.mxu0 0
  %1204 = vmatprep.subr.bf16.mxu0 0
  %1205 = vmatpush1.bf16.msra.mxu0 0
  %1206 = vmatprep.subr.bf16.mxu0 0
  %1207 = vmatpush1.bf16.msra.mxu0 0
  %1208 = vmatprep.subr.bf16.mxu0 0
  %1209 = vmatpush1.bf16.msra.mxu0 0
  %1210 = vmatprep.subr.bf16.mxu0 0
  %1211 = vmatpush1.bf16.msra.mxu0 0
  %1212 = vmatprep.subr.bf16.mxu0 0
  %1213 = vmatpush1.bf16.msra.mxu0 0
  %1214 = vmatprep.subr.bf16.mxu0 0
  %1215 = vmatpush1.bf16.msra.mxu0 0
  %1216 = vmatprep.subr.bf16.mxu0 0
  %1217 = vmatpush1.bf16.msra.mxu0 0
  %1218 = vmatprep.subr.bf16.mxu0 0
  %1219 = vmatpush1.bf16.msra.mxu0 0
  %1220 = vmatprep.subr.bf16.mxu0 0
  %1221 = vmatpush1.bf16.msra.mxu0 0
  %1222 = vmatprep.subr.bf16.mxu0 0
  %1223 = vmatpush1.bf16.msra.mxu0 0
  %1224 = vmatprep.subr.bf16.mxu0 0
  %1225 = vmatpush1.bf16.msra.mxu0 0
  %1226 = vmatprep.subr.bf16.mxu0 0
  %1227 = vmatpush1.bf16.msra.mxu0 0
  %1228 = vmatprep.mubr.bf16.mxu0 0
  %1229 = vmatmul.mubr.bf16.gmra.mrb[0].mxu0 %v1038
  %v1230 = vpop.f32.mrb[0].mxu0
  %v1231 = vadd.f32 0.0, %v1230
  %v1232 = vpop.f32.mrb[0].mxu0
  %v1233 = vadd.f32 0.0, %v1232
  %v1234 = vpop.f32.mrb[0].mxu0
  %v1235 = vpop.f32.mrb[0].mxu0
  %1236 = vdwg.mxu0
  %v1237 = vadd.f32 %v1151, %v1190
  %v1238 = vadd.f32 %v1152, %v1192
  %v1239 = vadd.f32 %v1153, %v1231
  %v1240 = vadd.f32 %v1154, %v1233
  %v1241 = vxor.u32 %v1237, 2147483648
  %v1242 = vmul.f32 %v1241, 1.442695
  %v1243 = vpow.pop %v1242
  %v1244 = vadd.f32 %v1243, 1.0
  %v1245 = vrcp.pop %v1244
  %v1246 = vmul.f32 1.0, %v1245
  %v1247 = vxor.u32 %v1238, 2147483648
  %v1248 = vmul.f32 %v1247, 1.442695
  %v1249 = vpow.pop %v1248
  %v1250 = vadd.f32 %v1249, 1.0
  %v1251 = vrcp.pop %v1250
  %v1252 = vmul.f32 1.0, %v1251
  %v1253 = vtanh.pop %v1239
  %v1254 = vxor.u32 %v1240, 2147483648
  %v1255 = vmul.f32 %v1254, 1.442695
  %v1256 = vpow.pop %v1255
  %v1257 = vadd.f32 %v1256, 1.0
  %v1258 = vrcp.pop %v1257
  %v1259 = vmul.f32 1.0, %v1258
  %v1260 = vmul.f32 %v1252, %v947
  %v1261 = vmul.f32 %v1246, %v1253
  %v1262 = vadd.f32 %v1260, %v1261
  %v1263 = vtanh.pop %v1262
  %v1264 = vmul.f32 %v1259, %v1263
  %v1265 = vpack.c.bf16 %v1264, %v1264
  %v1266 = vpack.c.bf16 %v1149, %v1149
  %v1268 = vsel %vm91, %v1266, 0
  %1270 = vmatprep.subr.bf16.mxu0 %v248
  %1271 = vmatpush1.bf16.msra.mxu0 %v247
  %1272 = vmatprep.subr.bf16.mxu0 %v252
  %1273 = vmatpush1.bf16.msra.mxu0 %v251
  %1274 = vmatprep.subr.bf16.mxu0 0
  %1275 = vmatpush1.bf16.msra.mxu0 0
  %1276 = vmatprep.subr.bf16.mxu0 0
  %1277 = vmatpush1.bf16.msra.mxu0 0
  %1278 = vmatprep.subr.bf16.mxu0 0
  %1279 = vmatpush1.bf16.msra.mxu0 0
  %1280 = vmatprep.subr.bf16.mxu0 0
  %1281 = vmatpush1.bf16.msra.mxu0 0
  %1282 = vmatprep.subr.bf16.mxu0 0
  %1283 = vmatpush1.bf16.msra.mxu0 0
  %1284 = vmatprep.subr.bf16.mxu0 0
  %1285 = vmatpush1.bf16.msra.mxu0 0
  %1286 = vmatprep.subr.bf16.mxu0 0
  %1287 = vmatpush1.bf16.msra.mxu0 0
  %1288 = vmatprep.subr.bf16.mxu0 0
  %1289 = vmatpush1.bf16.msra.mxu0 0
  %1290 = vmatprep.subr.bf16.mxu0 0
  %1291 = vmatpush1.bf16.msra.mxu0 0
  %1292 = vmatprep.subr.bf16.mxu0 0
  %1293 = vmatpush1.bf16.msra.mxu0 0
  %1294 = vmatprep.subr.bf16.mxu0 0
  %1295 = vmatpush1.bf16.msra.mxu0 0
  %1296 = vmatprep.subr.bf16.mxu0 0
  %1297 = vmatpush1.bf16.msra.mxu0 0
  %1298 = vmatprep.subr.bf16.mxu0 0
  %1299 = vmatpush1.bf16.msra.mxu0 0
  %1300 = vmatprep.subr.bf16.mxu0 0
  %1301 = vmatpush1.bf16.msra.mxu0 0
  %1302 = vmatprep.mubr.bf16.mxu0 0
  %1303 = vmatmul.mubr.bf16.gmra.mrb[0].mxu0 %v1268
  %v1304 = vpop.f32.mrb[0].mxu0
  %v1305 = vadd.f32 0.0, %v1304
  %v1306 = vpop.f32.mrb[0].mxu0
  %v1307 = vadd.f32 0.0, %v1306
  %v1308 = vpop.f32.mrb[0].mxu0
  %v1309 = vpop.f32.mrb[0].mxu0
  %1310 = vdwg.mxu0
  %1311 = vmatprep.subr.bf16.mxu0 %v250
  %1312 = vmatpush1.bf16.msra.mxu0 %v249
  %1313 = vmatprep.subr.bf16.mxu0 %v254
  %1314 = vmatpush1.bf16.msra.mxu0 %v253
  %1315 = vmatprep.subr.bf16.mxu0 0
  %1316 = vmatpush1.bf16.msra.mxu0 0
  %1317 = vmatprep.subr.bf16.mxu0 0
  %1318 = vmatpush1.bf16.msra.mxu0 0
  %1319 = vmatprep.subr.bf16.mxu0 0
  %1320 = vmatpush1.bf16.msra.mxu0 0
  %1321 = vmatprep.subr.bf16.mxu0 0
  %1322 = vmatpush1.bf16.msra.mxu0 0
  %1323 = vmatprep.subr.bf16.mxu0 0
  %1324 = vmatpush1.bf16.msra.mxu0 0
  %1325 = vmatprep.subr.bf16.mxu0 0
  %1326 = vmatpush1.bf16.msra.mxu0 0
  %1327 = vmatprep.subr.bf16.mxu0 0
  %1328 = vmatpush1.bf16.msra.mxu0 0
  %1329 = vmatprep.subr.bf16.mxu0 0
  %1330 = vmatpush1.bf16.msra.mxu0 0
  %1331 = vmatprep.subr.bf16.mxu0 0
  %1332 = vmatpush1.bf16.msra.mxu0 0
  %1333 = vmatprep.subr.bf16.mxu0 0
  %1334 = vmatpush1.bf16.msra.mxu0 0
  %1335 = vmatprep.subr.bf16.mxu0 0
  %1336 = vmatpush1.bf16.msra.mxu0 0
  %1337 = vmatprep.subr.bf16.mxu0 0
  %1338 = vmatpush1.bf16.msra.mxu0 0
  %1339 = vmatprep.subr.bf16.mxu0 0
  %1340 = vmatpush1.bf16.msra.mxu0 0
  %1341 = vmatprep.subr.bf16.mxu0 0
  %1342 = vmatpush1.bf16.msra.mxu0 0
  %1343 = vmatprep.mubr.bf16.mxu0 0
  %1344 = vmatmul.mubr.bf16.gmra.mrb[0].mxu0 %v1268
  %v1345 = vpop.f32.mrb[0].mxu0
  %v1346 = vadd.f32 0.0, %v1345
  %v1347 = vpop.f32.mrb[0].mxu0
  %v1348 = vadd.f32 0.0, %v1347
  %v1349 = vpop.f32.mrb[0].mxu0
  %v1350 = vpop.f32.mrb[0].mxu0
  %1351 = vdwg.mxu0
  %v1353 = vsel %vm91, %v1265, 0
  %1355 = vmatprep.subr.bf16.mxu0 %v370
  %1356 = vmatpush1.bf16.msra.mxu0 %v369
  %1357 = vmatprep.subr.bf16.mxu0 %v374
  %1358 = vmatpush1.bf16.msra.mxu0 %v373
  %1359 = vmatprep.subr.bf16.mxu0 0
  %1360 = vmatpush1.bf16.msra.mxu0 0
  %1361 = vmatprep.subr.bf16.mxu0 0
  %1362 = vmatpush1.bf16.msra.mxu0 0
  %1363 = vmatprep.subr.bf16.mxu0 0
  %1364 = vmatpush1.bf16.msra.mxu0 0
  %1365 = vmatprep.subr.bf16.mxu0 0
  %1366 = vmatpush1.bf16.msra.mxu0 0
  %1367 = vmatprep.subr.bf16.mxu0 0
  %1368 = vmatpush1.bf16.msra.mxu0 0
  %1369 = vmatprep.subr.bf16.mxu0 0
  %1370 = vmatpush1.bf16.msra.mxu0 0
  %1371 = vmatprep.subr.bf16.mxu0 0
  %1372 = vmatpush1.bf16.msra.mxu0 0
  %1373 = vmatprep.subr.bf16.mxu0 0
  %1374 = vmatpush1.bf16.msra.mxu0 0
  %1375 = vmatprep.subr.bf16.mxu0 0
  %1376 = vmatpush1.bf16.msra.mxu0 0
  %1377 = vmatprep.subr.bf16.mxu0 0
  %1378 = vmatpush1.bf16.msra.mxu0 0
  %1379 = vmatprep.subr.bf16.mxu0 0
  %1380 = vmatpush1.bf16.msra.mxu0 0
  %1381 = vmatprep.subr.bf16.mxu0 0
  %1382 = vmatpush1.bf16.msra.mxu0 0
  %1383 = vmatprep.subr.bf16.mxu0 0
  %1384 = vmatpush1.bf16.msra.mxu0 0
  %1385 = vmatprep.subr.bf16.mxu0 0
  %1386 = vmatpush1.bf16.msra.mxu0 0
  %1387 = vmatprep.mubr.bf16.mxu0 0
  %1388 = vmatmul.mubr.bf16.gmra.mrb[0].mxu0 %v1353
  %v1389 = vpop.f32.mrb[0].mxu0
  %v1390 = vadd.f32 %v1305, %v1389
  %v1391 = vpop.f32.mrb[0].mxu0
  %v1392 = vadd.f32 %v1307, %v1391
  %v1393 = vpop.f32.mrb[0].mxu0
  %v1394 = vpop.f32.mrb[0].mxu0
  %1395 = vdwg.mxu0
  %1396 = vmatprep.subr.bf16.mxu0 %v372
  %1397 = vmatpush1.bf16.msra.mxu0 %v371
  %1398 = vmatprep.subr.bf16.mxu0 %v376
  %1399 = vmatpush1.bf16.msra.mxu0 %v375
  %1400 = vmatprep.subr.bf16.mxu0 0
  %1401 = vmatpush1.bf16.msra.mxu0 0
  %1402 = vmatprep.subr.bf16.mxu0 0
  %1403 = vmatpush1.bf16.msra.mxu0 0
  %1404 = vmatprep.subr.bf16.mxu0 0
  %1405 = vmatpush1.bf16.msra.mxu0 0
  %1406 = vmatprep.subr.bf16.mxu0 0
  %1407 = vmatpush1.bf16.msra.mxu0 0
  %1408 = vmatprep.subr.bf16.mxu0 0
  %1409 = vmatpush1.bf16.msra.mxu0 0
  %1410 = vmatprep.subr.bf16.mxu0 0
  %1411 = vmatpush1.bf16.msra.mxu0 0
  %1412 = vmatprep.subr.bf16.mxu0 0
  %1413 = vmatpush1.bf16.msra.mxu0 0
  %1414 = vmatprep.subr.bf16.mxu0 0
  %1415 = vmatpush1.bf16.msra.mxu0 0
  %1416 = vmatprep.subr.bf16.mxu0 0
  %1417 = vmatpush1.bf16.msra.mxu0 0
  %1418 = vmatprep.subr.bf16.mxu0 0
  %1419 = vmatpush1.bf16.msra.mxu0 0
  %1420 = vmatprep.subr.bf16.mxu0 0
  %1421 = vmatpush1.bf16.msra.mxu0 0
  %1422 = vmatprep.subr.bf16.mxu0 0
  %1423 = vmatpush1.bf16.msra.mxu0 0
  %1424 = vmatprep.subr.bf16.mxu0 0
  %1425 = vmatpush1.bf16.msra.mxu0 0
  %1426 = vmatprep.subr.bf16.mxu0 0
  %1427 = vmatpush1.bf16.msra.mxu0 0
  %1428 = vmatprep.mubr.bf16.mxu0 0
  %1429 = vmatmul.mubr.bf16.gmra.mrb[0].mxu0 %v1353
  %v1430 = vpop.f32.mrb[0].mxu0
  %v1431 = vadd.f32 %v1346, %v1430
  %v1432 = vpop.f32.mrb[0].mxu0
  %v1433 = vadd.f32 %v1348, %v1432
  %v1434 = vpop.f32.mrb[0].mxu0
  %v1435 = vpop.f32.mrb[0].mxu0
  %1436 = vdwg.mxu0
  %v1437 = vadd.f32 %v1390, %v475
  %v1438 = vadd.f32 %v1392, %v479
  %v1439 = vadd.f32 %v1431, %v483
  %v1440 = vadd.f32 %v1433, %v487
  %v1441 = vxor.u32 %v1437, 2147483648
  %v1442 = vmul.f32 %v1441, 1.442695
  %v1443 = vpow.pop %v1442
  %v1444 = vadd.f32 %v1443, 1.0
  %v1445 = vrcp.pop %v1444
  %v1446 = vmul.f32 1.0, %v1445
  %v1447 = vxor.u32 %v1438, 2147483648
  %v1448 = vmul.f32 %v1447, 1.442695
  %v1449 = vpow.pop %v1448
  %v1450 = vadd.f32 %v1449, 1.0
  %v1451 = vrcp.pop %v1450
  %v1452 = vmul.f32 1.0, %v1451
  %v1453 = vtanh.pop %v1439
  %v1454 = vxor.u32 %v1440, 2147483648
  %v1455 = vmul.f32 %v1454, 1.442695
  %v1456 = vpow.pop %v1455
  %v1457 = vadd.f32 %v1456, 1.0
  %v1458 = vrcp.pop %v1457
  %v1459 = vmul.f32 1.0, %v1458
  %v1460 = vmul.f32 %v1452, %v1147
  %v1461 = vmul.f32 %v1446, %v1453
  %v1462 = vadd.f32 %v1460, %v1461
  %v1463 = vtanh.pop %v1462
  %v1464 = vmul.f32 %v1459, %v1463
  %s1465 = scalar_lea.vmem %s0, 128
  %v1466 = vld [vmem:[%s1465] sm:$0xff]
  %v1467 = vld [vmem:[%s1465 + $0x8] sm:$0xff]
  %v1468 = vld [vmem:[%s1465 + $0x10] sm:$0xff]
  %v1469 = vld [vmem:[%s1465 + $0x18] sm:$0xff]
  %1470 = vmatprep.subr.bf16.mxu0 %v76
  %1471 = vmatpush1.bf16.msra.mxu0 %v75
  %1472 = vmatprep.subr.bf16.mxu0 %v80
  %1473 = vmatpush1.bf16.msra.mxu0 %v79
  %1474 = vmatprep.subr.bf16.mxu0 0
  %1475 = vmatpush1.bf16.msra.mxu0 0
  %1476 = vmatprep.subr.bf16.mxu0 0
  %1477 = vmatpush1.bf16.msra.mxu0 0
  %1478 = vmatprep.subr.bf16.mxu0 0
  %1479 = vmatpush1.bf16.msra.mxu0 0
  %1480 = vmatprep.subr.bf16.mxu0 0
  %1481 = vmatpush1.bf16.msra.mxu0 0
  %1482 = vmatprep.subr.bf16.mxu0 0
  %1483 = vmatpush1.bf16.msra.mxu0 0
  %1484 = vmatprep.subr.bf16.mxu0 0
  %1485 = vmatpush1.bf16.msra.mxu0 0
  %1486 = vmatprep.subr.bf16.mxu0 0
  %1487 = vmatpush1.bf16.msra.mxu0 0
  %1488 = vmatprep.subr.bf16.mxu0 0
  %1489 = vmatpush1.bf16.msra.mxu0 0
  %1490 = vmatprep.subr.bf16.mxu0 0
  %1491 = vmatpush1.bf16.msra.mxu0 0
  %1492 = vmatprep.subr.bf16.mxu0 0
  %1493 = vmatpush1.bf16.msra.mxu0 0
  %1494 = vmatprep.subr.bf16.mxu0 0
  %1495 = vmatpush1.bf16.msra.mxu0 0
  %1496 = vmatprep.subr.bf16.mxu0 0
  %1497 = vmatpush1.bf16.msra.mxu0 0
  %1498 = vmatprep.subr.bf16.mxu0 0
  %1499 = vmatpush1.bf16.msra.mxu0 0
  %1500 = vmatprep.subr.bf16.mxu0 0
  %1501 = vmatpush1.bf16.msra.mxu0 0
  %1502 = vmatprep.mubr.bf16.mxu0 0
  %1503 = vmatmul.mubr.bf16.gmra.mrb[0].mxu0 %v1353
  %v1504 = vpop.f32.mrb[0].mxu0
  %v1505 = vadd.f32 0.0, %v1504
  %v1506 = vpop.f32.mrb[0].mxu0
  %v1507 = vadd.f32 0.0, %v1506
  %v1508 = vpop.f32.mrb[0].mxu0
  %v1509 = vpop.f32.mrb[0].mxu0
  %1510 = vdwg.mxu0
  %1511 = vmatprep.subr.bf16.mxu0 %v78
  %1512 = vmatpush1.bf16.msra.mxu0 %v77
  %1513 = vmatprep.subr.bf16.mxu0 %v82
  %1514 = vmatpush1.bf16.msra.mxu0 %v81
  %1515 = vmatprep.subr.bf16.mxu0 0
  %1516 = vmatpush1.bf16.msra.mxu0 0
  %1517 = vmatprep.subr.bf16.mxu0 0
  %1518 = vmatpush1.bf16.msra.mxu0 0
  %1519 = vmatprep.subr.bf16.mxu0 0
  %1520 = vmatpush1.bf16.msra.mxu0 0
  %1521 = vmatprep.subr.bf16.mxu0 0
  %1522 = vmatpush1.bf16.msra.mxu0 0
  %1523 = vmatprep.subr.bf16.mxu0 0
  %1524 = vmatpush1.bf16.msra.mxu0 0
  %1525 = vmatprep.subr.bf16.mxu0 0
  %1526 = vmatpush1.bf16.msra.mxu0 0
  %1527 = vmatprep.subr.bf16.mxu0 0
  %1528 = vmatpush1.bf16.msra.mxu0 0
  %1529 = vmatprep.subr.bf16.mxu0 0
  %1530 = vmatpush1.bf16.msra.mxu0 0
  %1531 = vmatprep.subr.bf16.mxu0 0
  %1532 = vmatpush1.bf16.msra.mxu0 0
  %1533 = vmatprep.subr.bf16.mxu0 0
  %1534 = vmatpush1.bf16.msra.mxu0 0
  %1535 = vmatprep.subr.bf16.mxu0 0
  %1536 = vmatpush1.bf16.msra.mxu0 0
  %1537 = vmatprep.subr.bf16.mxu0 0
  %1538 = vmatpush1.bf16.msra.mxu0 0
  %1539 = vmatprep.subr.bf16.mxu0 0
  %1540 = vmatpush1.bf16.msra.mxu0 0
  %1541 = vmatprep.subr.bf16.mxu0 0
  %1542 = vmatpush1.bf16.msra.mxu0 0
  %1543 = vmatprep.mubr.bf16.mxu0 0
  %1544 = vmatmul.mubr.bf16.gmra.mrb[0].mxu0 %v1353
  %v1545 = vpop.f32.mrb[0].mxu0
  %v1546 = vadd.f32 0.0, %v1545
  %v1547 = vpop.f32.mrb[0].mxu0
  %v1548 = vadd.f32 0.0, %v1547
  %v1549 = vpop.f32.mrb[0].mxu0
  %v1550 = vpop.f32.mrb[0].mxu0
  %1551 = vdwg.mxu0
  %v1552 = vadd.f32 %v1466, %v1505
  %v1553 = vadd.f32 %v1467, %v1507
  %v1554 = vadd.f32 %v1468, %v1546
  %v1555 = vadd.f32 %v1469, %v1548
  %v1556 = vxor.u32 %v1552, 2147483648
  %v1557 = vmul.f32 %v1556, 1.442695
  %v1558 = vpow.pop %v1557
  %v1559 = vadd.f32 %v1558, 1.0
  %v1560 = vrcp.pop %v1559
  %v1561 = vmul.f32 1.0, %v1560
  %v1562 = vxor.u32 %v1553, 2147483648
  %v1563 = vmul.f32 %v1562, 1.442695
  %v1564 = vpow.pop %v1563
  %v1565 = vadd.f32 %v1564, 1.0
  %v1566 = vrcp.pop %v1565
  %v1567 = vmul.f32 1.0, %v1566
  %v1568 = vtanh.pop %v1554
  %v1569 = vxor.u32 %v1555, 2147483648
  %v1570 = vmul.f32 %v1569, 1.442695
  %v1571 = vpow.pop %v1570
  %v1572 = vadd.f32 %v1571, 1.0
  %v1573 = vrcp.pop %v1572
  %v1574 = vmul.f32 1.0, %v1573
  %v1575 = vmul.f32 %v1567, %v1262
  %v1576 = vmul.f32 %v1561, %v1568
  %v1577 = vadd.f32 %v1575, %v1576
  %v1578 = vtanh.pop %v1577
  %v1579 = vmul.f32 %v1574, %v1578
  %v1580 = vpack.c.bf16 %v1579, %v1579
  %v1581 = vpack.c.bf16 %v1464, %v1464
  %v1583 = vsel %vm91, %v1581, 0
  %1585 = vmatprep.subr.bf16.mxu0 %v248
  %1586 = vmatpush1.bf16.msra.mxu0 %v247
  %1587 = vmatprep.subr.bf16.mxu0 %v252
  %1588 = vmatpush1.bf16.msra.mxu0 %v251
  %1589 = vmatprep.subr.bf16.mxu0 0
  %1590 = vmatpush1.bf16.msra.mxu0 0
  %1591 = vmatprep.subr.bf16.mxu0 0
  %1592 = vmatpush1.bf16.msra.mxu0 0
  %1593 = vmatprep.subr.bf16.mxu0 0
  %1594 = vmatpush1.bf16.msra.mxu0 0
  %1595 = vmatprep.subr.bf16.mxu0 0
  %1596 = vmatpush1.bf16.msra.mxu0 0
  %1597 = vmatprep.subr.bf16.mxu0 0
  %1598 = vmatpush1.bf16.msra.mxu0 0
  %1599 = vmatprep.subr.bf16.mxu0 0
  %1600 = vmatpush1.bf16.msra.mxu0 0
  %1601 = vmatprep.subr.bf16.mxu0 0
  %1602 = vmatpush1.bf16.msra.mxu0 0
  %1603 = vmatprep.subr.bf16.mxu0 0
  %1604 = vmatpush1.bf16.msra.mxu0 0
  %1605 = vmatprep.subr.bf16.mxu0 0
  %1606 = vmatpush1.bf16.msra.mxu0 0
  %1607 = vmatprep.subr.bf16.mxu0 0
  %1608 = vmatpush1.bf16.msra.mxu0 0
  %1609 = vmatprep.subr.bf16.mxu0 0
  %1610 = vmatpush1.bf16.msra.mxu0 0
  %1611 = vmatprep.subr.bf16.mxu0 0
  %1612 = vmatpush1.bf16.msra.mxu0 0
  %1613 = vmatprep.subr.bf16.mxu0 0
  %1614 = vmatpush1.bf16.msra.mxu0 0
  %1615 = vmatprep.subr.bf16.mxu0 0
  %1616 = vmatpush1.bf16.msra.mxu0 0
  %1617 = vmatprep.mubr.bf16.mxu0 0
  %1618 = vmatmul.mubr.bf16.gmra.mrb[0].mxu0 %v1583
  %v1619 = vpop.f32.mrb[0].mxu0
  %v1620 = vadd.f32 0.0, %v1619
  %v1621 = vpop.f32.mrb[0].mxu0
  %v1622 = vadd.f32 0.0, %v1621
  %v1623 = vpop.f32.mrb[0].mxu0
  %v1624 = vpop.f32.mrb[0].mxu0
  %1625 = vdwg.mxu0
  %1626 = vmatprep.subr.bf16.mxu0 %v250
  %1627 = vmatpush1.bf16.msra.mxu0 %v249
  %1628 = vmatprep.subr.bf16.mxu0 %v254
  %1629 = vmatpush1.bf16.msra.mxu0 %v253
  %1630 = vmatprep.subr.bf16.mxu0 0
  %1631 = vmatpush1.bf16.msra.mxu0 0
  %1632 = vmatprep.subr.bf16.mxu0 0
  %1633 = vmatpush1.bf16.msra.mxu0 0
  %1634 = vmatprep.subr.bf16.mxu0 0
  %1635 = vmatpush1.bf16.msra.mxu0 0
  %1636 = vmatprep.subr.bf16.mxu0 0
  %1637 = vmatpush1.bf16.msra.mxu0 0
  %1638 = vmatprep.subr.bf16.mxu0 0
  %1639 = vmatpush1.bf16.msra.mxu0 0
  %1640 = vmatprep.subr.bf16.mxu0 0
  %1641 = vmatpush1.bf16.msra.mxu0 0
  %1642 = vmatprep.subr.bf16.mxu0 0
  %1643 = vmatpush1.bf16.msra.mxu0 0
  %1644 = vmatprep.subr.bf16.mxu0 0
  %1645 = vmatpush1.bf16.msra.mxu0 0
  %1646 = vmatprep.subr.bf16.mxu0 0
  %1647 = vmatpush1.bf16.msra.mxu0 0
  %1648 = vmatprep.subr.bf16.mxu0 0
  %1649 = vmatpush1.bf16.msra.mxu0 0
  %1650 = vmatprep.subr.bf16.mxu0 0
  %1651 = vmatpush1.bf16.msra.mxu0 0
  %1652 = vmatprep.subr.bf16.mxu0 0
  %1653 = vmatpush1.bf16.msra.mxu0 0
  %1654 = vmatprep.subr.bf16.mxu0 0
  %1655 = vmatpush1.bf16.msra.mxu0 0
  %1656 = vmatprep.subr.bf16.mxu0 0
  %1657 = vmatpush1.bf16.msra.mxu0 0
  %1658 = vmatprep.mubr.bf16.mxu0 0
  %1659 = vmatmul.mubr.bf16.gmra.mrb[0].mxu0 %v1583
  %v1660 = vpop.f32.mrb[0].mxu0
  %v1661 = vadd.f32 0.0, %v1660
  %v1662 = vpop.f32.mrb[0].mxu0
  %v1663 = vadd.f32 0.0, %v1662
  %v1664 = vpop.f32.mrb[0].mxu0
  %v1665 = vpop.f32.mrb[0].mxu0
  %1666 = vdwg.mxu0
  %v1668 = vsel %vm91, %v1580, 0
  %1670 = vmatprep.subr.bf16.mxu0 %v370
  %1671 = vmatpush1.bf16.msra.mxu0 %v369
  %1672 = vmatprep.subr.bf16.mxu0 %v374
  %1673 = vmatpush1.bf16.msra.mxu0 %v373
  %1674 = vmatprep.subr.bf16.mxu0 0
  %1675 = vmatpush1.bf16.msra.mxu0 0
  %1676 = vmatprep.subr.bf16.mxu0 0
  %1677 = vmatpush1.bf16.msra.mxu0 0
  %1678 = vmatprep.subr.bf16.mxu0 0
  %1679 = vmatpush1.bf16.msra.mxu0 0
  %1680 = vmatprep.subr.bf16.mxu0 0
  %1681 = vmatpush1.bf16.msra.mxu0 0
  %1682 = vmatprep.subr.bf16.mxu0 0
  %1683 = vmatpush1.bf16.msra.mxu0 0
  %1684 = vmatprep.subr.bf16.mxu0 0
  %1685 = vmatpush1.bf16.msra.mxu0 0
  %1686 = vmatprep.subr.bf16.mxu0 0
  %1687 = vmatpush1.bf16.msra.mxu0 0
  %1688 = vmatprep.subr.bf16.mxu0 0
  %1689 = vmatpush1.bf16.msra.mxu0 0
  %1690 = vmatprep.subr.bf16.mxu0 0
  %1691 = vmatpush1.bf16.msra.mxu0 0
  %1692 = vmatprep.subr.bf16.mxu0 0
  %1693 = vmatpush1.bf16.msra.mxu0 0
  %1694 = vmatprep.subr.bf16.mxu0 0
  %1695 = vmatpush1.bf16.msra.mxu0 0
  %1696 = vmatprep.subr.bf16.mxu0 0
  %1697 = vmatpush1.bf16.msra.mxu0 0
  %1698 = vmatprep.subr.bf16.mxu0 0
  %1699 = vmatpush1.bf16.msra.mxu0 0
  %1700 = vmatprep.subr.bf16.mxu0 0
  %1701 = vmatpush1.bf16.msra.mxu0 0
  %1702 = vmatprep.mubr.bf16.mxu0 0
  %1703 = vmatmul.mubr.bf16.gmra.mrb[0].mxu0 %v1668
  %v1704 = vpop.f32.mrb[0].mxu0
  %v1705 = vadd.f32 %v1620, %v1704
  %v1706 = vpop.f32.mrb[0].mxu0
  %v1707 = vadd.f32 %v1622, %v1706
  %v1708 = vpop.f32.mrb[0].mxu0
  %v1709 = vpop.f32.mrb[0].mxu0
  %1710 = vdwg.mxu0
  %1711 = vmatprep.subr.bf16.mxu0 %v372
  %1712 = vmatpush1.bf16.msra.mxu0 %v371
  %1713 = vmatprep.subr.bf16.mxu0 %v376
  %1714 = vmatpush1.bf16.msra.mxu0 %v375
  %1715 = vmatprep.subr.bf16.mxu0 0
  %1716 = vmatpush1.bf16.msra.mxu0 0
  %1717 = vmatprep.subr.bf16.mxu0 0
  %1718 = vmatpush1.bf16.msra.mxu0 0
  %1719 = vmatprep.subr.bf16.mxu0 0
  %1720 = vmatpush1.bf16.msra.mxu0 0
  %1721 = vmatprep.subr.bf16.mxu0 0
  %1722 = vmatpush1.bf16.msra.mxu0 0
  %1723 = vmatprep.subr.bf16.mxu0 0
  %1724 = vmatpush1.bf16.msra.mxu0 0
  %1725 = vmatprep.subr.bf16.mxu0 0
  %1726 = vmatpush1.bf16.msra.mxu0 0
  %1727 = vmatprep.subr.bf16.mxu0 0
  %1728 = vmatpush1.bf16.msra.mxu0 0
  %1729 = vmatprep.subr.bf16.mxu0 0
  %1730 = vmatpush1.bf16.msra.mxu0 0
  %1731 = vmatprep.subr.bf16.mxu0 0
  %1732 = vmatpush1.bf16.msra.mxu0 0
  %1733 = vmatprep.subr.bf16.mxu0 0
  %1734 = vmatpush1.bf16.msra.mxu0 0
  %1735 = vmatprep.subr.bf16.mxu0 0
  %1736 = vmatpush1.bf16.msra.mxu0 0
  %1737 = vmatprep.subr.bf16.mxu0 0
  %1738 = vmatpush1.bf16.msra.mxu0 0
  %1739 = vmatprep.subr.bf16.mxu0 0
  %1740 = vmatpush1.bf16.msra.mxu0 0
  %1741 = vmatprep.subr.bf16.mxu0 0
  %1742 = vmatpush1.bf16.msra.mxu0 0
  %1743 = vmatprep.mubr.bf16.mxu0 0
  %1744 = vmatmul.mubr.bf16.gmra.mrb[0].mxu0 %v1668
  %v1745 = vpop.f32.mrb[0].mxu0
  %v1746 = vadd.f32 %v1661, %v1745
  %v1747 = vpop.f32.mrb[0].mxu0
  %v1748 = vadd.f32 %v1663, %v1747
  %v1749 = vpop.f32.mrb[0].mxu0
  %v1750 = vpop.f32.mrb[0].mxu0
  %1751 = vdwg.mxu0
  %v1752 = vadd.f32 %v1705, %v475
  %v1753 = vadd.f32 %v1707, %v479
  %v1754 = vadd.f32 %v1746, %v483
  %v1755 = vadd.f32 %v1748, %v487
  %v1756 = vxor.u32 %v1752, 2147483648
  %v1757 = vmul.f32 %v1756, 1.442695
  %v1758 = vpow.pop %v1757
  %v1759 = vadd.f32 %v1758, 1.0
  %v1760 = vrcp.pop %v1759
  %v1761 = vmul.f32 1.0, %v1760
  %v1762 = vxor.u32 %v1753, 2147483648
  %v1763 = vmul.f32 %v1762, 1.442695
  %v1764 = vpow.pop %v1763
  %v1765 = vadd.f32 %v1764, 1.0
  %v1766 = vrcp.pop %v1765
  %v1767 = vmul.f32 1.0, %v1766
  %v1768 = vtanh.pop %v1754
  %v1769 = vxor.u32 %v1755, 2147483648
  %v1770 = vmul.f32 %v1769, 1.442695
  %v1771 = vpow.pop %v1770
  %v1772 = vadd.f32 %v1771, 1.0
  %v1773 = vrcp.pop %v1772
  %v1774 = vmul.f32 1.0, %v1773
  %v1775 = vmul.f32 %v1767, %v1462
  %v1776 = vmul.f32 %v1761, %v1768
  %v1777 = vadd.f32 %v1775, %v1776
  %v1778 = vtanh.pop %v1777
  %v1779 = vmul.f32 %v1774, %v1778
  %s1780 = scalar_lea.vmem %s0, 160
  %v1781 = vld [vmem:[%s1780] sm:$0xff]
  %v1782 = vld [vmem:[%s1780 + $0x8] sm:$0xff]
  %v1783 = vld [vmem:[%s1780 + $0x10] sm:$0xff]
  %v1784 = vld [vmem:[%s1780 + $0x18] sm:$0xff]
  %1785 = vmatprep.subr.bf16.mxu0 %v76
  %1786 = vmatpush1.bf16.msra.mxu0 %v75
  %1787 = vmatprep.subr.bf16.mxu0 %v80
  %1788 = vmatpush1.bf16.msra.mxu0 %v79
  %1789 = vmatprep.subr.bf16.mxu0 0
  %1790 = vmatpush1.bf16.msra.mxu0 0
  %1791 = vmatprep.subr.bf16.mxu0 0
  %1792 = vmatpush1.bf16.msra.mxu0 0
  %1793 = vmatprep.subr.bf16.mxu0 0
  %1794 = vmatpush1.bf16.msra.mxu0 0
  %1795 = vmatprep.subr.bf16.mxu0 0
  %1796 = vmatpush1.bf16.msra.mxu0 0
  %1797 = vmatprep.subr.bf16.mxu0 0
  %1798 = vmatpush1.bf16.msra.mxu0 0
  %1799 = vmatprep.subr.bf16.mxu0 0
  %1800 = vmatpush1.bf16.msra.mxu0 0
  %1801 = vmatprep.subr.bf16.mxu0 0
  %1802 = vmatpush1.bf16.msra.mxu0 0
  %1803 = vmatprep.subr.bf16.mxu0 0
  %1804 = vmatpush1.bf16.msra.mxu0 0
  %1805 = vmatprep.subr.bf16.mxu0 0
  %1806 = vmatpush1.bf16.msra.mxu0 0
  %1807 = vmatprep.subr.bf16.mxu0 0
  %1808 = vmatpush1.bf16.msra.mxu0 0
  %1809 = vmatprep.subr.bf16.mxu0 0
  %1810 = vmatpush1.bf16.msra.mxu0 0
  %1811 = vmatprep.subr.bf16.mxu0 0
  %1812 = vmatpush1.bf16.msra.mxu0 0
  %1813 = vmatprep.subr.bf16.mxu0 0
  %1814 = vmatpush1.bf16.msra.mxu0 0
  %1815 = vmatprep.subr.bf16.mxu0 0
  %1816 = vmatpush1.bf16.msra.mxu0 0
  %1817 = vmatprep.mubr.bf16.mxu0 0
  %1818 = vmatmul.mubr.bf16.gmra.mrb[0].mxu0 %v1668
  %v1819 = vpop.f32.mrb[0].mxu0
  %v1820 = vadd.f32 0.0, %v1819
  %v1821 = vpop.f32.mrb[0].mxu0
  %v1822 = vadd.f32 0.0, %v1821
  %v1823 = vpop.f32.mrb[0].mxu0
  %v1824 = vpop.f32.mrb[0].mxu0
  %1825 = vdwg.mxu0
  %1826 = vmatprep.subr.bf16.mxu0 %v78
  %1827 = vmatpush1.bf16.msra.mxu0 %v77
  %1828 = vmatprep.subr.bf16.mxu0 %v82
  %1829 = vmatpush1.bf16.msra.mxu0 %v81
  %1830 = vmatprep.subr.bf16.mxu0 0
  %1831 = vmatpush1.bf16.msra.mxu0 0
  %1832 = vmatprep.subr.bf16.mxu0 0
  %1833 = vmatpush1.bf16.msra.mxu0 0
  %1834 = vmatprep.subr.bf16.mxu0 0
  %1835 = vmatpush1.bf16.msra.mxu0 0
  %1836 = vmatprep.subr.bf16.mxu0 0
  %1837 = vmatpush1.bf16.msra.mxu0 0
  %1838 = vmatprep.subr.bf16.mxu0 0
  %1839 = vmatpush1.bf16.msra.mxu0 0
  %1840 = vmatprep.subr.bf16.mxu0 0
  %1841 = vmatpush1.bf16.msra.mxu0 0
  %1842 = vmatprep.subr.bf16.mxu0 0
  %1843 = vmatpush1.bf16.msra.mxu0 0
  %1844 = vmatprep.subr.bf16.mxu0 0
  %1845 = vmatpush1.bf16.msra.mxu0 0
  %1846 = vmatprep.subr.bf16.mxu0 0
  %1847 = vmatpush1.bf16.msra.mxu0 0
  %1848 = vmatprep.subr.bf16.mxu0 0
  %1849 = vmatpush1.bf16.msra.mxu0 0
  %1850 = vmatprep.subr.bf16.mxu0 0
  %1851 = vmatpush1.bf16.msra.mxu0 0
  %1852 = vmatprep.subr.bf16.mxu0 0
  %1853 = vmatpush1.bf16.msra.mxu0 0
  %1854 = vmatprep.subr.bf16.mxu0 0
  %1855 = vmatpush1.bf16.msra.mxu0 0
  %1856 = vmatprep.subr.bf16.mxu0 0
  %1857 = vmatpush1.bf16.msra.mxu0 0
  %1858 = vmatprep.mubr.bf16.mxu0 0
  %1859 = vmatmul.mubr.bf16.gmra.mrb[0].mxu0 %v1668
  %v1860 = vpop.f32.mrb[0].mxu0
  %v1861 = vadd.f32 0.0, %v1860
  %v1862 = vpop.f32.mrb[0].mxu0
  %v1863 = vadd.f32 0.0, %v1862
  %v1864 = vpop.f32.mrb[0].mxu0
  %v1865 = vpop.f32.mrb[0].mxu0
  %1866 = vdwg.mxu0
  %v1867 = vadd.f32 %v1781, %v1820
  %v1868 = vadd.f32 %v1782, %v1822
  %v1869 = vadd.f32 %v1783, %v1861
  %v1870 = vadd.f32 %v1784, %v1863
  %v1871 = vxor.u32 %v1867, 2147483648
  %v1872 = vmul.f32 %v1871, 1.442695
  %v1873 = vpow.pop %v1872
  %v1874 = vadd.f32 %v1873, 1.0
  %v1875 = vrcp.pop %v1874
  %v1876 = vmul.f32 1.0, %v1875
  %v1877 = vxor.u32 %v1868, 2147483648
  %v1878 = vmul.f32 %v1877, 1.442695
  %v1879 = vpow.pop %v1878
  %v1880 = vadd.f32 %v1879, 1.0
  %v1881 = vrcp.pop %v1880
  %v1882 = vmul.f32 1.0, %v1881
  %v1883 = vtanh.pop %v1869
  %v1884 = vxor.u32 %v1870, 2147483648
  %v1885 = vmul.f32 %v1884, 1.442695
  %v1886 = vpow.pop %v1885
  %v1887 = vadd.f32 %v1886, 1.0
  %v1888 = vrcp.pop %v1887
  %v1889 = vmul.f32 1.0, %v1888
  %v1890 = vmul.f32 %v1882, %v1577
  %v1891 = vmul.f32 %v1876, %v1883
  %v1892 = vadd.f32 %v1890, %v1891
  %v1893 = vtanh.pop %v1892
  %v1894 = vmul.f32 %v1889, %v1893
  %v1895 = vpack.c.bf16 %v1894, %v1894
  %v1896 = vpack.c.bf16 %v1779, %v1779
  %v1898 = vsel %vm91, %v1896, 0
  %1900 = vmatprep.subr.bf16.mxu0 %v248
  %1901 = vmatpush1.bf16.msra.mxu0 %v247
  %1902 = vmatprep.subr.bf16.mxu0 %v252
  %1903 = vmatpush1.bf16.msra.mxu0 %v251
  %1904 = vmatprep.subr.bf16.mxu0 0
  %1905 = vmatpush1.bf16.msra.mxu0 0
  %1906 = vmatprep.subr.bf16.mxu0 0
  %1907 = vmatpush1.bf16.msra.mxu0 0
  %1908 = vmatprep.subr.bf16.mxu0 0
  %1909 = vmatpush1.bf16.msra.mxu0 0
  %1910 = vmatprep.subr.bf16.mxu0 0
  %1911 = vmatpush1.bf16.msra.mxu0 0
  %1912 = vmatprep.subr.bf16.mxu0 0
  %1913 = vmatpush1.bf16.msra.mxu0 0
  %1914 = vmatprep.subr.bf16.mxu0 0
  %1915 = vmatpush1.bf16.msra.mxu0 0
  %1916 = vmatprep.subr.bf16.mxu0 0
  %1917 = vmatpush1.bf16.msra.mxu0 0
  %1918 = vmatprep.subr.bf16.mxu0 0
  %1919 = vmatpush1.bf16.msra.mxu0 0
  %1920 = vmatprep.subr.bf16.mxu0 0
  %1921 = vmatpush1.bf16.msra.mxu0 0
  %1922 = vmatprep.subr.bf16.mxu0 0
  %1923 = vmatpush1.bf16.msra.mxu0 0
  %1924 = vmatprep.subr.bf16.mxu0 0
  %1925 = vmatpush1.bf16.msra.mxu0 0
  %1926 = vmatprep.subr.bf16.mxu0 0
  %1927 = vmatpush1.bf16.msra.mxu0 0
  %1928 = vmatprep.subr.bf16.mxu0 0
  %1929 = vmatpush1.bf16.msra.mxu0 0
  %1930 = vmatprep.subr.bf16.mxu0 0
  %1931 = vmatpush1.bf16.msra.mxu0 0
  %1932 = vmatprep.mubr.bf16.mxu0 0
  %1933 = vmatmul.mubr.bf16.gmra.mrb[0].mxu0 %v1898
  %v1934 = vpop.f32.mrb[0].mxu0
  %v1935 = vadd.f32 0.0, %v1934
  %v1936 = vpop.f32.mrb[0].mxu0
  %v1937 = vadd.f32 0.0, %v1936
  %v1938 = vpop.f32.mrb[0].mxu0
  %v1939 = vpop.f32.mrb[0].mxu0
  %1940 = vdwg.mxu0
  %1941 = vmatprep.subr.bf16.mxu0 %v250
  %1942 = vmatpush1.bf16.msra.mxu0 %v249
  %1943 = vmatprep.subr.bf16.mxu0 %v254
  %1944 = vmatpush1.bf16.msra.mxu0 %v253
  %1945 = vmatprep.subr.bf16.mxu0 0
  %1946 = vmatpush1.bf16.msra.mxu0 0
  %1947 = vmatprep.subr.bf16.mxu0 0
  %1948 = vmatpush1.bf16.msra.mxu0 0
  %1949 = vmatprep.subr.bf16.mxu0 0
  %1950 = vmatpush1.bf16.msra.mxu0 0
  %1951 = vmatprep.subr.bf16.mxu0 0
  %1952 = vmatpush1.bf16.msra.mxu0 0
  %1953 = vmatprep.subr.bf16.mxu0 0
  %1954 = vmatpush1.bf16.msra.mxu0 0
  %1955 = vmatprep.subr.bf16.mxu0 0
  %1956 = vmatpush1.bf16.msra.mxu0 0
  %1957 = vmatprep.subr.bf16.mxu0 0
  %1958 = vmatpush1.bf16.msra.mxu0 0
  %1959 = vmatprep.subr.bf16.mxu0 0
  %1960 = vmatpush1.bf16.msra.mxu0 0
  %1961 = vmatprep.subr.bf16.mxu0 0
  %1962 = vmatpush1.bf16.msra.mxu0 0
  %1963 = vmatprep.subr.bf16.mxu0 0
  %1964 = vmatpush1.bf16.msra.mxu0 0
  %1965 = vmatprep.subr.bf16.mxu0 0
  %1966 = vmatpush1.bf16.msra.mxu0 0
  %1967 = vmatprep.subr.bf16.mxu0 0
  %1968 = vmatpush1.bf16.msra.mxu0 0
  %1969 = vmatprep.subr.bf16.mxu0 0
  %1970 = vmatpush1.bf16.msra.mxu0 0
  %1971 = vmatprep.subr.bf16.mxu0 0
  %1972 = vmatpush1.bf16.msra.mxu0 0
  %1973 = vmatprep.mubr.bf16.mxu0 0
  %1974 = vmatmul.mubr.bf16.gmra.mrb[0].mxu0 %v1898
  %v1975 = vpop.f32.mrb[0].mxu0
  %v1976 = vadd.f32 0.0, %v1975
  %v1977 = vpop.f32.mrb[0].mxu0
  %v1978 = vadd.f32 0.0, %v1977
  %v1979 = vpop.f32.mrb[0].mxu0
  %v1980 = vpop.f32.mrb[0].mxu0
  %1981 = vdwg.mxu0
  %v1983 = vsel %vm91, %v1895, 0
  %1985 = vmatprep.subr.bf16.mxu0 %v370
  %1986 = vmatpush1.bf16.msra.mxu0 %v369
  %1987 = vmatprep.subr.bf16.mxu0 %v374
  %1988 = vmatpush1.bf16.msra.mxu0 %v373
  %1989 = vmatprep.subr.bf16.mxu0 0
  %1990 = vmatpush1.bf16.msra.mxu0 0
  %1991 = vmatprep.subr.bf16.mxu0 0
  %1992 = vmatpush1.bf16.msra.mxu0 0
  %1993 = vmatprep.subr.bf16.mxu0 0
  %1994 = vmatpush1.bf16.msra.mxu0 0
  %1995 = vmatprep.subr.bf16.mxu0 0
  %1996 = vmatpush1.bf16.msra.mxu0 0
  %1997 = vmatprep.subr.bf16.mxu0 0
  %1998 = vmatpush1.bf16.msra.mxu0 0
  %1999 = vmatprep.subr.bf16.mxu0 0
  %2000 = vmatpush1.bf16.msra.mxu0 0
  %2001 = vmatprep.subr.bf16.mxu0 0
  %2002 = vmatpush1.bf16.msra.mxu0 0
  %2003 = vmatprep.subr.bf16.mxu0 0
  %2004 = vmatpush1.bf16.msra.mxu0 0
  %2005 = vmatprep.subr.bf16.mxu0 0
  %2006 = vmatpush1.bf16.msra.mxu0 0
  %2007 = vmatprep.subr.bf16.mxu0 0
  %2008 = vmatpush1.bf16.msra.mxu0 0
  %2009 = vmatprep.subr.bf16.mxu0 0
  %2010 = vmatpush1.bf16.msra.mxu0 0
  %2011 = vmatprep.subr.bf16.mxu0 0
  %2012 = vmatpush1.bf16.msra.mxu0 0
  %2013 = vmatprep.subr.bf16.mxu0 0
  %2014 = vmatpush1.bf16.msra.mxu0 0
  %2015 = vmatprep.subr.bf16.mxu0 0
  %2016 = vmatpush1.bf16.msra.mxu0 0
  %2017 = vmatprep.mubr.bf16.mxu0 0
  %2018 = vmatmul.mubr.bf16.gmra.mrb[0].mxu0 %v1983
  %v2019 = vpop.f32.mrb[0].mxu0
  %v2020 = vadd.f32 %v1935, %v2019
  %v2021 = vpop.f32.mrb[0].mxu0
  %v2022 = vadd.f32 %v1937, %v2021
  %v2023 = vpop.f32.mrb[0].mxu0
  %v2024 = vpop.f32.mrb[0].mxu0
  %2025 = vdwg.mxu0
  %2026 = vmatprep.subr.bf16.mxu0 %v372
  %2027 = vmatpush1.bf16.msra.mxu0 %v371
  %2028 = vmatprep.subr.bf16.mxu0 %v376
  %2029 = vmatpush1.bf16.msra.mxu0 %v375
  %2030 = vmatprep.subr.bf16.mxu0 0
  %2031 = vmatpush1.bf16.msra.mxu0 0
  %2032 = vmatprep.subr.bf16.mxu0 0
  %2033 = vmatpush1.bf16.msra.mxu0 0
  %2034 = vmatprep.subr.bf16.mxu0 0
  %2035 = vmatpush1.bf16.msra.mxu0 0
  %2036 = vmatprep.subr.bf16.mxu0 0
  %2037 = vmatpush1.bf16.msra.mxu0 0
  %2038 = vmatprep.subr.bf16.mxu0 0
  %2039 = vmatpush1.bf16.msra.mxu0 0
  %2040 = vmatprep.subr.bf16.mxu0 0
  %2041 = vmatpush1.bf16.msra.mxu0 0
  %2042 = vmatprep.subr.bf16.mxu0 0
  %2043 = vmatpush1.bf16.msra.mxu0 0
  %2044 = vmatprep.subr.bf16.mxu0 0
  %2045 = vmatpush1.bf16.msra.mxu0 0
  %2046 = vmatprep.subr.bf16.mxu0 0
  %2047 = vmatpush1.bf16.msra.mxu0 0
  %2048 = vmatprep.subr.bf16.mxu0 0
  %2049 = vmatpush1.bf16.msra.mxu0 0
  %2050 = vmatprep.subr.bf16.mxu0 0
  %2051 = vmatpush1.bf16.msra.mxu0 0
  %2052 = vmatprep.subr.bf16.mxu0 0
  %2053 = vmatpush1.bf16.msra.mxu0 0
  %2054 = vmatprep.subr.bf16.mxu0 0
  %2055 = vmatpush1.bf16.msra.mxu0 0
  %2056 = vmatprep.subr.bf16.mxu0 0
  %2057 = vmatpush1.bf16.msra.mxu0 0
  %2058 = vmatprep.mubr.bf16.mxu0 0
  %2059 = vmatmul.mubr.bf16.gmra.mrb[0].mxu0 %v1983
  %v2060 = vpop.f32.mrb[0].mxu0
  %v2061 = vadd.f32 %v1976, %v2060
  %v2062 = vpop.f32.mrb[0].mxu0
  %v2063 = vadd.f32 %v1978, %v2062
  %v2064 = vpop.f32.mrb[0].mxu0
  %v2065 = vpop.f32.mrb[0].mxu0
  %2066 = vdwg.mxu0
  %v2067 = vadd.f32 %v2020, %v475
  %v2068 = vadd.f32 %v2022, %v479
  %v2069 = vadd.f32 %v2061, %v483
  %v2070 = vadd.f32 %v2063, %v487
  %v2071 = vxor.u32 %v2067, 2147483648
  %v2072 = vmul.f32 %v2071, 1.442695
  %v2073 = vpow.pop %v2072
  %v2074 = vadd.f32 %v2073, 1.0
  %v2075 = vrcp.pop %v2074
  %v2076 = vmul.f32 1.0, %v2075
  %v2077 = vxor.u32 %v2068, 2147483648
  %v2078 = vmul.f32 %v2077, 1.442695
  %v2079 = vpow.pop %v2078
  %v2080 = vadd.f32 %v2079, 1.0
  %v2081 = vrcp.pop %v2080
  %v2082 = vmul.f32 1.0, %v2081
  %v2083 = vtanh.pop %v2069
  %v2084 = vxor.u32 %v2070, 2147483648
  %v2085 = vmul.f32 %v2084, 1.442695
  %v2086 = vpow.pop %v2085
  %v2087 = vadd.f32 %v2086, 1.0
  %v2088 = vrcp.pop %v2087
  %v2089 = vmul.f32 1.0, %v2088
  %v2090 = vmul.f32 %v2082, %v1777
  %v2091 = vmul.f32 %v2076, %v2083
  %v2092 = vadd.f32 %v2090, %v2091
  %v2093 = vtanh.pop %v2092
  %v2094 = vmul.f32 %v2089, %v2093
  %s2095 = scalar_lea.vmem %s0, 192
  %v2096 = vld [vmem:[%s2095] sm:$0xff]
  %v2097 = vld [vmem:[%s2095 + $0x8] sm:$0xff]
  %v2098 = vld [vmem:[%s2095 + $0x10] sm:$0xff]
  %v2099 = vld [vmem:[%s2095 + $0x18] sm:$0xff]
  %2100 = vmatprep.subr.bf16.mxu0 %v76
  %2101 = vmatpush1.bf16.msra.mxu0 %v75
  %2102 = vmatprep.subr.bf16.mxu0 %v80
  %2103 = vmatpush1.bf16.msra.mxu0 %v79
  %2104 = vmatprep.subr.bf16.mxu0 0
  %2105 = vmatpush1.bf16.msra.mxu0 0
  %2106 = vmatprep.subr.bf16.mxu0 0
  %2107 = vmatpush1.bf16.msra.mxu0 0
  %2108 = vmatprep.subr.bf16.mxu0 0
  %2109 = vmatpush1.bf16.msra.mxu0 0
  %2110 = vmatprep.subr.bf16.mxu0 0
  %2111 = vmatpush1.bf16.msra.mxu0 0
  %2112 = vmatprep.subr.bf16.mxu0 0
  %2113 = vmatpush1.bf16.msra.mxu0 0
  %2114 = vmatprep.subr.bf16.mxu0 0
  %2115 = vmatpush1.bf16.msra.mxu0 0
  %2116 = vmatprep.subr.bf16.mxu0 0
  %2117 = vmatpush1.bf16.msra.mxu0 0
  %2118 = vmatprep.subr.bf16.mxu0 0
  %2119 = vmatpush1.bf16.msra.mxu0 0
  %2120 = vmatprep.subr.bf16.mxu0 0
  %2121 = vmatpush1.bf16.msra.mxu0 0
  %2122 = vmatprep.subr.bf16.mxu0 0
  %2123 = vmatpush1.bf16.msra.mxu0 0
  %2124 = vmatprep.subr.bf16.mxu0 0
  %2125 = vmatpush1.bf16.msra.mxu0 0
  %2126 = vmatprep.subr.bf16.mxu0 0
  %2127 = vmatpush1.bf16.msra.mxu0 0
  %2128 = vmatprep.subr.bf16.mxu0 0
  %2129 = vmatpush1.bf16.msra.mxu0 0
  %2130 = vmatprep.subr.bf16.mxu0 0
  %2131 = vmatpush1.bf16.msra.mxu0 0
  %2132 = vmatprep.mubr.bf16.mxu0 0
  %2133 = vmatmul.mubr.bf16.gmra.mrb[0].mxu0 %v1983
  %v2134 = vpop.f32.mrb[0].mxu0
  %v2135 = vadd.f32 0.0, %v2134
  %v2136 = vpop.f32.mrb[0].mxu0
  %v2137 = vadd.f32 0.0, %v2136
  %v2138 = vpop.f32.mrb[0].mxu0
  %v2139 = vpop.f32.mrb[0].mxu0
  %2140 = vdwg.mxu0
  %2141 = vmatprep.subr.bf16.mxu0 %v78
  %2142 = vmatpush1.bf16.msra.mxu0 %v77
  %2143 = vmatprep.subr.bf16.mxu0 %v82
  %2144 = vmatpush1.bf16.msra.mxu0 %v81
  %2145 = vmatprep.subr.bf16.mxu0 0
  %2146 = vmatpush1.bf16.msra.mxu0 0
  %2147 = vmatprep.subr.bf16.mxu0 0
  %2148 = vmatpush1.bf16.msra.mxu0 0
  %2149 = vmatprep.subr.bf16.mxu0 0
  %2150 = vmatpush1.bf16.msra.mxu0 0
  %2151 = vmatprep.subr.bf16.mxu0 0
  %2152 = vmatpush1.bf16.msra.mxu0 0
  %2153 = vmatprep.subr.bf16.mxu0 0
  %2154 = vmatpush1.bf16.msra.mxu0 0
  %2155 = vmatprep.subr.bf16.mxu0 0
  %2156 = vmatpush1.bf16.msra.mxu0 0
  %2157 = vmatprep.subr.bf16.mxu0 0
  %2158 = vmatpush1.bf16.msra.mxu0 0
  %2159 = vmatprep.subr.bf16.mxu0 0
  %2160 = vmatpush1.bf16.msra.mxu0 0
  %2161 = vmatprep.subr.bf16.mxu0 0
  %2162 = vmatpush1.bf16.msra.mxu0 0
  %2163 = vmatprep.subr.bf16.mxu0 0
  %2164 = vmatpush1.bf16.msra.mxu0 0
  %2165 = vmatprep.subr.bf16.mxu0 0
  %2166 = vmatpush1.bf16.msra.mxu0 0
  %2167 = vmatprep.subr.bf16.mxu0 0
  %2168 = vmatpush1.bf16.msra.mxu0 0
  %2169 = vmatprep.subr.bf16.mxu0 0
  %2170 = vmatpush1.bf16.msra.mxu0 0
  %2171 = vmatprep.subr.bf16.mxu0 0
  %2172 = vmatpush1.bf16.msra.mxu0 0
  %2173 = vmatprep.mubr.bf16.mxu0 0
  %2174 = vmatmul.mubr.bf16.gmra.mrb[0].mxu0 %v1983
  %v2175 = vpop.f32.mrb[0].mxu0
  %v2176 = vadd.f32 0.0, %v2175
  %v2177 = vpop.f32.mrb[0].mxu0
  %v2178 = vadd.f32 0.0, %v2177
  %v2179 = vpop.f32.mrb[0].mxu0
  %v2180 = vpop.f32.mrb[0].mxu0
  %2181 = vdwg.mxu0
  %v2182 = vadd.f32 %v2096, %v2135
  %v2183 = vadd.f32 %v2097, %v2137
  %v2184 = vadd.f32 %v2098, %v2176
  %v2185 = vadd.f32 %v2099, %v2178
  %v2186 = vxor.u32 %v2182, 2147483648
  %v2187 = vmul.f32 %v2186, 1.442695
  %v2188 = vpow.pop %v2187
  %v2189 = vadd.f32 %v2188, 1.0
  %v2190 = vrcp.pop %v2189
  %v2191 = vmul.f32 1.0, %v2190
  %v2192 = vxor.u32 %v2183, 2147483648
  %v2193 = vmul.f32 %v2192, 1.442695
  %v2194 = vpow.pop %v2193
  %v2195 = vadd.f32 %v2194, 1.0
  %v2196 = vrcp.pop %v2195
  %v2197 = vmul.f32 1.0, %v2196
  %v2198 = vtanh.pop %v2184
  %v2199 = vxor.u32 %v2185, 2147483648
  %v2200 = vmul.f32 %v2199, 1.442695
  %v2201 = vpow.pop %v2200
  %v2202 = vadd.f32 %v2201, 1.0
  %v2203 = vrcp.pop %v2202
  %v2204 = vmul.f32 1.0, %v2203
  %v2205 = vmul.f32 %v2197, %v1892
  %v2206 = vmul.f32 %v2191, %v2198
  %v2207 = vadd.f32 %v2205, %v2206
  %v2208 = vtanh.pop %v2207
  %v2209 = vmul.f32 %v2204, %v2208
  %v2210 = vpack.c.bf16 %v2209, %v2209
  %v2211 = vpack.c.bf16 %v2094, %v2094
  %v2213 = vsel %vm91, %v2211, 0
  %2215 = vmatprep.subr.bf16.mxu0 %v248
  %2216 = vmatpush1.bf16.msra.mxu0 %v247
  %2217 = vmatprep.subr.bf16.mxu0 %v252
  %2218 = vmatpush1.bf16.msra.mxu0 %v251
  %2219 = vmatprep.subr.bf16.mxu0 0
  %2220 = vmatpush1.bf16.msra.mxu0 0
  %2221 = vmatprep.subr.bf16.mxu0 0
  %2222 = vmatpush1.bf16.msra.mxu0 0
  %2223 = vmatprep.subr.bf16.mxu0 0
  %2224 = vmatpush1.bf16.msra.mxu0 0
  %2225 = vmatprep.subr.bf16.mxu0 0
  %2226 = vmatpush1.bf16.msra.mxu0 0
  %2227 = vmatprep.subr.bf16.mxu0 0
  %2228 = vmatpush1.bf16.msra.mxu0 0
  %2229 = vmatprep.subr.bf16.mxu0 0
  %2230 = vmatpush1.bf16.msra.mxu0 0
  %2231 = vmatprep.subr.bf16.mxu0 0
  %2232 = vmatpush1.bf16.msra.mxu0 0
  %2233 = vmatprep.subr.bf16.mxu0 0
  %2234 = vmatpush1.bf16.msra.mxu0 0
  %2235 = vmatprep.subr.bf16.mxu0 0
  %2236 = vmatpush1.bf16.msra.mxu0 0
  %2237 = vmatprep.subr.bf16.mxu0 0
  %2238 = vmatpush1.bf16.msra.mxu0 0
  %2239 = vmatprep.subr.bf16.mxu0 0
  %2240 = vmatpush1.bf16.msra.mxu0 0
  %2241 = vmatprep.subr.bf16.mxu0 0
  %2242 = vmatpush1.bf16.msra.mxu0 0
  %2243 = vmatprep.subr.bf16.mxu0 0
  %2244 = vmatpush1.bf16.msra.mxu0 0
  %2245 = vmatprep.subr.bf16.mxu0 0
  %2246 = vmatpush1.bf16.msra.mxu0 0
  %2247 = vmatprep.mubr.bf16.mxu0 0
  %2248 = vmatmul.mubr.bf16.gmra.mrb[0].mxu0 %v2213
  %v2249 = vpop.f32.mrb[0].mxu0
  %v2250 = vadd.f32 0.0, %v2249
  %v2251 = vpop.f32.mrb[0].mxu0
  %v2252 = vadd.f32 0.0, %v2251
  %v2253 = vpop.f32.mrb[0].mxu0
  %v2254 = vpop.f32.mrb[0].mxu0
  %2255 = vdwg.mxu0
  %2256 = vmatprep.subr.bf16.mxu0 %v250
  %2257 = vmatpush1.bf16.msra.mxu0 %v249
  %2258 = vmatprep.subr.bf16.mxu0 %v254
  %2259 = vmatpush1.bf16.msra.mxu0 %v253
  %2260 = vmatprep.subr.bf16.mxu0 0
  %2261 = vmatpush1.bf16.msra.mxu0 0
  %2262 = vmatprep.subr.bf16.mxu0 0
  %2263 = vmatpush1.bf16.msra.mxu0 0
  %2264 = vmatprep.subr.bf16.mxu0 0
  %2265 = vmatpush1.bf16.msra.mxu0 0
  %2266 = vmatprep.subr.bf16.mxu0 0
  %2267 = vmatpush1.bf16.msra.mxu0 0
  %2268 = vmatprep.subr.bf16.mxu0 0
  %2269 = vmatpush1.bf16.msra.mxu0 0
  %2270 = vmatprep.subr.bf16.mxu0 0
  %2271 = vmatpush1.bf16.msra.mxu0 0
  %2272 = vmatprep.subr.bf16.mxu0 0
  %2273 = vmatpush1.bf16.msra.mxu0 0
  %2274 = vmatprep.subr.bf16.mxu0 0
  %2275 = vmatpush1.bf16.msra.mxu0 0
  %2276 = vmatprep.subr.bf16.mxu0 0
  %2277 = vmatpush1.bf16.msra.mxu0 0
  %2278 = vmatprep.subr.bf16.mxu0 0
  %2279 = vmatpush1.bf16.msra.mxu0 0
  %2280 = vmatprep.subr.bf16.mxu0 0
  %2281 = vmatpush1.bf16.msra.mxu0 0
  %2282 = vmatprep.subr.bf16.mxu0 0
  %2283 = vmatpush1.bf16.msra.mxu0 0
  %2284 = vmatprep.subr.bf16.mxu0 0
  %2285 = vmatpush1.bf16.msra.mxu0 0
  %2286 = vmatprep.subr.bf16.mxu0 0
  %2287 = vmatpush1.bf16.msra.mxu0 0
  %2288 = vmatprep.mubr.bf16.mxu0 0
  %2289 = vmatmul.mubr.bf16.gmra.mrb[0].mxu0 %v2213
  %v2290 = vpop.f32.mrb[0].mxu0
  %v2291 = vadd.f32 0.0, %v2290
  %v2292 = vpop.f32.mrb[0].mxu0
  %v2293 = vadd.f32 0.0, %v2292
  %v2294 = vpop.f32.mrb[0].mxu0
  %v2295 = vpop.f32.mrb[0].mxu0
  %2296 = vdwg.mxu0
  %v2298 = vsel %vm91, %v2210, 0
  %2300 = vmatprep.subr.bf16.mxu0 %v370
  %2301 = vmatpush1.bf16.msra.mxu0 %v369
  %2302 = vmatprep.subr.bf16.mxu0 %v374
  %2303 = vmatpush1.bf16.msra.mxu0 %v373
  %2304 = vmatprep.subr.bf16.mxu0 0
  %2305 = vmatpush1.bf16.msra.mxu0 0
  %2306 = vmatprep.subr.bf16.mxu0 0
  %2307 = vmatpush1.bf16.msra.mxu0 0
  %2308 = vmatprep.subr.bf16.mxu0 0
  %2309 = vmatpush1.bf16.msra.mxu0 0
  %2310 = vmatprep.subr.bf16.mxu0 0
  %2311 = vmatpush1.bf16.msra.mxu0 0
  %2312 = vmatprep.subr.bf16.mxu0 0
  %2313 = vmatpush1.bf16.msra.mxu0 0
  %2314 = vmatprep.subr.bf16.mxu0 0
  %2315 = vmatpush1.bf16.msra.mxu0 0
  %2316 = vmatprep.subr.bf16.mxu0 0
  %2317 = vmatpush1.bf16.msra.mxu0 0
  %2318 = vmatprep.subr.bf16.mxu0 0
  %2319 = vmatpush1.bf16.msra.mxu0 0
  %2320 = vmatprep.subr.bf16.mxu0 0
  %2321 = vmatpush1.bf16.msra.mxu0 0
  %2322 = vmatprep.subr.bf16.mxu0 0
  %2323 = vmatpush1.bf16.msra.mxu0 0
  %2324 = vmatprep.subr.bf16.mxu0 0
  %2325 = vmatpush1.bf16.msra.mxu0 0
  %2326 = vmatprep.subr.bf16.mxu0 0
  %2327 = vmatpush1.bf16.msra.mxu0 0
  %2328 = vmatprep.subr.bf16.mxu0 0
  %2329 = vmatpush1.bf16.msra.mxu0 0
  %2330 = vmatprep.subr.bf16.mxu0 0
  %2331 = vmatpush1.bf16.msra.mxu0 0
  %2332 = vmatprep.mubr.bf16.mxu0 0
  %2333 = vmatmul.mubr.bf16.gmra.mrb[0].mxu0 %v2298
  %v2334 = vpop.f32.mrb[0].mxu0
  %v2335 = vadd.f32 %v2250, %v2334
  %v2336 = vpop.f32.mrb[0].mxu0
  %v2337 = vadd.f32 %v2252, %v2336
  %v2338 = vpop.f32.mrb[0].mxu0
  %v2339 = vpop.f32.mrb[0].mxu0
  %2340 = vdwg.mxu0
  %2341 = vmatprep.subr.bf16.mxu0 %v372
  %2342 = vmatpush1.bf16.msra.mxu0 %v371
  %2343 = vmatprep.subr.bf16.mxu0 %v376
  %2344 = vmatpush1.bf16.msra.mxu0 %v375
  %2345 = vmatprep.subr.bf16.mxu0 0
  %2346 = vmatpush1.bf16.msra.mxu0 0
  %2347 = vmatprep.subr.bf16.mxu0 0
  %2348 = vmatpush1.bf16.msra.mxu0 0
  %2349 = vmatprep.subr.bf16.mxu0 0
  %2350 = vmatpush1.bf16.msra.mxu0 0
  %2351 = vmatprep.subr.bf16.mxu0 0
  %2352 = vmatpush1.bf16.msra.mxu0 0
  %2353 = vmatprep.subr.bf16.mxu0 0
  %2354 = vmatpush1.bf16.msra.mxu0 0
  %2355 = vmatprep.subr.bf16.mxu0 0
  %2356 = vmatpush1.bf16.msra.mxu0 0
  %2357 = vmatprep.subr.bf16.mxu0 0
  %2358 = vmatpush1.bf16.msra.mxu0 0
  %2359 = vmatprep.subr.bf16.mxu0 0
  %2360 = vmatpush1.bf16.msra.mxu0 0
  %2361 = vmatprep.subr.bf16.mxu0 0
  %2362 = vmatpush1.bf16.msra.mxu0 0
  %2363 = vmatprep.subr.bf16.mxu0 0
  %2364 = vmatpush1.bf16.msra.mxu0 0
  %2365 = vmatprep.subr.bf16.mxu0 0
  %2366 = vmatpush1.bf16.msra.mxu0 0
  %2367 = vmatprep.subr.bf16.mxu0 0
  %2368 = vmatpush1.bf16.msra.mxu0 0
  %2369 = vmatprep.subr.bf16.mxu0 0
  %2370 = vmatpush1.bf16.msra.mxu0 0
  %2371 = vmatprep.subr.bf16.mxu0 0
  %2372 = vmatpush1.bf16.msra.mxu0 0
  %2373 = vmatprep.mubr.bf16.mxu0 0
  %2374 = vmatmul.mubr.bf16.gmra.mrb[0].mxu0 %v2298
  %v2375 = vpop.f32.mrb[0].mxu0
  %v2376 = vadd.f32 %v2291, %v2375
  %v2377 = vpop.f32.mrb[0].mxu0
  %v2378 = vadd.f32 %v2293, %v2377
  %v2379 = vpop.f32.mrb[0].mxu0
  %v2380 = vpop.f32.mrb[0].mxu0
  %2381 = vdwg.mxu0
  %v2382 = vadd.f32 %v2335, %v475
  %v2383 = vadd.f32 %v2337, %v479
  %v2384 = vadd.f32 %v2376, %v483
  %v2385 = vadd.f32 %v2378, %v487
  %v2386 = vxor.u32 %v2382, 2147483648
  %v2387 = vmul.f32 %v2386, 1.442695
  %v2388 = vpow.pop %v2387
  %v2389 = vadd.f32 %v2388, 1.0
  %v2390 = vrcp.pop %v2389
  %v2391 = vmul.f32 1.0, %v2390
  %v2392 = vxor.u32 %v2383, 2147483648
  %v2393 = vmul.f32 %v2392, 1.442695
  %v2394 = vpow.pop %v2393
  %v2395 = vadd.f32 %v2394, 1.0
  %v2396 = vrcp.pop %v2395
  %v2397 = vmul.f32 1.0, %v2396
  %v2398 = vtanh.pop %v2384
  %v2399 = vxor.u32 %v2385, 2147483648
  %v2400 = vmul.f32 %v2399, 1.442695
  %v2401 = vpow.pop %v2400
  %v2402 = vadd.f32 %v2401, 1.0
  %v2403 = vrcp.pop %v2402
  %v2404 = vmul.f32 1.0, %v2403
  %v2405 = vmul.f32 %v2397, %v2092
  %v2406 = vmul.f32 %v2391, %v2398
  %v2407 = vadd.f32 %v2405, %v2406
  %v2408 = vtanh.pop %v2407
  %v2409 = vmul.f32 %v2404, %v2408
  %s2410 = scalar_lea.vmem %s0, 224
  %v2411 = vld [vmem:[%s2410] sm:$0xff]
  %v2412 = vld [vmem:[%s2410 + $0x8] sm:$0xff]
  %v2413 = vld [vmem:[%s2410 + $0x10] sm:$0xff]
  %v2414 = vld [vmem:[%s2410 + $0x18] sm:$0xff]
  %2415 = vmatprep.subr.bf16.mxu0 %v76
  %2416 = vmatpush1.bf16.msra.mxu0 %v75
  %2417 = vmatprep.subr.bf16.mxu0 %v80
  %2418 = vmatpush1.bf16.msra.mxu0 %v79
  %2419 = vmatprep.subr.bf16.mxu0 0
  %2420 = vmatpush1.bf16.msra.mxu0 0
  %2421 = vmatprep.subr.bf16.mxu0 0
  %2422 = vmatpush1.bf16.msra.mxu0 0
  %2423 = vmatprep.subr.bf16.mxu0 0
  %2424 = vmatpush1.bf16.msra.mxu0 0
  %2425 = vmatprep.subr.bf16.mxu0 0
  %2426 = vmatpush1.bf16.msra.mxu0 0
  %2427 = vmatprep.subr.bf16.mxu0 0
  %2428 = vmatpush1.bf16.msra.mxu0 0
  %2429 = vmatprep.subr.bf16.mxu0 0
  %2430 = vmatpush1.bf16.msra.mxu0 0
  %2431 = vmatprep.subr.bf16.mxu0 0
  %2432 = vmatpush1.bf16.msra.mxu0 0
  %2433 = vmatprep.subr.bf16.mxu0 0
  %2434 = vmatpush1.bf16.msra.mxu0 0
  %2435 = vmatprep.subr.bf16.mxu0 0
  %2436 = vmatpush1.bf16.msra.mxu0 0
  %2437 = vmatprep.subr.bf16.mxu0 0
  %2438 = vmatpush1.bf16.msra.mxu0 0
  %2439 = vmatprep.subr.bf16.mxu0 0
  %2440 = vmatpush1.bf16.msra.mxu0 0
  %2441 = vmatprep.subr.bf16.mxu0 0
  %2442 = vmatpush1.bf16.msra.mxu0 0
  %2443 = vmatprep.subr.bf16.mxu0 0
  %2444 = vmatpush1.bf16.msra.mxu0 0
  %2445 = vmatprep.subr.bf16.mxu0 0
  %2446 = vmatpush1.bf16.msra.mxu0 0
  %2447 = vmatprep.mubr.bf16.mxu0 0
  %2448 = vmatmul.mubr.bf16.gmra.mrb[0].mxu0 %v2298
  %v2449 = vpop.f32.mrb[0].mxu0
  %v2450 = vadd.f32 0.0, %v2449
  %v2451 = vpop.f32.mrb[0].mxu0
  %v2452 = vadd.f32 0.0, %v2451
  %v2453 = vpop.f32.mrb[0].mxu0
  %v2454 = vpop.f32.mrb[0].mxu0
  %2455 = vdwg.mxu0
  %2456 = vmatprep.subr.bf16.mxu0 %v78
  %2457 = vmatpush1.bf16.msra.mxu0 %v77
  %2458 = vmatprep.subr.bf16.mxu0 %v82
  %2459 = vmatpush1.bf16.msra.mxu0 %v81
  %2460 = vmatprep.subr.bf16.mxu0 0
  %2461 = vmatpush1.bf16.msra.mxu0 0
  %2462 = vmatprep.subr.bf16.mxu0 0
  %2463 = vmatpush1.bf16.msra.mxu0 0
  %2464 = vmatprep.subr.bf16.mxu0 0
  %2465 = vmatpush1.bf16.msra.mxu0 0
  %2466 = vmatprep.subr.bf16.mxu0 0
  %2467 = vmatpush1.bf16.msra.mxu0 0
  %2468 = vmatprep.subr.bf16.mxu0 0
  %2469 = vmatpush1.bf16.msra.mxu0 0
  %2470 = vmatprep.subr.bf16.mxu0 0
  %2471 = vmatpush1.bf16.msra.mxu0 0
  %2472 = vmatprep.subr.bf16.mxu0 0
  %2473 = vmatpush1.bf16.msra.mxu0 0
  %2474 = vmatprep.subr.bf16.mxu0 0
  %2475 = vmatpush1.bf16.msra.mxu0 0
  %2476 = vmatprep.subr.bf16.mxu0 0
  %2477 = vmatpush1.bf16.msra.mxu0 0
  %2478 = vmatprep.subr.bf16.mxu0 0
  %2479 = vmatpush1.bf16.msra.mxu0 0
  %2480 = vmatprep.subr.bf16.mxu0 0
  %2481 = vmatpush1.bf16.msra.mxu0 0
  %2482 = vmatprep.subr.bf16.mxu0 0
  %2483 = vmatpush1.bf16.msra.mxu0 0
  %2484 = vmatprep.subr.bf16.mxu0 0
  %2485 = vmatpush1.bf16.msra.mxu0 0
  %2486 = vmatprep.subr.bf16.mxu0 0
  %2487 = vmatpush1.bf16.msra.mxu0 0
  %2488 = vmatprep.mubr.bf16.mxu0 0
  %2489 = vmatmul.mubr.bf16.gmra.mrb[0].mxu0 %v2298
  %v2490 = vpop.f32.mrb[0].mxu0
  %v2491 = vadd.f32 0.0, %v2490
  %v2492 = vpop.f32.mrb[0].mxu0
  %v2493 = vadd.f32 0.0, %v2492
  %v2494 = vpop.f32.mrb[0].mxu0
  %v2495 = vpop.f32.mrb[0].mxu0
  %2496 = vdwg.mxu0
  %v2497 = vadd.f32 %v2411, %v2450
  %v2498 = vadd.f32 %v2412, %v2452
  %v2499 = vadd.f32 %v2413, %v2491
  %v2500 = vadd.f32 %v2414, %v2493
  %v2501 = vxor.u32 %v2497, 2147483648
  %v2502 = vmul.f32 %v2501, 1.442695
  %v2503 = vpow.pop %v2502
  %v2504 = vadd.f32 %v2503, 1.0
  %v2505 = vrcp.pop %v2504
  %v2506 = vmul.f32 1.0, %v2505
  %v2507 = vxor.u32 %v2498, 2147483648
  %v2508 = vmul.f32 %v2507, 1.442695
  %v2509 = vpow.pop %v2508
  %v2510 = vadd.f32 %v2509, 1.0
  %v2511 = vrcp.pop %v2510
  %v2512 = vmul.f32 1.0, %v2511
  %v2513 = vtanh.pop %v2499
  %v2514 = vxor.u32 %v2500, 2147483648
  %v2515 = vmul.f32 %v2514, 1.442695
  %v2516 = vpow.pop %v2515
  %v2517 = vadd.f32 %v2516, 1.0
  %v2518 = vrcp.pop %v2517
  %v2519 = vmul.f32 1.0, %v2518
  %v2520 = vmul.f32 %v2512, %v2207
  %v2521 = vmul.f32 %v2506, %v2513
  %v2522 = vadd.f32 %v2520, %v2521
  %v2523 = vtanh.pop %v2522
  %v2524 = vmul.f32 %v2519, %v2523
  %v2525 = vpack.c.bf16 %v2524, %v2524
  %v2526 = vpack.c.bf16 %v2409, %v2409
  %v2528 = vsel %vm91, %v2526, 0
  %2530 = vmatprep.subr.bf16.mxu0 %v248
  %2531 = vmatpush1.bf16.msra.mxu0 %v247
  %2532 = vmatprep.subr.bf16.mxu0 %v252
  %2533 = vmatpush1.bf16.msra.mxu0 %v251
  %2534 = vmatprep.subr.bf16.mxu0 0
  %2535 = vmatpush1.bf16.msra.mxu0 0
  %2536 = vmatprep.subr.bf16.mxu0 0
  %2537 = vmatpush1.bf16.msra.mxu0 0
  %2538 = vmatprep.subr.bf16.mxu0 0
  %2539 = vmatpush1.bf16.msra.mxu0 0
  %2540 = vmatprep.subr.bf16.mxu0 0
  %2541 = vmatpush1.bf16.msra.mxu0 0
  %2542 = vmatprep.subr.bf16.mxu0 0
  %2543 = vmatpush1.bf16.msra.mxu0 0
  %2544 = vmatprep.subr.bf16.mxu0 0
  %2545 = vmatpush1.bf16.msra.mxu0 0
  %2546 = vmatprep.subr.bf16.mxu0 0
  %2547 = vmatpush1.bf16.msra.mxu0 0
  %2548 = vmatprep.subr.bf16.mxu0 0
  %2549 = vmatpush1.bf16.msra.mxu0 0
  %2550 = vmatprep.subr.bf16.mxu0 0
  %2551 = vmatpush1.bf16.msra.mxu0 0
  %2552 = vmatprep.subr.bf16.mxu0 0
  %2553 = vmatpush1.bf16.msra.mxu0 0
  %2554 = vmatprep.subr.bf16.mxu0 0
  %2555 = vmatpush1.bf16.msra.mxu0 0
  %2556 = vmatprep.subr.bf16.mxu0 0
  %2557 = vmatpush1.bf16.msra.mxu0 0
  %2558 = vmatprep.subr.bf16.mxu0 0
  %2559 = vmatpush1.bf16.msra.mxu0 0
  %2560 = vmatprep.subr.bf16.mxu0 0
  %2561 = vmatpush1.bf16.msra.mxu0 0
  %2562 = vmatprep.mubr.bf16.mxu0 0
  %2563 = vmatmul.mubr.bf16.gmra.mrb[0].mxu0 %v2528
  %v2564 = vpop.f32.mrb[0].mxu0
  %v2565 = vadd.f32 0.0, %v2564
  %v2566 = vpop.f32.mrb[0].mxu0
  %v2567 = vadd.f32 0.0, %v2566
  %v2568 = vpop.f32.mrb[0].mxu0
  %v2569 = vpop.f32.mrb[0].mxu0
  %2570 = vdwg.mxu0
  %2571 = vmatprep.subr.bf16.mxu0 %v250
  %2572 = vmatpush1.bf16.msra.mxu0 %v249
  %2573 = vmatprep.subr.bf16.mxu0 %v254
  %2574 = vmatpush1.bf16.msra.mxu0 %v253
  %2575 = vmatprep.subr.bf16.mxu0 0
  %2576 = vmatpush1.bf16.msra.mxu0 0
  %2577 = vmatprep.subr.bf16.mxu0 0
  %2578 = vmatpush1.bf16.msra.mxu0 0
  %2579 = vmatprep.subr.bf16.mxu0 0
  %2580 = vmatpush1.bf16.msra.mxu0 0
  %2581 = vmatprep.subr.bf16.mxu0 0
  %2582 = vmatpush1.bf16.msra.mxu0 0
  %2583 = vmatprep.subr.bf16.mxu0 0
  %2584 = vmatpush1.bf16.msra.mxu0 0
  %2585 = vmatprep.subr.bf16.mxu0 0
  %2586 = vmatpush1.bf16.msra.mxu0 0
  %2587 = vmatprep.subr.bf16.mxu0 0
  %2588 = vmatpush1.bf16.msra.mxu0 0
  %2589 = vmatprep.subr.bf16.mxu0 0
  %2590 = vmatpush1.bf16.msra.mxu0 0
  %2591 = vmatprep.subr.bf16.mxu0 0
  %2592 = vmatpush1.bf16.msra.mxu0 0
  %2593 = vmatprep.subr.bf16.mxu0 0
  %2594 = vmatpush1.bf16.msra.mxu0 0
  %2595 = vmatprep.subr.bf16.mxu0 0
  %2596 = vmatpush1.bf16.msra.mxu0 0
  %2597 = vmatprep.subr.bf16.mxu0 0
  %2598 = vmatpush1.bf16.msra.mxu0 0
  %2599 = vmatprep.subr.bf16.mxu0 0
  %2600 = vmatpush1.bf16.msra.mxu0 0
  %2601 = vmatprep.subr.bf16.mxu0 0
  %2602 = vmatpush1.bf16.msra.mxu0 0
  %2603 = vmatprep.mubr.bf16.mxu0 0
  %2604 = vmatmul.mubr.bf16.gmra.mrb[0].mxu0 %v2528
  %v2605 = vpop.f32.mrb[0].mxu0
  %v2606 = vadd.f32 0.0, %v2605
  %v2607 = vpop.f32.mrb[0].mxu0
  %v2608 = vadd.f32 0.0, %v2607
  %v2609 = vpop.f32.mrb[0].mxu0
  %v2610 = vpop.f32.mrb[0].mxu0
  %2611 = vdwg.mxu0
  %v2613 = vsel %vm91, %v2525, 0
  %2615 = vmatprep.subr.bf16.mxu0 %v370
  %2616 = vmatpush1.bf16.msra.mxu0 %v369
  %2617 = vmatprep.subr.bf16.mxu0 %v374
  %2618 = vmatpush1.bf16.msra.mxu0 %v373
  %2619 = vmatprep.subr.bf16.mxu0 0
  %2620 = vmatpush1.bf16.msra.mxu0 0
  %2621 = vmatprep.subr.bf16.mxu0 0
  %2622 = vmatpush1.bf16.msra.mxu0 0
  %2623 = vmatprep.subr.bf16.mxu0 0
  %2624 = vmatpush1.bf16.msra.mxu0 0
  %2625 = vmatprep.subr.bf16.mxu0 0
  %2626 = vmatpush1.bf16.msra.mxu0 0
  %2627 = vmatprep.subr.bf16.mxu0 0
  %2628 = vmatpush1.bf16.msra.mxu0 0
  %2629 = vmatprep.subr.bf16.mxu0 0
  %2630 = vmatpush1.bf16.msra.mxu0 0
  %2631 = vmatprep.subr.bf16.mxu0 0
  %2632 = vmatpush1.bf16.msra.mxu0 0
  %2633 = vmatprep.subr.bf16.mxu0 0
  %2634 = vmatpush1.bf16.msra.mxu0 0
  %2635 = vmatprep.subr.bf16.mxu0 0
  %2636 = vmatpush1.bf16.msra.mxu0 0
  %2637 = vmatprep.subr.bf16.mxu0 0
  %2638 = vmatpush1.bf16.msra.mxu0 0
  %2639 = vmatprep.subr.bf16.mxu0 0
  %2640 = vmatpush1.bf16.msra.mxu0 0
  %2641 = vmatprep.subr.bf16.mxu0 0
  %2642 = vmatpush1.bf16.msra.mxu0 0
  %2643 = vmatprep.subr.bf16.mxu0 0
  %2644 = vmatpush1.bf16.msra.mxu0 0
  %2645 = vmatprep.subr.bf16.mxu0 0
  %2646 = vmatpush1.bf16.msra.mxu0 0
  %2647 = vmatprep.mubr.bf16.mxu0 0
  %2648 = vmatmul.mubr.bf16.gmra.mrb[0].mxu0 %v2613
  %v2649 = vpop.f32.mrb[0].mxu0
  %v2650 = vadd.f32 %v2565, %v2649
  %v2651 = vpop.f32.mrb[0].mxu0
  %v2652 = vadd.f32 %v2567, %v2651
  %v2653 = vpop.f32.mrb[0].mxu0
  %v2654 = vpop.f32.mrb[0].mxu0
  %2655 = vdwg.mxu0
  %2656 = vmatprep.subr.bf16.mxu0 %v372
  %2657 = vmatpush1.bf16.msra.mxu0 %v371
  %2658 = vmatprep.subr.bf16.mxu0 %v376
  %2659 = vmatpush1.bf16.msra.mxu0 %v375
  %2660 = vmatprep.subr.bf16.mxu0 0
  %2661 = vmatpush1.bf16.msra.mxu0 0
  %2662 = vmatprep.subr.bf16.mxu0 0
  %2663 = vmatpush1.bf16.msra.mxu0 0
  %2664 = vmatprep.subr.bf16.mxu0 0
  %2665 = vmatpush1.bf16.msra.mxu0 0
  %2666 = vmatprep.subr.bf16.mxu0 0
  %2667 = vmatpush1.bf16.msra.mxu0 0
  %2668 = vmatprep.subr.bf16.mxu0 0
  %2669 = vmatpush1.bf16.msra.mxu0 0
  %2670 = vmatprep.subr.bf16.mxu0 0
  %2671 = vmatpush1.bf16.msra.mxu0 0
  %2672 = vmatprep.subr.bf16.mxu0 0
  %2673 = vmatpush1.bf16.msra.mxu0 0
  %2674 = vmatprep.subr.bf16.mxu0 0
  %2675 = vmatpush1.bf16.msra.mxu0 0
  %2676 = vmatprep.subr.bf16.mxu0 0
  %2677 = vmatpush1.bf16.msra.mxu0 0
  %2678 = vmatprep.subr.bf16.mxu0 0
  %2679 = vmatpush1.bf16.msra.mxu0 0
  %2680 = vmatprep.subr.bf16.mxu0 0
  %2681 = vmatpush1.bf16.msra.mxu0 0
  %2682 = vmatprep.subr.bf16.mxu0 0
  %2683 = vmatpush1.bf16.msra.mxu0 0
  %2684 = vmatprep.subr.bf16.mxu0 0
  %2685 = vmatpush1.bf16.msra.mxu0 0
  %2686 = vmatprep.subr.bf16.mxu0 0
  %2687 = vmatpush1.bf16.msra.mxu0 0
  %2688 = vmatprep.mubr.bf16.mxu0 0
  %2689 = vmatmul.mubr.bf16.gmra.mrb[0].mxu0 %v2613
  %v2690 = vpop.f32.mrb[0].mxu0
  %v2691 = vadd.f32 %v2606, %v2690
  %v2692 = vpop.f32.mrb[0].mxu0
  %v2693 = vadd.f32 %v2608, %v2692
  %v2694 = vpop.f32.mrb[0].mxu0
  %v2695 = vpop.f32.mrb[0].mxu0
  %2696 = vdwg.mxu0
  %v2697 = vadd.f32 %v2650, %v475
  %v2698 = vadd.f32 %v2652, %v479
  %v2699 = vadd.f32 %v2691, %v483
  %v2700 = vadd.f32 %v2693, %v487
  %v2701 = vxor.u32 %v2697, 2147483648
  %v2702 = vmul.f32 %v2701, 1.442695
  %v2703 = vpow.pop %v2702
  %v2704 = vadd.f32 %v2703, 1.0
  %v2705 = vrcp.pop %v2704
  %v2706 = vmul.f32 1.0, %v2705
  %v2707 = vxor.u32 %v2698, 2147483648
  %v2708 = vmul.f32 %v2707, 1.442695
  %v2709 = vpow.pop %v2708
  %v2710 = vadd.f32 %v2709, 1.0
  %v2711 = vrcp.pop %v2710
  %v2712 = vmul.f32 1.0, %v2711
  %v2713 = vtanh.pop %v2699
  %v2714 = vxor.u32 %v2700, 2147483648
  %v2715 = vmul.f32 %v2714, 1.442695
  %v2716 = vpow.pop %v2715
  %v2717 = vadd.f32 %v2716, 1.0
  %v2718 = vrcp.pop %v2717
  %v2719 = vmul.f32 1.0, %v2718
  %v2720 = vmul.f32 %v2712, %v2407
  %v2721 = vmul.f32 %v2706, %v2713
  %v2722 = vadd.f32 %v2720, %v2721
  %v2723 = vtanh.pop %v2722
  %v2724 = vmul.f32 %v2719, %v2723
  %2725 = vst [vmem:[%s11] sm:$0xff] 0.0
  %v2726 = vlaneseq
  %v2727 = vand.u32 %v2726, 127
  %v2728 = vcvt.s32.f32 %v2727
  %v2729 = vld [vmem:[%s10] sm:$0xff]
  %v2730 = vld [vmem:[%s10 + $0x8] sm:$0xff]
  %v2731 = vld [vmem:[%s10 + $0x10] sm:$0xff]
  %v2732 = vld [vmem:[%s10 + $0x18] sm:$0xff]
  %v2733 = vld [vmem:[%s4] sm:$0xff]
  %v2734 = vld [vmem:[%s4 + $0x8] sm:$0xff]
  %v2735 = vld [vmem:[%s4 + $0x10] sm:$0xff]
  %v2736 = vld [vmem:[%s4 + $0x18] sm:$0xff]
  %v2737 = vld [vmem:[%s4 + $0x20] sm:$0xff]
  %v2738 = vld [vmem:[%s4 + $0x28] sm:$0xff]
  %v2739 = vld [vmem:[%s4 + $0x30] sm:$0xff]
  %v2740 = vld [vmem:[%s4 + $0x38] sm:$0xff]
  %v2749 = vunpack.c.l.b16 %v2733
  %v2750 = vunpack.c.h.b16 %v2733
  %v2751 = vunpack.c.l.b16 %v2734
  %v2752 = vunpack.c.h.b16 %v2734
  %v2753 = vunpack.c.l.b16 %v2735
  %v2754 = vunpack.c.h.b16 %v2735
  %v2755 = vunpack.c.l.b16 %v2736
  %v2756 = vunpack.c.h.b16 %v2736
  %v2757 = vunpack.c.l.b16 %v2737
  %v2758 = vunpack.c.h.b16 %v2737
  %v2759 = vunpack.c.l.b16 %v2738
  %v2760 = vunpack.c.h.b16 %v2738
  %v2761 = vunpack.c.l.b16 %v2739
  %v2762 = vunpack.c.h.b16 %v2739
  %v2763 = vunpack.c.l.b16 %v2740
  %v2764 = vunpack.c.h.b16 %v2740
  %v2765 = vpack.c.b16 %v2753, %v2749
  %v2766 = vpack.c.b16 %v2754, %v2750
  %v2767 = vpack.c.b16 %v2755, %v2751
  %v2768 = vpack.c.b16 %v2756, %v2752
  %v2769 = vpack.c.b16 %v2761, %v2757
  %v2770 = vpack.c.b16 %v2762, %v2758
  %v2771 = vpack.c.b16 %v2763, %v2759
  %v2772 = vpack.c.b16 %v2764, %v2760
  %2781 = vmatprep.subr.bf16.mxu0 %v2766
  %2782 = vmatpush1.bf16.msra.mxu0 %v2765
  %2783 = vmatprep.subr.bf16.mxu0 %v2770
  %2784 = vmatpush1.bf16.msra.mxu0 %v2769
  %2785 = vmatprep.subr.bf16.mxu0 0
  %2786 = vmatpush1.bf16.msra.mxu0 0
  %2787 = vmatprep.subr.bf16.mxu0 0
  %2788 = vmatpush1.bf16.msra.mxu0 0
  %2789 = vmatprep.subr.bf16.mxu0 0
  %2790 = vmatpush1.bf16.msra.mxu0 0
  %2791 = vmatprep.subr.bf16.mxu0 0
  %2792 = vmatpush1.bf16.msra.mxu0 0
  %2793 = vmatprep.subr.bf16.mxu0 0
  %2794 = vmatpush1.bf16.msra.mxu0 0
  %2795 = vmatprep.subr.bf16.mxu0 0
  %2796 = vmatpush1.bf16.msra.mxu0 0
  %2797 = vmatprep.subr.bf16.mxu0 0
  %2798 = vmatpush1.bf16.msra.mxu0 0
  %2799 = vmatprep.subr.bf16.mxu0 0
  %2800 = vmatpush1.bf16.msra.mxu0 0
  %2801 = vmatprep.subr.bf16.mxu0 0
  %2802 = vmatpush1.bf16.msra.mxu0 0
  %2803 = vmatprep.subr.bf16.mxu0 0
  %2804 = vmatpush1.bf16.msra.mxu0 0
  %2805 = vmatprep.subr.bf16.mxu0 0
  %2806 = vmatpush1.bf16.msra.mxu0 0
  %2807 = vmatprep.subr.bf16.mxu0 0
  %2808 = vmatpush1.bf16.msra.mxu0 0
  %2809 = vmatprep.subr.bf16.mxu0 0
  %2810 = vmatpush1.bf16.msra.mxu0 0
  %2811 = vmatprep.subr.bf16.mxu0 0
  %2812 = vmatpush1.bf16.msra.mxu0 0
  %2813 = vmatprep.mubr.bf16.mxu0 0
  %2814 = vmatmul.mubr.bf16.gmra.mrb[0].mxu0 %v2613
  %v2815 = vpop.f32.mrb[0].mxu0
  %v2816 = vadd.f32 0.0, %v2815
  %v2817 = vpop.f32.mrb[0].mxu0
  %v2818 = vadd.f32 0.0, %v2817
  %v2819 = vpop.f32.mrb[0].mxu0
  %v2820 = vpop.f32.mrb[0].mxu0
  %2821 = vdwg.mxu0
  %2822 = vmatprep.subr.bf16.mxu0 %v2768
  %2823 = vmatpush1.bf16.msra.mxu0 %v2767
  %2824 = vmatprep.subr.bf16.mxu0 %v2772
  %2825 = vmatpush1.bf16.msra.mxu0 %v2771
  %2826 = vmatprep.subr.bf16.mxu0 0
  %2827 = vmatpush1.bf16.msra.mxu0 0
  %2828 = vmatprep.subr.bf16.mxu0 0
  %2829 = vmatpush1.bf16.msra.mxu0 0
  %2830 = vmatprep.subr.bf16.mxu0 0
  %2831 = vmatpush1.bf16.msra.mxu0 0
  %2832 = vmatprep.subr.bf16.mxu0 0
  %2833 = vmatpush1.bf16.msra.mxu0 0
  %2834 = vmatprep.subr.bf16.mxu0 0
  %2835 = vmatpush1.bf16.msra.mxu0 0
  %2836 = vmatprep.subr.bf16.mxu0 0
  %2837 = vmatpush1.bf16.msra.mxu0 0
  %2838 = vmatprep.subr.bf16.mxu0 0
  %2839 = vmatpush1.bf16.msra.mxu0 0
  %2840 = vmatprep.subr.bf16.mxu0 0
  %2841 = vmatpush1.bf16.msra.mxu0 0
  %2842 = vmatprep.subr.bf16.mxu0 0
  %2843 = vmatpush1.bf16.msra.mxu0 0
  %2844 = vmatprep.subr.bf16.mxu0 0
  %2845 = vmatpush1.bf16.msra.mxu0 0
  %2846 = vmatprep.subr.bf16.mxu0 0
  %2847 = vmatpush1.bf16.msra.mxu0 0
  %2848 = vmatprep.subr.bf16.mxu0 0
  %2849 = vmatpush1.bf16.msra.mxu0 0
  %2850 = vmatprep.subr.bf16.mxu0 0
  %2851 = vmatpush1.bf16.msra.mxu0 0
  %2852 = vmatprep.subr.bf16.mxu0 0
  %2853 = vmatpush1.bf16.msra.mxu0 0
  %2854 = vmatprep.mubr.bf16.mxu0 0
  %2855 = vmatmul.mubr.bf16.gmra.mrb[0].mxu0 %v2613
  %v2856 = vpop.f32.mrb[0].mxu0
  %v2857 = vadd.f32 0.0, %v2856
  %v2858 = vpop.f32.mrb[0].mxu0
  %v2859 = vadd.f32 0.0, %v2858
  %v2860 = vpop.f32.mrb[0].mxu0
  %v2861 = vpop.f32.mrb[0].mxu0
  %2862 = vdwg.mxu0
  %v2863 = vadd.f32 %v2729, %v2816
  %v2864 = vadd.f32 %v2730, %v2818
  %v2865 = vadd.f32 %v2731, %v2857
  %v2866 = vadd.f32 %v2732, %v2859
  %v2867 = vxor.u32 %v2863, 2147483648
  %v2868 = vmul.f32 %v2867, 1.442695
  %v2869 = vpow.pop %v2868
  %v2870 = vadd.f32 %v2869, 1.0
  %v2871 = vrcp.pop %v2870
  %v2872 = vmul.f32 1.0, %v2871
  %v2873 = vxor.u32 %v2864, 2147483648
  %v2874 = vmul.f32 %v2873, 1.442695
  %v2875 = vpow.pop %v2874
  %v2876 = vadd.f32 %v2875, 1.0
  %v2877 = vrcp.pop %v2876
  %v2878 = vmul.f32 1.0, %v2877
  %v2879 = vtanh.pop %v2865
  %v2880 = vxor.u32 %v2866, 2147483648
  %v2881 = vmul.f32 %v2880, 1.442695
  %v2882 = vpow.pop %v2881
  %v2883 = vadd.f32 %v2882, 1.0
  %v2884 = vrcp.pop %v2883
  %v2885 = vmul.f32 1.0, %v2884
  %v2886 = vmul.f32 %v2878, %v2522
  %v2887 = vmul.f32 %v2872, %v2879
  %v2888 = vadd.f32 %v2886, %v2887
  %v2889 = vtanh.pop %v2888
  %v2890 = vmul.f32 %v2885, %v2889
  %v2891 = vpack.c.bf16 %v2890, %v2890
  %v2892 = vld [vmem:[%s5] sm:$0xff]
  %v2893 = vld [vmem:[%s5 + $0x8] sm:$0xff]
  %v2894 = vld [vmem:[%s5 + $0x10] sm:$0xff]
  %v2895 = vld [vmem:[%s5 + $0x18] sm:$0xff]
  %v2896 = vld [vmem:[%s5 + $0x20] sm:$0xff]
  %v2897 = vld [vmem:[%s5 + $0x28] sm:$0xff]
  %v2898 = vld [vmem:[%s5 + $0x30] sm:$0xff]
  %v2899 = vld [vmem:[%s5 + $0x38] sm:$0xff]
  %v2900 = vpack.c.bf16 %v2724, %v2724
  %s2901 = scalar_lea.vmem %s4, 64
  %v2902 = vld [vmem:[%s2901] sm:$0xff]
  %v2903 = vld [vmem:[%s2901 + $0x8] sm:$0xff]
  %v2904 = vld [vmem:[%s2901 + $0x10] sm:$0xff]
  %v2905 = vld [vmem:[%s2901 + $0x18] sm:$0xff]
  %v2906 = vld [vmem:[%s2901 + $0x20] sm:$0xff]
  %v2907 = vld [vmem:[%s2901 + $0x28] sm:$0xff]
  %v2908 = vld [vmem:[%s2901 + $0x30] sm:$0xff]
  %v2909 = vld [vmem:[%s2901 + $0x38] sm:$0xff]
  %v2918 = vunpack.c.l.b16 %v2902
  %v2919 = vunpack.c.h.b16 %v2902
  %v2920 = vunpack.c.l.b16 %v2903
  %v2921 = vunpack.c.h.b16 %v2903
  %v2922 = vunpack.c.l.b16 %v2904
  %v2923 = vunpack.c.h.b16 %v2904
  %v2924 = vunpack.c.l.b16 %v2905
  %v2925 = vunpack.c.h.b16 %v2905
  %v2926 = vunpack.c.l.b16 %v2906
  %v2927 = vunpack.c.h.b16 %v2906
  %v2928 = vunpack.c.l.b16 %v2907
  %v2929 = vunpack.c.h.b16 %v2907
  %v2930 = vunpack.c.l.b16 %v2908
  %v2931 = vunpack.c.h.b16 %v2908
  %v2932 = vunpack.c.l.b16 %v2909
  %v2933 = vunpack.c.h.b16 %v2909
  %v2934 = vpack.c.b16 %v2922, %v2918
  %v2935 = vpack.c.b16 %v2923, %v2919
  %v2936 = vpack.c.b16 %v2924, %v2920
  %v2937 = vpack.c.b16 %v2925, %v2921
  %v2938 = vpack.c.b16 %v2930, %v2926
  %v2939 = vpack.c.b16 %v2931, %v2927
  %v2940 = vpack.c.b16 %v2932, %v2928
  %v2941 = vpack.c.b16 %v2933, %v2929
  %v2951 = vsel %vm91, %v2900, 0
  %2953 = vmatprep.subr.bf16.mxu0 %v2935
  %2954 = vmatpush1.bf16.msra.mxu0 %v2934
  %2955 = vmatprep.subr.bf16.mxu0 %v2939
  %2956 = vmatpush1.bf16.msra.mxu0 %v2938
  %2957 = vmatprep.subr.bf16.mxu0 0
  %2958 = vmatpush1.bf16.msra.mxu0 0
  %2959 = vmatprep.subr.bf16.mxu0 0
  %2960 = vmatpush1.bf16.msra.mxu0 0
  %2961 = vmatprep.subr.bf16.mxu0 0
  %2962 = vmatpush1.bf16.msra.mxu0 0
  %2963 = vmatprep.subr.bf16.mxu0 0
  %2964 = vmatpush1.bf16.msra.mxu0 0
  %2965 = vmatprep.subr.bf16.mxu0 0
  %2966 = vmatpush1.bf16.msra.mxu0 0
  %2967 = vmatprep.subr.bf16.mxu0 0
  %2968 = vmatpush1.bf16.msra.mxu0 0
  %2969 = vmatprep.subr.bf16.mxu0 0
  %2970 = vmatpush1.bf16.msra.mxu0 0
  %2971 = vmatprep.subr.bf16.mxu0 0
  %2972 = vmatpush1.bf16.msra.mxu0 0
  %2973 = vmatprep.subr.bf16.mxu0 0
  %2974 = vmatpush1.bf16.msra.mxu0 0
  %2975 = vmatprep.subr.bf16.mxu0 0
  %2976 = vmatpush1.bf16.msra.mxu0 0
  %2977 = vmatprep.subr.bf16.mxu0 0
  %2978 = vmatpush1.bf16.msra.mxu0 0
  %2979 = vmatprep.subr.bf16.mxu0 0
  %2980 = vmatpush1.bf16.msra.mxu0 0
  %2981 = vmatprep.subr.bf16.mxu0 0
  %2982 = vmatpush1.bf16.msra.mxu0 0
  %2983 = vmatprep.subr.bf16.mxu0 0
  %2984 = vmatpush1.bf16.msra.mxu0 0
  %2985 = vmatprep.mubr.bf16.mxu0 0
  %2986 = vmatmul.mubr.bf16.gmra.mrb[0].mxu0 %v2951
  %v2987 = vpop.f32.mrb[0].mxu0
  %v2988 = vadd.f32 0.0, %v2987
  %v2989 = vpop.f32.mrb[0].mxu0
  %v2990 = vadd.f32 0.0, %v2989
  %v2991 = vpop.f32.mrb[0].mxu0
  %v2992 = vpop.f32.mrb[0].mxu0
  %2993 = vdwg.mxu0
  %2994 = vmatprep.subr.bf16.mxu0 %v2937
  %2995 = vmatpush1.bf16.msra.mxu0 %v2936
  %2996 = vmatprep.subr.bf16.mxu0 %v2941
  %2997 = vmatpush1.bf16.msra.mxu0 %v2940
  %2998 = vmatprep.subr.bf16.mxu0 0
  %2999 = vmatpush1.bf16.msra.mxu0 0
  %3000 = vmatprep.subr.bf16.mxu0 0
  %3001 = vmatpush1.bf16.msra.mxu0 0
  %3002 = vmatprep.subr.bf16.mxu0 0
  %3003 = vmatpush1.bf16.msra.mxu0 0
  %3004 = vmatprep.subr.bf16.mxu0 0
  %3005 = vmatpush1.bf16.msra.mxu0 0
  %3006 = vmatprep.subr.bf16.mxu0 0
  %3007 = vmatpush1.bf16.msra.mxu0 0
  %3008 = vmatprep.subr.bf16.mxu0 0
  %3009 = vmatpush1.bf16.msra.mxu0 0
  %3010 = vmatprep.subr.bf16.mxu0 0
  %3011 = vmatpush1.bf16.msra.mxu0 0
  %3012 = vmatprep.subr.bf16.mxu0 0
  %3013 = vmatpush1.bf16.msra.mxu0 0
  %3014 = vmatprep.subr.bf16.mxu0 0
  %3015 = vmatpush1.bf16.msra.mxu0 0
  %3016 = vmatprep.subr.bf16.mxu0 0
  %3017 = vmatpush1.bf16.msra.mxu0 0
  %3018 = vmatprep.subr.bf16.mxu0 0
  %3019 = vmatpush1.bf16.msra.mxu0 0
  %3020 = vmatprep.subr.bf16.mxu0 0
  %3021 = vmatpush1.bf16.msra.mxu0 0
  %3022 = vmatprep.subr.bf16.mxu0 0
  %3023 = vmatpush1.bf16.msra.mxu0 0
  %3024 = vmatprep.subr.bf16.mxu0 0
  %3025 = vmatpush1.bf16.msra.mxu0 0
  %3026 = vmatprep.mubr.bf16.mxu0 0
  %3027 = vmatmul.mubr.bf16.gmra.mrb[0].mxu0 %v2951
  %v3028 = vpop.f32.mrb[0].mxu0
  %v3029 = vadd.f32 0.0, %v3028
  %v3030 = vpop.f32.mrb[0].mxu0
  %v3031 = vadd.f32 0.0, %v3030
  %v3032 = vpop.f32.mrb[0].mxu0
  %v3033 = vpop.f32.mrb[0].mxu0
  %3034 = vdwg.mxu0
  %v3043 = vunpack.c.l.b16 %v2892
  %v3044 = vunpack.c.h.b16 %v2892
  %v3045 = vunpack.c.l.b16 %v2893
  %v3046 = vunpack.c.h.b16 %v2893
  %v3047 = vunpack.c.l.b16 %v2894
  %v3048 = vunpack.c.h.b16 %v2894
  %v3049 = vunpack.c.l.b16 %v2895
  %v3050 = vunpack.c.h.b16 %v2895
  %v3051 = vunpack.c.l.b16 %v2896
  %v3052 = vunpack.c.h.b16 %v2896
  %v3053 = vunpack.c.l.b16 %v2897
  %v3054 = vunpack.c.h.b16 %v2897
  %v3055 = vunpack.c.l.b16 %v2898
  %v3056 = vunpack.c.h.b16 %v2898
  %v3057 = vunpack.c.l.b16 %v2899
  %v3058 = vunpack.c.h.b16 %v2899
  %v3059 = vpack.c.b16 %v3047, %v3043
  %v3060 = vpack.c.b16 %v3048, %v3044
  %v3061 = vpack.c.b16 %v3049, %v3045
  %v3062 = vpack.c.b16 %v3050, %v3046
  %v3063 = vpack.c.b16 %v3055, %v3051
  %v3064 = vpack.c.b16 %v3056, %v3052
  %v3065 = vpack.c.b16 %v3057, %v3053
  %v3066 = vpack.c.b16 %v3058, %v3054
  %v3076 = vsel %vm91, %v2891, 0
  %3078 = vmatprep.subr.bf16.mxu0 %v3060
  %3079 = vmatpush1.bf16.msra.mxu0 %v3059
  %3080 = vmatprep.subr.bf16.mxu0 %v3064
  %3081 = vmatpush1.bf16.msra.mxu0 %v3063
  %3082 = vmatprep.subr.bf16.mxu0 0
  %3083 = vmatpush1.bf16.msra.mxu0 0
  %3084 = vmatprep.subr.bf16.mxu0 0
  %3085 = vmatpush1.bf16.msra.mxu0 0
  %3086 = vmatprep.subr.bf16.mxu0 0
  %3087 = vmatpush1.bf16.msra.mxu0 0
  %3088 = vmatprep.subr.bf16.mxu0 0
  %3089 = vmatpush1.bf16.msra.mxu0 0
  %3090 = vmatprep.subr.bf16.mxu0 0
  %3091 = vmatpush1.bf16.msra.mxu0 0
  %3092 = vmatprep.subr.bf16.mxu0 0
  %3093 = vmatpush1.bf16.msra.mxu0 0
  %3094 = vmatprep.subr.bf16.mxu0 0
  %3095 = vmatpush1.bf16.msra.mxu0 0
  %3096 = vmatprep.subr.bf16.mxu0 0
  %3097 = vmatpush1.bf16.msra.mxu0 0
  %3098 = vmatprep.subr.bf16.mxu0 0
  %3099 = vmatpush1.bf16.msra.mxu0 0
  %3100 = vmatprep.subr.bf16.mxu0 0
  %3101 = vmatpush1.bf16.msra.mxu0 0
  %3102 = vmatprep.subr.bf16.mxu0 0
  %3103 = vmatpush1.bf16.msra.mxu0 0
  %3104 = vmatprep.subr.bf16.mxu0 0
  %3105 = vmatpush1.bf16.msra.mxu0 0
  %3106 = vmatprep.subr.bf16.mxu0 0
  %3107 = vmatpush1.bf16.msra.mxu0 0
  %3108 = vmatprep.subr.bf16.mxu0 0
  %3109 = vmatpush1.bf16.msra.mxu0 0
  %3110 = vmatprep.mubr.bf16.mxu0 0
  %3111 = vmatmul.mubr.bf16.gmra.mrb[0].mxu0 %v3076
  %v3112 = vpop.f32.mrb[0].mxu0
  %v3113 = vadd.f32 %v2988, %v3112
  %v3114 = vpop.f32.mrb[0].mxu0
  %v3115 = vadd.f32 %v2990, %v3114
  %v3116 = vpop.f32.mrb[0].mxu0
  %v3117 = vpop.f32.mrb[0].mxu0
  %3118 = vdwg.mxu0
  %3119 = vmatprep.subr.bf16.mxu0 %v3062
  %3120 = vmatpush1.bf16.msra.mxu0 %v3061
  %3121 = vmatprep.subr.bf16.mxu0 %v3066
  %3122 = vmatpush1.bf16.msra.mxu0 %v3065
  %3123 = vmatprep.subr.bf16.mxu0 0
  %3124 = vmatpush1.bf16.msra.mxu0 0
  %3125 = vmatprep.subr.bf16.mxu0 0
  %3126 = vmatpush1.bf16.msra.mxu0 0
  %3127 = vmatprep.subr.bf16.mxu0 0
  %3128 = vmatpush1.bf16.msra.mxu0 0
  %3129 = vmatprep.subr.bf16.mxu0 0
  %3130 = vmatpush1.bf16.msra.mxu0 0
  %3131 = vmatprep.subr.bf16.mxu0 0
  %3132 = vmatpush1.bf16.msra.mxu0 0
  %3133 = vmatprep.subr.bf16.mxu0 0
  %3134 = vmatpush1.bf16.msra.mxu0 0
  %3135 = vmatprep.subr.bf16.mxu0 0
  %3136 = vmatpush1.bf16.msra.mxu0 0
  %3137 = vmatprep.subr.bf16.mxu0 0
  %3138 = vmatpush1.bf16.msra.mxu0 0
  %3139 = vmatprep.subr.bf16.mxu0 0
  %3140 = vmatpush1.bf16.msra.mxu0 0
  %3141 = vmatprep.subr.bf16.mxu0 0
  %3142 = vmatpush1.bf16.msra.mxu0 0
  %3143 = vmatprep.subr.bf16.mxu0 0
  %3144 = vmatpush1.bf16.msra.mxu0 0
  %3145 = vmatprep.subr.bf16.mxu0 0
  %3146 = vmatpush1.bf16.msra.mxu0 0
  %3147 = vmatprep.subr.bf16.mxu0 0
  %3148 = vmatpush1.bf16.msra.mxu0 0
  %3149 = vmatprep.subr.bf16.mxu0 0
  %3150 = vmatpush1.bf16.msra.mxu0 0
  %3151 = vmatprep.mubr.bf16.mxu0 0
  %3152 = vmatmul.mubr.bf16.gmra.mrb[0].mxu0 %v3076
  %v3153 = vpop.f32.mrb[0].mxu0
  %v3154 = vadd.f32 %v3029, %v3153
  %v3155 = vpop.f32.mrb[0].mxu0
  %v3156 = vadd.f32 %v3031, %v3155
  %v3157 = vpop.f32.mrb[0].mxu0
  %v3158 = vpop.f32.mrb[0].mxu0
  %3159 = vdwg.mxu0
  %v3160 = vld [vmem:[%s6] sm:$0xf]
  %v3162 = vlaneseq
  %v3163 = vshrl.u32 %v3162, 7
  %v3164 = vsub.s32 0, %v3163
  %v3165 = vrot.slane %v3160, %v3164
  %v3166 = vlaneseq
  %v3167 = vshrl.u32 %v3166, 7
  %v3168 = vsub.s32 1, %v3167
  %v3169 = vrot.slane %v3160, %v3168
  %v3170 = vlaneseq
  %v3171 = vshrl.u32 %v3170, 7
  %v3172 = vsub.s32 2, %v3171
  %v3173 = vrot.slane %v3160, %v3172
  %v3174 = vlaneseq
  %v3175 = vshrl.u32 %v3174, 7
  %v3176 = vsub.s32 3, %v3175
  %v3177 = vrot.slane %v3160, %v3176
  %v3182 = vadd.f32 %v3113, %v3165
  %v3183 = vadd.f32 %v3115, %v3169
  %v3184 = vadd.f32 %v3154, %v3173
  %v3185 = vadd.f32 %v3156, %v3177
  %v3186 = vxor.u32 %v3182, 2147483648
  %v3187 = vmul.f32 %v3186, 1.442695
  %v3188 = vpow.pop %v3187
  %v3189 = vadd.f32 %v3188, 1.0
  %v3190 = vrcp.pop %v3189
  %v3191 = vmul.f32 1.0, %v3190
  %v3192 = vxor.u32 %v3183, 2147483648
  %v3193 = vmul.f32 %v3192, 1.442695
  %v3194 = vpow.pop %v3193
  %v3195 = vadd.f32 %v3194, 1.0
  %v3196 = vrcp.pop %v3195
  %v3197 = vmul.f32 1.0, %v3196
  %v3198 = vtanh.pop %v3184
  %v3199 = vxor.u32 %v3185, 2147483648
  %v3200 = vmul.f32 %v3199, 1.442695
  %v3201 = vpow.pop %v3200
  %v3202 = vadd.f32 %v3201, 1.0
  %v3203 = vrcp.pop %v3202
  %v3204 = vmul.f32 1.0, %v3203
  %v3205 = vmul.f32 %v3197, %v2722
  %v3206 = vmul.f32 %v3191, %v3198
  %v3207 = vadd.f32 %v3205, %v3206
  %v3208 = vtanh.pop %v3207
  %v3209 = vmul.f32 %v3204, %v3208
  %v3210 = vpack.c.bf16 %v3209, %v3209
  %v3211 = vld [vmem:[%s8] sm:$0xf]
  %v3212 = vld [vmem:[%s8 + $0x4] sm:$0xf]
  %v3213 = vld [vmem:[%s8 + $0x8] sm:$0xf]
  %v3214 = vld [vmem:[%s8 + $0xc] sm:$0xf]
  %v3215 = vld [vmem:[%s9] sm:$0x1]
  %v3217 = vlaneseq
  %v3218 = vshrl.u32 %v3217, 7
  %v3219 = vsub.s32 0, %v3218
  %v3220 = vrot.slane %v3215, %v3219
  %v3226 = vunpack.c.l.b16 %v3211
  %v3227 = vunpack.c.l.b16 %v3212
  %v3228 = vunpack.c.l.b16 %v3213
  %v3229 = vunpack.c.l.b16 %v3214
  %v3230 = vpack.c.b16 %v3227, %v3226
  %v3231 = vpack.c.b16 %v3229, %v3228
  %v3235 = vsel %vm91, %v3210, 0
  %3237 = vmatprep.subr.bf16.mxu0 0
  %3238 = vmatpush1.bf16.msra.mxu0 %v3230
  %3239 = vmatprep.subr.bf16.mxu0 0
  %3240 = vmatpush1.bf16.msra.mxu0 %v3231
  %3241 = vmatprep.subr.bf16.mxu0 0
  %3242 = vmatpush1.bf16.msra.mxu0 0
  %3243 = vmatprep.subr.bf16.mxu0 0
  %3244 = vmatpush1.bf16.msra.mxu0 0
  %3245 = vmatprep.subr.bf16.mxu0 0
  %3246 = vmatpush1.bf16.msra.mxu0 0
  %3247 = vmatprep.subr.bf16.mxu0 0
  %3248 = vmatpush1.bf16.msra.mxu0 0
  %3249 = vmatprep.subr.bf16.mxu0 0
  %3250 = vmatpush1.bf16.msra.mxu0 0
  %3251 = vmatprep.subr.bf16.mxu0 0
  %3252 = vmatpush1.bf16.msra.mxu0 0
  %3253 = vmatprep.subr.bf16.mxu0 0
  %3254 = vmatpush1.bf16.msra.mxu0 0
  %3255 = vmatprep.subr.bf16.mxu0 0
  %3256 = vmatpush1.bf16.msra.mxu0 0
  %3257 = vmatprep.subr.bf16.mxu0 0
  %3258 = vmatpush1.bf16.msra.mxu0 0
  %3259 = vmatprep.subr.bf16.mxu0 0
  %3260 = vmatpush1.bf16.msra.mxu0 0
  %3261 = vmatprep.subr.bf16.mxu0 0
  %3262 = vmatpush1.bf16.msra.mxu0 0
  %3263 = vmatprep.subr.bf16.mxu0 0
  %3264 = vmatpush1.bf16.msra.mxu0 0
  %3265 = vmatprep.subr.bf16.mxu0 0
  %3266 = vmatpush1.bf16.msra.mxu0 0
  %3267 = vmatprep.subr.bf16.mxu0 0
  %3268 = vmatpush1.bf16.msra.mxu0 0
  %3269 = vmatprep.mubr.bf16.mxu0 0
  %3270 = vmatmul.mubr.bf16.gmra.mrb[0].mxu0 %v3235
  %v3271 = vpop.f32.mrb[0].mxu0
  %v3272 = vadd.f32 %v3220, %v3271
  %v3273 = vpop.f32.mrb[0].mxu0
  %v3274 = vpop.f32.mrb[0].mxu0
  %v3275 = vpop.f32.mrb[0].mxu0
  %3276 = vdwg.mxu0
  %s3277 = scalar_lea.vmem %s11, 8
  %3278 = vst [vmem:[%s3277] sm:$0xff] %v3272
  %3279 = vmax.xlane.f32.xlu0 %v3272
  %v3280 = vpop.xlane.xlu0 %3279
  %vm3281 = vcmp.ge.f32.partialorder %v3272, %v3280
  %v3282 = vsel %vm3281, %v2728, 128.0
  %3283 = vmin.xlane.f32.xlu0 %v3282
  %v3284 = vpop.xlane.xlu0 %3283
  %vm3285 = vcmp.eq.f32.partialorder %v2728, %v3284
  %v3286 = vsel %vm3285, 1, 0
  %v3287 = vcvt.s32.f32 %v3286
  %v3288 = vpack.c.bf16 %v3287, %v3287
  %v3289 = vld [vmem:[%s7] sm:$0xff]
  %v3290 = vld [vmem:[%s7 + $0x8] sm:$0xff]
  %v3291 = vld [vmem:[%s7 + $0x10] sm:$0xff]
  %v3292 = vld [vmem:[%s7 + $0x18] sm:$0xff]
  %v3293 = vld [vmem:[%s7 + $0x20] sm:$0xff]
  %v3294 = vld [vmem:[%s7 + $0x28] sm:$0xff]
  %v3295 = vld [vmem:[%s7 + $0x30] sm:$0xff]
  %v3296 = vld [vmem:[%s7 + $0x38] sm:$0xff]
  %v3297 = vld [vmem:[%s7 + $0x40] sm:$0xff]
  %v3298 = vld [vmem:[%s7 + $0x48] sm:$0xff]
  %v3299 = vld [vmem:[%s7 + $0x50] sm:$0xff]
  %v3300 = vld [vmem:[%s7 + $0x58] sm:$0xff]
  %v3301 = vld [vmem:[%s7 + $0x60] sm:$0xff]
  %v3302 = vld [vmem:[%s7 + $0x68] sm:$0xff]
  %v3303 = vld [vmem:[%s7 + $0x70] sm:$0xff]
  %v3304 = vld [vmem:[%s7 + $0x78] sm:$0xff]
  %v3305 = vld [vmem:[%s7 + $0x80] sm:$0xff]
  %v3306 = vld [vmem:[%s7 + $0x88] sm:$0xff]
  %v3307 = vld [vmem:[%s7 + $0x90] sm:$0xff]
  %v3308 = vld [vmem:[%s7 + $0x98] sm:$0xff]
  %v3309 = vld [vmem:[%s7 + $0xa0] sm:$0xff]
  %v3310 = vld [vmem:[%s7 + $0xa8] sm:$0xff]
  %v3311 = vld [vmem:[%s7 + $0xb0] sm:$0xff]
  %v3312 = vld [vmem:[%s7 + $0xb8] sm:$0xff]
  %v3313 = vld [vmem:[%s7 + $0xc0] sm:$0xff]
  %v3314 = vld [vmem:[%s7 + $0xc8] sm:$0xff]
  %v3315 = vld [vmem:[%s7 + $0xd0] sm:$0xff]
  %v3316 = vld [vmem:[%s7 + $0xd8] sm:$0xff]
  %v3317 = vld [vmem:[%s7 + $0xe0] sm:$0xff]
  %v3318 = vld [vmem:[%s7 + $0xe8] sm:$0xff]
  %v3319 = vld [vmem:[%s7 + $0xf0] sm:$0xff]
  %v3320 = vld [vmem:[%s7 + $0xf8] sm:$0xff]
  %v3321 = vld [vmem:[%s4] sm:$0xff]
  %v3322 = vld [vmem:[%s4 + $0x8] sm:$0xff]
  %v3323 = vld [vmem:[%s4 + $0x10] sm:$0xff]
  %v3324 = vld [vmem:[%s4 + $0x18] sm:$0xff]
  %v3325 = vld [vmem:[%s4 + $0x20] sm:$0xff]
  %v3326 = vld [vmem:[%s4 + $0x28] sm:$0xff]
  %v3327 = vld [vmem:[%s4 + $0x30] sm:$0xff]
  %v3328 = vld [vmem:[%s4 + $0x38] sm:$0xff]
  %v3337 = vunpack.c.l.b16 %v3321
  %v3338 = vunpack.c.h.b16 %v3321
  %v3339 = vunpack.c.l.b16 %v3322
  %v3340 = vunpack.c.h.b16 %v3322
  %v3341 = vunpack.c.l.b16 %v3323
  %v3342 = vunpack.c.h.b16 %v3323
  %v3343 = vunpack.c.l.b16 %v3324
  %v3344 = vunpack.c.h.b16 %v3324
  %v3345 = vunpack.c.l.b16 %v3325
  %v3346 = vunpack.c.h.b16 %v3325
  %v3347 = vunpack.c.l.b16 %v3326
  %v3348 = vunpack.c.h.b16 %v3326
  %v3349 = vunpack.c.l.b16 %v3327
  %v3350 = vunpack.c.h.b16 %v3327
  %v3351 = vunpack.c.l.b16 %v3328
  %v3352 = vunpack.c.h.b16 %v3328
  %v3353 = vpack.c.b16 %v3341, %v3337
  %v3354 = vpack.c.b16 %v3342, %v3338
  %v3355 = vpack.c.b16 %v3343, %v3339
  %v3356 = vpack.c.b16 %v3344, %v3340
  %v3357 = vpack.c.b16 %v3349, %v3345
  %v3358 = vpack.c.b16 %v3350, %v3346
  %v3359 = vpack.c.b16 %v3351, %v3347
  %v3360 = vpack.c.b16 %v3352, %v3348
  %3369 = vmatprep.subr.bf16.mxu0 %v3354
  %3370 = vmatpush1.bf16.msra.mxu0 %v3353
  %3371 = vmatprep.subr.bf16.mxu0 %v3358
  %3372 = vmatpush1.bf16.msra.mxu0 %v3357
  %3373 = vmatprep.subr.bf16.mxu0 0
  %3374 = vmatpush1.bf16.msra.mxu0 0
  %3375 = vmatprep.subr.bf16.mxu0 0
  %3376 = vmatpush1.bf16.msra.mxu0 0
  %3377 = vmatprep.subr.bf16.mxu0 0
  %3378 = vmatpush1.bf16.msra.mxu0 0
  %3379 = vmatprep.subr.bf16.mxu0 0
  %3380 = vmatpush1.bf16.msra.mxu0 0
  %3381 = vmatprep.subr.bf16.mxu0 0
  %3382 = vmatpush1.bf16.msra.mxu0 0
  %3383 = vmatprep.subr.bf16.mxu0 0
  %3384 = vmatpush1.bf16.msra.mxu0 0
  %3385 = vmatprep.subr.bf16.mxu0 0
  %3386 = vmatpush1.bf16.msra.mxu0 0
  %3387 = vmatprep.subr.bf16.mxu0 0
  %3388 = vmatpush1.bf16.msra.mxu0 0
  %3389 = vmatprep.subr.bf16.mxu0 0
  %3390 = vmatpush1.bf16.msra.mxu0 0
  %3391 = vmatprep.subr.bf16.mxu0 0
  %3392 = vmatpush1.bf16.msra.mxu0 0
  %3393 = vmatprep.subr.bf16.mxu0 0
  %3394 = vmatpush1.bf16.msra.mxu0 0
  %3395 = vmatprep.subr.bf16.mxu0 0
  %3396 = vmatpush1.bf16.msra.mxu0 0
  %3397 = vmatprep.subr.bf16.mxu0 0
  %3398 = vmatpush1.bf16.msra.mxu0 0
  %3399 = vmatprep.subr.bf16.mxu0 0
  %3400 = vmatpush1.bf16.msra.mxu0 0
  %3401 = vmatprep.mubr.bf16.mxu0 0
  %3402 = vmatmul.mubr.bf16.gmra.mrb[0].mxu0 %v3076
  %v3403 = vpop.f32.mrb[0].mxu0
  %v3404 = vadd.f32 0.0, %v3403
  %v3405 = vpop.f32.mrb[0].mxu0
  %v3406 = vadd.f32 0.0, %v3405
  %v3407 = vpop.f32.mrb[0].mxu0
  %v3408 = vpop.f32.mrb[0].mxu0
  %3409 = vdwg.mxu0
  %3410 = vmatprep.subr.bf16.mxu0 %v3356
  %3411 = vmatpush1.bf16.msra.mxu0 %v3355
  %3412 = vmatprep.subr.bf16.mxu0 %v3360
  %3413 = vmatpush1.bf16.msra.mxu0 %v3359
  %3414 = vmatprep.subr.bf16.mxu0 0
  %3415 = vmatpush1.bf16.msra.mxu0 0
  %3416 = vmatprep.subr.bf16.mxu0 0
  %3417 = vmatpush1.bf16.msra.mxu0 0
  %3418 = vmatprep.subr.bf16.mxu0 0
  %3419 = vmatpush1.bf16.msra.mxu0 0
  %3420 = vmatprep.subr.bf16.mxu0 0
  %3421 = vmatpush1.bf16.msra.mxu0 0
  %3422 = vmatprep.subr.bf16.mxu0 0
  %3423 = vmatpush1.bf16.msra.mxu0 0
  %3424 = vmatprep.subr.bf16.mxu0 0
  %3425 = vmatpush1.bf16.msra.mxu0 0
  %3426 = vmatprep.subr.bf16.mxu0 0
  %3427 = vmatpush1.bf16.msra.mxu0 0
  %3428 = vmatprep.subr.bf16.mxu0 0
  %3429 = vmatpush1.bf16.msra.mxu0 0
  %3430 = vmatprep.subr.bf16.mxu0 0
  %3431 = vmatpush1.bf16.msra.mxu0 0
  %3432 = vmatprep.subr.bf16.mxu0 0
  %3433 = vmatpush1.bf16.msra.mxu0 0
  %3434 = vmatprep.subr.bf16.mxu0 0
  %3435 = vmatpush1.bf16.msra.mxu0 0
  %3436 = vmatprep.subr.bf16.mxu0 0
  %3437 = vmatpush1.bf16.msra.mxu0 0
  %3438 = vmatprep.subr.bf16.mxu0 0
  %3439 = vmatpush1.bf16.msra.mxu0 0
  %3440 = vmatprep.subr.bf16.mxu0 0
  %3441 = vmatpush1.bf16.msra.mxu0 0
  %3442 = vmatprep.mubr.bf16.mxu0 0
  %3443 = vmatmul.mubr.bf16.gmra.mrb[0].mxu0 %v3076
  %v3444 = vpop.f32.mrb[0].mxu0
  %v3445 = vadd.f32 0.0, %v3444
  %v3446 = vpop.f32.mrb[0].mxu0
  %v3447 = vadd.f32 0.0, %v3446
  %v3448 = vpop.f32.mrb[0].mxu0
  %v3449 = vpop.f32.mrb[0].mxu0
  %3450 = vdwg.mxu0
  %v3483 = vunpack.c.l.b16 %v3289
  %v3484 = vunpack.c.h.b16 %v3289
  %v3485 = vunpack.c.l.b16 %v3290
  %v3486 = vunpack.c.h.b16 %v3290
  %v3487 = vunpack.c.l.b16 %v3291
  %v3488 = vunpack.c.h.b16 %v3291
  %v3489 = vunpack.c.l.b16 %v3292
  %v3490 = vunpack.c.h.b16 %v3292
  %v3491 = vunpack.c.l.b16 %v3293
  %v3492 = vunpack.c.h.b16 %v3293
  %v3493 = vunpack.c.l.b16 %v3294
  %v3494 = vunpack.c.h.b16 %v3294
  %v3495 = vunpack.c.l.b16 %v3295
  %v3496 = vunpack.c.h.b16 %v3295
  %v3497 = vunpack.c.l.b16 %v3296
  %v3498 = vunpack.c.h.b16 %v3296
  %v3499 = vunpack.c.l.b16 %v3297
  %v3500 = vunpack.c.h.b16 %v3297
  %v3501 = vunpack.c.l.b16 %v3298
  %v3502 = vunpack.c.h.b16 %v3298
  %v3503 = vunpack.c.l.b16 %v3299
  %v3504 = vunpack.c.h.b16 %v3299
  %v3505 = vunpack.c.l.b16 %v3300
  %v3506 = vunpack.c.h.b16 %v3300
  %v3507 = vunpack.c.l.b16 %v3301
  %v3508 = vunpack.c.h.b16 %v3301
  %v3509 = vunpack.c.l.b16 %v3302
  %v3510 = vunpack.c.h.b16 %v3302
  %v3511 = vunpack.c.l.b16 %v3303
  %v3512 = vunpack.c.h.b16 %v3303
  %v3513 = vunpack.c.l.b16 %v3304
  %v3514 = vunpack.c.h.b16 %v3304
  %v3515 = vunpack.c.l.b16 %v3305
  %v3516 = vunpack.c.h.b16 %v3305
  %v3517 = vunpack.c.l.b16 %v3306
  %v3518 = vunpack.c.h.b16 %v3306
  %v3519 = vunpack.c.l.b16 %v3307
  %v3520 = vunpack.c.h.b16 %v3307
  %v3521 = vunpack.c.l.b16 %v3308
  %v3522 = vunpack.c.h.b16 %v3308
  %v3523 = vunpack.c.l.b16 %v3309
  %v3524 = vunpack.c.h.b16 %v3309
  %v3525 = vunpack.c.l.b16 %v3310
  %v3526 = vunpack.c.h.b16 %v3310
  %v3527 = vunpack.c.l.b16 %v3311
  %v3528 = vunpack.c.h.b16 %v3311
  %v3529 = vunpack.c.l.b16 %v3312
  %v3530 = vunpack.c.h.b16 %v3312
  %v3531 = vunpack.c.l.b16 %v3313
  %v3532 = vunpack.c.h.b16 %v3313
  %v3533 = vunpack.c.l.b16 %v3314
  %v3534 = vunpack.c.h.b16 %v3314
  %v3535 = vunpack.c.l.b16 %v3315
  %v3536 = vunpack.c.h.b16 %v3315
  %v3537 = vunpack.c.l.b16 %v3316
  %v3538 = vunpack.c.h.b16 %v3316
  %v3539 = vunpack.c.l.b16 %v3317
  %v3540 = vunpack.c.h.b16 %v3317
  %v3541 = vunpack.c.l.b16 %v3318
  %v3542 = vunpack.c.h.b16 %v3318
  %v3543 = vunpack.c.l.b16 %v3319
  %v3544 = vunpack.c.h.b16 %v3319
  %v3545 = vunpack.c.l.b16 %v3320
  %v3546 = vunpack.c.h.b16 %v3320
  %v3547 = vpack.c.b16 %v3487, %v3483
  %v3548 = vpack.c.b16 %v3488, %v3484
  %v3549 = vpack.c.b16 %v3489, %v3485
  %v3550 = vpack.c.b16 %v3490, %v3486
  %v3551 = vpack.c.b16 %v3495, %v3491
  %v3552 = vpack.c.b16 %v3496, %v3492
  %v3553 = vpack.c.b16 %v3497, %v3493
  %v3554 = vpack.c.b16 %v3498, %v3494
  %v3555 = vpack.c.b16 %v3503, %v3499
  %v3556 = vpack.c.b16 %v3504, %v3500
  %v3557 = vpack.c.b16 %v3505, %v3501
  %v3558 = vpack.c.b16 %v3506, %v3502
  %v3559 = vpack.c.b16 %v3511, %v3507
  %v3560 = vpack.c.b16 %v3512, %v3508
  %v3561 = vpack.c.b16 %v3513, %v3509
  %v3562 = vpack.c.b16 %v3514, %v3510
  %v3563 = vpack.c.b16 %v3519, %v3515
  %v3564 = vpack.c.b16 %v3520, %v3516
  %v3565 = vpack.c.b16 %v3521, %v3517
  %v3566 = vpack.c.b16 %v3522, %v3518
  %v3567 = vpack.c.b16 %v3527, %v3523
  %v3568 = vpack.c.b16 %v3528, %v3524
  %v3569 = vpack.c.b16 %v3529, %v3525
  %v3570 = vpack.c.b16 %v3530, %v3526
  %v3571 = vpack.c.b16 %v3535, %v3531
  %v3572 = vpack.c.b16 %v3536, %v3532
  %v3573 = vpack.c.b16 %v3537, %v3533
  %v3574 = vpack.c.b16 %v3538, %v3534
  %v3575 = vpack.c.b16 %v3543, %v3539
  %v3576 = vpack.c.b16 %v3544, %v3540
  %v3577 = vpack.c.b16 %v3545, %v3541
  %v3578 = vpack.c.b16 %v3546, %v3542
  %3611 = vmatprep.subr.bf16.mxu0 %v3548
  %3612 = vmatpush1.bf16.msra.mxu0 %v3547
  %3613 = vmatprep.subr.bf16.mxu0 %v3552
  %3614 = vmatpush1.bf16.msra.mxu0 %v3551
  %3615 = vmatprep.subr.bf16.mxu0 %v3556
  %3616 = vmatpush1.bf16.msra.mxu0 %v3555
  %3617 = vmatprep.subr.bf16.mxu0 %v3560
  %3618 = vmatpush1.bf16.msra.mxu0 %v3559
  %3619 = vmatprep.subr.bf16.mxu0 %v3564
  %3620 = vmatpush1.bf16.msra.mxu0 %v3563
  %3621 = vmatprep.subr.bf16.mxu0 %v3568
  %3622 = vmatpush1.bf16.msra.mxu0 %v3567
  %3623 = vmatprep.subr.bf16.mxu0 %v3572
  %3624 = vmatpush1.bf16.msra.mxu0 %v3571
  %3625 = vmatprep.subr.bf16.mxu0 %v3576
  %3626 = vmatpush1.bf16.msra.mxu0 %v3575
  %3627 = vmatprep.subr.bf16.mxu0 0
  %3628 = vmatpush1.bf16.msra.mxu0 0
  %3629 = vmatprep.subr.bf16.mxu0 0
  %3630 = vmatpush1.bf16.msra.mxu0 0
  %3631 = vmatprep.subr.bf16.mxu0 0
  %3632 = vmatpush1.bf16.msra.mxu0 0
  %3633 = vmatprep.subr.bf16.mxu0 0
  %3634 = vmatpush1.bf16.msra.mxu0 0
  %3635 = vmatprep.subr.bf16.mxu0 0
  %3636 = vmatpush1.bf16.msra.mxu0 0
  %3637 = vmatprep.subr.bf16.mxu0 0
  %3638 = vmatpush1.bf16.msra.mxu0 0
  %3639 = vmatprep.subr.bf16.mxu0 0
  %3640 = vmatpush1.bf16.msra.mxu0 0
  %3641 = vmatprep.subr.bf16.mxu0 0
  %3642 = vmatpush1.bf16.msra.mxu0 0
  %3643 = vmatprep.mubr.bf16.mxu0 0
  %3644 = vmatmul.mubr.bf16.gmra.mrb[0].mxu0 %v3288
  %v3645 = vpop.f32.mrb[0].mxu0
  %v3646 = vadd.f32 %v3404, %v3645
  %v3647 = vpop.f32.mrb[0].mxu0
  %v3648 = vadd.f32 %v3406, %v3647
  %v3649 = vpop.f32.mrb[0].mxu0
  %v3650 = vpop.f32.mrb[0].mxu0
  %3651 = vdwg.mxu0
  %3652 = vmatprep.subr.bf16.mxu0 %v3550
  %3653 = vmatpush1.bf16.msra.mxu0 %v3549
  %3654 = vmatprep.subr.bf16.mxu0 %v3554
  %3655 = vmatpush1.bf16.msra.mxu0 %v3553
  %3656 = vmatprep.subr.bf16.mxu0 %v3558
  %3657 = vmatpush1.bf16.msra.mxu0 %v3557
  %3658 = vmatprep.subr.bf16.mxu0 %v3562
  %3659 = vmatpush1.bf16.msra.mxu0 %v3561
  %3660 = vmatprep.subr.bf16.mxu0 %v3566
  %3661 = vmatpush1.bf16.msra.mxu0 %v3565
  %3662 = vmatprep.subr.bf16.mxu0 %v3570
  %3663 = vmatpush1.bf16.msra.mxu0 %v3569
  %3664 = vmatprep.subr.bf16.mxu0 %v3574
  %3665 = vmatpush1.bf16.msra.mxu0 %v3573
  %3666 = vmatprep.subr.bf16.mxu0 %v3578
  %3667 = vmatpush1.bf16.msra.mxu0 %v3577
  %3668 = vmatprep.subr.bf16.mxu0 0
  %3669 = vmatpush1.bf16.msra.mxu0 0
  %3670 = vmatprep.subr.bf16.mxu0 0
  %3671 = vmatpush1.bf16.msra.mxu0 0
  %3672 = vmatprep.subr.bf16.mxu0 0
  %3673 = vmatpush1.bf16.msra.mxu0 0
  %3674 = vmatprep.subr.bf16.mxu0 0
  %3675 = vmatpush1.bf16.msra.mxu0 0
  %3676 = vmatprep.subr.bf16.mxu0 0
  %3677 = vmatpush1.bf16.msra.mxu0 0
  %3678 = vmatprep.subr.bf16.mxu0 0
  %3679 = vmatpush1.bf16.msra.mxu0 0
  %3680 = vmatprep.subr.bf16.mxu0 0
  %3681 = vmatpush1.bf16.msra.mxu0 0
  %3682 = vmatprep.subr.bf16.mxu0 0
  %3683 = vmatpush1.bf16.msra.mxu0 0
  %3684 = vmatprep.mubr.bf16.mxu0 0
  %3685 = vmatmul.mubr.bf16.gmra.mrb[0].mxu0 %v3288
  %v3686 = vpop.f32.mrb[0].mxu0
  %v3687 = vadd.f32 %v3445, %v3686
  %v3688 = vpop.f32.mrb[0].mxu0
  %v3689 = vadd.f32 %v3447, %v3688
  %v3690 = vpop.f32.mrb[0].mxu0
  %v3691 = vpop.f32.mrb[0].mxu0
  %3692 = vdwg.mxu0
  %v3693 = vxor.u32 %v3646, 2147483648
  %v3694 = vmul.f32 %v3693, 1.442695
  %v3695 = vpow.pop %v3694
  %v3696 = vadd.f32 %v3695, 1.0
  %v3697 = vrcp.pop %v3696
  %v3698 = vmul.f32 1.0, %v3697
  %v3699 = vxor.u32 %v3648, 2147483648
  %v3700 = vmul.f32 %v3699, 1.442695
  %v3701 = vpow.pop %v3700
  %v3702 = vadd.f32 %v3701, 1.0
  %v3703 = vrcp.pop %v3702
  %v3704 = vmul.f32 1.0, %v3703
  %v3705 = vtanh.pop %v3687
  %v3706 = vxor.u32 %v3689, 2147483648
  %v3707 = vmul.f32 %v3706, 1.442695
  %v3708 = vpow.pop %v3707
  %v3709 = vadd.f32 %v3708, 1.0
  %v3710 = vrcp.pop %v3709
  %v3711 = vmul.f32 1.0, %v3710
  %v3712 = vmul.f32 %v3704, %v2888
  %v3713 = vmul.f32 %v3698, %v3705
  %v3714 = vadd.f32 %v3712, %v3713
  %v3715 = vtanh.pop %v3714
  %v3716 = vmul.f32 %v3711, %v3715
  %v3717 = vpack.c.bf16 %v3716, %v3716
  %v3718 = vld [vmem:[%s5] sm:$0xff]
  %v3719 = vld [vmem:[%s5 + $0x8] sm:$0xff]
  %v3720 = vld [vmem:[%s5 + $0x10] sm:$0xff]
  %v3721 = vld [vmem:[%s5 + $0x18] sm:$0xff]
  %v3722 = vld [vmem:[%s5 + $0x20] sm:$0xff]
  %v3723 = vld [vmem:[%s5 + $0x28] sm:$0xff]
  %v3724 = vld [vmem:[%s5 + $0x30] sm:$0xff]
  %v3725 = vld [vmem:[%s5 + $0x38] sm:$0xff]
  %v3726 = vld [vmem:[%s2901] sm:$0xff]
  %v3727 = vld [vmem:[%s2901 + $0x8] sm:$0xff]
  %v3728 = vld [vmem:[%s2901 + $0x10] sm:$0xff]
  %v3729 = vld [vmem:[%s2901 + $0x18] sm:$0xff]
  %v3730 = vld [vmem:[%s2901 + $0x20] sm:$0xff]
  %v3731 = vld [vmem:[%s2901 + $0x28] sm:$0xff]
  %v3732 = vld [vmem:[%s2901 + $0x30] sm:$0xff]
  %v3733 = vld [vmem:[%s2901 + $0x38] sm:$0xff]
  %v3742 = vunpack.c.l.b16 %v3726
  %v3743 = vunpack.c.h.b16 %v3726
  %v3744 = vunpack.c.l.b16 %v3727
  %v3745 = vunpack.c.h.b16 %v3727
  %v3746 = vunpack.c.l.b16 %v3728
  %v3747 = vunpack.c.h.b16 %v3728
  %v3748 = vunpack.c.l.b16 %v3729
  %v3749 = vunpack.c.h.b16 %v3729
  %v3750 = vunpack.c.l.b16 %v3730
  %v3751 = vunpack.c.h.b16 %v3730
  %v3752 = vunpack.c.l.b16 %v3731
  %v3753 = vunpack.c.h.b16 %v3731
  %v3754 = vunpack.c.l.b16 %v3732
  %v3755 = vunpack.c.h.b16 %v3732
  %v3756 = vunpack.c.l.b16 %v3733
  %v3757 = vunpack.c.h.b16 %v3733
  %v3758 = vpack.c.b16 %v3746, %v3742
  %v3759 = vpack.c.b16 %v3747, %v3743
  %v3760 = vpack.c.b16 %v3748, %v3744
  %v3761 = vpack.c.b16 %v3749, %v3745
  %v3762 = vpack.c.b16 %v3754, %v3750
  %v3763 = vpack.c.b16 %v3755, %v3751
  %v3764 = vpack.c.b16 %v3756, %v3752
  %v3765 = vpack.c.b16 %v3757, %v3753
  %3774 = vmatprep.subr.bf16.mxu0 %v3759
  %3775 = vmatpush1.bf16.msra.mxu0 %v3758
  %3776 = vmatprep.subr.bf16.mxu0 %v3763
  %3777 = vmatpush1.bf16.msra.mxu0 %v3762
  %3778 = vmatprep.subr.bf16.mxu0 0
  %3779 = vmatpush1.bf16.msra.mxu0 0
  %3780 = vmatprep.subr.bf16.mxu0 0
  %3781 = vmatpush1.bf16.msra.mxu0 0
  %3782 = vmatprep.subr.bf16.mxu0 0
  %3783 = vmatpush1.bf16.msra.mxu0 0
  %3784 = vmatprep.subr.bf16.mxu0 0
  %3785 = vmatpush1.bf16.msra.mxu0 0
  %3786 = vmatprep.subr.bf16.mxu0 0
  %3787 = vmatpush1.bf16.msra.mxu0 0
  %3788 = vmatprep.subr.bf16.mxu0 0
  %3789 = vmatpush1.bf16.msra.mxu0 0
  %3790 = vmatprep.subr.bf16.mxu0 0
  %3791 = vmatpush1.bf16.msra.mxu0 0
  %3792 = vmatprep.subr.bf16.mxu0 0
  %3793 = vmatpush1.bf16.msra.mxu0 0
  %3794 = vmatprep.subr.bf16.mxu0 0
  %3795 = vmatpush1.bf16.msra.mxu0 0
  %3796 = vmatprep.subr.bf16.mxu0 0
  %3797 = vmatpush1.bf16.msra.mxu0 0
  %3798 = vmatprep.subr.bf16.mxu0 0
  %3799 = vmatpush1.bf16.msra.mxu0 0
  %3800 = vmatprep.subr.bf16.mxu0 0
  %3801 = vmatpush1.bf16.msra.mxu0 0
  %3802 = vmatprep.subr.bf16.mxu0 0
  %3803 = vmatpush1.bf16.msra.mxu0 0
  %3804 = vmatprep.subr.bf16.mxu0 0
  %3805 = vmatpush1.bf16.msra.mxu0 0
  %3806 = vmatprep.mubr.bf16.mxu0 0
  %3807 = vmatmul.mubr.bf16.gmra.mrb[0].mxu0 %v3235
  %v3808 = vpop.f32.mrb[0].mxu0
  %v3809 = vadd.f32 0.0, %v3808
  %v3810 = vpop.f32.mrb[0].mxu0
  %v3811 = vadd.f32 0.0, %v3810
  %v3812 = vpop.f32.mrb[0].mxu0
  %v3813 = vpop.f32.mrb[0].mxu0
  %3814 = vdwg.mxu0
  %3815 = vmatprep.subr.bf16.mxu0 %v3761
  %3816 = vmatpush1.bf16.msra.mxu0 %v3760
  %3817 = vmatprep.subr.bf16.mxu0 %v3765
  %3818 = vmatpush1.bf16.msra.mxu0 %v3764
  %3819 = vmatprep.subr.bf16.mxu0 0
  %3820 = vmatpush1.bf16.msra.mxu0 0
  %3821 = vmatprep.subr.bf16.mxu0 0
  %3822 = vmatpush1.bf16.msra.mxu0 0
  %3823 = vmatprep.subr.bf16.mxu0 0
  %3824 = vmatpush1.bf16.msra.mxu0 0
  %3825 = vmatprep.subr.bf16.mxu0 0
  %3826 = vmatpush1.bf16.msra.mxu0 0
  %3827 = vmatprep.subr.bf16.mxu0 0
  %3828 = vmatpush1.bf16.msra.mxu0 0
  %3829 = vmatprep.subr.bf16.mxu0 0
  %3830 = vmatpush1.bf16.msra.mxu0 0
  %3831 = vmatprep.subr.bf16.mxu0 0
  %3832 = vmatpush1.bf16.msra.mxu0 0
  %3833 = vmatprep.subr.bf16.mxu0 0
  %3834 = vmatpush1.bf16.msra.mxu0 0
  %3835 = vmatprep.subr.bf16.mxu0 0
  %3836 = vmatpush1.bf16.msra.mxu0 0
  %3837 = vmatprep.subr.bf16.mxu0 0
  %3838 = vmatpush1.bf16.msra.mxu0 0
  %3839 = vmatprep.subr.bf16.mxu0 0
  %3840 = vmatpush1.bf16.msra.mxu0 0
  %3841 = vmatprep.subr.bf16.mxu0 0
  %3842 = vmatpush1.bf16.msra.mxu0 0
  %3843 = vmatprep.subr.bf16.mxu0 0
  %3844 = vmatpush1.bf16.msra.mxu0 0
  %3845 = vmatprep.subr.bf16.mxu0 0
  %3846 = vmatpush1.bf16.msra.mxu0 0
  %3847 = vmatprep.mubr.bf16.mxu0 0
  %3848 = vmatmul.mubr.bf16.gmra.mrb[0].mxu0 %v3235
  %v3849 = vpop.f32.mrb[0].mxu0
  %v3850 = vadd.f32 0.0, %v3849
  %v3851 = vpop.f32.mrb[0].mxu0
  %v3852 = vadd.f32 0.0, %v3851
  %v3853 = vpop.f32.mrb[0].mxu0
  %v3854 = vpop.f32.mrb[0].mxu0
  %3855 = vdwg.mxu0
  %v3864 = vunpack.c.l.b16 %v3718
  %v3865 = vunpack.c.h.b16 %v3718
  %v3866 = vunpack.c.l.b16 %v3719
  %v3867 = vunpack.c.h.b16 %v3719
  %v3868 = vunpack.c.l.b16 %v3720
  %v3869 = vunpack.c.h.b16 %v3720
  %v3870 = vunpack.c.l.b16 %v3721
  %v3871 = vunpack.c.h.b16 %v3721
  %v3872 = vunpack.c.l.b16 %v3722
  %v3873 = vunpack.c.h.b16 %v3722
  %v3874 = vunpack.c.l.b16 %v3723
  %v3875 = vunpack.c.h.b16 %v3723
  %v3876 = vunpack.c.l.b16 %v3724
  %v3877 = vunpack.c.h.b16 %v3724
  %v3878 = vunpack.c.l.b16 %v3725
  %v3879 = vunpack.c.h.b16 %v3725
  %v3880 = vpack.c.b16 %v3868, %v3864
  %v3881 = vpack.c.b16 %v3869, %v3865
  %v3882 = vpack.c.b16 %v3870, %v3866
  %v3883 = vpack.c.b16 %v3871, %v3867
  %v3884 = vpack.c.b16 %v3876, %v3872
  %v3885 = vpack.c.b16 %v3877, %v3873
  %v3886 = vpack.c.b16 %v3878, %v3874
  %v3887 = vpack.c.b16 %v3879, %v3875
  %v3897 = vsel %vm91, %v3717, 0
  %3899 = vmatprep.subr.bf16.mxu0 %v3881
  %3900 = vmatpush1.bf16.msra.mxu0 %v3880
  %3901 = vmatprep.subr.bf16.mxu0 %v3885
  %3902 = vmatpush1.bf16.msra.mxu0 %v3884
  %3903 = vmatprep.subr.bf16.mxu0 0
  %3904 = vmatpush1.bf16.msra.mxu0 0
  %3905 = vmatprep.subr.bf16.mxu0 0
  %3906 = vmatpush1.bf16.msra.mxu0 0
  %3907 = vmatprep.subr.bf16.mxu0 0
  %3908 = vmatpush1.bf16.msra.mxu0 0
  %3909 = vmatprep.subr.bf16.mxu0 0
  %3910 = vmatpush1.bf16.msra.mxu0 0
  %3911 = vmatprep.subr.bf16.mxu0 0
  %3912 = vmatpush1.bf16.msra.mxu0 0
  %3913 = vmatprep.subr.bf16.mxu0 0
  %3914 = vmatpush1.bf16.msra.mxu0 0
  %3915 = vmatprep.subr.bf16.mxu0 0
  %3916 = vmatpush1.bf16.msra.mxu0 0
  %3917 = vmatprep.subr.bf16.mxu0 0
  %3918 = vmatpush1.bf16.msra.mxu0 0
  %3919 = vmatprep.subr.bf16.mxu0 0
  %3920 = vmatpush1.bf16.msra.mxu0 0
  %3921 = vmatprep.subr.bf16.mxu0 0
  %3922 = vmatpush1.bf16.msra.mxu0 0
  %3923 = vmatprep.subr.bf16.mxu0 0
  %3924 = vmatpush1.bf16.msra.mxu0 0
  %3925 = vmatprep.subr.bf16.mxu0 0
  %3926 = vmatpush1.bf16.msra.mxu0 0
  %3927 = vmatprep.subr.bf16.mxu0 0
  %3928 = vmatpush1.bf16.msra.mxu0 0
  %3929 = vmatprep.subr.bf16.mxu0 0
  %3930 = vmatpush1.bf16.msra.mxu0 0
  %3931 = vmatprep.mubr.bf16.mxu0 0
  %3932 = vmatmul.mubr.bf16.gmra.mrb[0].mxu0 %v3897
  %v3933 = vpop.f32.mrb[0].mxu0
  %v3934 = vadd.f32 %v3809, %v3933
  %v3935 = vpop.f32.mrb[0].mxu0
  %v3936 = vadd.f32 %v3811, %v3935
  %v3937 = vpop.f32.mrb[0].mxu0
  %v3938 = vpop.f32.mrb[0].mxu0
  %3939 = vdwg.mxu0
  %3940 = vmatprep.subr.bf16.mxu0 %v3883
  %3941 = vmatpush1.bf16.msra.mxu0 %v3882
  %3942 = vmatprep.subr.bf16.mxu0 %v3887
  %3943 = vmatpush1.bf16.msra.mxu0 %v3886
  %3944 = vmatprep.subr.bf16.mxu0 0
  %3945 = vmatpush1.bf16.msra.mxu0 0
  %3946 = vmatprep.subr.bf16.mxu0 0
  %3947 = vmatpush1.bf16.msra.mxu0 0
  %3948 = vmatprep.subr.bf16.mxu0 0
  %3949 = vmatpush1.bf16.msra.mxu0 0
  %3950 = vmatprep.subr.bf16.mxu0 0
  %3951 = vmatpush1.bf16.msra.mxu0 0
  %3952 = vmatprep.subr.bf16.mxu0 0
  %3953 = vmatpush1.bf16.msra.mxu0 0
  %3954 = vmatprep.subr.bf16.mxu0 0
  %3955 = vmatpush1.bf16.msra.mxu0 0
  %3956 = vmatprep.subr.bf16.mxu0 0
  %3957 = vmatpush1.bf16.msra.mxu0 0
  %3958 = vmatprep.subr.bf16.mxu0 0
  %3959 = vmatpush1.bf16.msra.mxu0 0
  %3960 = vmatprep.subr.bf16.mxu0 0
  %3961 = vmatpush1.bf16.msra.mxu0 0
  %3962 = vmatprep.subr.bf16.mxu0 0
  %3963 = vmatpush1.bf16.msra.mxu0 0
  %3964 = vmatprep.subr.bf16.mxu0 0
  %3965 = vmatpush1.bf16.msra.mxu0 0
  %3966 = vmatprep.subr.bf16.mxu0 0
  %3967 = vmatpush1.bf16.msra.mxu0 0
  %3968 = vmatprep.subr.bf16.mxu0 0
  %3969 = vmatpush1.bf16.msra.mxu0 0
  %3970 = vmatprep.subr.bf16.mxu0 0
  %3971 = vmatpush1.bf16.msra.mxu0 0
  %3972 = vmatprep.mubr.bf16.mxu0 0
  %3973 = vmatmul.mubr.bf16.gmra.mrb[0].mxu0 %v3897
  %v3974 = vpop.f32.mrb[0].mxu0
  %v3975 = vadd.f32 %v3850, %v3974
  %v3976 = vpop.f32.mrb[0].mxu0
  %v3977 = vadd.f32 %v3852, %v3976
  %v3978 = vpop.f32.mrb[0].mxu0
  %v3979 = vpop.f32.mrb[0].mxu0
  %3980 = vdwg.mxu0
  %v3981 = vld [vmem:[%s6] sm:$0xf]
  %v3983 = vlaneseq
  %v3984 = vshrl.u32 %v3983, 7
  %v3985 = vsub.s32 0, %v3984
  %v3986 = vrot.slane %v3981, %v3985
  %v3987 = vlaneseq
  %v3988 = vshrl.u32 %v3987, 7
  %v3989 = vsub.s32 1, %v3988
  %v3990 = vrot.slane %v3981, %v3989
  %v3991 = vlaneseq
  %v3992 = vshrl.u32 %v3991, 7
  %v3993 = vsub.s32 2, %v3992
  %v3994 = vrot.slane %v3981, %v3993
  %v3995 = vlaneseq
  %v3996 = vshrl.u32 %v3995, 7
  %v3997 = vsub.s32 3, %v3996
  %v3998 = vrot.slane %v3981, %v3997
  %v4003 = vadd.f32 %v3934, %v3986
  %v4004 = vadd.f32 %v3936, %v3990
  %v4005 = vadd.f32 %v3975, %v3994
  %v4006 = vadd.f32 %v3977, %v3998
  %v4007 = vxor.u32 %v4003, 2147483648
  %v4008 = vmul.f32 %v4007, 1.442695
  %v4009 = vpow.pop %v4008
  %v4010 = vadd.f32 %v4009, 1.0
  %v4011 = vrcp.pop %v4010
  %v4012 = vmul.f32 1.0, %v4011
  %v4013 = vxor.u32 %v4004, 2147483648
  %v4014 = vmul.f32 %v4013, 1.442695
  %v4015 = vpow.pop %v4014
  %v4016 = vadd.f32 %v4015, 1.0
  %v4017 = vrcp.pop %v4016
  %v4018 = vmul.f32 1.0, %v4017
  %v4019 = vtanh.pop %v4005
  %v4020 = vxor.u32 %v4006, 2147483648
  %v4021 = vmul.f32 %v4020, 1.442695
  %v4022 = vpow.pop %v4021
  %v4023 = vadd.f32 %v4022, 1.0
  %v4024 = vrcp.pop %v4023
  %v4025 = vmul.f32 1.0, %v4024
  %v4026 = vmul.f32 %v4018, %v3207
  %v4027 = vmul.f32 %v4012, %v4019
  %v4028 = vadd.f32 %v4026, %v4027
  %v4029 = vtanh.pop %v4028
  %v4030 = vmul.f32 %v4025, %v4029
  %v4031 = vpack.c.bf16 %v4030, %v4030
  %v4032 = vld [vmem:[%s8] sm:$0xf]
  %v4033 = vld [vmem:[%s8 + $0x4] sm:$0xf]
  %v4034 = vld [vmem:[%s8 + $0x8] sm:$0xf]
  %v4035 = vld [vmem:[%s8 + $0xc] sm:$0xf]
  %v4036 = vld [vmem:[%s9] sm:$0x1]
  %v4038 = vlaneseq
  %v4039 = vshrl.u32 %v4038, 7
  %v4040 = vsub.s32 0, %v4039
  %v4041 = vrot.slane %v4036, %v4040
  %v4047 = vunpack.c.l.b16 %v4032
  %v4048 = vunpack.c.l.b16 %v4033
  %v4049 = vunpack.c.l.b16 %v4034
  %v4050 = vunpack.c.l.b16 %v4035
  %v4051 = vpack.c.b16 %v4048, %v4047
  %v4052 = vpack.c.b16 %v4050, %v4049
  %v4056 = vsel %vm91, %v4031, 0
  %4058 = vmatprep.subr.bf16.mxu0 0
  %4059 = vmatpush1.bf16.msra.mxu0 %v4051
  %4060 = vmatprep.subr.bf16.mxu0 0
  %4061 = vmatpush1.bf16.msra.mxu0 %v4052
  %4062 = vmatprep.subr.bf16.mxu0 0
  %4063 = vmatpush1.bf16.msra.mxu0 0
  %4064 = vmatprep.subr.bf16.mxu0 0
  %4065 = vmatpush1.bf16.msra.mxu0 0
  %4066 = vmatprep.subr.bf16.mxu0 0
  %4067 = vmatpush1.bf16.msra.mxu0 0
  %4068 = vmatprep.subr.bf16.mxu0 0
  %4069 = vmatpush1.bf16.msra.mxu0 0
  %4070 = vmatprep.subr.bf16.mxu0 0
  %4071 = vmatpush1.bf16.msra.mxu0 0
  %4072 = vmatprep.subr.bf16.mxu0 0
  %4073 = vmatpush1.bf16.msra.mxu0 0
  %4074 = vmatprep.subr.bf16.mxu0 0
  %4075 = vmatpush1.bf16.msra.mxu0 0
  %4076 = vmatprep.subr.bf16.mxu0 0
  %4077 = vmatpush1.bf16.msra.mxu0 0
  %4078 = vmatprep.subr.bf16.mxu0 0
  %4079 = vmatpush1.bf16.msra.mxu0 0
  %4080 = vmatprep.subr.bf16.mxu0 0
  %4081 = vmatpush1.bf16.msra.mxu0 0
  %4082 = vmatprep.subr.bf16.mxu0 0
  %4083 = vmatpush1.bf16.msra.mxu0 0
  %4084 = vmatprep.subr.bf16.mxu0 0
  %4085 = vmatpush1.bf16.msra.mxu0 0
  %4086 = vmatprep.subr.bf16.mxu0 0
  %4087 = vmatpush1.bf16.msra.mxu0 0
  %4088 = vmatprep.subr.bf16.mxu0 0
  %4089 = vmatpush1.bf16.msra.mxu0 0
  %4090 = vmatprep.mubr.bf16.mxu0 0
  %4091 = vmatmul.mubr.bf16.gmra.mrb[0].mxu0 %v4056
  %v4092 = vpop.f32.mrb[0].mxu0
  %v4093 = vadd.f32 %v4041, %v4092
  %v4094 = vpop.f32.mrb[0].mxu0
  %v4095 = vpop.f32.mrb[0].mxu0
  %v4096 = vpop.f32.mrb[0].mxu0
  %4097 = vdwg.mxu0
  %s4098 = scalar_lea.vmem %s11, 16
  %4099 = vst [vmem:[%s4098] sm:$0xff] %v4093
  %4100 = vmax.xlane.f32.xlu0 %v4093
  %v4101 = vpop.xlane.xlu0 %4100
  %vm4102 = vcmp.ge.f32.partialorder %v4093, %v4101
  %v4103 = vsel %vm4102, %v2728, 128.0
  %4104 = vmin.xlane.f32.xlu0 %v4103
  %v4105 = vpop.xlane.xlu0 %4104
  %vm4106 = vcmp.eq.f32.partialorder %v2728, %v4105
  %v4107 = vsel %vm4106, 1, 0
  %v4108 = vcvt.s32.f32 %v4107
  %v4109 = vpack.c.bf16 %v4108, %v4108
  %v4110 = vld [vmem:[%s7] sm:$0xff]
  %v4111 = vld [vmem:[%s7 + $0x8] sm:$0xff]
  %v4112 = vld [vmem:[%s7 + $0x10] sm:$0xff]
  %v4113 = vld [vmem:[%s7 + $0x18] sm:$0xff]
  %v4114 = vld [vmem:[%s7 + $0x20] sm:$0xff]
  %v4115 = vld [vmem:[%s7 + $0x28] sm:$0xff]
  %v4116 = vld [vmem:[%s7 + $0x30] sm:$0xff]
  %v4117 = vld [vmem:[%s7 + $0x38] sm:$0xff]
  %v4118 = vld [vmem:[%s7 + $0x40] sm:$0xff]
  %v4119 = vld [vmem:[%s7 + $0x48] sm:$0xff]
  %v4120 = vld [vmem:[%s7 + $0x50] sm:$0xff]
  %v4121 = vld [vmem:[%s7 + $0x58] sm:$0xff]
  %v4122 = vld [vmem:[%s7 + $0x60] sm:$0xff]
  %v4123 = vld [vmem:[%s7 + $0x68] sm:$0xff]
  %v4124 = vld [vmem:[%s7 + $0x70] sm:$0xff]
  %v4125 = vld [vmem:[%s7 + $0x78] sm:$0xff]
  %v4126 = vld [vmem:[%s7 + $0x80] sm:$0xff]
  %v4127 = vld [vmem:[%s7 + $0x88] sm:$0xff]
  %v4128 = vld [vmem:[%s7 + $0x90] sm:$0xff]
  %v4129 = vld [vmem:[%s7 + $0x98] sm:$0xff]
  %v4130 = vld [vmem:[%s7 + $0xa0] sm:$0xff]
  %v4131 = vld [vmem:[%s7 + $0xa8] sm:$0xff]
  %v4132 = vld [vmem:[%s7 + $0xb0] sm:$0xff]
  %v4133 = vld [vmem:[%s7 + $0xb8] sm:$0xff]
  %v4134 = vld [vmem:[%s7 + $0xc0] sm:$0xff]
  %v4135 = vld [vmem:[%s7 + $0xc8] sm:$0xff]
  %v4136 = vld [vmem:[%s7 + $0xd0] sm:$0xff]
  %v4137 = vld [vmem:[%s7 + $0xd8] sm:$0xff]
  %v4138 = vld [vmem:[%s7 + $0xe0] sm:$0xff]
  %v4139 = vld [vmem:[%s7 + $0xe8] sm:$0xff]
  %v4140 = vld [vmem:[%s7 + $0xf0] sm:$0xff]
  %v4141 = vld [vmem:[%s7 + $0xf8] sm:$0xff]
  %v4142 = vld [vmem:[%s4] sm:$0xff]
  %v4143 = vld [vmem:[%s4 + $0x8] sm:$0xff]
  %v4144 = vld [vmem:[%s4 + $0x10] sm:$0xff]
  %v4145 = vld [vmem:[%s4 + $0x18] sm:$0xff]
  %v4146 = vld [vmem:[%s4 + $0x20] sm:$0xff]
  %v4147 = vld [vmem:[%s4 + $0x28] sm:$0xff]
  %v4148 = vld [vmem:[%s4 + $0x30] sm:$0xff]
  %v4149 = vld [vmem:[%s4 + $0x38] sm:$0xff]
  %v4158 = vunpack.c.l.b16 %v4142
  %v4159 = vunpack.c.h.b16 %v4142
  %v4160 = vunpack.c.l.b16 %v4143
  %v4161 = vunpack.c.h.b16 %v4143
  %v4162 = vunpack.c.l.b16 %v4144
  %v4163 = vunpack.c.h.b16 %v4144
  %v4164 = vunpack.c.l.b16 %v4145
  %v4165 = vunpack.c.h.b16 %v4145
  %v4166 = vunpack.c.l.b16 %v4146
  %v4167 = vunpack.c.h.b16 %v4146
  %v4168 = vunpack.c.l.b16 %v4147
  %v4169 = vunpack.c.h.b16 %v4147
  %v4170 = vunpack.c.l.b16 %v4148
  %v4171 = vunpack.c.h.b16 %v4148
  %v4172 = vunpack.c.l.b16 %v4149
  %v4173 = vunpack.c.h.b16 %v4149
  %v4174 = vpack.c.b16 %v4162, %v4158
  %v4175 = vpack.c.b16 %v4163, %v4159
  %v4176 = vpack.c.b16 %v4164, %v4160
  %v4177 = vpack.c.b16 %v4165, %v4161
  %v4178 = vpack.c.b16 %v4170, %v4166
  %v4179 = vpack.c.b16 %v4171, %v4167
  %v4180 = vpack.c.b16 %v4172, %v4168
  %v4181 = vpack.c.b16 %v4173, %v4169
  %4190 = vmatprep.subr.bf16.mxu0 %v4175
  %4191 = vmatpush1.bf16.msra.mxu0 %v4174
  %4192 = vmatprep.subr.bf16.mxu0 %v4179
  %4193 = vmatpush1.bf16.msra.mxu0 %v4178
  %4194 = vmatprep.subr.bf16.mxu0 0
  %4195 = vmatpush1.bf16.msra.mxu0 0
  %4196 = vmatprep.subr.bf16.mxu0 0
  %4197 = vmatpush1.bf16.msra.mxu0 0
  %4198 = vmatprep.subr.bf16.mxu0 0
  %4199 = vmatpush1.bf16.msra.mxu0 0
  %4200 = vmatprep.subr.bf16.mxu0 0
  %4201 = vmatpush1.bf16.msra.mxu0 0
  %4202 = vmatprep.subr.bf16.mxu0 0
  %4203 = vmatpush1.bf16.msra.mxu0 0
  %4204 = vmatprep.subr.bf16.mxu0 0
  %4205 = vmatpush1.bf16.msra.mxu0 0
  %4206 = vmatprep.subr.bf16.mxu0 0
  %4207 = vmatpush1.bf16.msra.mxu0 0
  %4208 = vmatprep.subr.bf16.mxu0 0
  %4209 = vmatpush1.bf16.msra.mxu0 0
  %4210 = vmatprep.subr.bf16.mxu0 0
  %4211 = vmatpush1.bf16.msra.mxu0 0
  %4212 = vmatprep.subr.bf16.mxu0 0
  %4213 = vmatpush1.bf16.msra.mxu0 0
  %4214 = vmatprep.subr.bf16.mxu0 0
  %4215 = vmatpush1.bf16.msra.mxu0 0
  %4216 = vmatprep.subr.bf16.mxu0 0
  %4217 = vmatpush1.bf16.msra.mxu0 0
  %4218 = vmatprep.subr.bf16.mxu0 0
  %4219 = vmatpush1.bf16.msra.mxu0 0
  %4220 = vmatprep.subr.bf16.mxu0 0
  %4221 = vmatpush1.bf16.msra.mxu0 0
  %4222 = vmatprep.mubr.bf16.mxu0 0
  %4223 = vmatmul.mubr.bf16.gmra.mrb[0].mxu0 %v3897
  %v4224 = vpop.f32.mrb[0].mxu0
  %v4225 = vadd.f32 0.0, %v4224
  %v4226 = vpop.f32.mrb[0].mxu0
  %v4227 = vadd.f32 0.0, %v4226
  %v4228 = vpop.f32.mrb[0].mxu0
  %v4229 = vpop.f32.mrb[0].mxu0
  %4230 = vdwg.mxu0
  %4231 = vmatprep.subr.bf16.mxu0 %v4177
  %4232 = vmatpush1.bf16.msra.mxu0 %v4176
  %4233 = vmatprep.subr.bf16.mxu0 %v4181
  %4234 = vmatpush1.bf16.msra.mxu0 %v4180
  %4235 = vmatprep.subr.bf16.mxu0 0
  %4236 = vmatpush1.bf16.msra.mxu0 0
  %4237 = vmatprep.subr.bf16.mxu0 0
  %4238 = vmatpush1.bf16.msra.mxu0 0
  %4239 = vmatprep.subr.bf16.mxu0 0
  %4240 = vmatpush1.bf16.msra.mxu0 0
  %4241 = vmatprep.subr.bf16.mxu0 0
  %4242 = vmatpush1.bf16.msra.mxu0 0
  %4243 = vmatprep.subr.bf16.mxu0 0
  %4244 = vmatpush1.bf16.msra.mxu0 0
  %4245 = vmatprep.subr.bf16.mxu0 0
  %4246 = vmatpush1.bf16.msra.mxu0 0
  %4247 = vmatprep.subr.bf16.mxu0 0
  %4248 = vmatpush1.bf16.msra.mxu0 0
  %4249 = vmatprep.subr.bf16.mxu0 0
  %4250 = vmatpush1.bf16.msra.mxu0 0
  %4251 = vmatprep.subr.bf16.mxu0 0
  %4252 = vmatpush1.bf16.msra.mxu0 0
  %4253 = vmatprep.subr.bf16.mxu0 0
  %4254 = vmatpush1.bf16.msra.mxu0 0
  %4255 = vmatprep.subr.bf16.mxu0 0
  %4256 = vmatpush1.bf16.msra.mxu0 0
  %4257 = vmatprep.subr.bf16.mxu0 0
  %4258 = vmatpush1.bf16.msra.mxu0 0
  %4259 = vmatprep.subr.bf16.mxu0 0
  %4260 = vmatpush1.bf16.msra.mxu0 0
  %4261 = vmatprep.subr.bf16.mxu0 0
  %4262 = vmatpush1.bf16.msra.mxu0 0
  %4263 = vmatprep.mubr.bf16.mxu0 0
  %4264 = vmatmul.mubr.bf16.gmra.mrb[0].mxu0 %v3897
  %v4265 = vpop.f32.mrb[0].mxu0
  %v4266 = vadd.f32 0.0, %v4265
  %v4267 = vpop.f32.mrb[0].mxu0
  %v4268 = vadd.f32 0.0, %v4267
  %v4269 = vpop.f32.mrb[0].mxu0
  %v4270 = vpop.f32.mrb[0].mxu0
  %4271 = vdwg.mxu0
  %v4304 = vunpack.c.l.b16 %v4110
  %v4305 = vunpack.c.h.b16 %v4110
  %v4306 = vunpack.c.l.b16 %v4111
  %v4307 = vunpack.c.h.b16 %v4111
  %v4308 = vunpack.c.l.b16 %v4112
  %v4309 = vunpack.c.h.b16 %v4112
  %v4310 = vunpack.c.l.b16 %v4113
  %v4311 = vunpack.c.h.b16 %v4113
  %v4312 = vunpack.c.l.b16 %v4114
  %v4313 = vunpack.c.h.b16 %v4114
  %v4314 = vunpack.c.l.b16 %v4115
  %v4315 = vunpack.c.h.b16 %v4115
  %v4316 = vunpack.c.l.b16 %v4116
  %v4317 = vunpack.c.h.b16 %v4116
  %v4318 = vunpack.c.l.b16 %v4117
  %v4319 = vunpack.c.h.b16 %v4117
  %v4320 = vunpack.c.l.b16 %v4118
  %v4321 = vunpack.c.h.b16 %v4118
  %v4322 = vunpack.c.l.b16 %v4119
  %v4323 = vunpack.c.h.b16 %v4119
  %v4324 = vunpack.c.l.b16 %v4120
  %v4325 = vunpack.c.h.b16 %v4120
  %v4326 = vunpack.c.l.b16 %v4121
  %v4327 = vunpack.c.h.b16 %v4121
  %v4328 = vunpack.c.l.b16 %v4122
  %v4329 = vunpack.c.h.b16 %v4122
  %v4330 = vunpack.c.l.b16 %v4123
  %v4331 = vunpack.c.h.b16 %v4123
  %v4332 = vunpack.c.l.b16 %v4124
  %v4333 = vunpack.c.h.b16 %v4124
  %v4334 = vunpack.c.l.b16 %v4125
  %v4335 = vunpack.c.h.b16 %v4125
  %v4336 = vunpack.c.l.b16 %v4126
  %v4337 = vunpack.c.h.b16 %v4126
  %v4338 = vunpack.c.l.b16 %v4127
  %v4339 = vunpack.c.h.b16 %v4127
  %v4340 = vunpack.c.l.b16 %v4128
  %v4341 = vunpack.c.h.b16 %v4128
  %v4342 = vunpack.c.l.b16 %v4129
  %v4343 = vunpack.c.h.b16 %v4129
  %v4344 = vunpack.c.l.b16 %v4130
  %v4345 = vunpack.c.h.b16 %v4130
  %v4346 = vunpack.c.l.b16 %v4131
  %v4347 = vunpack.c.h.b16 %v4131
  %v4348 = vunpack.c.l.b16 %v4132
  %v4349 = vunpack.c.h.b16 %v4132
  %v4350 = vunpack.c.l.b16 %v4133
  %v4351 = vunpack.c.h.b16 %v4133
  %v4352 = vunpack.c.l.b16 %v4134
  %v4353 = vunpack.c.h.b16 %v4134
  %v4354 = vunpack.c.l.b16 %v4135
  %v4355 = vunpack.c.h.b16 %v4135
  %v4356 = vunpack.c.l.b16 %v4136
  %v4357 = vunpack.c.h.b16 %v4136
  %v4358 = vunpack.c.l.b16 %v4137
  %v4359 = vunpack.c.h.b16 %v4137
  %v4360 = vunpack.c.l.b16 %v4138
  %v4361 = vunpack.c.h.b16 %v4138
  %v4362 = vunpack.c.l.b16 %v4139
  %v4363 = vunpack.c.h.b16 %v4139
  %v4364 = vunpack.c.l.b16 %v4140
  %v4365 = vunpack.c.h.b16 %v4140
  %v4366 = vunpack.c.l.b16 %v4141
  %v4367 = vunpack.c.h.b16 %v4141
  %v4368 = vpack.c.b16 %v4308, %v4304
  %v4369 = vpack.c.b16 %v4309, %v4305
  %v4370 = vpack.c.b16 %v4310, %v4306
  %v4371 = vpack.c.b16 %v4311, %v4307
  %v4372 = vpack.c.b16 %v4316, %v4312
  %v4373 = vpack.c.b16 %v4317, %v4313
  %v4374 = vpack.c.b16 %v4318, %v4314
  %v4375 = vpack.c.b16 %v4319, %v4315
  %v4376 = vpack.c.b16 %v4324, %v4320
  %v4377 = vpack.c.b16 %v4325, %v4321
  %v4378 = vpack.c.b16 %v4326, %v4322
  %v4379 = vpack.c.b16 %v4327, %v4323
  %v4380 = vpack.c.b16 %v4332, %v4328
  %v4381 = vpack.c.b16 %v4333, %v4329
  %v4382 = vpack.c.b16 %v4334, %v4330
  %v4383 = vpack.c.b16 %v4335, %v4331
  %v4384 = vpack.c.b16 %v4340, %v4336
  %v4385 = vpack.c.b16 %v4341, %v4337
  %v4386 = vpack.c.b16 %v4342, %v4338
  %v4387 = vpack.c.b16 %v4343, %v4339
  %v4388 = vpack.c.b16 %v4348, %v4344
  %v4389 = vpack.c.b16 %v4349, %v4345
  %v4390 = vpack.c.b16 %v4350, %v4346
  %v4391 = vpack.c.b16 %v4351, %v4347
  %v4392 = vpack.c.b16 %v4356, %v4352
  %v4393 = vpack.c.b16 %v4357, %v4353
  %v4394 = vpack.c.b16 %v4358, %v4354
  %v4395 = vpack.c.b16 %v4359, %v4355
  %v4396 = vpack.c.b16 %v4364, %v4360
  %v4397 = vpack.c.b16 %v4365, %v4361
  %v4398 = vpack.c.b16 %v4366, %v4362
  %v4399 = vpack.c.b16 %v4367, %v4363
  %4432 = vmatprep.subr.bf16.mxu0 %v4369
  %4433 = vmatpush1.bf16.msra.mxu0 %v4368
  %4434 = vmatprep.subr.bf16.mxu0 %v4373
  %4435 = vmatpush1.bf16.msra.mxu0 %v4372
  %4436 = vmatprep.subr.bf16.mxu0 %v4377
  %4437 = vmatpush1.bf16.msra.mxu0 %v4376
  %4438 = vmatprep.subr.bf16.mxu0 %v4381
  %4439 = vmatpush1.bf16.msra.mxu0 %v4380
  %4440 = vmatprep.subr.bf16.mxu0 %v4385
  %4441 = vmatpush1.bf16.msra.mxu0 %v4384
  %4442 = vmatprep.subr.bf16.mxu0 %v4389
  %4443 = vmatpush1.bf16.msra.mxu0 %v4388
  %4444 = vmatprep.subr.bf16.mxu0 %v4393
  %4445 = vmatpush1.bf16.msra.mxu0 %v4392
  %4446 = vmatprep.subr.bf16.mxu0 %v4397
  %4447 = vmatpush1.bf16.msra.mxu0 %v4396
  %4448 = vmatprep.subr.bf16.mxu0 0
  %4449 = vmatpush1.bf16.msra.mxu0 0
  %4450 = vmatprep.subr.bf16.mxu0 0
  %4451 = vmatpush1.bf16.msra.mxu0 0
  %4452 = vmatprep.subr.bf16.mxu0 0
  %4453 = vmatpush1.bf16.msra.mxu0 0
  %4454 = vmatprep.subr.bf16.mxu0 0
  %4455 = vmatpush1.bf16.msra.mxu0 0
  %4456 = vmatprep.subr.bf16.mxu0 0
  %4457 = vmatpush1.bf16.msra.mxu0 0
  %4458 = vmatprep.subr.bf16.mxu0 0
  %4459 = vmatpush1.bf16.msra.mxu0 0
  %4460 = vmatprep.subr.bf16.mxu0 0
  %4461 = vmatpush1.bf16.msra.mxu0 0
  %4462 = vmatprep.subr.bf16.mxu0 0
  %4463 = vmatpush1.bf16.msra.mxu0 0
  %4464 = vmatprep.mubr.bf16.mxu0 0
  %4465 = vmatmul.mubr.bf16.gmra.mrb[0].mxu0 %v4109
  %v4466 = vpop.f32.mrb[0].mxu0
  %v4467 = vadd.f32 %v4225, %v4466
  %v4468 = vpop.f32.mrb[0].mxu0
  %v4469 = vadd.f32 %v4227, %v4468
  %v4470 = vpop.f32.mrb[0].mxu0
  %v4471 = vpop.f32.mrb[0].mxu0
  %4472 = vdwg.mxu0
  %4473 = vmatprep.subr.bf16.mxu0 %v4371
  %4474 = vmatpush1.bf16.msra.mxu0 %v4370
  %4475 = vmatprep.subr.bf16.mxu0 %v4375
  %4476 = vmatpush1.bf16.msra.mxu0 %v4374
  %4477 = vmatprep.subr.bf16.mxu0 %v4379
  %4478 = vmatpush1.bf16.msra.mxu0 %v4378
  %4479 = vmatprep.subr.bf16.mxu0 %v4383
  %4480 = vmatpush1.bf16.msra.mxu0 %v4382
  %4481 = vmatprep.subr.bf16.mxu0 %v4387
  %4482 = vmatpush1.bf16.msra.mxu0 %v4386
  %4483 = vmatprep.subr.bf16.mxu0 %v4391
  %4484 = vmatpush1.bf16.msra.mxu0 %v4390
  %4485 = vmatprep.subr.bf16.mxu0 %v4395
  %4486 = vmatpush1.bf16.msra.mxu0 %v4394
  %4487 = vmatprep.subr.bf16.mxu0 %v4399
  %4488 = vmatpush1.bf16.msra.mxu0 %v4398
  %4489 = vmatprep.subr.bf16.mxu0 0
  %4490 = vmatpush1.bf16.msra.mxu0 0
  %4491 = vmatprep.subr.bf16.mxu0 0
  %4492 = vmatpush1.bf16.msra.mxu0 0
  %4493 = vmatprep.subr.bf16.mxu0 0
  %4494 = vmatpush1.bf16.msra.mxu0 0
  %4495 = vmatprep.subr.bf16.mxu0 0
  %4496 = vmatpush1.bf16.msra.mxu0 0
  %4497 = vmatprep.subr.bf16.mxu0 0
  %4498 = vmatpush1.bf16.msra.mxu0 0
  %4499 = vmatprep.subr.bf16.mxu0 0
  %4500 = vmatpush1.bf16.msra.mxu0 0
  %4501 = vmatprep.subr.bf16.mxu0 0
  %4502 = vmatpush1.bf16.msra.mxu0 0
  %4503 = vmatprep.subr.bf16.mxu0 0
  %4504 = vmatpush1.bf16.msra.mxu0 0
  %4505 = vmatprep.mubr.bf16.mxu0 0
  %4506 = vmatmul.mubr.bf16.gmra.mrb[0].mxu0 %v4109
  %v4507 = vpop.f32.mrb[0].mxu0
  %v4508 = vadd.f32 %v4266, %v4507
  %v4509 = vpop.f32.mrb[0].mxu0
  %v4510 = vadd.f32 %v4268, %v4509
  %v4511 = vpop.f32.mrb[0].mxu0
  %v4512 = vpop.f32.mrb[0].mxu0
  %4513 = vdwg.mxu0
  %v4514 = vxor.u32 %v4467, 2147483648
  %v4515 = vmul.f32 %v4514, 1.442695
  %v4516 = vpow.pop %v4515
  %v4517 = vadd.f32 %v4516, 1.0
  %v4518 = vrcp.pop %v4517
  %v4519 = vmul.f32 1.0, %v4518
  %v4520 = vxor.u32 %v4469, 2147483648
  %v4521 = vmul.f32 %v4520, 1.442695
  %v4522 = vpow.pop %v4521
  %v4523 = vadd.f32 %v4522, 1.0
  %v4524 = vrcp.pop %v4523
  %v4525 = vmul.f32 1.0, %v4524
  %v4526 = vtanh.pop %v4508
  %v4527 = vxor.u32 %v4510, 2147483648
  %v4528 = vmul.f32 %v4527, 1.442695
  %v4529 = vpow.pop %v4528
  %v4530 = vadd.f32 %v4529, 1.0
  %v4531 = vrcp.pop %v4530
  %v4532 = vmul.f32 1.0, %v4531
  %v4533 = vmul.f32 %v4525, %v3714
  %v4534 = vmul.f32 %v4519, %v4526
  %v4535 = vadd.f32 %v4533, %v4534
  %v4536 = vtanh.pop %v4535
  %v4537 = vmul.f32 %v4532, %v4536
  %v4538 = vpack.c.bf16 %v4537, %v4537
  %v4539 = vld [vmem:[%s5] sm:$0xff]
  %v4540 = vld [vmem:[%s5 + $0x8] sm:$0xff]
  %v4541 = vld [vmem:[%s5 + $0x10] sm:$0xff]
  %v4542 = vld [vmem:[%s5 + $0x18] sm:$0xff]
  %v4543 = vld [vmem:[%s5 + $0x20] sm:$0xff]
  %v4544 = vld [vmem:[%s5 + $0x28] sm:$0xff]
  %v4545 = vld [vmem:[%s5 + $0x30] sm:$0xff]
  %v4546 = vld [vmem:[%s5 + $0x38] sm:$0xff]
  %v4547 = vld [vmem:[%s2901] sm:$0xff]
  %v4548 = vld [vmem:[%s2901 + $0x8] sm:$0xff]
  %v4549 = vld [vmem:[%s2901 + $0x10] sm:$0xff]
  %v4550 = vld [vmem:[%s2901 + $0x18] sm:$0xff]
  %v4551 = vld [vmem:[%s2901 + $0x20] sm:$0xff]
  %v4552 = vld [vmem:[%s2901 + $0x28] sm:$0xff]
  %v4553 = vld [vmem:[%s2901 + $0x30] sm:$0xff]
  %v4554 = vld [vmem:[%s2901 + $0x38] sm:$0xff]
  %v4563 = vunpack.c.l.b16 %v4547
  %v4564 = vunpack.c.h.b16 %v4547
  %v4565 = vunpack.c.l.b16 %v4548
  %v4566 = vunpack.c.h.b16 %v4548
  %v4567 = vunpack.c.l.b16 %v4549
  %v4568 = vunpack.c.h.b16 %v4549
  %v4569 = vunpack.c.l.b16 %v4550
  %v4570 = vunpack.c.h.b16 %v4550
  %v4571 = vunpack.c.l.b16 %v4551
  %v4572 = vunpack.c.h.b16 %v4551
  %v4573 = vunpack.c.l.b16 %v4552
  %v4574 = vunpack.c.h.b16 %v4552
  %v4575 = vunpack.c.l.b16 %v4553
  %v4576 = vunpack.c.h.b16 %v4553
  %v4577 = vunpack.c.l.b16 %v4554
  %v4578 = vunpack.c.h.b16 %v4554
  %v4579 = vpack.c.b16 %v4567, %v4563
  %v4580 = vpack.c.b16 %v4568, %v4564
  %v4581 = vpack.c.b16 %v4569, %v4565
  %v4582 = vpack.c.b16 %v4570, %v4566
  %v4583 = vpack.c.b16 %v4575, %v4571
  %v4584 = vpack.c.b16 %v4576, %v4572
  %v4585 = vpack.c.b16 %v4577, %v4573
  %v4586 = vpack.c.b16 %v4578, %v4574
  %4595 = vmatprep.subr.bf16.mxu0 %v4580
  %4596 = vmatpush1.bf16.msra.mxu0 %v4579
  %4597 = vmatprep.subr.bf16.mxu0 %v4584
  %4598 = vmatpush1.bf16.msra.mxu0 %v4583
  %4599 = vmatprep.subr.bf16.mxu0 0
  %4600 = vmatpush1.bf16.msra.mxu0 0
  %4601 = vmatprep.subr.bf16.mxu0 0
  %4602 = vmatpush1.bf16.msra.mxu0 0
  %4603 = vmatprep.subr.bf16.mxu0 0
  %4604 = vmatpush1.bf16.msra.mxu0 0
  %4605 = vmatprep.subr.bf16.mxu0 0
  %4606 = vmatpush1.bf16.msra.mxu0 0
  %4607 = vmatprep.subr.bf16.mxu0 0
  %4608 = vmatpush1.bf16.msra.mxu0 0
  %4609 = vmatprep.subr.bf16.mxu0 0
  %4610 = vmatpush1.bf16.msra.mxu0 0
  %4611 = vmatprep.subr.bf16.mxu0 0
  %4612 = vmatpush1.bf16.msra.mxu0 0
  %4613 = vmatprep.subr.bf16.mxu0 0
  %4614 = vmatpush1.bf16.msra.mxu0 0
  %4615 = vmatprep.subr.bf16.mxu0 0
  %4616 = vmatpush1.bf16.msra.mxu0 0
  %4617 = vmatprep.subr.bf16.mxu0 0
  %4618 = vmatpush1.bf16.msra.mxu0 0
  %4619 = vmatprep.subr.bf16.mxu0 0
  %4620 = vmatpush1.bf16.msra.mxu0 0
  %4621 = vmatprep.subr.bf16.mxu0 0
  %4622 = vmatpush1.bf16.msra.mxu0 0
  %4623 = vmatprep.subr.bf16.mxu0 0
  %4624 = vmatpush1.bf16.msra.mxu0 0
  %4625 = vmatprep.subr.bf16.mxu0 0
  %4626 = vmatpush1.bf16.msra.mxu0 0
  %4627 = vmatprep.mubr.bf16.mxu0 0
  %4628 = vmatmul.mubr.bf16.gmra.mrb[0].mxu0 %v4056
  %v4629 = vpop.f32.mrb[0].mxu0
  %v4630 = vadd.f32 0.0, %v4629
  %v4631 = vpop.f32.mrb[0].mxu0
  %v4632 = vadd.f32 0.0, %v4631
  %v4633 = vpop.f32.mrb[0].mxu0
  %v4634 = vpop.f32.mrb[0].mxu0
  %4635 = vdwg.mxu0
  %4636 = vmatprep.subr.bf16.mxu0 %v4582
  %4637 = vmatpush1.bf16.msra.mxu0 %v4581
  %4638 = vmatprep.subr.bf16.mxu0 %v4586
  %4639 = vmatpush1.bf16.msra.mxu0 %v4585
  %4640 = vmatprep.subr.bf16.mxu0 0
  %4641 = vmatpush1.bf16.msra.mxu0 0
  %4642 = vmatprep.subr.bf16.mxu0 0
  %4643 = vmatpush1.bf16.msra.mxu0 0
  %4644 = vmatprep.subr.bf16.mxu0 0
  %4645 = vmatpush1.bf16.msra.mxu0 0
  %4646 = vmatprep.subr.bf16.mxu0 0
  %4647 = vmatpush1.bf16.msra.mxu0 0
  %4648 = vmatprep.subr.bf16.mxu0 0
  %4649 = vmatpush1.bf16.msra.mxu0 0
  %4650 = vmatprep.subr.bf16.mxu0 0
  %4651 = vmatpush1.bf16.msra.mxu0 0
  %4652 = vmatprep.subr.bf16.mxu0 0
  %4653 = vmatpush1.bf16.msra.mxu0 0
  %4654 = vmatprep.subr.bf16.mxu0 0
  %4655 = vmatpush1.bf16.msra.mxu0 0
  %4656 = vmatprep.subr.bf16.mxu0 0
  %4657 = vmatpush1.bf16.msra.mxu0 0
  %4658 = vmatprep.subr.bf16.mxu0 0
  %4659 = vmatpush1.bf16.msra.mxu0 0
  %4660 = vmatprep.subr.bf16.mxu0 0
  %4661 = vmatpush1.bf16.msra.mxu0 0
  %4662 = vmatprep.subr.bf16.mxu0 0
  %4663 = vmatpush1.bf16.msra.mxu0 0
  %4664 = vmatprep.subr.bf16.mxu0 0
  %4665 = vmatpush1.bf16.msra.mxu0 0
  %4666 = vmatprep.subr.bf16.mxu0 0
  %4667 = vmatpush1.bf16.msra.mxu0 0
  %4668 = vmatprep.mubr.bf16.mxu0 0
  %4669 = vmatmul.mubr.bf16.gmra.mrb[0].mxu0 %v4056
  %v4670 = vpop.f32.mrb[0].mxu0
  %v4671 = vadd.f32 0.0, %v4670
  %v4672 = vpop.f32.mrb[0].mxu0
  %v4673 = vadd.f32 0.0, %v4672
  %v4674 = vpop.f32.mrb[0].mxu0
  %v4675 = vpop.f32.mrb[0].mxu0
  %4676 = vdwg.mxu0
  %v4685 = vunpack.c.l.b16 %v4539
  %v4686 = vunpack.c.h.b16 %v4539
  %v4687 = vunpack.c.l.b16 %v4540
  %v4688 = vunpack.c.h.b16 %v4540
  %v4689 = vunpack.c.l.b16 %v4541
  %v4690 = vunpack.c.h.b16 %v4541
  %v4691 = vunpack.c.l.b16 %v4542
  %v4692 = vunpack.c.h.b16 %v4542
  %v4693 = vunpack.c.l.b16 %v4543
  %v4694 = vunpack.c.h.b16 %v4543
  %v4695 = vunpack.c.l.b16 %v4544
  %v4696 = vunpack.c.h.b16 %v4544
  %v4697 = vunpack.c.l.b16 %v4545
  %v4698 = vunpack.c.h.b16 %v4545
  %v4699 = vunpack.c.l.b16 %v4546
  %v4700 = vunpack.c.h.b16 %v4546
  %v4701 = vpack.c.b16 %v4689, %v4685
  %v4702 = vpack.c.b16 %v4690, %v4686
  %v4703 = vpack.c.b16 %v4691, %v4687
  %v4704 = vpack.c.b16 %v4692, %v4688
  %v4705 = vpack.c.b16 %v4697, %v4693
  %v4706 = vpack.c.b16 %v4698, %v4694
  %v4707 = vpack.c.b16 %v4699, %v4695
  %v4708 = vpack.c.b16 %v4700, %v4696
  %v4718 = vsel %vm91, %v4538, 0
  %4720 = vmatprep.subr.bf16.mxu0 %v4702
  %4721 = vmatpush1.bf16.msra.mxu0 %v4701
  %4722 = vmatprep.subr.bf16.mxu0 %v4706
  %4723 = vmatpush1.bf16.msra.mxu0 %v4705
  %4724 = vmatprep.subr.bf16.mxu0 0
  %4725 = vmatpush1.bf16.msra.mxu0 0
  %4726 = vmatprep.subr.bf16.mxu0 0
  %4727 = vmatpush1.bf16.msra.mxu0 0
  %4728 = vmatprep.subr.bf16.mxu0 0
  %4729 = vmatpush1.bf16.msra.mxu0 0
  %4730 = vmatprep.subr.bf16.mxu0 0
  %4731 = vmatpush1.bf16.msra.mxu0 0
  %4732 = vmatprep.subr.bf16.mxu0 0
  %4733 = vmatpush1.bf16.msra.mxu0 0
  %4734 = vmatprep.subr.bf16.mxu0 0
  %4735 = vmatpush1.bf16.msra.mxu0 0
  %4736 = vmatprep.subr.bf16.mxu0 0
  %4737 = vmatpush1.bf16.msra.mxu0 0
  %4738 = vmatprep.subr.bf16.mxu0 0
  %4739 = vmatpush1.bf16.msra.mxu0 0
  %4740 = vmatprep.subr.bf16.mxu0 0
  %4741 = vmatpush1.bf16.msra.mxu0 0
  %4742 = vmatprep.subr.bf16.mxu0 0
  %4743 = vmatpush1.bf16.msra.mxu0 0
  %4744 = vmatprep.subr.bf16.mxu0 0
  %4745 = vmatpush1.bf16.msra.mxu0 0
  %4746 = vmatprep.subr.bf16.mxu0 0
  %4747 = vmatpush1.bf16.msra.mxu0 0
  %4748 = vmatprep.subr.bf16.mxu0 0
  %4749 = vmatpush1.bf16.msra.mxu0 0
  %4750 = vmatprep.subr.bf16.mxu0 0
  %4751 = vmatpush1.bf16.msra.mxu0 0
  %4752 = vmatprep.mubr.bf16.mxu0 0
  %4753 = vmatmul.mubr.bf16.gmra.mrb[0].mxu0 %v4718
  %v4754 = vpop.f32.mrb[0].mxu0
  %v4755 = vadd.f32 %v4630, %v4754
  %v4756 = vpop.f32.mrb[0].mxu0
  %v4757 = vadd.f32 %v4632, %v4756
  %v4758 = vpop.f32.mrb[0].mxu0
  %v4759 = vpop.f32.mrb[0].mxu0
  %4760 = vdwg.mxu0
  %4761 = vmatprep.subr.bf16.mxu0 %v4704
  %4762 = vmatpush1.bf16.msra.mxu0 %v4703
  %4763 = vmatprep.subr.bf16.mxu0 %v4708
  %4764 = vmatpush1.bf16.msra.mxu0 %v4707
  %4765 = vmatprep.subr.bf16.mxu0 0
  %4766 = vmatpush1.bf16.msra.mxu0 0
  %4767 = vmatprep.subr.bf16.mxu0 0
  %4768 = vmatpush1.bf16.msra.mxu0 0
  %4769 = vmatprep.subr.bf16.mxu0 0
  %4770 = vmatpush1.bf16.msra.mxu0 0
  %4771 = vmatprep.subr.bf16.mxu0 0
  %4772 = vmatpush1.bf16.msra.mxu0 0
  %4773 = vmatprep.subr.bf16.mxu0 0
  %4774 = vmatpush1.bf16.msra.mxu0 0
  %4775 = vmatprep.subr.bf16.mxu0 0
  %4776 = vmatpush1.bf16.msra.mxu0 0
  %4777 = vmatprep.subr.bf16.mxu0 0
  %4778 = vmatpush1.bf16.msra.mxu0 0
  %4779 = vmatprep.subr.bf16.mxu0 0
  %4780 = vmatpush1.bf16.msra.mxu0 0
  %4781 = vmatprep.subr.bf16.mxu0 0
  %4782 = vmatpush1.bf16.msra.mxu0 0
  %4783 = vmatprep.subr.bf16.mxu0 0
  %4784 = vmatpush1.bf16.msra.mxu0 0
  %4785 = vmatprep.subr.bf16.mxu0 0
  %4786 = vmatpush1.bf16.msra.mxu0 0
  %4787 = vmatprep.subr.bf16.mxu0 0
  %4788 = vmatpush1.bf16.msra.mxu0 0
  %4789 = vmatprep.subr.bf16.mxu0 0
  %4790 = vmatpush1.bf16.msra.mxu0 0
  %4791 = vmatprep.subr.bf16.mxu0 0
  %4792 = vmatpush1.bf16.msra.mxu0 0
  %4793 = vmatprep.mubr.bf16.mxu0 0
  %4794 = vmatmul.mubr.bf16.gmra.mrb[0].mxu0 %v4718
  %v4795 = vpop.f32.mrb[0].mxu0
  %v4796 = vadd.f32 %v4671, %v4795
  %v4797 = vpop.f32.mrb[0].mxu0
  %v4798 = vadd.f32 %v4673, %v4797
  %v4799 = vpop.f32.mrb[0].mxu0
  %v4800 = vpop.f32.mrb[0].mxu0
  %4801 = vdwg.mxu0
  %v4802 = vld [vmem:[%s6] sm:$0xf]
  %v4804 = vlaneseq
  %v4805 = vshrl.u32 %v4804, 7
  %v4806 = vsub.s32 0, %v4805
  %v4807 = vrot.slane %v4802, %v4806
  %v4808 = vlaneseq
  %v4809 = vshrl.u32 %v4808, 7
  %v4810 = vsub.s32 1, %v4809
  %v4811 = vrot.slane %v4802, %v4810
  %v4812 = vlaneseq
  %v4813 = vshrl.u32 %v4812, 7
  %v4814 = vsub.s32 2, %v4813
  %v4815 = vrot.slane %v4802, %v4814
  %v4816 = vlaneseq
  %v4817 = vshrl.u32 %v4816, 7
  %v4818 = vsub.s32 3, %v4817
  %v4819 = vrot.slane %v4802, %v4818
  %v4824 = vadd.f32 %v4755, %v4807
  %v4825 = vadd.f32 %v4757, %v4811
  %v4826 = vadd.f32 %v4796, %v4815
  %v4827 = vadd.f32 %v4798, %v4819
  %v4828 = vxor.u32 %v4824, 2147483648
  %v4829 = vmul.f32 %v4828, 1.442695
  %v4830 = vpow.pop %v4829
  %v4831 = vadd.f32 %v4830, 1.0
  %v4832 = vrcp.pop %v4831
  %v4833 = vmul.f32 1.0, %v4832
  %v4834 = vxor.u32 %v4825, 2147483648
  %v4835 = vmul.f32 %v4834, 1.442695
  %v4836 = vpow.pop %v4835
  %v4837 = vadd.f32 %v4836, 1.0
  %v4838 = vrcp.pop %v4837
  %v4839 = vmul.f32 1.0, %v4838
  %v4840 = vtanh.pop %v4826
  %v4841 = vxor.u32 %v4827, 2147483648
  %v4842 = vmul.f32 %v4841, 1.442695
  %v4843 = vpow.pop %v4842
  %v4844 = vadd.f32 %v4843, 1.0
  %v4845 = vrcp.pop %v4844
  %v4846 = vmul.f32 1.0, %v4845
  %v4847 = vmul.f32 %v4839, %v4028
  %v4848 = vmul.f32 %v4833, %v4840
  %v4849 = vadd.f32 %v4847, %v4848
  %v4850 = vtanh.pop %v4849
  %v4851 = vmul.f32 %v4846, %v4850
  %v4852 = vpack.c.bf16 %v4851, %v4851
  %v4853 = vld [vmem:[%s8] sm:$0xf]
  %v4854 = vld [vmem:[%s8 + $0x4] sm:$0xf]
  %v4855 = vld [vmem:[%s8 + $0x8] sm:$0xf]
  %v4856 = vld [vmem:[%s8 + $0xc] sm:$0xf]
  %v4857 = vld [vmem:[%s9] sm:$0x1]
  %v4859 = vlaneseq
  %v4860 = vshrl.u32 %v4859, 7
  %v4861 = vsub.s32 0, %v4860
  %v4862 = vrot.slane %v4857, %v4861
  %v4868 = vunpack.c.l.b16 %v4853
  %v4869 = vunpack.c.l.b16 %v4854
  %v4870 = vunpack.c.l.b16 %v4855
  %v4871 = vunpack.c.l.b16 %v4856
  %v4872 = vpack.c.b16 %v4869, %v4868
  %v4873 = vpack.c.b16 %v4871, %v4870
  %v4877 = vsel %vm91, %v4852, 0
  %4879 = vmatprep.subr.bf16.mxu0 0
  %4880 = vmatpush1.bf16.msra.mxu0 %v4872
  %4881 = vmatprep.subr.bf16.mxu0 0
  %4882 = vmatpush1.bf16.msra.mxu0 %v4873
  %4883 = vmatprep.subr.bf16.mxu0 0
  %4884 = vmatpush1.bf16.msra.mxu0 0
  %4885 = vmatprep.subr.bf16.mxu0 0
  %4886 = vmatpush1.bf16.msra.mxu0 0
  %4887 = vmatprep.subr.bf16.mxu0 0
  %4888 = vmatpush1.bf16.msra.mxu0 0
  %4889 = vmatprep.subr.bf16.mxu0 0
  %4890 = vmatpush1.bf16.msra.mxu0 0
  %4891 = vmatprep.subr.bf16.mxu0 0
  %4892 = vmatpush1.bf16.msra.mxu0 0
  %4893 = vmatprep.subr.bf16.mxu0 0
  %4894 = vmatpush1.bf16.msra.mxu0 0
  %4895 = vmatprep.subr.bf16.mxu0 0
  %4896 = vmatpush1.bf16.msra.mxu0 0
  %4897 = vmatprep.subr.bf16.mxu0 0
  %4898 = vmatpush1.bf16.msra.mxu0 0
  %4899 = vmatprep.subr.bf16.mxu0 0
  %4900 = vmatpush1.bf16.msra.mxu0 0
  %4901 = vmatprep.subr.bf16.mxu0 0
  %4902 = vmatpush1.bf16.msra.mxu0 0
  %4903 = vmatprep.subr.bf16.mxu0 0
  %4904 = vmatpush1.bf16.msra.mxu0 0
  %4905 = vmatprep.subr.bf16.mxu0 0
  %4906 = vmatpush1.bf16.msra.mxu0 0
  %4907 = vmatprep.subr.bf16.mxu0 0
  %4908 = vmatpush1.bf16.msra.mxu0 0
  %4909 = vmatprep.subr.bf16.mxu0 0
  %4910 = vmatpush1.bf16.msra.mxu0 0
  %4911 = vmatprep.mubr.bf16.mxu0 0
  %4912 = vmatmul.mubr.bf16.gmra.mrb[0].mxu0 %v4877
  %v4913 = vpop.f32.mrb[0].mxu0
  %v4914 = vadd.f32 %v4862, %v4913
  %v4915 = vpop.f32.mrb[0].mxu0
  %v4916 = vpop.f32.mrb[0].mxu0
  %v4917 = vpop.f32.mrb[0].mxu0
  %4918 = vdwg.mxu0
  %s4919 = scalar_lea.vmem %s11, 24
  %4920 = vst [vmem:[%s4919] sm:$0xff] %v4914
  %4921 = vmax.xlane.f32.xlu0 %v4914
  %v4922 = vpop.xlane.xlu0 %4921
  %vm4923 = vcmp.ge.f32.partialorder %v4914, %v4922
  %v4924 = vsel %vm4923, %v2728, 128.0
  %4925 = vmin.xlane.f32.xlu0 %v4924
  %v4926 = vpop.xlane.xlu0 %4925
  %vm4927 = vcmp.eq.f32.partialorder %v2728, %v4926
  %v4928 = vsel %vm4927, 1, 0
  %v4929 = vcvt.s32.f32 %v4928
  %v4930 = vpack.c.bf16 %v4929, %v4929
  %v4931 = vld [vmem:[%s7] sm:$0xff]
  %v4932 = vld [vmem:[%s7 + $0x8] sm:$0xff]
  %v4933 = vld [vmem:[%s7 + $0x10] sm:$0xff]
  %v4934 = vld [vmem:[%s7 + $0x18] sm:$0xff]
  %v4935 = vld [vmem:[%s7 + $0x20] sm:$0xff]
  %v4936 = vld [vmem:[%s7 + $0x28] sm:$0xff]
  %v4937 = vld [vmem:[%s7 + $0x30] sm:$0xff]
  %v4938 = vld [vmem:[%s7 + $0x38] sm:$0xff]
  %v4939 = vld [vmem:[%s7 + $0x40] sm:$0xff]
  %v4940 = vld [vmem:[%s7 + $0x48] sm:$0xff]
  %v4941 = vld [vmem:[%s7 + $0x50] sm:$0xff]
  %v4942 = vld [vmem:[%s7 + $0x58] sm:$0xff]
  %v4943 = vld [vmem:[%s7 + $0x60] sm:$0xff]
  %v4944 = vld [vmem:[%s7 + $0x68] sm:$0xff]
  %v4945 = vld [vmem:[%s7 + $0x70] sm:$0xff]
  %v4946 = vld [vmem:[%s7 + $0x78] sm:$0xff]
  %v4947 = vld [vmem:[%s7 + $0x80] sm:$0xff]
  %v4948 = vld [vmem:[%s7 + $0x88] sm:$0xff]
  %v4949 = vld [vmem:[%s7 + $0x90] sm:$0xff]
  %v4950 = vld [vmem:[%s7 + $0x98] sm:$0xff]
  %v4951 = vld [vmem:[%s7 + $0xa0] sm:$0xff]
  %v4952 = vld [vmem:[%s7 + $0xa8] sm:$0xff]
  %v4953 = vld [vmem:[%s7 + $0xb0] sm:$0xff]
  %v4954 = vld [vmem:[%s7 + $0xb8] sm:$0xff]
  %v4955 = vld [vmem:[%s7 + $0xc0] sm:$0xff]
  %v4956 = vld [vmem:[%s7 + $0xc8] sm:$0xff]
  %v4957 = vld [vmem:[%s7 + $0xd0] sm:$0xff]
  %v4958 = vld [vmem:[%s7 + $0xd8] sm:$0xff]
  %v4959 = vld [vmem:[%s7 + $0xe0] sm:$0xff]
  %v4960 = vld [vmem:[%s7 + $0xe8] sm:$0xff]
  %v4961 = vld [vmem:[%s7 + $0xf0] sm:$0xff]
  %v4962 = vld [vmem:[%s7 + $0xf8] sm:$0xff]
  %v4963 = vld [vmem:[%s4] sm:$0xff]
  %v4964 = vld [vmem:[%s4 + $0x8] sm:$0xff]
  %v4965 = vld [vmem:[%s4 + $0x10] sm:$0xff]
  %v4966 = vld [vmem:[%s4 + $0x18] sm:$0xff]
  %v4967 = vld [vmem:[%s4 + $0x20] sm:$0xff]
  %v4968 = vld [vmem:[%s4 + $0x28] sm:$0xff]
  %v4969 = vld [vmem:[%s4 + $0x30] sm:$0xff]
  %v4970 = vld [vmem:[%s4 + $0x38] sm:$0xff]
  %v4979 = vunpack.c.l.b16 %v4963
  %v4980 = vunpack.c.h.b16 %v4963
  %v4981 = vunpack.c.l.b16 %v4964
  %v4982 = vunpack.c.h.b16 %v4964
  %v4983 = vunpack.c.l.b16 %v4965
  %v4984 = vunpack.c.h.b16 %v4965
  %v4985 = vunpack.c.l.b16 %v4966
  %v4986 = vunpack.c.h.b16 %v4966
  %v4987 = vunpack.c.l.b16 %v4967
  %v4988 = vunpack.c.h.b16 %v4967
  %v4989 = vunpack.c.l.b16 %v4968
  %v4990 = vunpack.c.h.b16 %v4968
  %v4991 = vunpack.c.l.b16 %v4969
  %v4992 = vunpack.c.h.b16 %v4969
  %v4993 = vunpack.c.l.b16 %v4970
  %v4994 = vunpack.c.h.b16 %v4970
  %v4995 = vpack.c.b16 %v4983, %v4979
  %v4996 = vpack.c.b16 %v4984, %v4980
  %v4997 = vpack.c.b16 %v4985, %v4981
  %v4998 = vpack.c.b16 %v4986, %v4982
  %v4999 = vpack.c.b16 %v4991, %v4987
  %v5000 = vpack.c.b16 %v4992, %v4988
  %v5001 = vpack.c.b16 %v4993, %v4989
  %v5002 = vpack.c.b16 %v4994, %v4990
  %5011 = vmatprep.subr.bf16.mxu0 %v4996
  %5012 = vmatpush1.bf16.msra.mxu0 %v4995
  %5013 = vmatprep.subr.bf16.mxu0 %v5000
  %5014 = vmatpush1.bf16.msra.mxu0 %v4999
  %5015 = vmatprep.subr.bf16.mxu0 0
  %5016 = vmatpush1.bf16.msra.mxu0 0
  %5017 = vmatprep.subr.bf16.mxu0 0
  %5018 = vmatpush1.bf16.msra.mxu0 0
  %5019 = vmatprep.subr.bf16.mxu0 0
  %5020 = vmatpush1.bf16.msra.mxu0 0
  %5021 = vmatprep.subr.bf16.mxu0 0
  %5022 = vmatpush1.bf16.msra.mxu0 0
  %5023 = vmatprep.subr.bf16.mxu0 0
  %5024 = vmatpush1.bf16.msra.mxu0 0
  %5025 = vmatprep.subr.bf16.mxu0 0
  %5026 = vmatpush1.bf16.msra.mxu0 0
  %5027 = vmatprep.subr.bf16.mxu0 0
  %5028 = vmatpush1.bf16.msra.mxu0 0
  %5029 = vmatprep.subr.bf16.mxu0 0
  %5030 = vmatpush1.bf16.msra.mxu0 0
  %5031 = vmatprep.subr.bf16.mxu0 0
  %5032 = vmatpush1.bf16.msra.mxu0 0
  %5033 = vmatprep.subr.bf16.mxu0 0
  %5034 = vmatpush1.bf16.msra.mxu0 0
  %5035 = vmatprep.subr.bf16.mxu0 0
  %5036 = vmatpush1.bf16.msra.mxu0 0
  %5037 = vmatprep.subr.bf16.mxu0 0
  %5038 = vmatpush1.bf16.msra.mxu0 0
  %5039 = vmatprep.subr.bf16.mxu0 0
  %5040 = vmatpush1.bf16.msra.mxu0 0
  %5041 = vmatprep.subr.bf16.mxu0 0
  %5042 = vmatpush1.bf16.msra.mxu0 0
  %5043 = vmatprep.mubr.bf16.mxu0 0
  %5044 = vmatmul.mubr.bf16.gmra.mrb[0].mxu0 %v4718
  %v5045 = vpop.f32.mrb[0].mxu0
  %v5046 = vadd.f32 0.0, %v5045
  %v5047 = vpop.f32.mrb[0].mxu0
  %v5048 = vadd.f32 0.0, %v5047
  %v5049 = vpop.f32.mrb[0].mxu0
  %v5050 = vpop.f32.mrb[0].mxu0
  %5051 = vdwg.mxu0
  %5052 = vmatprep.subr.bf16.mxu0 %v4998
  %5053 = vmatpush1.bf16.msra.mxu0 %v4997
  %5054 = vmatprep.subr.bf16.mxu0 %v5002
  %5055 = vmatpush1.bf16.msra.mxu0 %v5001
  %5056 = vmatprep.subr.bf16.mxu0 0
  %5057 = vmatpush1.bf16.msra.mxu0 0
  %5058 = vmatprep.subr.bf16.mxu0 0
  %5059 = vmatpush1.bf16.msra.mxu0 0
  %5060 = vmatprep.subr.bf16.mxu0 0
  %5061 = vmatpush1.bf16.msra.mxu0 0
  %5062 = vmatprep.subr.bf16.mxu0 0
  %5063 = vmatpush1.bf16.msra.mxu0 0
  %5064 = vmatprep.subr.bf16.mxu0 0
  %5065 = vmatpush1.bf16.msra.mxu0 0
  %5066 = vmatprep.subr.bf16.mxu0 0
  %5067 = vmatpush1.bf16.msra.mxu0 0
  %5068 = vmatprep.subr.bf16.mxu0 0
  %5069 = vmatpush1.bf16.msra.mxu0 0
  %5070 = vmatprep.subr.bf16.mxu0 0
  %5071 = vmatpush1.bf16.msra.mxu0 0
  %5072 = vmatprep.subr.bf16.mxu0 0
  %5073 = vmatpush1.bf16.msra.mxu0 0
  %5074 = vmatprep.subr.bf16.mxu0 0
  %5075 = vmatpush1.bf16.msra.mxu0 0
  %5076 = vmatprep.subr.bf16.mxu0 0
  %5077 = vmatpush1.bf16.msra.mxu0 0
  %5078 = vmatprep.subr.bf16.mxu0 0
  %5079 = vmatpush1.bf16.msra.mxu0 0
  %5080 = vmatprep.subr.bf16.mxu0 0
  %5081 = vmatpush1.bf16.msra.mxu0 0
  %5082 = vmatprep.subr.bf16.mxu0 0
  %5083 = vmatpush1.bf16.msra.mxu0 0
  %5084 = vmatprep.mubr.bf16.mxu0 0
  %5085 = vmatmul.mubr.bf16.gmra.mrb[0].mxu0 %v4718
  %v5086 = vpop.f32.mrb[0].mxu0
  %v5087 = vadd.f32 0.0, %v5086
  %v5088 = vpop.f32.mrb[0].mxu0
  %v5089 = vadd.f32 0.0, %v5088
  %v5090 = vpop.f32.mrb[0].mxu0
  %v5091 = vpop.f32.mrb[0].mxu0
  %5092 = vdwg.mxu0
  %v5125 = vunpack.c.l.b16 %v4931
  %v5126 = vunpack.c.h.b16 %v4931
  %v5127 = vunpack.c.l.b16 %v4932
  %v5128 = vunpack.c.h.b16 %v4932
  %v5129 = vunpack.c.l.b16 %v4933
  %v5130 = vunpack.c.h.b16 %v4933
  %v5131 = vunpack.c.l.b16 %v4934
  %v5132 = vunpack.c.h.b16 %v4934
  %v5133 = vunpack.c.l.b16 %v4935
  %v5134 = vunpack.c.h.b16 %v4935
  %v5135 = vunpack.c.l.b16 %v4936
  %v5136 = vunpack.c.h.b16 %v4936
  %v5137 = vunpack.c.l.b16 %v4937
  %v5138 = vunpack.c.h.b16 %v4937
  %v5139 = vunpack.c.l.b16 %v4938
  %v5140 = vunpack.c.h.b16 %v4938
  %v5141 = vunpack.c.l.b16 %v4939
  %v5142 = vunpack.c.h.b16 %v4939
  %v5143 = vunpack.c.l.b16 %v4940
  %v5144 = vunpack.c.h.b16 %v4940
  %v5145 = vunpack.c.l.b16 %v4941
  %v5146 = vunpack.c.h.b16 %v4941
  %v5147 = vunpack.c.l.b16 %v4942
  %v5148 = vunpack.c.h.b16 %v4942
  %v5149 = vunpack.c.l.b16 %v4943
  %v5150 = vunpack.c.h.b16 %v4943
  %v5151 = vunpack.c.l.b16 %v4944
  %v5152 = vunpack.c.h.b16 %v4944
  %v5153 = vunpack.c.l.b16 %v4945
  %v5154 = vunpack.c.h.b16 %v4945
  %v5155 = vunpack.c.l.b16 %v4946
  %v5156 = vunpack.c.h.b16 %v4946
  %v5157 = vunpack.c.l.b16 %v4947
  %v5158 = vunpack.c.h.b16 %v4947
  %v5159 = vunpack.c.l.b16 %v4948
  %v5160 = vunpack.c.h.b16 %v4948
  %v5161 = vunpack.c.l.b16 %v4949
  %v5162 = vunpack.c.h.b16 %v4949
  %v5163 = vunpack.c.l.b16 %v4950
  %v5164 = vunpack.c.h.b16 %v4950
  %v5165 = vunpack.c.l.b16 %v4951
  %v5166 = vunpack.c.h.b16 %v4951
  %v5167 = vunpack.c.l.b16 %v4952
  %v5168 = vunpack.c.h.b16 %v4952
  %v5169 = vunpack.c.l.b16 %v4953
  %v5170 = vunpack.c.h.b16 %v4953
  %v5171 = vunpack.c.l.b16 %v4954
  %v5172 = vunpack.c.h.b16 %v4954
  %v5173 = vunpack.c.l.b16 %v4955
  %v5174 = vunpack.c.h.b16 %v4955
  %v5175 = vunpack.c.l.b16 %v4956
  %v5176 = vunpack.c.h.b16 %v4956
  %v5177 = vunpack.c.l.b16 %v4957
  %v5178 = vunpack.c.h.b16 %v4957
  %v5179 = vunpack.c.l.b16 %v4958
  %v5180 = vunpack.c.h.b16 %v4958
  %v5181 = vunpack.c.l.b16 %v4959
  %v5182 = vunpack.c.h.b16 %v4959
  %v5183 = vunpack.c.l.b16 %v4960
  %v5184 = vunpack.c.h.b16 %v4960
  %v5185 = vunpack.c.l.b16 %v4961
  %v5186 = vunpack.c.h.b16 %v4961
  %v5187 = vunpack.c.l.b16 %v4962
  %v5188 = vunpack.c.h.b16 %v4962
  %v5189 = vpack.c.b16 %v5129, %v5125
  %v5190 = vpack.c.b16 %v5130, %v5126
  %v5191 = vpack.c.b16 %v5131, %v5127
  %v5192 = vpack.c.b16 %v5132, %v5128
  %v5193 = vpack.c.b16 %v5137, %v5133
  %v5194 = vpack.c.b16 %v5138, %v5134
  %v5195 = vpack.c.b16 %v5139, %v5135
  %v5196 = vpack.c.b16 %v5140, %v5136
  %v5197 = vpack.c.b16 %v5145, %v5141
  %v5198 = vpack.c.b16 %v5146, %v5142
  %v5199 = vpack.c.b16 %v5147, %v5143
  %v5200 = vpack.c.b16 %v5148, %v5144
  %v5201 = vpack.c.b16 %v5153, %v5149
  %v5202 = vpack.c.b16 %v5154, %v5150
  %v5203 = vpack.c.b16 %v5155, %v5151
  %v5204 = vpack.c.b16 %v5156, %v5152
  %v5205 = vpack.c.b16 %v5161, %v5157
  %v5206 = vpack.c.b16 %v5162, %v5158
  %v5207 = vpack.c.b16 %v5163, %v5159
  %v5208 = vpack.c.b16 %v5164, %v5160
  %v5209 = vpack.c.b16 %v5169, %v5165
  %v5210 = vpack.c.b16 %v5170, %v5166
  %v5211 = vpack.c.b16 %v5171, %v5167
  %v5212 = vpack.c.b16 %v5172, %v5168
  %v5213 = vpack.c.b16 %v5177, %v5173
  %v5214 = vpack.c.b16 %v5178, %v5174
  %v5215 = vpack.c.b16 %v5179, %v5175
  %v5216 = vpack.c.b16 %v5180, %v5176
  %v5217 = vpack.c.b16 %v5185, %v5181
  %v5218 = vpack.c.b16 %v5186, %v5182
  %v5219 = vpack.c.b16 %v5187, %v5183
  %v5220 = vpack.c.b16 %v5188, %v5184
  %5253 = vmatprep.subr.bf16.mxu0 %v5190
  %5254 = vmatpush1.bf16.msra.mxu0 %v5189
  %5255 = vmatprep.subr.bf16.mxu0 %v5194
  %5256 = vmatpush1.bf16.msra.mxu0 %v5193
  %5257 = vmatprep.subr.bf16.mxu0 %v5198
  %5258 = vmatpush1.bf16.msra.mxu0 %v5197
  %5259 = vmatprep.subr.bf16.mxu0 %v5202
  %5260 = vmatpush1.bf16.msra.mxu0 %v5201
  %5261 = vmatprep.subr.bf16.mxu0 %v5206
  %5262 = vmatpush1.bf16.msra.mxu0 %v5205
  %5263 = vmatprep.subr.bf16.mxu0 %v5210
  %5264 = vmatpush1.bf16.msra.mxu0 %v5209
  %5265 = vmatprep.subr.bf16.mxu0 %v5214
  %5266 = vmatpush1.bf16.msra.mxu0 %v5213
  %5267 = vmatprep.subr.bf16.mxu0 %v5218
  %5268 = vmatpush1.bf16.msra.mxu0 %v5217
  %5269 = vmatprep.subr.bf16.mxu0 0
  %5270 = vmatpush1.bf16.msra.mxu0 0
  %5271 = vmatprep.subr.bf16.mxu0 0
  %5272 = vmatpush1.bf16.msra.mxu0 0
  %5273 = vmatprep.subr.bf16.mxu0 0
  %5274 = vmatpush1.bf16.msra.mxu0 0
  %5275 = vmatprep.subr.bf16.mxu0 0
  %5276 = vmatpush1.bf16.msra.mxu0 0
  %5277 = vmatprep.subr.bf16.mxu0 0
  %5278 = vmatpush1.bf16.msra.mxu0 0
  %5279 = vmatprep.subr.bf16.mxu0 0
  %5280 = vmatpush1.bf16.msra.mxu0 0
  %5281 = vmatprep.subr.bf16.mxu0 0
  %5282 = vmatpush1.bf16.msra.mxu0 0
  %5283 = vmatprep.subr.bf16.mxu0 0
  %5284 = vmatpush1.bf16.msra.mxu0 0
  %5285 = vmatprep.mubr.bf16.mxu0 0
  %5286 = vmatmul.mubr.bf16.gmra.mrb[0].mxu0 %v4930
  %v5287 = vpop.f32.mrb[0].mxu0
  %v5288 = vadd.f32 %v5046, %v5287
  %v5289 = vpop.f32.mrb[0].mxu0
  %v5290 = vadd.f32 %v5048, %v5289
  %v5291 = vpop.f32.mrb[0].mxu0
  %v5292 = vpop.f32.mrb[0].mxu0
  %5293 = vdwg.mxu0
  %5294 = vmatprep.subr.bf16.mxu0 %v5192
  %5295 = vmatpush1.bf16.msra.mxu0 %v5191
  %5296 = vmatprep.subr.bf16.mxu0 %v5196
  %5297 = vmatpush1.bf16.msra.mxu0 %v5195
  %5298 = vmatprep.subr.bf16.mxu0 %v5200
  %5299 = vmatpush1.bf16.msra.mxu0 %v5199
  %5300 = vmatprep.subr.bf16.mxu0 %v5204
  %5301 = vmatpush1.bf16.msra.mxu0 %v5203
  %5302 = vmatprep.subr.bf16.mxu0 %v5208
  %5303 = vmatpush1.bf16.msra.mxu0 %v5207
  %5304 = vmatprep.subr.bf16.mxu0 %v5212
  %5305 = vmatpush1.bf16.msra.mxu0 %v5211
  %5306 = vmatprep.subr.bf16.mxu0 %v5216
  %5307 = vmatpush1.bf16.msra.mxu0 %v5215
  %5308 = vmatprep.subr.bf16.mxu0 %v5220
  %5309 = vmatpush1.bf16.msra.mxu0 %v5219
  %5310 = vmatprep.subr.bf16.mxu0 0
  %5311 = vmatpush1.bf16.msra.mxu0 0
  %5312 = vmatprep.subr.bf16.mxu0 0
  %5313 = vmatpush1.bf16.msra.mxu0 0
  %5314 = vmatprep.subr.bf16.mxu0 0
  %5315 = vmatpush1.bf16.msra.mxu0 0
  %5316 = vmatprep.subr.bf16.mxu0 0
  %5317 = vmatpush1.bf16.msra.mxu0 0
  %5318 = vmatprep.subr.bf16.mxu0 0
  %5319 = vmatpush1.bf16.msra.mxu0 0
  %5320 = vmatprep.subr.bf16.mxu0 0
  %5321 = vmatpush1.bf16.msra.mxu0 0
  %5322 = vmatprep.subr.bf16.mxu0 0
  %5323 = vmatpush1.bf16.msra.mxu0 0
  %5324 = vmatprep.subr.bf16.mxu0 0
  %5325 = vmatpush1.bf16.msra.mxu0 0
  %5326 = vmatprep.mubr.bf16.mxu0 0
  %5327 = vmatmul.mubr.bf16.gmra.mrb[0].mxu0 %v4930
  %v5328 = vpop.f32.mrb[0].mxu0
  %v5329 = vadd.f32 %v5087, %v5328
  %v5330 = vpop.f32.mrb[0].mxu0
  %v5331 = vadd.f32 %v5089, %v5330
  %v5332 = vpop.f32.mrb[0].mxu0
  %v5333 = vpop.f32.mrb[0].mxu0
  %5334 = vdwg.mxu0
  %v5335 = vxor.u32 %v5288, 2147483648
  %v5336 = vmul.f32 %v5335, 1.442695
  %v5337 = vpow.pop %v5336
  %v5338 = vadd.f32 %v5337, 1.0
  %v5339 = vrcp.pop %v5338
  %v5340 = vmul.f32 1.0, %v5339
  %v5341 = vxor.u32 %v5290, 2147483648
  %v5342 = vmul.f32 %v5341, 1.442695
  %v5343 = vpow.pop %v5342
  %v5344 = vadd.f32 %v5343, 1.0
  %v5345 = vrcp.pop %v5344
  %v5346 = vmul.f32 1.0, %v5345
  %v5347 = vtanh.pop %v5329
  %v5348 = vxor.u32 %v5331, 2147483648
  %v5349 = vmul.f32 %v5348, 1.442695
  %v5350 = vpow.pop %v5349
  %v5351 = vadd.f32 %v5350, 1.0
  %v5352 = vrcp.pop %v5351
  %v5353 = vmul.f32 1.0, %v5352
  %v5354 = vmul.f32 %v5346, %v4535
  %v5355 = vmul.f32 %v5340, %v5347
  %v5356 = vadd.f32 %v5354, %v5355
  %v5357 = vtanh.pop %v5356
  %v5358 = vmul.f32 %v5353, %v5357
  %v5359 = vpack.c.bf16 %v5358, %v5358
  %v5360 = vld [vmem:[%s5] sm:$0xff]
  %v5361 = vld [vmem:[%s5 + $0x8] sm:$0xff]
  %v5362 = vld [vmem:[%s5 + $0x10] sm:$0xff]
  %v5363 = vld [vmem:[%s5 + $0x18] sm:$0xff]
  %v5364 = vld [vmem:[%s5 + $0x20] sm:$0xff]
  %v5365 = vld [vmem:[%s5 + $0x28] sm:$0xff]
  %v5366 = vld [vmem:[%s5 + $0x30] sm:$0xff]
  %v5367 = vld [vmem:[%s5 + $0x38] sm:$0xff]
  %v5368 = vld [vmem:[%s2901] sm:$0xff]
  %v5369 = vld [vmem:[%s2901 + $0x8] sm:$0xff]
  %v5370 = vld [vmem:[%s2901 + $0x10] sm:$0xff]
  %v5371 = vld [vmem:[%s2901 + $0x18] sm:$0xff]
  %v5372 = vld [vmem:[%s2901 + $0x20] sm:$0xff]
  %v5373 = vld [vmem:[%s2901 + $0x28] sm:$0xff]
  %v5374 = vld [vmem:[%s2901 + $0x30] sm:$0xff]
  %v5375 = vld [vmem:[%s2901 + $0x38] sm:$0xff]
  %v5384 = vunpack.c.l.b16 %v5368
  %v5385 = vunpack.c.h.b16 %v5368
  %v5386 = vunpack.c.l.b16 %v5369
  %v5387 = vunpack.c.h.b16 %v5369
  %v5388 = vunpack.c.l.b16 %v5370
  %v5389 = vunpack.c.h.b16 %v5370
  %v5390 = vunpack.c.l.b16 %v5371
  %v5391 = vunpack.c.h.b16 %v5371
  %v5392 = vunpack.c.l.b16 %v5372
  %v5393 = vunpack.c.h.b16 %v5372
  %v5394 = vunpack.c.l.b16 %v5373
  %v5395 = vunpack.c.h.b16 %v5373
  %v5396 = vunpack.c.l.b16 %v5374
  %v5397 = vunpack.c.h.b16 %v5374
  %v5398 = vunpack.c.l.b16 %v5375
  %v5399 = vunpack.c.h.b16 %v5375
  %v5400 = vpack.c.b16 %v5388, %v5384
  %v5401 = vpack.c.b16 %v5389, %v5385
  %v5402 = vpack.c.b16 %v5390, %v5386
  %v5403 = vpack.c.b16 %v5391, %v5387
  %v5404 = vpack.c.b16 %v5396, %v5392
  %v5405 = vpack.c.b16 %v5397, %v5393
  %v5406 = vpack.c.b16 %v5398, %v5394
  %v5407 = vpack.c.b16 %v5399, %v5395
  %5416 = vmatprep.subr.bf16.mxu0 %v5401
  %5417 = vmatpush1.bf16.msra.mxu0 %v5400
  %5418 = vmatprep.subr.bf16.mxu0 %v5405
  %5419 = vmatpush1.bf16.msra.mxu0 %v5404
  %5420 = vmatprep.subr.bf16.mxu0 0
  %5421 = vmatpush1.bf16.msra.mxu0 0
  %5422 = vmatprep.subr.bf16.mxu0 0
  %5423 = vmatpush1.bf16.msra.mxu0 0
  %5424 = vmatprep.subr.bf16.mxu0 0
  %5425 = vmatpush1.bf16.msra.mxu0 0
  %5426 = vmatprep.subr.bf16.mxu0 0
  %5427 = vmatpush1.bf16.msra.mxu0 0
  %5428 = vmatprep.subr.bf16.mxu0 0
  %5429 = vmatpush1.bf16.msra.mxu0 0
  %5430 = vmatprep.subr.bf16.mxu0 0
  %5431 = vmatpush1.bf16.msra.mxu0 0
  %5432 = vmatprep.subr.bf16.mxu0 0
  %5433 = vmatpush1.bf16.msra.mxu0 0
  %5434 = vmatprep.subr.bf16.mxu0 0
  %5435 = vmatpush1.bf16.msra.mxu0 0
  %5436 = vmatprep.subr.bf16.mxu0 0
  %5437 = vmatpush1.bf16.msra.mxu0 0
  %5438 = vmatprep.subr.bf16.mxu0 0
  %5439 = vmatpush1.bf16.msra.mxu0 0
  %5440 = vmatprep.subr.bf16.mxu0 0
  %5441 = vmatpush1.bf16.msra.mxu0 0
  %5442 = vmatprep.subr.bf16.mxu0 0
  %5443 = vmatpush1.bf16.msra.mxu0 0
  %5444 = vmatprep.subr.bf16.mxu0 0
  %5445 = vmatpush1.bf16.msra.mxu0 0
  %5446 = vmatprep.subr.bf16.mxu0 0
  %5447 = vmatpush1.bf16.msra.mxu0 0
  %5448 = vmatprep.mubr.bf16.mxu0 0
  %5449 = vmatmul.mubr.bf16.gmra.mrb[0].mxu0 %v4877
  %v5450 = vpop.f32.mrb[0].mxu0
  %v5451 = vadd.f32 0.0, %v5450
  %v5452 = vpop.f32.mrb[0].mxu0
  %v5453 = vadd.f32 0.0, %v5452
  %v5454 = vpop.f32.mrb[0].mxu0
  %v5455 = vpop.f32.mrb[0].mxu0
  %5456 = vdwg.mxu0
  %5457 = vmatprep.subr.bf16.mxu0 %v5403
  %5458 = vmatpush1.bf16.msra.mxu0 %v5402
  %5459 = vmatprep.subr.bf16.mxu0 %v5407
  %5460 = vmatpush1.bf16.msra.mxu0 %v5406
  %5461 = vmatprep.subr.bf16.mxu0 0
  %5462 = vmatpush1.bf16.msra.mxu0 0
  %5463 = vmatprep.subr.bf16.mxu0 0
  %5464 = vmatpush1.bf16.msra.mxu0 0
  %5465 = vmatprep.subr.bf16.mxu0 0
  %5466 = vmatpush1.bf16.msra.mxu0 0
  %5467 = vmatprep.subr.bf16.mxu0 0
  %5468 = vmatpush1.bf16.msra.mxu0 0
  %5469 = vmatprep.subr.bf16.mxu0 0
  %5470 = vmatpush1.bf16.msra.mxu0 0
  %5471 = vmatprep.subr.bf16.mxu0 0
  %5472 = vmatpush1.bf16.msra.mxu0 0
  %5473 = vmatprep.subr.bf16.mxu0 0
  %5474 = vmatpush1.bf16.msra.mxu0 0
  %5475 = vmatprep.subr.bf16.mxu0 0
  %5476 = vmatpush1.bf16.msra.mxu0 0
  %5477 = vmatprep.subr.bf16.mxu0 0
  %5478 = vmatpush1.bf16.msra.mxu0 0
  %5479 = vmatprep.subr.bf16.mxu0 0
  %5480 = vmatpush1.bf16.msra.mxu0 0
  %5481 = vmatprep.subr.bf16.mxu0 0
  %5482 = vmatpush1.bf16.msra.mxu0 0
  %5483 = vmatprep.subr.bf16.mxu0 0
  %5484 = vmatpush1.bf16.msra.mxu0 0
  %5485 = vmatprep.subr.bf16.mxu0 0
  %5486 = vmatpush1.bf16.msra.mxu0 0
  %5487 = vmatprep.subr.bf16.mxu0 0
  %5488 = vmatpush1.bf16.msra.mxu0 0
  %5489 = vmatprep.mubr.bf16.mxu0 0
  %5490 = vmatmul.mubr.bf16.gmra.mrb[0].mxu0 %v4877
  %v5491 = vpop.f32.mrb[0].mxu0
  %v5492 = vadd.f32 0.0, %v5491
  %v5493 = vpop.f32.mrb[0].mxu0
  %v5494 = vadd.f32 0.0, %v5493
  %v5495 = vpop.f32.mrb[0].mxu0
  %v5496 = vpop.f32.mrb[0].mxu0
  %5497 = vdwg.mxu0
  %v5506 = vunpack.c.l.b16 %v5360
  %v5507 = vunpack.c.h.b16 %v5360
  %v5508 = vunpack.c.l.b16 %v5361
  %v5509 = vunpack.c.h.b16 %v5361
  %v5510 = vunpack.c.l.b16 %v5362
  %v5511 = vunpack.c.h.b16 %v5362
  %v5512 = vunpack.c.l.b16 %v5363
  %v5513 = vunpack.c.h.b16 %v5363
  %v5514 = vunpack.c.l.b16 %v5364
  %v5515 = vunpack.c.h.b16 %v5364
  %v5516 = vunpack.c.l.b16 %v5365
  %v5517 = vunpack.c.h.b16 %v5365
  %v5518 = vunpack.c.l.b16 %v5366
  %v5519 = vunpack.c.h.b16 %v5366
  %v5520 = vunpack.c.l.b16 %v5367
  %v5521 = vunpack.c.h.b16 %v5367
  %v5522 = vpack.c.b16 %v5510, %v5506
  %v5523 = vpack.c.b16 %v5511, %v5507
  %v5524 = vpack.c.b16 %v5512, %v5508
  %v5525 = vpack.c.b16 %v5513, %v5509
  %v5526 = vpack.c.b16 %v5518, %v5514
  %v5527 = vpack.c.b16 %v5519, %v5515
  %v5528 = vpack.c.b16 %v5520, %v5516
  %v5529 = vpack.c.b16 %v5521, %v5517
  %v5539 = vsel %vm91, %v5359, 0
  %5541 = vmatprep.subr.bf16.mxu0 %v5523
  %5542 = vmatpush1.bf16.msra.mxu0 %v5522
  %5543 = vmatprep.subr.bf16.mxu0 %v5527
  %5544 = vmatpush1.bf16.msra.mxu0 %v5526
  %5545 = vmatprep.subr.bf16.mxu0 0
  %5546 = vmatpush1.bf16.msra.mxu0 0
  %5547 = vmatprep.subr.bf16.mxu0 0
  %5548 = vmatpush1.bf16.msra.mxu0 0
  %5549 = vmatprep.subr.bf16.mxu0 0
  %5550 = vmatpush1.bf16.msra.mxu0 0
  %5551 = vmatprep.subr.bf16.mxu0 0
  %5552 = vmatpush1.bf16.msra.mxu0 0
  %5553 = vmatprep.subr.bf16.mxu0 0
  %5554 = vmatpush1.bf16.msra.mxu0 0
  %5555 = vmatprep.subr.bf16.mxu0 0
  %5556 = vmatpush1.bf16.msra.mxu0 0
  %5557 = vmatprep.subr.bf16.mxu0 0
  %5558 = vmatpush1.bf16.msra.mxu0 0
  %5559 = vmatprep.subr.bf16.mxu0 0
  %5560 = vmatpush1.bf16.msra.mxu0 0
  %5561 = vmatprep.subr.bf16.mxu0 0
  %5562 = vmatpush1.bf16.msra.mxu0 0
  %5563 = vmatprep.subr.bf16.mxu0 0
  %5564 = vmatpush1.bf16.msra.mxu0 0
  %5565 = vmatprep.subr.bf16.mxu0 0
  %5566 = vmatpush1.bf16.msra.mxu0 0
  %5567 = vmatprep.subr.bf16.mxu0 0
  %5568 = vmatpush1.bf16.msra.mxu0 0
  %5569 = vmatprep.subr.bf16.mxu0 0
  %5570 = vmatpush1.bf16.msra.mxu0 0
  %5571 = vmatprep.subr.bf16.mxu0 0
  %5572 = vmatpush1.bf16.msra.mxu0 0
  %5573 = vmatprep.mubr.bf16.mxu0 0
  %5574 = vmatmul.mubr.bf16.gmra.mrb[0].mxu0 %v5539
  %v5575 = vpop.f32.mrb[0].mxu0
  %v5576 = vadd.f32 %v5451, %v5575
  %v5577 = vpop.f32.mrb[0].mxu0
  %v5578 = vadd.f32 %v5453, %v5577
  %v5579 = vpop.f32.mrb[0].mxu0
  %v5580 = vpop.f32.mrb[0].mxu0
  %5581 = vdwg.mxu0
  %5582 = vmatprep.subr.bf16.mxu0 %v5525
  %5583 = vmatpush1.bf16.msra.mxu0 %v5524
  %5584 = vmatprep.subr.bf16.mxu0 %v5529
  %5585 = vmatpush1.bf16.msra.mxu0 %v5528
  %5586 = vmatprep.subr.bf16.mxu0 0
  %5587 = vmatpush1.bf16.msra.mxu0 0
  %5588 = vmatprep.subr.bf16.mxu0 0
  %5589 = vmatpush1.bf16.msra.mxu0 0
  %5590 = vmatprep.subr.bf16.mxu0 0
  %5591 = vmatpush1.bf16.msra.mxu0 0
  %5592 = vmatprep.subr.bf16.mxu0 0
  %5593 = vmatpush1.bf16.msra.mxu0 0
  %5594 = vmatprep.subr.bf16.mxu0 0
  %5595 = vmatpush1.bf16.msra.mxu0 0
  %5596 = vmatprep.subr.bf16.mxu0 0
  %5597 = vmatpush1.bf16.msra.mxu0 0
  %5598 = vmatprep.subr.bf16.mxu0 0
  %5599 = vmatpush1.bf16.msra.mxu0 0
  %5600 = vmatprep.subr.bf16.mxu0 0
  %5601 = vmatpush1.bf16.msra.mxu0 0
  %5602 = vmatprep.subr.bf16.mxu0 0
  %5603 = vmatpush1.bf16.msra.mxu0 0
  %5604 = vmatprep.subr.bf16.mxu0 0
  %5605 = vmatpush1.bf16.msra.mxu0 0
  %5606 = vmatprep.subr.bf16.mxu0 0
  %5607 = vmatpush1.bf16.msra.mxu0 0
  %5608 = vmatprep.subr.bf16.mxu0 0
  %5609 = vmatpush1.bf16.msra.mxu0 0
  %5610 = vmatprep.subr.bf16.mxu0 0
  %5611 = vmatpush1.bf16.msra.mxu0 0
  %5612 = vmatprep.subr.bf16.mxu0 0
  %5613 = vmatpush1.bf16.msra.mxu0 0
  %5614 = vmatprep.mubr.bf16.mxu0 0
  %5615 = vmatmul.mubr.bf16.gmra.mrb[0].mxu0 %v5539
  %v5616 = vpop.f32.mrb[0].mxu0
  %v5617 = vadd.f32 %v5492, %v5616
  %v5618 = vpop.f32.mrb[0].mxu0
  %v5619 = vadd.f32 %v5494, %v5618
  %v5620 = vpop.f32.mrb[0].mxu0
  %v5621 = vpop.f32.mrb[0].mxu0
  %5622 = vdwg.mxu0
  %v5623 = vld [vmem:[%s6] sm:$0xf]
  %v5625 = vlaneseq
  %v5626 = vshrl.u32 %v5625, 7
  %v5627 = vsub.s32 0, %v5626
  %v5628 = vrot.slane %v5623, %v5627
  %v5629 = vlaneseq
  %v5630 = vshrl.u32 %v5629, 7
  %v5631 = vsub.s32 1, %v5630
  %v5632 = vrot.slane %v5623, %v5631
  %v5633 = vlaneseq
  %v5634 = vshrl.u32 %v5633, 7
  %v5635 = vsub.s32 2, %v5634
  %v5636 = vrot.slane %v5623, %v5635
  %v5637 = vlaneseq
  %v5638 = vshrl.u32 %v5637, 7
  %v5639 = vsub.s32 3, %v5638
  %v5640 = vrot.slane %v5623, %v5639
  %v5645 = vadd.f32 %v5576, %v5628
  %v5646 = vadd.f32 %v5578, %v5632
  %v5647 = vadd.f32 %v5617, %v5636
  %v5648 = vadd.f32 %v5619, %v5640
  %v5649 = vxor.u32 %v5645, 2147483648
  %v5650 = vmul.f32 %v5649, 1.442695
  %v5651 = vpow.pop %v5650
  %v5652 = vadd.f32 %v5651, 1.0
  %v5653 = vrcp.pop %v5652
  %v5654 = vmul.f32 1.0, %v5653
  %v5655 = vxor.u32 %v5646, 2147483648
  %v5656 = vmul.f32 %v5655, 1.442695
  %v5657 = vpow.pop %v5656
  %v5658 = vadd.f32 %v5657, 1.0
  %v5659 = vrcp.pop %v5658
  %v5660 = vmul.f32 1.0, %v5659
  %v5661 = vtanh.pop %v5647
  %v5662 = vxor.u32 %v5648, 2147483648
  %v5663 = vmul.f32 %v5662, 1.442695
  %v5664 = vpow.pop %v5663
  %v5665 = vadd.f32 %v5664, 1.0
  %v5666 = vrcp.pop %v5665
  %v5667 = vmul.f32 1.0, %v5666
  %v5668 = vmul.f32 %v5660, %v4849
  %v5669 = vmul.f32 %v5654, %v5661
  %v5670 = vadd.f32 %v5668, %v5669
  %v5671 = vtanh.pop %v5670
  %v5672 = vmul.f32 %v5667, %v5671
  %v5673 = vpack.c.bf16 %v5672, %v5672
  %v5674 = vld [vmem:[%s8] sm:$0xf]
  %v5675 = vld [vmem:[%s8 + $0x4] sm:$0xf]
  %v5676 = vld [vmem:[%s8 + $0x8] sm:$0xf]
  %v5677 = vld [vmem:[%s8 + $0xc] sm:$0xf]
  %v5678 = vld [vmem:[%s9] sm:$0x1]
  %v5680 = vlaneseq
  %v5681 = vshrl.u32 %v5680, 7
  %v5682 = vsub.s32 0, %v5681
  %v5683 = vrot.slane %v5678, %v5682
  %v5689 = vunpack.c.l.b16 %v5674
  %v5690 = vunpack.c.l.b16 %v5675
  %v5691 = vunpack.c.l.b16 %v5676
  %v5692 = vunpack.c.l.b16 %v5677
  %v5693 = vpack.c.b16 %v5690, %v5689
  %v5694 = vpack.c.b16 %v5692, %v5691
  %v5698 = vsel %vm91, %v5673, 0
  %5700 = vmatprep.subr.bf16.mxu0 0
  %5701 = vmatpush1.bf16.msra.mxu0 %v5693
  %5702 = vmatprep.subr.bf16.mxu0 0
  %5703 = vmatpush1.bf16.msra.mxu0 %v5694
  %5704 = vmatprep.subr.bf16.mxu0 0
  %5705 = vmatpush1.bf16.msra.mxu0 0
  %5706 = vmatprep.subr.bf16.mxu0 0
  %5707 = vmatpush1.bf16.msra.mxu0 0
  %5708 = vmatprep.subr.bf16.mxu0 0
  %5709 = vmatpush1.bf16.msra.mxu0 0
  %5710 = vmatprep.subr.bf16.mxu0 0
  %5711 = vmatpush1.bf16.msra.mxu0 0
  %5712 = vmatprep.subr.bf16.mxu0 0
  %5713 = vmatpush1.bf16.msra.mxu0 0
  %5714 = vmatprep.subr.bf16.mxu0 0
  %5715 = vmatpush1.bf16.msra.mxu0 0
  %5716 = vmatprep.subr.bf16.mxu0 0
  %5717 = vmatpush1.bf16.msra.mxu0 0
  %5718 = vmatprep.subr.bf16.mxu0 0
  %5719 = vmatpush1.bf16.msra.mxu0 0
  %5720 = vmatprep.subr.bf16.mxu0 0
  %5721 = vmatpush1.bf16.msra.mxu0 0
  %5722 = vmatprep.subr.bf16.mxu0 0
  %5723 = vmatpush1.bf16.msra.mxu0 0
  %5724 = vmatprep.subr.bf16.mxu0 0
  %5725 = vmatpush1.bf16.msra.mxu0 0
  %5726 = vmatprep.subr.bf16.mxu0 0
  %5727 = vmatpush1.bf16.msra.mxu0 0
  %5728 = vmatprep.subr.bf16.mxu0 0
  %5729 = vmatpush1.bf16.msra.mxu0 0
  %5730 = vmatprep.subr.bf16.mxu0 0
  %5731 = vmatpush1.bf16.msra.mxu0 0
  %5732 = vmatprep.mubr.bf16.mxu0 0
  %5733 = vmatmul.mubr.bf16.gmra.mrb[0].mxu0 %v5698
  %v5734 = vpop.f32.mrb[0].mxu0
  %v5735 = vadd.f32 %v5683, %v5734
  %v5736 = vpop.f32.mrb[0].mxu0
  %v5737 = vpop.f32.mrb[0].mxu0
  %v5738 = vpop.f32.mrb[0].mxu0
  %5739 = vdwg.mxu0
  %s5740 = scalar_lea.vmem %s11, 32
  %5741 = vst [vmem:[%s5740] sm:$0xff] %v5735
  %5742 = vmax.xlane.f32.xlu0 %v5735
  %v5743 = vpop.xlane.xlu0 %5742
  %vm5744 = vcmp.ge.f32.partialorder %v5735, %v5743
  %v5745 = vsel %vm5744, %v2728, 128.0
  %5746 = vmin.xlane.f32.xlu0 %v5745
  %v5747 = vpop.xlane.xlu0 %5746
  %vm5748 = vcmp.eq.f32.partialorder %v2728, %v5747
  %v5749 = vsel %vm5748, 1, 0
  %v5750 = vcvt.s32.f32 %v5749
  %v5751 = vpack.c.bf16 %v5750, %v5750
  %v5752 = vld [vmem:[%s7] sm:$0xff]
  %v5753 = vld [vmem:[%s7 + $0x8] sm:$0xff]
  %v5754 = vld [vmem:[%s7 + $0x10] sm:$0xff]
  %v5755 = vld [vmem:[%s7 + $0x18] sm:$0xff]
  %v5756 = vld [vmem:[%s7 + $0x20] sm:$0xff]
  %v5757 = vld [vmem:[%s7 + $0x28] sm:$0xff]
  %v5758 = vld [vmem:[%s7 + $0x30] sm:$0xff]
  %v5759 = vld [vmem:[%s7 + $0x38] sm:$0xff]
  %v5760 = vld [vmem:[%s7 + $0x40] sm:$0xff]
  %v5761 = vld [vmem:[%s7 + $0x48] sm:$0xff]
  %v5762 = vld [vmem:[%s7 + $0x50] sm:$0xff]
  %v5763 = vld [vmem:[%s7 + $0x58] sm:$0xff]
  %v5764 = vld [vmem:[%s7 + $0x60] sm:$0xff]
  %v5765 = vld [vmem:[%s7 + $0x68] sm:$0xff]
  %v5766 = vld [vmem:[%s7 + $0x70] sm:$0xff]
  %v5767 = vld [vmem:[%s7 + $0x78] sm:$0xff]
  %v5768 = vld [vmem:[%s7 + $0x80] sm:$0xff]
  %v5769 = vld [vmem:[%s7 + $0x88] sm:$0xff]
  %v5770 = vld [vmem:[%s7 + $0x90] sm:$0xff]
  %v5771 = vld [vmem:[%s7 + $0x98] sm:$0xff]
  %v5772 = vld [vmem:[%s7 + $0xa0] sm:$0xff]
  %v5773 = vld [vmem:[%s7 + $0xa8] sm:$0xff]
  %v5774 = vld [vmem:[%s7 + $0xb0] sm:$0xff]
  %v5775 = vld [vmem:[%s7 + $0xb8] sm:$0xff]
  %v5776 = vld [vmem:[%s7 + $0xc0] sm:$0xff]
  %v5777 = vld [vmem:[%s7 + $0xc8] sm:$0xff]
  %v5778 = vld [vmem:[%s7 + $0xd0] sm:$0xff]
  %v5779 = vld [vmem:[%s7 + $0xd8] sm:$0xff]
  %v5780 = vld [vmem:[%s7 + $0xe0] sm:$0xff]
  %v5781 = vld [vmem:[%s7 + $0xe8] sm:$0xff]
  %v5782 = vld [vmem:[%s7 + $0xf0] sm:$0xff]
  %v5783 = vld [vmem:[%s7 + $0xf8] sm:$0xff]
  %v5784 = vld [vmem:[%s4] sm:$0xff]
  %v5785 = vld [vmem:[%s4 + $0x8] sm:$0xff]
  %v5786 = vld [vmem:[%s4 + $0x10] sm:$0xff]
  %v5787 = vld [vmem:[%s4 + $0x18] sm:$0xff]
  %v5788 = vld [vmem:[%s4 + $0x20] sm:$0xff]
  %v5789 = vld [vmem:[%s4 + $0x28] sm:$0xff]
  %v5790 = vld [vmem:[%s4 + $0x30] sm:$0xff]
  %v5791 = vld [vmem:[%s4 + $0x38] sm:$0xff]
  %v5800 = vunpack.c.l.b16 %v5784
  %v5801 = vunpack.c.h.b16 %v5784
  %v5802 = vunpack.c.l.b16 %v5785
  %v5803 = vunpack.c.h.b16 %v5785
  %v5804 = vunpack.c.l.b16 %v5786
  %v5805 = vunpack.c.h.b16 %v5786
  %v5806 = vunpack.c.l.b16 %v5787
  %v5807 = vunpack.c.h.b16 %v5787
  %v5808 = vunpack.c.l.b16 %v5788
  %v5809 = vunpack.c.h.b16 %v5788
  %v5810 = vunpack.c.l.b16 %v5789
  %v5811 = vunpack.c.h.b16 %v5789
  %v5812 = vunpack.c.l.b16 %v5790
  %v5813 = vunpack.c.h.b16 %v5790
  %v5814 = vunpack.c.l.b16 %v5791
  %v5815 = vunpack.c.h.b16 %v5791
  %v5816 = vpack.c.b16 %v5804, %v5800
  %v5817 = vpack.c.b16 %v5805, %v5801
  %v5818 = vpack.c.b16 %v5806, %v5802
  %v5819 = vpack.c.b16 %v5807, %v5803
  %v5820 = vpack.c.b16 %v5812, %v5808
  %v5821 = vpack.c.b16 %v5813, %v5809
  %v5822 = vpack.c.b16 %v5814, %v5810
  %v5823 = vpack.c.b16 %v5815, %v5811
  %5832 = vmatprep.subr.bf16.mxu0 %v5817
  %5833 = vmatpush1.bf16.msra.mxu0 %v5816
  %5834 = vmatprep.subr.bf16.mxu0 %v5821
  %5835 = vmatpush1.bf16.msra.mxu0 %v5820
  %5836 = vmatprep.subr.bf16.mxu0 0
  %5837 = vmatpush1.bf16.msra.mxu0 0
  %5838 = vmatprep.subr.bf16.mxu0 0
  %5839 = vmatpush1.bf16.msra.mxu0 0
  %5840 = vmatprep.subr.bf16.mxu0 0
  %5841 = vmatpush1.bf16.msra.mxu0 0
  %5842 = vmatprep.subr.bf16.mxu0 0
  %5843 = vmatpush1.bf16.msra.mxu0 0
  %5844 = vmatprep.subr.bf16.mxu0 0
  %5845 = vmatpush1.bf16.msra.mxu0 0
  %5846 = vmatprep.subr.bf16.mxu0 0
  %5847 = vmatpush1.bf16.msra.mxu0 0
  %5848 = vmatprep.subr.bf16.mxu0 0
  %5849 = vmatpush1.bf16.msra.mxu0 0
  %5850 = vmatprep.subr.bf16.mxu0 0
  %5851 = vmatpush1.bf16.msra.mxu0 0
  %5852 = vmatprep.subr.bf16.mxu0 0
  %5853 = vmatpush1.bf16.msra.mxu0 0
  %5854 = vmatprep.subr.bf16.mxu0 0
  %5855 = vmatpush1.bf16.msra.mxu0 0
  %5856 = vmatprep.subr.bf16.mxu0 0
  %5857 = vmatpush1.bf16.msra.mxu0 0
  %5858 = vmatprep.subr.bf16.mxu0 0
  %5859 = vmatpush1.bf16.msra.mxu0 0
  %5860 = vmatprep.subr.bf16.mxu0 0
  %5861 = vmatpush1.bf16.msra.mxu0 0
  %5862 = vmatprep.subr.bf16.mxu0 0
  %5863 = vmatpush1.bf16.msra.mxu0 0
  %5864 = vmatprep.mubr.bf16.mxu0 0
  %5865 = vmatmul.mubr.bf16.gmra.mrb[0].mxu0 %v5539
  %v5866 = vpop.f32.mrb[0].mxu0
  %v5867 = vadd.f32 0.0, %v5866
  %v5868 = vpop.f32.mrb[0].mxu0
  %v5869 = vadd.f32 0.0, %v5868
  %v5870 = vpop.f32.mrb[0].mxu0
  %v5871 = vpop.f32.mrb[0].mxu0
  %5872 = vdwg.mxu0
  %5873 = vmatprep.subr.bf16.mxu0 %v5819
  %5874 = vmatpush1.bf16.msra.mxu0 %v5818
  %5875 = vmatprep.subr.bf16.mxu0 %v5823
  %5876 = vmatpush1.bf16.msra.mxu0 %v5822
  %5877 = vmatprep.subr.bf16.mxu0 0
  %5878 = vmatpush1.bf16.msra.mxu0 0
  %5879 = vmatprep.subr.bf16.mxu0 0
  %5880 = vmatpush1.bf16.msra.mxu0 0
  %5881 = vmatprep.subr.bf16.mxu0 0
  %5882 = vmatpush1.bf16.msra.mxu0 0
  %5883 = vmatprep.subr.bf16.mxu0 0
  %5884 = vmatpush1.bf16.msra.mxu0 0
  %5885 = vmatprep.subr.bf16.mxu0 0
  %5886 = vmatpush1.bf16.msra.mxu0 0
  %5887 = vmatprep.subr.bf16.mxu0 0
  %5888 = vmatpush1.bf16.msra.mxu0 0
  %5889 = vmatprep.subr.bf16.mxu0 0
  %5890 = vmatpush1.bf16.msra.mxu0 0
  %5891 = vmatprep.subr.bf16.mxu0 0
  %5892 = vmatpush1.bf16.msra.mxu0 0
  %5893 = vmatprep.subr.bf16.mxu0 0
  %5894 = vmatpush1.bf16.msra.mxu0 0
  %5895 = vmatprep.subr.bf16.mxu0 0
  %5896 = vmatpush1.bf16.msra.mxu0 0
  %5897 = vmatprep.subr.bf16.mxu0 0
  %5898 = vmatpush1.bf16.msra.mxu0 0
  %5899 = vmatprep.subr.bf16.mxu0 0
  %5900 = vmatpush1.bf16.msra.mxu0 0
  %5901 = vmatprep.subr.bf16.mxu0 0
  %5902 = vmatpush1.bf16.msra.mxu0 0
  %5903 = vmatprep.subr.bf16.mxu0 0
  %5904 = vmatpush1.bf16.msra.mxu0 0
  %5905 = vmatprep.mubr.bf16.mxu0 0
  %5906 = vmatmul.mubr.bf16.gmra.mrb[0].mxu0 %v5539
  %v5907 = vpop.f32.mrb[0].mxu0
  %v5908 = vadd.f32 0.0, %v5907
  %v5909 = vpop.f32.mrb[0].mxu0
  %v5910 = vadd.f32 0.0, %v5909
  %v5911 = vpop.f32.mrb[0].mxu0
  %v5912 = vpop.f32.mrb[0].mxu0
  %5913 = vdwg.mxu0
  %v5946 = vunpack.c.l.b16 %v5752
  %v5947 = vunpack.c.h.b16 %v5752
  %v5948 = vunpack.c.l.b16 %v5753
  %v5949 = vunpack.c.h.b16 %v5753
  %v5950 = vunpack.c.l.b16 %v5754
  %v5951 = vunpack.c.h.b16 %v5754
  %v5952 = vunpack.c.l.b16 %v5755
  %v5953 = vunpack.c.h.b16 %v5755
  %v5954 = vunpack.c.l.b16 %v5756
  %v5955 = vunpack.c.h.b16 %v5756
  %v5956 = vunpack.c.l.b16 %v5757
  %v5957 = vunpack.c.h.b16 %v5757
  %v5958 = vunpack.c.l.b16 %v5758
  %v5959 = vunpack.c.h.b16 %v5758
  %v5960 = vunpack.c.l.b16 %v5759
  %v5961 = vunpack.c.h.b16 %v5759
  %v5962 = vunpack.c.l.b16 %v5760
  %v5963 = vunpack.c.h.b16 %v5760
  %v5964 = vunpack.c.l.b16 %v5761
  %v5965 = vunpack.c.h.b16 %v5761
  %v5966 = vunpack.c.l.b16 %v5762
  %v5967 = vunpack.c.h.b16 %v5762
  %v5968 = vunpack.c.l.b16 %v5763
  %v5969 = vunpack.c.h.b16 %v5763
  %v5970 = vunpack.c.l.b16 %v5764
  %v5971 = vunpack.c.h.b16 %v5764
  %v5972 = vunpack.c.l.b16 %v5765
  %v5973 = vunpack.c.h.b16 %v5765
  %v5974 = vunpack.c.l.b16 %v5766
  %v5975 = vunpack.c.h.b16 %v5766
  %v5976 = vunpack.c.l.b16 %v5767
  %v5977 = vunpack.c.h.b16 %v5767
  %v5978 = vunpack.c.l.b16 %v5768
  %v5979 = vunpack.c.h.b16 %v5768
  %v5980 = vunpack.c.l.b16 %v5769
  %v5981 = vunpack.c.h.b16 %v5769
  %v5982 = vunpack.c.l.b16 %v5770
  %v5983 = vunpack.c.h.b16 %v5770
  %v5984 = vunpack.c.l.b16 %v5771
  %v5985 = vunpack.c.h.b16 %v5771
  %v5986 = vunpack.c.l.b16 %v5772
  %v5987 = vunpack.c.h.b16 %v5772
  %v5988 = vunpack.c.l.b16 %v5773
  %v5989 = vunpack.c.h.b16 %v5773
  %v5990 = vunpack.c.l.b16 %v5774
  %v5991 = vunpack.c.h.b16 %v5774
  %v5992 = vunpack.c.l.b16 %v5775
  %v5993 = vunpack.c.h.b16 %v5775
  %v5994 = vunpack.c.l.b16 %v5776
  %v5995 = vunpack.c.h.b16 %v5776
  %v5996 = vunpack.c.l.b16 %v5777
  %v5997 = vunpack.c.h.b16 %v5777
  %v5998 = vunpack.c.l.b16 %v5778
  %v5999 = vunpack.c.h.b16 %v5778
  %v6000 = vunpack.c.l.b16 %v5779
  %v6001 = vunpack.c.h.b16 %v5779
  %v6002 = vunpack.c.l.b16 %v5780
  %v6003 = vunpack.c.h.b16 %v5780
  %v6004 = vunpack.c.l.b16 %v5781
  %v6005 = vunpack.c.h.b16 %v5781
  %v6006 = vunpack.c.l.b16 %v5782
  %v6007 = vunpack.c.h.b16 %v5782
  %v6008 = vunpack.c.l.b16 %v5783
  %v6009 = vunpack.c.h.b16 %v5783
  %v6010 = vpack.c.b16 %v5950, %v5946
  %v6011 = vpack.c.b16 %v5951, %v5947
  %v6012 = vpack.c.b16 %v5952, %v5948
  %v6013 = vpack.c.b16 %v5953, %v5949
  %v6014 = vpack.c.b16 %v5958, %v5954
  %v6015 = vpack.c.b16 %v5959, %v5955
  %v6016 = vpack.c.b16 %v5960, %v5956
  %v6017 = vpack.c.b16 %v5961, %v5957
  %v6018 = vpack.c.b16 %v5966, %v5962
  %v6019 = vpack.c.b16 %v5967, %v5963
  %v6020 = vpack.c.b16 %v5968, %v5964
  %v6021 = vpack.c.b16 %v5969, %v5965
  %v6022 = vpack.c.b16 %v5974, %v5970
  %v6023 = vpack.c.b16 %v5975, %v5971
  %v6024 = vpack.c.b16 %v5976, %v5972
  %v6025 = vpack.c.b16 %v5977, %v5973
  %v6026 = vpack.c.b16 %v5982, %v5978
  %v6027 = vpack.c.b16 %v5983, %v5979
  %v6028 = vpack.c.b16 %v5984, %v5980
  %v6029 = vpack.c.b16 %v5985, %v5981
  %v6030 = vpack.c.b16 %v5990, %v5986
  %v6031 = vpack.c.b16 %v5991, %v5987
  %v6032 = vpack.c.b16 %v5992, %v5988
  %v6033 = vpack.c.b16 %v5993, %v5989
  %v6034 = vpack.c.b16 %v5998, %v5994
  %v6035 = vpack.c.b16 %v5999, %v5995
  %v6036 = vpack.c.b16 %v6000, %v5996
  %v6037 = vpack.c.b16 %v6001, %v5997
  %v6038 = vpack.c.b16 %v6006, %v6002
  %v6039 = vpack.c.b16 %v6007, %v6003
  %v6040 = vpack.c.b16 %v6008, %v6004
  %v6041 = vpack.c.b16 %v6009, %v6005
  %6074 = vmatprep.subr.bf16.mxu0 %v6011
  %6075 = vmatpush1.bf16.msra.mxu0 %v6010
  %6076 = vmatprep.subr.bf16.mxu0 %v6015
  %6077 = vmatpush1.bf16.msra.mxu0 %v6014
  %6078 = vmatprep.subr.bf16.mxu0 %v6019
  %6079 = vmatpush1.bf16.msra.mxu0 %v6018
  %6080 = vmatprep.subr.bf16.mxu0 %v6023
  %6081 = vmatpush1.bf16.msra.mxu0 %v6022
  %6082 = vmatprep.subr.bf16.mxu0 %v6027
  %6083 = vmatpush1.bf16.msra.mxu0 %v6026
  %6084 = vmatprep.subr.bf16.mxu0 %v6031
  %6085 = vmatpush1.bf16.msra.mxu0 %v6030
  %6086 = vmatprep.subr.bf16.mxu0 %v6035
  %6087 = vmatpush1.bf16.msra.mxu0 %v6034
  %6088 = vmatprep.subr.bf16.mxu0 %v6039
  %6089 = vmatpush1.bf16.msra.mxu0 %v6038
  %6090 = vmatprep.subr.bf16.mxu0 0
  %6091 = vmatpush1.bf16.msra.mxu0 0
  %6092 = vmatprep.subr.bf16.mxu0 0
  %6093 = vmatpush1.bf16.msra.mxu0 0
  %6094 = vmatprep.subr.bf16.mxu0 0
  %6095 = vmatpush1.bf16.msra.mxu0 0
  %6096 = vmatprep.subr.bf16.mxu0 0
  %6097 = vmatpush1.bf16.msra.mxu0 0
  %6098 = vmatprep.subr.bf16.mxu0 0
  %6099 = vmatpush1.bf16.msra.mxu0 0
  %6100 = vmatprep.subr.bf16.mxu0 0
  %6101 = vmatpush1.bf16.msra.mxu0 0
  %6102 = vmatprep.subr.bf16.mxu0 0
  %6103 = vmatpush1.bf16.msra.mxu0 0
  %6104 = vmatprep.subr.bf16.mxu0 0
  %6105 = vmatpush1.bf16.msra.mxu0 0
  %6106 = vmatprep.mubr.bf16.mxu0 0
  %6107 = vmatmul.mubr.bf16.gmra.mrb[0].mxu0 %v5751
  %v6108 = vpop.f32.mrb[0].mxu0
  %v6109 = vadd.f32 %v5867, %v6108
  %v6110 = vpop.f32.mrb[0].mxu0
  %v6111 = vadd.f32 %v5869, %v6110
  %v6112 = vpop.f32.mrb[0].mxu0
  %v6113 = vpop.f32.mrb[0].mxu0
  %6114 = vdwg.mxu0
  %6115 = vmatprep.subr.bf16.mxu0 %v6013
  %6116 = vmatpush1.bf16.msra.mxu0 %v6012
  %6117 = vmatprep.subr.bf16.mxu0 %v6017
  %6118 = vmatpush1.bf16.msra.mxu0 %v6016
  %6119 = vmatprep.subr.bf16.mxu0 %v6021
  %6120 = vmatpush1.bf16.msra.mxu0 %v6020
  %6121 = vmatprep.subr.bf16.mxu0 %v6025
  %6122 = vmatpush1.bf16.msra.mxu0 %v6024
  %6123 = vmatprep.subr.bf16.mxu0 %v6029
  %6124 = vmatpush1.bf16.msra.mxu0 %v6028
  %6125 = vmatprep.subr.bf16.mxu0 %v6033
  %6126 = vmatpush1.bf16.msra.mxu0 %v6032
  %6127 = vmatprep.subr.bf16.mxu0 %v6037
  %6128 = vmatpush1.bf16.msra.mxu0 %v6036
  %6129 = vmatprep.subr.bf16.mxu0 %v6041
  %6130 = vmatpush1.bf16.msra.mxu0 %v6040
  %6131 = vmatprep.subr.bf16.mxu0 0
  %6132 = vmatpush1.bf16.msra.mxu0 0
  %6133 = vmatprep.subr.bf16.mxu0 0
  %6134 = vmatpush1.bf16.msra.mxu0 0
  %6135 = vmatprep.subr.bf16.mxu0 0
  %6136 = vmatpush1.bf16.msra.mxu0 0
  %6137 = vmatprep.subr.bf16.mxu0 0
  %6138 = vmatpush1.bf16.msra.mxu0 0
  %6139 = vmatprep.subr.bf16.mxu0 0
  %6140 = vmatpush1.bf16.msra.mxu0 0
  %6141 = vmatprep.subr.bf16.mxu0 0
  %6142 = vmatpush1.bf16.msra.mxu0 0
  %6143 = vmatprep.subr.bf16.mxu0 0
  %6144 = vmatpush1.bf16.msra.mxu0 0
  %6145 = vmatprep.subr.bf16.mxu0 0
  %6146 = vmatpush1.bf16.msra.mxu0 0
  %6147 = vmatprep.mubr.bf16.mxu0 0
  %6148 = vmatmul.mubr.bf16.gmra.mrb[0].mxu0 %v5751
  %v6149 = vpop.f32.mrb[0].mxu0
  %v6150 = vadd.f32 %v5908, %v6149
  %v6151 = vpop.f32.mrb[0].mxu0
  %v6152 = vadd.f32 %v5910, %v6151
  %v6153 = vpop.f32.mrb[0].mxu0
  %v6154 = vpop.f32.mrb[0].mxu0
  %6155 = vdwg.mxu0
  %v6156 = vxor.u32 %v6109, 2147483648
  %v6157 = vmul.f32 %v6156, 1.442695
  %v6158 = vpow.pop %v6157
  %v6159 = vadd.f32 %v6158, 1.0
  %v6160 = vrcp.pop %v6159
  %v6161 = vmul.f32 1.0, %v6160
  %v6162 = vxor.u32 %v6111, 2147483648
  %v6163 = vmul.f32 %v6162, 1.442695
  %v6164 = vpow.pop %v6163
  %v6165 = vadd.f32 %v6164, 1.0
  %v6166 = vrcp.pop %v6165
  %v6167 = vmul.f32 1.0, %v6166
  %v6168 = vtanh.pop %v6150
  %v6169 = vxor.u32 %v6152, 2147483648
  %v6170 = vmul.f32 %v6169, 1.442695
  %v6171 = vpow.pop %v6170
  %v6172 = vadd.f32 %v6171, 1.0
  %v6173 = vrcp.pop %v6172
  %v6174 = vmul.f32 1.0, %v6173
  %v6175 = vmul.f32 %v6167, %v5356
  %v6176 = vmul.f32 %v6161, %v6168
  %v6177 = vadd.f32 %v6175, %v6176
  %v6178 = vtanh.pop %v6177
  %v6179 = vmul.f32 %v6174, %v6178
  %v6180 = vpack.c.bf16 %v6179, %v6179
  %v6181 = vld [vmem:[%s5] sm:$0xff]
  %v6182 = vld [vmem:[%s5 + $0x8] sm:$0xff]
  %v6183 = vld [vmem:[%s5 + $0x10] sm:$0xff]
  %v6184 = vld [vmem:[%s5 + $0x18] sm:$0xff]
  %v6185 = vld [vmem:[%s5 + $0x20] sm:$0xff]
  %v6186 = vld [vmem:[%s5 + $0x28] sm:$0xff]
  %v6187 = vld [vmem:[%s5 + $0x30] sm:$0xff]
  %v6188 = vld [vmem:[%s5 + $0x38] sm:$0xff]
  %v6189 = vld [vmem:[%s2901] sm:$0xff]
  %v6190 = vld [vmem:[%s2901 + $0x8] sm:$0xff]
  %v6191 = vld [vmem:[%s2901 + $0x10] sm:$0xff]
  %v6192 = vld [vmem:[%s2901 + $0x18] sm:$0xff]
  %v6193 = vld [vmem:[%s2901 + $0x20] sm:$0xff]
  %v6194 = vld [vmem:[%s2901 + $0x28] sm:$0xff]
  %v6195 = vld [vmem:[%s2901 + $0x30] sm:$0xff]
  %v6196 = vld [vmem:[%s2901 + $0x38] sm:$0xff]
  %v6205 = vunpack.c.l.b16 %v6189
  %v6206 = vunpack.c.h.b16 %v6189
  %v6207 = vunpack.c.l.b16 %v6190
  %v6208 = vunpack.c.h.b16 %v6190
  %v6209 = vunpack.c.l.b16 %v6191
  %v6210 = vunpack.c.h.b16 %v6191
  %v6211 = vunpack.c.l.b16 %v6192
  %v6212 = vunpack.c.h.b16 %v6192
  %v6213 = vunpack.c.l.b16 %v6193
  %v6214 = vunpack.c.h.b16 %v6193
  %v6215 = vunpack.c.l.b16 %v6194
  %v6216 = vunpack.c.h.b16 %v6194
  %v6217 = vunpack.c.l.b16 %v6195
  %v6218 = vunpack.c.h.b16 %v6195
  %v6219 = vunpack.c.l.b16 %v6196
  %v6220 = vunpack.c.h.b16 %v6196
  %v6221 = vpack.c.b16 %v6209, %v6205
  %v6222 = vpack.c.b16 %v6210, %v6206
  %v6223 = vpack.c.b16 %v6211, %v6207
  %v6224 = vpack.c.b16 %v6212, %v6208
  %v6225 = vpack.c.b16 %v6217, %v6213
  %v6226 = vpack.c.b16 %v6218, %v6214
  %v6227 = vpack.c.b16 %v6219, %v6215
  %v6228 = vpack.c.b16 %v6220, %v6216
  %6237 = vmatprep.subr.bf16.mxu0 %v6222
  %6238 = vmatpush1.bf16.msra.mxu0 %v6221
  %6239 = vmatprep.subr.bf16.mxu0 %v6226
  %6240 = vmatpush1.bf16.msra.mxu0 %v6225
  %6241 = vmatprep.subr.bf16.mxu0 0
  %6242 = vmatpush1.bf16.msra.mxu0 0
  %6243 = vmatprep.subr.bf16.mxu0 0
  %6244 = vmatpush1.bf16.msra.mxu0 0
  %6245 = vmatprep.subr.bf16.mxu0 0
  %6246 = vmatpush1.bf16.msra.mxu0 0
  %6247 = vmatprep.subr.bf16.mxu0 0
  %6248 = vmatpush1.bf16.msra.mxu0 0
  %6249 = vmatprep.subr.bf16.mxu0 0
  %6250 = vmatpush1.bf16.msra.mxu0 0
  %6251 = vmatprep.subr.bf16.mxu0 0
  %6252 = vmatpush1.bf16.msra.mxu0 0
  %6253 = vmatprep.subr.bf16.mxu0 0
  %6254 = vmatpush1.bf16.msra.mxu0 0
  %6255 = vmatprep.subr.bf16.mxu0 0
  %6256 = vmatpush1.bf16.msra.mxu0 0
  %6257 = vmatprep.subr.bf16.mxu0 0
  %6258 = vmatpush1.bf16.msra.mxu0 0
  %6259 = vmatprep.subr.bf16.mxu0 0
  %6260 = vmatpush1.bf16.msra.mxu0 0
  %6261 = vmatprep.subr.bf16.mxu0 0
  %6262 = vmatpush1.bf16.msra.mxu0 0
  %6263 = vmatprep.subr.bf16.mxu0 0
  %6264 = vmatpush1.bf16.msra.mxu0 0
  %6265 = vmatprep.subr.bf16.mxu0 0
  %6266 = vmatpush1.bf16.msra.mxu0 0
  %6267 = vmatprep.subr.bf16.mxu0 0
  %6268 = vmatpush1.bf16.msra.mxu0 0
  %6269 = vmatprep.mubr.bf16.mxu0 0
  %6270 = vmatmul.mubr.bf16.gmra.mrb[0].mxu0 %v5698
  %v6271 = vpop.f32.mrb[0].mxu0
  %v6272 = vadd.f32 0.0, %v6271
  %v6273 = vpop.f32.mrb[0].mxu0
  %v6274 = vadd.f32 0.0, %v6273
  %v6275 = vpop.f32.mrb[0].mxu0
  %v6276 = vpop.f32.mrb[0].mxu0
  %6277 = vdwg.mxu0
  %6278 = vmatprep.subr.bf16.mxu0 %v6224
  %6279 = vmatpush1.bf16.msra.mxu0 %v6223
  %6280 = vmatprep.subr.bf16.mxu0 %v6228
  %6281 = vmatpush1.bf16.msra.mxu0 %v6227
  %6282 = vmatprep.subr.bf16.mxu0 0
  %6283 = vmatpush1.bf16.msra.mxu0 0
  %6284 = vmatprep.subr.bf16.mxu0 0
  %6285 = vmatpush1.bf16.msra.mxu0 0
  %6286 = vmatprep.subr.bf16.mxu0 0
  %6287 = vmatpush1.bf16.msra.mxu0 0
  %6288 = vmatprep.subr.bf16.mxu0 0
  %6289 = vmatpush1.bf16.msra.mxu0 0
  %6290 = vmatprep.subr.bf16.mxu0 0
  %6291 = vmatpush1.bf16.msra.mxu0 0
  %6292 = vmatprep.subr.bf16.mxu0 0
  %6293 = vmatpush1.bf16.msra.mxu0 0
  %6294 = vmatprep.subr.bf16.mxu0 0
  %6295 = vmatpush1.bf16.msra.mxu0 0
  %6296 = vmatprep.subr.bf16.mxu0 0
  %6297 = vmatpush1.bf16.msra.mxu0 0
  %6298 = vmatprep.subr.bf16.mxu0 0
  %6299 = vmatpush1.bf16.msra.mxu0 0
  %6300 = vmatprep.subr.bf16.mxu0 0
  %6301 = vmatpush1.bf16.msra.mxu0 0
  %6302 = vmatprep.subr.bf16.mxu0 0
  %6303 = vmatpush1.bf16.msra.mxu0 0
  %6304 = vmatprep.subr.bf16.mxu0 0
  %6305 = vmatpush1.bf16.msra.mxu0 0
  %6306 = vmatprep.subr.bf16.mxu0 0
  %6307 = vmatpush1.bf16.msra.mxu0 0
  %6308 = vmatprep.subr.bf16.mxu0 0
  %6309 = vmatpush1.bf16.msra.mxu0 0
  %6310 = vmatprep.mubr.bf16.mxu0 0
  %6311 = vmatmul.mubr.bf16.gmra.mrb[0].mxu0 %v5698
  %v6312 = vpop.f32.mrb[0].mxu0
  %v6313 = vadd.f32 0.0, %v6312
  %v6314 = vpop.f32.mrb[0].mxu0
  %v6315 = vadd.f32 0.0, %v6314
  %v6316 = vpop.f32.mrb[0].mxu0
  %v6317 = vpop.f32.mrb[0].mxu0
  %6318 = vdwg.mxu0
  %v6327 = vunpack.c.l.b16 %v6181
  %v6328 = vunpack.c.h.b16 %v6181
  %v6329 = vunpack.c.l.b16 %v6182
  %v6330 = vunpack.c.h.b16 %v6182
  %v6331 = vunpack.c.l.b16 %v6183
  %v6332 = vunpack.c.h.b16 %v6183
  %v6333 = vunpack.c.l.b16 %v6184
  %v6334 = vunpack.c.h.b16 %v6184
  %v6335 = vunpack.c.l.b16 %v6185
  %v6336 = vunpack.c.h.b16 %v6185
  %v6337 = vunpack.c.l.b16 %v6186
  %v6338 = vunpack.c.h.b16 %v6186
  %v6339 = vunpack.c.l.b16 %v6187
  %v6340 = vunpack.c.h.b16 %v6187
  %v6341 = vunpack.c.l.b16 %v6188
  %v6342 = vunpack.c.h.b16 %v6188
  %v6343 = vpack.c.b16 %v6331, %v6327
  %v6344 = vpack.c.b16 %v6332, %v6328
  %v6345 = vpack.c.b16 %v6333, %v6329
  %v6346 = vpack.c.b16 %v6334, %v6330
  %v6347 = vpack.c.b16 %v6339, %v6335
  %v6348 = vpack.c.b16 %v6340, %v6336
  %v6349 = vpack.c.b16 %v6341, %v6337
  %v6350 = vpack.c.b16 %v6342, %v6338
  %v6360 = vsel %vm91, %v6180, 0
  %6362 = vmatprep.subr.bf16.mxu0 %v6344
  %6363 = vmatpush1.bf16.msra.mxu0 %v6343
  %6364 = vmatprep.subr.bf16.mxu0 %v6348
  %6365 = vmatpush1.bf16.msra.mxu0 %v6347
  %6366 = vmatprep.subr.bf16.mxu0 0
  %6367 = vmatpush1.bf16.msra.mxu0 0
  %6368 = vmatprep.subr.bf16.mxu0 0
  %6369 = vmatpush1.bf16.msra.mxu0 0
  %6370 = vmatprep.subr.bf16.mxu0 0
  %6371 = vmatpush1.bf16.msra.mxu0 0
  %6372 = vmatprep.subr.bf16.mxu0 0
  %6373 = vmatpush1.bf16.msra.mxu0 0
  %6374 = vmatprep.subr.bf16.mxu0 0
  %6375 = vmatpush1.bf16.msra.mxu0 0
  %6376 = vmatprep.subr.bf16.mxu0 0
  %6377 = vmatpush1.bf16.msra.mxu0 0
  %6378 = vmatprep.subr.bf16.mxu0 0
  %6379 = vmatpush1.bf16.msra.mxu0 0
  %6380 = vmatprep.subr.bf16.mxu0 0
  %6381 = vmatpush1.bf16.msra.mxu0 0
  %6382 = vmatprep.subr.bf16.mxu0 0
  %6383 = vmatpush1.bf16.msra.mxu0 0
  %6384 = vmatprep.subr.bf16.mxu0 0
  %6385 = vmatpush1.bf16.msra.mxu0 0
  %6386 = vmatprep.subr.bf16.mxu0 0
  %6387 = vmatpush1.bf16.msra.mxu0 0
  %6388 = vmatprep.subr.bf16.mxu0 0
  %6389 = vmatpush1.bf16.msra.mxu0 0
  %6390 = vmatprep.subr.bf16.mxu0 0
  %6391 = vmatpush1.bf16.msra.mxu0 0
  %6392 = vmatprep.subr.bf16.mxu0 0
  %6393 = vmatpush1.bf16.msra.mxu0 0
  %6394 = vmatprep.mubr.bf16.mxu0 0
  %6395 = vmatmul.mubr.bf16.gmra.mrb[0].mxu0 %v6360
  %v6396 = vpop.f32.mrb[0].mxu0
  %v6397 = vadd.f32 %v6272, %v6396
  %v6398 = vpop.f32.mrb[0].mxu0
  %v6399 = vadd.f32 %v6274, %v6398
  %v6400 = vpop.f32.mrb[0].mxu0
  %v6401 = vpop.f32.mrb[0].mxu0
  %6402 = vdwg.mxu0
  %6403 = vmatprep.subr.bf16.mxu0 %v6346
  %6404 = vmatpush1.bf16.msra.mxu0 %v6345
  %6405 = vmatprep.subr.bf16.mxu0 %v6350
  %6406 = vmatpush1.bf16.msra.mxu0 %v6349
  %6407 = vmatprep.subr.bf16.mxu0 0
  %6408 = vmatpush1.bf16.msra.mxu0 0
  %6409 = vmatprep.subr.bf16.mxu0 0
  %6410 = vmatpush1.bf16.msra.mxu0 0
  %6411 = vmatprep.subr.bf16.mxu0 0
  %6412 = vmatpush1.bf16.msra.mxu0 0
  %6413 = vmatprep.subr.bf16.mxu0 0
  %6414 = vmatpush1.bf16.msra.mxu0 0
  %6415 = vmatprep.subr.bf16.mxu0 0
  %6416 = vmatpush1.bf16.msra.mxu0 0
  %6417 = vmatprep.subr.bf16.mxu0 0
  %6418 = vmatpush1.bf16.msra.mxu0 0
  %6419 = vmatprep.subr.bf16.mxu0 0
  %6420 = vmatpush1.bf16.msra.mxu0 0
  %6421 = vmatprep.subr.bf16.mxu0 0
  %6422 = vmatpush1.bf16.msra.mxu0 0
  %6423 = vmatprep.subr.bf16.mxu0 0
  %6424 = vmatpush1.bf16.msra.mxu0 0
  %6425 = vmatprep.subr.bf16.mxu0 0
  %6426 = vmatpush1.bf16.msra.mxu0 0
  %6427 = vmatprep.subr.bf16.mxu0 0
  %6428 = vmatpush1.bf16.msra.mxu0 0
  %6429 = vmatprep.subr.bf16.mxu0 0
  %6430 = vmatpush1.bf16.msra.mxu0 0
  %6431 = vmatprep.subr.bf16.mxu0 0
  %6432 = vmatpush1.bf16.msra.mxu0 0
  %6433 = vmatprep.subr.bf16.mxu0 0
  %6434 = vmatpush1.bf16.msra.mxu0 0
  %6435 = vmatprep.mubr.bf16.mxu0 0
  %6436 = vmatmul.mubr.bf16.gmra.mrb[0].mxu0 %v6360
  %v6437 = vpop.f32.mrb[0].mxu0
  %v6438 = vadd.f32 %v6313, %v6437
  %v6439 = vpop.f32.mrb[0].mxu0
  %v6440 = vadd.f32 %v6315, %v6439
  %v6441 = vpop.f32.mrb[0].mxu0
  %v6442 = vpop.f32.mrb[0].mxu0
  %6443 = vdwg.mxu0
  %v6444 = vld [vmem:[%s6] sm:$0xf]
  %v6446 = vlaneseq
  %v6447 = vshrl.u32 %v6446, 7
  %v6448 = vsub.s32 0, %v6447
  %v6449 = vrot.slane %v6444, %v6448
  %v6450 = vlaneseq
  %v6451 = vshrl.u32 %v6450, 7
  %v6452 = vsub.s32 1, %v6451
  %v6453 = vrot.slane %v6444, %v6452
  %v6454 = vlaneseq
  %v6455 = vshrl.u32 %v6454, 7
  %v6456 = vsub.s32 2, %v6455
  %v6457 = vrot.slane %v6444, %v6456
  %v6458 = vlaneseq
  %v6459 = vshrl.u32 %v6458, 7
  %v6460 = vsub.s32 3, %v6459
  %v6461 = vrot.slane %v6444, %v6460
  %v6466 = vadd.f32 %v6397, %v6449
  %v6467 = vadd.f32 %v6399, %v6453
  %v6468 = vadd.f32 %v6438, %v6457
  %v6469 = vadd.f32 %v6440, %v6461
  %v6470 = vxor.u32 %v6466, 2147483648
  %v6471 = vmul.f32 %v6470, 1.442695
  %v6472 = vpow.pop %v6471
  %v6473 = vadd.f32 %v6472, 1.0
  %v6474 = vrcp.pop %v6473
  %v6475 = vmul.f32 1.0, %v6474
  %v6476 = vxor.u32 %v6467, 2147483648
  %v6477 = vmul.f32 %v6476, 1.442695
  %v6478 = vpow.pop %v6477
  %v6479 = vadd.f32 %v6478, 1.0
  %v6480 = vrcp.pop %v6479
  %v6481 = vmul.f32 1.0, %v6480
  %v6482 = vtanh.pop %v6468
  %v6483 = vxor.u32 %v6469, 2147483648
  %v6484 = vmul.f32 %v6483, 1.442695
  %v6485 = vpow.pop %v6484
  %v6486 = vadd.f32 %v6485, 1.0
  %v6487 = vrcp.pop %v6486
  %v6488 = vmul.f32 1.0, %v6487
  %v6489 = vmul.f32 %v6481, %v5670
  %v6490 = vmul.f32 %v6475, %v6482
  %v6491 = vadd.f32 %v6489, %v6490
  %v6492 = vtanh.pop %v6491
  %v6493 = vmul.f32 %v6488, %v6492
  %v6494 = vpack.c.bf16 %v6493, %v6493
  %v6495 = vld [vmem:[%s8] sm:$0xf]
  %v6496 = vld [vmem:[%s8 + $0x4] sm:$0xf]
  %v6497 = vld [vmem:[%s8 + $0x8] sm:$0xf]
  %v6498 = vld [vmem:[%s8 + $0xc] sm:$0xf]
  %v6499 = vld [vmem:[%s9] sm:$0x1]
  %v6501 = vlaneseq
  %v6502 = vshrl.u32 %v6501, 7
  %v6503 = vsub.s32 0, %v6502
  %v6504 = vrot.slane %v6499, %v6503
  %v6510 = vunpack.c.l.b16 %v6495
  %v6511 = vunpack.c.l.b16 %v6496
  %v6512 = vunpack.c.l.b16 %v6497
  %v6513 = vunpack.c.l.b16 %v6498
  %v6514 = vpack.c.b16 %v6511, %v6510
  %v6515 = vpack.c.b16 %v6513, %v6512
  %v6519 = vsel %vm91, %v6494, 0
  %6521 = vmatprep.subr.bf16.mxu0 0
  %6522 = vmatpush1.bf16.msra.mxu0 %v6514
  %6523 = vmatprep.subr.bf16.mxu0 0
  %6524 = vmatpush1.bf16.msra.mxu0 %v6515
  %6525 = vmatprep.subr.bf16.mxu0 0
  %6526 = vmatpush1.bf16.msra.mxu0 0
  %6527 = vmatprep.subr.bf16.mxu0 0
  %6528 = vmatpush1.bf16.msra.mxu0 0
  %6529 = vmatprep.subr.bf16.mxu0 0
  %6530 = vmatpush1.bf16.msra.mxu0 0
  %6531 = vmatprep.subr.bf16.mxu0 0
  %6532 = vmatpush1.bf16.msra.mxu0 0
  %6533 = vmatprep.subr.bf16.mxu0 0
  %6534 = vmatpush1.bf16.msra.mxu0 0
  %6535 = vmatprep.subr.bf16.mxu0 0
  %6536 = vmatpush1.bf16.msra.mxu0 0
  %6537 = vmatprep.subr.bf16.mxu0 0
  %6538 = vmatpush1.bf16.msra.mxu0 0
  %6539 = vmatprep.subr.bf16.mxu0 0
  %6540 = vmatpush1.bf16.msra.mxu0 0
  %6541 = vmatprep.subr.bf16.mxu0 0
  %6542 = vmatpush1.bf16.msra.mxu0 0
  %6543 = vmatprep.subr.bf16.mxu0 0
  %6544 = vmatpush1.bf16.msra.mxu0 0
  %6545 = vmatprep.subr.bf16.mxu0 0
  %6546 = vmatpush1.bf16.msra.mxu0 0
  %6547 = vmatprep.subr.bf16.mxu0 0
  %6548 = vmatpush1.bf16.msra.mxu0 0
  %6549 = vmatprep.subr.bf16.mxu0 0
  %6550 = vmatpush1.bf16.msra.mxu0 0
  %6551 = vmatprep.subr.bf16.mxu0 0
  %6552 = vmatpush1.bf16.msra.mxu0 0
  %6553 = vmatprep.mubr.bf16.mxu0 0
  %6554 = vmatmul.mubr.bf16.gmra.mrb[0].mxu0 %v6519
  %v6555 = vpop.f32.mrb[0].mxu0
  %v6556 = vadd.f32 %v6504, %v6555
  %v6557 = vpop.f32.mrb[0].mxu0
  %v6558 = vpop.f32.mrb[0].mxu0
  %v6559 = vpop.f32.mrb[0].mxu0
  %6560 = vdwg.mxu0
  %s6561 = scalar_lea.vmem %s11, 40
  %6562 = vst [vmem:[%s6561] sm:$0xff] %v6556
  %6563 = vmax.xlane.f32.xlu0 %v6556
  %v6564 = vpop.xlane.xlu0 %6563
  %vm6565 = vcmp.ge.f32.partialorder %v6556, %v6564
  %v6566 = vsel %vm6565, %v2728, 128.0
  %6567 = vmin.xlane.f32.xlu0 %v6566
  %v6568 = vpop.xlane.xlu0 %6567
  %vm6569 = vcmp.eq.f32.partialorder %v2728, %v6568
  %v6570 = vsel %vm6569, 1, 0
  %v6571 = vcvt.s32.f32 %v6570
  %v6572 = vpack.c.bf16 %v6571, %v6571
  %v6573 = vld [vmem:[%s7] sm:$0xff]
  %v6574 = vld [vmem:[%s7 + $0x8] sm:$0xff]
  %v6575 = vld [vmem:[%s7 + $0x10] sm:$0xff]
  %v6576 = vld [vmem:[%s7 + $0x18] sm:$0xff]
  %v6577 = vld [vmem:[%s7 + $0x20] sm:$0xff]
  %v6578 = vld [vmem:[%s7 + $0x28] sm:$0xff]
  %v6579 = vld [vmem:[%s7 + $0x30] sm:$0xff]
  %v6580 = vld [vmem:[%s7 + $0x38] sm:$0xff]
  %v6581 = vld [vmem:[%s7 + $0x40] sm:$0xff]
  %v6582 = vld [vmem:[%s7 + $0x48] sm:$0xff]
  %v6583 = vld [vmem:[%s7 + $0x50] sm:$0xff]
  %v6584 = vld [vmem:[%s7 + $0x58] sm:$0xff]
  %v6585 = vld [vmem:[%s7 + $0x60] sm:$0xff]
  %v6586 = vld [vmem:[%s7 + $0x68] sm:$0xff]
  %v6587 = vld [vmem:[%s7 + $0x70] sm:$0xff]
  %v6588 = vld [vmem:[%s7 + $0x78] sm:$0xff]
  %v6589 = vld [vmem:[%s7 + $0x80] sm:$0xff]
  %v6590 = vld [vmem:[%s7 + $0x88] sm:$0xff]
  %v6591 = vld [vmem:[%s7 + $0x90] sm:$0xff]
  %v6592 = vld [vmem:[%s7 + $0x98] sm:$0xff]
  %v6593 = vld [vmem:[%s7 + $0xa0] sm:$0xff]
  %v6594 = vld [vmem:[%s7 + $0xa8] sm:$0xff]
  %v6595 = vld [vmem:[%s7 + $0xb0] sm:$0xff]
  %v6596 = vld [vmem:[%s7 + $0xb8] sm:$0xff]
  %v6597 = vld [vmem:[%s7 + $0xc0] sm:$0xff]
  %v6598 = vld [vmem:[%s7 + $0xc8] sm:$0xff]
  %v6599 = vld [vmem:[%s7 + $0xd0] sm:$0xff]
  %v6600 = vld [vmem:[%s7 + $0xd8] sm:$0xff]
  %v6601 = vld [vmem:[%s7 + $0xe0] sm:$0xff]
  %v6602 = vld [vmem:[%s7 + $0xe8] sm:$0xff]
  %v6603 = vld [vmem:[%s7 + $0xf0] sm:$0xff]
  %v6604 = vld [vmem:[%s7 + $0xf8] sm:$0xff]
  %v6605 = vld [vmem:[%s4] sm:$0xff]
  %v6606 = vld [vmem:[%s4 + $0x8] sm:$0xff]
  %v6607 = vld [vmem:[%s4 + $0x10] sm:$0xff]
  %v6608 = vld [vmem:[%s4 + $0x18] sm:$0xff]
  %v6609 = vld [vmem:[%s4 + $0x20] sm:$0xff]
  %v6610 = vld [vmem:[%s4 + $0x28] sm:$0xff]
  %v6611 = vld [vmem:[%s4 + $0x30] sm:$0xff]
  %v6612 = vld [vmem:[%s4 + $0x38] sm:$0xff]
  %v6621 = vunpack.c.l.b16 %v6605
  %v6622 = vunpack.c.h.b16 %v6605
  %v6623 = vunpack.c.l.b16 %v6606
  %v6624 = vunpack.c.h.b16 %v6606
  %v6625 = vunpack.c.l.b16 %v6607
  %v6626 = vunpack.c.h.b16 %v6607
  %v6627 = vunpack.c.l.b16 %v6608
  %v6628 = vunpack.c.h.b16 %v6608
  %v6629 = vunpack.c.l.b16 %v6609
  %v6630 = vunpack.c.h.b16 %v6609
  %v6631 = vunpack.c.l.b16 %v6610
  %v6632 = vunpack.c.h.b16 %v6610
  %v6633 = vunpack.c.l.b16 %v6611
  %v6634 = vunpack.c.h.b16 %v6611
  %v6635 = vunpack.c.l.b16 %v6612
  %v6636 = vunpack.c.h.b16 %v6612
  %v6637 = vpack.c.b16 %v6625, %v6621
  %v6638 = vpack.c.b16 %v6626, %v6622
  %v6639 = vpack.c.b16 %v6627, %v6623
  %v6640 = vpack.c.b16 %v6628, %v6624
  %v6641 = vpack.c.b16 %v6633, %v6629
  %v6642 = vpack.c.b16 %v6634, %v6630
  %v6643 = vpack.c.b16 %v6635, %v6631
  %v6644 = vpack.c.b16 %v6636, %v6632
  %6653 = vmatprep.subr.bf16.mxu0 %v6638
  %6654 = vmatpush1.bf16.msra.mxu0 %v6637
  %6655 = vmatprep.subr.bf16.mxu0 %v6642
  %6656 = vmatpush1.bf16.msra.mxu0 %v6641
  %6657 = vmatprep.subr.bf16.mxu0 0
  %6658 = vmatpush1.bf16.msra.mxu0 0
  %6659 = vmatprep.subr.bf16.mxu0 0
  %6660 = vmatpush1.bf16.msra.mxu0 0
  %6661 = vmatprep.subr.bf16.mxu0 0
  %6662 = vmatpush1.bf16.msra.mxu0 0
  %6663 = vmatprep.subr.bf16.mxu0 0
  %6664 = vmatpush1.bf16.msra.mxu0 0
  %6665 = vmatprep.subr.bf16.mxu0 0
  %6666 = vmatpush1.bf16.msra.mxu0 0
  %6667 = vmatprep.subr.bf16.mxu0 0
  %6668 = vmatpush1.bf16.msra.mxu0 0
  %6669 = vmatprep.subr.bf16.mxu0 0
  %6670 = vmatpush1.bf16.msra.mxu0 0
  %6671 = vmatprep.subr.bf16.mxu0 0
  %6672 = vmatpush1.bf16.msra.mxu0 0
  %6673 = vmatprep.subr.bf16.mxu0 0
  %6674 = vmatpush1.bf16.msra.mxu0 0
  %6675 = vmatprep.subr.bf16.mxu0 0
  %6676 = vmatpush1.bf16.msra.mxu0 0
  %6677 = vmatprep.subr.bf16.mxu0 0
  %6678 = vmatpush1.bf16.msra.mxu0 0
  %6679 = vmatprep.subr.bf16.mxu0 0
  %6680 = vmatpush1.bf16.msra.mxu0 0
  %6681 = vmatprep.subr.bf16.mxu0 0
  %6682 = vmatpush1.bf16.msra.mxu0 0
  %6683 = vmatprep.subr.bf16.mxu0 0
  %6684 = vmatpush1.bf16.msra.mxu0 0
  %6685 = vmatprep.mubr.bf16.mxu0 0
  %6686 = vmatmul.mubr.bf16.gmra.mrb[0].mxu0 %v6360
  %v6687 = vpop.f32.mrb[0].mxu0
  %v6688 = vadd.f32 0.0, %v6687
  %v6689 = vpop.f32.mrb[0].mxu0
  %v6690 = vadd.f32 0.0, %v6689
  %v6691 = vpop.f32.mrb[0].mxu0
  %v6692 = vpop.f32.mrb[0].mxu0
  %6693 = vdwg.mxu0
  %6694 = vmatprep.subr.bf16.mxu0 %v6640
  %6695 = vmatpush1.bf16.msra.mxu0 %v6639
  %6696 = vmatprep.subr.bf16.mxu0 %v6644
  %6697 = vmatpush1.bf16.msra.mxu0 %v6643
  %6698 = vmatprep.subr.bf16.mxu0 0
  %6699 = vmatpush1.bf16.msra.mxu0 0
  %6700 = vmatprep.subr.bf16.mxu0 0
  %6701 = vmatpush1.bf16.msra.mxu0 0
  %6702 = vmatprep.subr.bf16.mxu0 0
  %6703 = vmatpush1.bf16.msra.mxu0 0
  %6704 = vmatprep.subr.bf16.mxu0 0
  %6705 = vmatpush1.bf16.msra.mxu0 0
  %6706 = vmatprep.subr.bf16.mxu0 0
  %6707 = vmatpush1.bf16.msra.mxu0 0
  %6708 = vmatprep.subr.bf16.mxu0 0
  %6709 = vmatpush1.bf16.msra.mxu0 0
  %6710 = vmatprep.subr.bf16.mxu0 0
  %6711 = vmatpush1.bf16.msra.mxu0 0
  %6712 = vmatprep.subr.bf16.mxu0 0
  %6713 = vmatpush1.bf16.msra.mxu0 0
  %6714 = vmatprep.subr.bf16.mxu0 0
  %6715 = vmatpush1.bf16.msra.mxu0 0
  %6716 = vmatprep.subr.bf16.mxu0 0
  %6717 = vmatpush1.bf16.msra.mxu0 0
  %6718 = vmatprep.subr.bf16.mxu0 0
  %6719 = vmatpush1.bf16.msra.mxu0 0
  %6720 = vmatprep.subr.bf16.mxu0 0
  %6721 = vmatpush1.bf16.msra.mxu0 0
  %6722 = vmatprep.subr.bf16.mxu0 0
  %6723 = vmatpush1.bf16.msra.mxu0 0
  %6724 = vmatprep.subr.bf16.mxu0 0
  %6725 = vmatpush1.bf16.msra.mxu0 0
  %6726 = vmatprep.mubr.bf16.mxu0 0
  %6727 = vmatmul.mubr.bf16.gmra.mrb[0].mxu0 %v6360
  %v6728 = vpop.f32.mrb[0].mxu0
  %v6729 = vadd.f32 0.0, %v6728
  %v6730 = vpop.f32.mrb[0].mxu0
  %v6731 = vadd.f32 0.0, %v6730
  %v6732 = vpop.f32.mrb[0].mxu0
  %v6733 = vpop.f32.mrb[0].mxu0
  %6734 = vdwg.mxu0
  %v6767 = vunpack.c.l.b16 %v6573
  %v6768 = vunpack.c.h.b16 %v6573
  %v6769 = vunpack.c.l.b16 %v6574
  %v6770 = vunpack.c.h.b16 %v6574
  %v6771 = vunpack.c.l.b16 %v6575
  %v6772 = vunpack.c.h.b16 %v6575
  %v6773 = vunpack.c.l.b16 %v6576
  %v6774 = vunpack.c.h.b16 %v6576
  %v6775 = vunpack.c.l.b16 %v6577
  %v6776 = vunpack.c.h.b16 %v6577
  %v6777 = vunpack.c.l.b16 %v6578
  %v6778 = vunpack.c.h.b16 %v6578
  %v6779 = vunpack.c.l.b16 %v6579
  %v6780 = vunpack.c.h.b16 %v6579
  %v6781 = vunpack.c.l.b16 %v6580
  %v6782 = vunpack.c.h.b16 %v6580
  %v6783 = vunpack.c.l.b16 %v6581
  %v6784 = vunpack.c.h.b16 %v6581
  %v6785 = vunpack.c.l.b16 %v6582
  %v6786 = vunpack.c.h.b16 %v6582
  %v6787 = vunpack.c.l.b16 %v6583
  %v6788 = vunpack.c.h.b16 %v6583
  %v6789 = vunpack.c.l.b16 %v6584
  %v6790 = vunpack.c.h.b16 %v6584
  %v6791 = vunpack.c.l.b16 %v6585
  %v6792 = vunpack.c.h.b16 %v6585
  %v6793 = vunpack.c.l.b16 %v6586
  %v6794 = vunpack.c.h.b16 %v6586
  %v6795 = vunpack.c.l.b16 %v6587
  %v6796 = vunpack.c.h.b16 %v6587
  %v6797 = vunpack.c.l.b16 %v6588
  %v6798 = vunpack.c.h.b16 %v6588
  %v6799 = vunpack.c.l.b16 %v6589
  %v6800 = vunpack.c.h.b16 %v6589
  %v6801 = vunpack.c.l.b16 %v6590
  %v6802 = vunpack.c.h.b16 %v6590
  %v6803 = vunpack.c.l.b16 %v6591
  %v6804 = vunpack.c.h.b16 %v6591
  %v6805 = vunpack.c.l.b16 %v6592
  %v6806 = vunpack.c.h.b16 %v6592
  %v6807 = vunpack.c.l.b16 %v6593
  %v6808 = vunpack.c.h.b16 %v6593
  %v6809 = vunpack.c.l.b16 %v6594
  %v6810 = vunpack.c.h.b16 %v6594
  %v6811 = vunpack.c.l.b16 %v6595
  %v6812 = vunpack.c.h.b16 %v6595
  %v6813 = vunpack.c.l.b16 %v6596
  %v6814 = vunpack.c.h.b16 %v6596
  %v6815 = vunpack.c.l.b16 %v6597
  %v6816 = vunpack.c.h.b16 %v6597
  %v6817 = vunpack.c.l.b16 %v6598
  %v6818 = vunpack.c.h.b16 %v6598
  %v6819 = vunpack.c.l.b16 %v6599
  %v6820 = vunpack.c.h.b16 %v6599
  %v6821 = vunpack.c.l.b16 %v6600
  %v6822 = vunpack.c.h.b16 %v6600
  %v6823 = vunpack.c.l.b16 %v6601
  %v6824 = vunpack.c.h.b16 %v6601
  %v6825 = vunpack.c.l.b16 %v6602
  %v6826 = vunpack.c.h.b16 %v6602
  %v6827 = vunpack.c.l.b16 %v6603
  %v6828 = vunpack.c.h.b16 %v6603
  %v6829 = vunpack.c.l.b16 %v6604
  %v6830 = vunpack.c.h.b16 %v6604
  %v6831 = vpack.c.b16 %v6771, %v6767
  %v6832 = vpack.c.b16 %v6772, %v6768
  %v6833 = vpack.c.b16 %v6773, %v6769
  %v6834 = vpack.c.b16 %v6774, %v6770
  %v6835 = vpack.c.b16 %v6779, %v6775
  %v6836 = vpack.c.b16 %v6780, %v6776
  %v6837 = vpack.c.b16 %v6781, %v6777
  %v6838 = vpack.c.b16 %v6782, %v6778
  %v6839 = vpack.c.b16 %v6787, %v6783
  %v6840 = vpack.c.b16 %v6788, %v6784
  %v6841 = vpack.c.b16 %v6789, %v6785
  %v6842 = vpack.c.b16 %v6790, %v6786
  %v6843 = vpack.c.b16 %v6795, %v6791
  %v6844 = vpack.c.b16 %v6796, %v6792
  %v6845 = vpack.c.b16 %v6797, %v6793
  %v6846 = vpack.c.b16 %v6798, %v6794
  %v6847 = vpack.c.b16 %v6803, %v6799
  %v6848 = vpack.c.b16 %v6804, %v6800
  %v6849 = vpack.c.b16 %v6805, %v6801
  %v6850 = vpack.c.b16 %v6806, %v6802
  %v6851 = vpack.c.b16 %v6811, %v6807
  %v6852 = vpack.c.b16 %v6812, %v6808
  %v6853 = vpack.c.b16 %v6813, %v6809
  %v6854 = vpack.c.b16 %v6814, %v6810
  %v6855 = vpack.c.b16 %v6819, %v6815
  %v6856 = vpack.c.b16 %v6820, %v6816
  %v6857 = vpack.c.b16 %v6821, %v6817
  %v6858 = vpack.c.b16 %v6822, %v6818
  %v6859 = vpack.c.b16 %v6827, %v6823
  %v6860 = vpack.c.b16 %v6828, %v6824
  %v6861 = vpack.c.b16 %v6829, %v6825
  %v6862 = vpack.c.b16 %v6830, %v6826
  %6895 = vmatprep.subr.bf16.mxu0 %v6832
  %6896 = vmatpush1.bf16.msra.mxu0 %v6831
  %6897 = vmatprep.subr.bf16.mxu0 %v6836
  %6898 = vmatpush1.bf16.msra.mxu0 %v6835
  %6899 = vmatprep.subr.bf16.mxu0 %v6840
  %6900 = vmatpush1.bf16.msra.mxu0 %v6839
  %6901 = vmatprep.subr.bf16.mxu0 %v6844
  %6902 = vmatpush1.bf16.msra.mxu0 %v6843
  %6903 = vmatprep.subr.bf16.mxu0 %v6848
  %6904 = vmatpush1.bf16.msra.mxu0 %v6847
  %6905 = vmatprep.subr.bf16.mxu0 %v6852
  %6906 = vmatpush1.bf16.msra.mxu0 %v6851
  %6907 = vmatprep.subr.bf16.mxu0 %v6856
  %6908 = vmatpush1.bf16.msra.mxu0 %v6855
  %6909 = vmatprep.subr.bf16.mxu0 %v6860
  %6910 = vmatpush1.bf16.msra.mxu0 %v6859
  %6911 = vmatprep.subr.bf16.mxu0 0
  %6912 = vmatpush1.bf16.msra.mxu0 0
  %6913 = vmatprep.subr.bf16.mxu0 0
  %6914 = vmatpush1.bf16.msra.mxu0 0
  %6915 = vmatprep.subr.bf16.mxu0 0
  %6916 = vmatpush1.bf16.msra.mxu0 0
  %6917 = vmatprep.subr.bf16.mxu0 0
  %6918 = vmatpush1.bf16.msra.mxu0 0
  %6919 = vmatprep.subr.bf16.mxu0 0
  %6920 = vmatpush1.bf16.msra.mxu0 0
  %6921 = vmatprep.subr.bf16.mxu0 0
  %6922 = vmatpush1.bf16.msra.mxu0 0
  %6923 = vmatprep.subr.bf16.mxu0 0
  %6924 = vmatpush1.bf16.msra.mxu0 0
  %6925 = vmatprep.subr.bf16.mxu0 0
  %6926 = vmatpush1.bf16.msra.mxu0 0
  %6927 = vmatprep.mubr.bf16.mxu0 0
  %6928 = vmatmul.mubr.bf16.gmra.mrb[0].mxu0 %v6572
  %v6929 = vpop.f32.mrb[0].mxu0
  %v6930 = vadd.f32 %v6688, %v6929
  %v6931 = vpop.f32.mrb[0].mxu0
  %v6932 = vadd.f32 %v6690, %v6931
  %v6933 = vpop.f32.mrb[0].mxu0
  %v6934 = vpop.f32.mrb[0].mxu0
  %6935 = vdwg.mxu0
  %6936 = vmatprep.subr.bf16.mxu0 %v6834
  %6937 = vmatpush1.bf16.msra.mxu0 %v6833
  %6938 = vmatprep.subr.bf16.mxu0 %v6838
  %6939 = vmatpush1.bf16.msra.mxu0 %v6837
  %6940 = vmatprep.subr.bf16.mxu0 %v6842
  %6941 = vmatpush1.bf16.msra.mxu0 %v6841
  %6942 = vmatprep.subr.bf16.mxu0 %v6846
  %6943 = vmatpush1.bf16.msra.mxu0 %v6845
  %6944 = vmatprep.subr.bf16.mxu0 %v6850
  %6945 = vmatpush1.bf16.msra.mxu0 %v6849
  %6946 = vmatprep.subr.bf16.mxu0 %v6854
  %6947 = vmatpush1.bf16.msra.mxu0 %v6853
  %6948 = vmatprep.subr.bf16.mxu0 %v6858
  %6949 = vmatpush1.bf16.msra.mxu0 %v6857
  %6950 = vmatprep.subr.bf16.mxu0 %v6862
  %6951 = vmatpush1.bf16.msra.mxu0 %v6861
  %6952 = vmatprep.subr.bf16.mxu0 0
  %6953 = vmatpush1.bf16.msra.mxu0 0
  %6954 = vmatprep.subr.bf16.mxu0 0
  %6955 = vmatpush1.bf16.msra.mxu0 0
  %6956 = vmatprep.subr.bf16.mxu0 0
  %6957 = vmatpush1.bf16.msra.mxu0 0
  %6958 = vmatprep.subr.bf16.mxu0 0
  %6959 = vmatpush1.bf16.msra.mxu0 0
  %6960 = vmatprep.subr.bf16.mxu0 0
  %6961 = vmatpush1.bf16.msra.mxu0 0
  %6962 = vmatprep.subr.bf16.mxu0 0
  %6963 = vmatpush1.bf16.msra.mxu0 0
  %6964 = vmatprep.subr.bf16.mxu0 0
  %6965 = vmatpush1.bf16.msra.mxu0 0
  %6966 = vmatprep.subr.bf16.mxu0 0
  %6967 = vmatpush1.bf16.msra.mxu0 0
  %6968 = vmatprep.mubr.bf16.mxu0 0
  %6969 = vmatmul.mubr.bf16.gmra.mrb[0].mxu0 %v6572
  %v6970 = vpop.f32.mrb[0].mxu0
  %v6971 = vadd.f32 %v6729, %v6970
  %v6972 = vpop.f32.mrb[0].mxu0
  %v6973 = vadd.f32 %v6731, %v6972
  %v6974 = vpop.f32.mrb[0].mxu0
  %v6975 = vpop.f32.mrb[0].mxu0
  %6976 = vdwg.mxu0
  %v6977 = vxor.u32 %v6930, 2147483648
  %v6978 = vmul.f32 %v6977, 1.442695
  %v6979 = vpow.pop %v6978
  %v6980 = vadd.f32 %v6979, 1.0
  %v6981 = vrcp.pop %v6980
  %v6982 = vmul.f32 1.0, %v6981
  %v6983 = vxor.u32 %v6932, 2147483648
  %v6984 = vmul.f32 %v6983, 1.442695
  %v6985 = vpow.pop %v6984
  %v6986 = vadd.f32 %v6985, 1.0
  %v6987 = vrcp.pop %v6986
  %v6988 = vmul.f32 1.0, %v6987
  %v6989 = vtanh.pop %v6971
  %v6990 = vxor.u32 %v6973, 2147483648
  %v6991 = vmul.f32 %v6990, 1.442695
  %v6992 = vpow.pop %v6991
  %v6993 = vadd.f32 %v6992, 1.0
  %v6994 = vrcp.pop %v6993
  %v6995 = vmul.f32 1.0, %v6994
  %v6996 = vmul.f32 %v6988, %v6177
  %v6997 = vmul.f32 %v6982, %v6989
  %v6998 = vadd.f32 %v6996, %v6997
  %v6999 = vtanh.pop %v6998
  %v7000 = vmul.f32 %v6995, %v6999
  %v7001 = vpack.c.bf16 %v7000, %v7000
  %v7002 = vld [vmem:[%s5] sm:$0xff]
  %v7003 = vld [vmem:[%s5 + $0x8] sm:$0xff]
  %v7004 = vld [vmem:[%s5 + $0x10] sm:$0xff]
  %v7005 = vld [vmem:[%s5 + $0x18] sm:$0xff]
  %v7006 = vld [vmem:[%s5 + $0x20] sm:$0xff]
  %v7007 = vld [vmem:[%s5 + $0x28] sm:$0xff]
  %v7008 = vld [vmem:[%s5 + $0x30] sm:$0xff]
  %v7009 = vld [vmem:[%s5 + $0x38] sm:$0xff]
  %v7010 = vld [vmem:[%s2901] sm:$0xff]
  %v7011 = vld [vmem:[%s2901 + $0x8] sm:$0xff]
  %v7012 = vld [vmem:[%s2901 + $0x10] sm:$0xff]
  %v7013 = vld [vmem:[%s2901 + $0x18] sm:$0xff]
  %v7014 = vld [vmem:[%s2901 + $0x20] sm:$0xff]
  %v7015 = vld [vmem:[%s2901 + $0x28] sm:$0xff]
  %v7016 = vld [vmem:[%s2901 + $0x30] sm:$0xff]
  %v7017 = vld [vmem:[%s2901 + $0x38] sm:$0xff]
  %v7026 = vunpack.c.l.b16 %v7010
  %v7027 = vunpack.c.h.b16 %v7010
  %v7028 = vunpack.c.l.b16 %v7011
  %v7029 = vunpack.c.h.b16 %v7011
  %v7030 = vunpack.c.l.b16 %v7012
  %v7031 = vunpack.c.h.b16 %v7012
  %v7032 = vunpack.c.l.b16 %v7013
  %v7033 = vunpack.c.h.b16 %v7013
  %v7034 = vunpack.c.l.b16 %v7014
  %v7035 = vunpack.c.h.b16 %v7014
  %v7036 = vunpack.c.l.b16 %v7015
  %v7037 = vunpack.c.h.b16 %v7015
  %v7038 = vunpack.c.l.b16 %v7016
  %v7039 = vunpack.c.h.b16 %v7016
  %v7040 = vunpack.c.l.b16 %v7017
  %v7041 = vunpack.c.h.b16 %v7017
  %v7042 = vpack.c.b16 %v7030, %v7026
  %v7043 = vpack.c.b16 %v7031, %v7027
  %v7044 = vpack.c.b16 %v7032, %v7028
  %v7045 = vpack.c.b16 %v7033, %v7029
  %v7046 = vpack.c.b16 %v7038, %v7034
  %v7047 = vpack.c.b16 %v7039, %v7035
  %v7048 = vpack.c.b16 %v7040, %v7036
  %v7049 = vpack.c.b16 %v7041, %v7037
  %7058 = vmatprep.subr.bf16.mxu0 %v7043
  %7059 = vmatpush1.bf16.msra.mxu0 %v7042
  %7060 = vmatprep.subr.bf16.mxu0 %v7047
  %7061 = vmatpush1.bf16.msra.mxu0 %v7046
  %7062 = vmatprep.subr.bf16.mxu0 0
  %7063 = vmatpush1.bf16.msra.mxu0 0
  %7064 = vmatprep.subr.bf16.mxu0 0
  %7065 = vmatpush1.bf16.msra.mxu0 0
  %7066 = vmatprep.subr.bf16.mxu0 0
  %7067 = vmatpush1.bf16.msra.mxu0 0
  %7068 = vmatprep.subr.bf16.mxu0 0
  %7069 = vmatpush1.bf16.msra.mxu0 0
  %7070 = vmatprep.subr.bf16.mxu0 0
  %7071 = vmatpush1.bf16.msra.mxu0 0
  %7072 = vmatprep.subr.bf16.mxu0 0
  %7073 = vmatpush1.bf16.msra.mxu0 0
  %7074 = vmatprep.subr.bf16.mxu0 0
  %7075 = vmatpush1.bf16.msra.mxu0 0
  %7076 = vmatprep.subr.bf16.mxu0 0
  %7077 = vmatpush1.bf16.msra.mxu0 0
  %7078 = vmatprep.subr.bf16.mxu0 0
  %7079 = vmatpush1.bf16.msra.mxu0 0
  %7080 = vmatprep.subr.bf16.mxu0 0
  %7081 = vmatpush1.bf16.msra.mxu0 0
  %7082 = vmatprep.subr.bf16.mxu0 0
  %7083 = vmatpush1.bf16.msra.mxu0 0
  %7084 = vmatprep.subr.bf16.mxu0 0
  %7085 = vmatpush1.bf16.msra.mxu0 0
  %7086 = vmatprep.subr.bf16.mxu0 0
  %7087 = vmatpush1.bf16.msra.mxu0 0
  %7088 = vmatprep.subr.bf16.mxu0 0
  %7089 = vmatpush1.bf16.msra.mxu0 0
  %7090 = vmatprep.mubr.bf16.mxu0 0
  %7091 = vmatmul.mubr.bf16.gmra.mrb[0].mxu0 %v6519
  %v7092 = vpop.f32.mrb[0].mxu0
  %v7093 = vadd.f32 0.0, %v7092
  %v7094 = vpop.f32.mrb[0].mxu0
  %v7095 = vadd.f32 0.0, %v7094
  %v7096 = vpop.f32.mrb[0].mxu0
  %v7097 = vpop.f32.mrb[0].mxu0
  %7098 = vdwg.mxu0
  %7099 = vmatprep.subr.bf16.mxu0 %v7045
  %7100 = vmatpush1.bf16.msra.mxu0 %v7044
  %7101 = vmatprep.subr.bf16.mxu0 %v7049
  %7102 = vmatpush1.bf16.msra.mxu0 %v7048
  %7103 = vmatprep.subr.bf16.mxu0 0
  %7104 = vmatpush1.bf16.msra.mxu0 0
  %7105 = vmatprep.subr.bf16.mxu0 0
  %7106 = vmatpush1.bf16.msra.mxu0 0
  %7107 = vmatprep.subr.bf16.mxu0 0
  %7108 = vmatpush1.bf16.msra.mxu0 0
  %7109 = vmatprep.subr.bf16.mxu0 0
  %7110 = vmatpush1.bf16.msra.mxu0 0
  %7111 = vmatprep.subr.bf16.mxu0 0
  %7112 = vmatpush1.bf16.msra.mxu0 0
  %7113 = vmatprep.subr.bf16.mxu0 0
  %7114 = vmatpush1.bf16.msra.mxu0 0
  %7115 = vmatprep.subr.bf16.mxu0 0
  %7116 = vmatpush1.bf16.msra.mxu0 0
  %7117 = vmatprep.subr.bf16.mxu0 0
  %7118 = vmatpush1.bf16.msra.mxu0 0
  %7119 = vmatprep.subr.bf16.mxu0 0
  %7120 = vmatpush1.bf16.msra.mxu0 0
  %7121 = vmatprep.subr.bf16.mxu0 0
  %7122 = vmatpush1.bf16.msra.mxu0 0
  %7123 = vmatprep.subr.bf16.mxu0 0
  %7124 = vmatpush1.bf16.msra.mxu0 0
  %7125 = vmatprep.subr.bf16.mxu0 0
  %7126 = vmatpush1.bf16.msra.mxu0 0
  %7127 = vmatprep.subr.bf16.mxu0 0
  %7128 = vmatpush1.bf16.msra.mxu0 0
  %7129 = vmatprep.subr.bf16.mxu0 0
  %7130 = vmatpush1.bf16.msra.mxu0 0
  %7131 = vmatprep.mubr.bf16.mxu0 0
  %7132 = vmatmul.mubr.bf16.gmra.mrb[0].mxu0 %v6519
  %v7133 = vpop.f32.mrb[0].mxu0
  %v7134 = vadd.f32 0.0, %v7133
  %v7135 = vpop.f32.mrb[0].mxu0
  %v7136 = vadd.f32 0.0, %v7135
  %v7137 = vpop.f32.mrb[0].mxu0
  %v7138 = vpop.f32.mrb[0].mxu0
  %7139 = vdwg.mxu0
  %v7148 = vunpack.c.l.b16 %v7002
  %v7149 = vunpack.c.h.b16 %v7002
  %v7150 = vunpack.c.l.b16 %v7003
  %v7151 = vunpack.c.h.b16 %v7003
  %v7152 = vunpack.c.l.b16 %v7004
  %v7153 = vunpack.c.h.b16 %v7004
  %v7154 = vunpack.c.l.b16 %v7005
  %v7155 = vunpack.c.h.b16 %v7005
  %v7156 = vunpack.c.l.b16 %v7006
  %v7157 = vunpack.c.h.b16 %v7006
  %v7158 = vunpack.c.l.b16 %v7007
  %v7159 = vunpack.c.h.b16 %v7007
  %v7160 = vunpack.c.l.b16 %v7008
  %v7161 = vunpack.c.h.b16 %v7008
  %v7162 = vunpack.c.l.b16 %v7009
  %v7163 = vunpack.c.h.b16 %v7009
  %v7164 = vpack.c.b16 %v7152, %v7148
  %v7165 = vpack.c.b16 %v7153, %v7149
  %v7166 = vpack.c.b16 %v7154, %v7150
  %v7167 = vpack.c.b16 %v7155, %v7151
  %v7168 = vpack.c.b16 %v7160, %v7156
  %v7169 = vpack.c.b16 %v7161, %v7157
  %v7170 = vpack.c.b16 %v7162, %v7158
  %v7171 = vpack.c.b16 %v7163, %v7159
  %v7181 = vsel %vm91, %v7001, 0
  %7183 = vmatprep.subr.bf16.mxu0 %v7165
  %7184 = vmatpush1.bf16.msra.mxu0 %v7164
  %7185 = vmatprep.subr.bf16.mxu0 %v7169
  %7186 = vmatpush1.bf16.msra.mxu0 %v7168
  %7187 = vmatprep.subr.bf16.mxu0 0
  %7188 = vmatpush1.bf16.msra.mxu0 0
  %7189 = vmatprep.subr.bf16.mxu0 0
  %7190 = vmatpush1.bf16.msra.mxu0 0
  %7191 = vmatprep.subr.bf16.mxu0 0
  %7192 = vmatpush1.bf16.msra.mxu0 0
  %7193 = vmatprep.subr.bf16.mxu0 0
  %7194 = vmatpush1.bf16.msra.mxu0 0
  %7195 = vmatprep.subr.bf16.mxu0 0
  %7196 = vmatpush1.bf16.msra.mxu0 0
  %7197 = vmatprep.subr.bf16.mxu0 0
  %7198 = vmatpush1.bf16.msra.mxu0 0
  %7199 = vmatprep.subr.bf16.mxu0 0
  %7200 = vmatpush1.bf16.msra.mxu0 0
  %7201 = vmatprep.subr.bf16.mxu0 0
  %7202 = vmatpush1.bf16.msra.mxu0 0
  %7203 = vmatprep.subr.bf16.mxu0 0
  %7204 = vmatpush1.bf16.msra.mxu0 0
  %7205 = vmatprep.subr.bf16.mxu0 0
  %7206 = vmatpush1.bf16.msra.mxu0 0
  %7207 = vmatprep.subr.bf16.mxu0 0
  %7208 = vmatpush1.bf16.msra.mxu0 0
  %7209 = vmatprep.subr.bf16.mxu0 0
  %7210 = vmatpush1.bf16.msra.mxu0 0
  %7211 = vmatprep.subr.bf16.mxu0 0
  %7212 = vmatpush1.bf16.msra.mxu0 0
  %7213 = vmatprep.subr.bf16.mxu0 0
  %7214 = vmatpush1.bf16.msra.mxu0 0
  %7215 = vmatprep.mubr.bf16.mxu0 0
  %7216 = vmatmul.mubr.bf16.gmra.mrb[0].mxu0 %v7181
  %v7217 = vpop.f32.mrb[0].mxu0
  %v7218 = vadd.f32 %v7093, %v7217
  %v7219 = vpop.f32.mrb[0].mxu0
  %v7220 = vadd.f32 %v7095, %v7219
  %v7221 = vpop.f32.mrb[0].mxu0
  %v7222 = vpop.f32.mrb[0].mxu0
  %7223 = vdwg.mxu0
  %7224 = vmatprep.subr.bf16.mxu0 %v7167
  %7225 = vmatpush1.bf16.msra.mxu0 %v7166
  %7226 = vmatprep.subr.bf16.mxu0 %v7171
  %7227 = vmatpush1.bf16.msra.mxu0 %v7170
  %7228 = vmatprep.subr.bf16.mxu0 0
  %7229 = vmatpush1.bf16.msra.mxu0 0
  %7230 = vmatprep.subr.bf16.mxu0 0
  %7231 = vmatpush1.bf16.msra.mxu0 0
  %7232 = vmatprep.subr.bf16.mxu0 0
  %7233 = vmatpush1.bf16.msra.mxu0 0
  %7234 = vmatprep.subr.bf16.mxu0 0
  %7235 = vmatpush1.bf16.msra.mxu0 0
  %7236 = vmatprep.subr.bf16.mxu0 0
  %7237 = vmatpush1.bf16.msra.mxu0 0
  %7238 = vmatprep.subr.bf16.mxu0 0
  %7239 = vmatpush1.bf16.msra.mxu0 0
  %7240 = vmatprep.subr.bf16.mxu0 0
  %7241 = vmatpush1.bf16.msra.mxu0 0
  %7242 = vmatprep.subr.bf16.mxu0 0
  %7243 = vmatpush1.bf16.msra.mxu0 0
  %7244 = vmatprep.subr.bf16.mxu0 0
  %7245 = vmatpush1.bf16.msra.mxu0 0
  %7246 = vmatprep.subr.bf16.mxu0 0
  %7247 = vmatpush1.bf16.msra.mxu0 0
  %7248 = vmatprep.subr.bf16.mxu0 0
  %7249 = vmatpush1.bf16.msra.mxu0 0
  %7250 = vmatprep.subr.bf16.mxu0 0
  %7251 = vmatpush1.bf16.msra.mxu0 0
  %7252 = vmatprep.subr.bf16.mxu0 0
  %7253 = vmatpush1.bf16.msra.mxu0 0
  %7254 = vmatprep.subr.bf16.mxu0 0
  %7255 = vmatpush1.bf16.msra.mxu0 0
  %7256 = vmatprep.mubr.bf16.mxu0 0
  %7257 = vmatmul.mubr.bf16.gmra.mrb[0].mxu0 %v7181
  %v7258 = vpop.f32.mrb[0].mxu0
  %v7259 = vadd.f32 %v7134, %v7258
  %v7260 = vpop.f32.mrb[0].mxu0
  %v7261 = vadd.f32 %v7136, %v7260
  %v7262 = vpop.f32.mrb[0].mxu0
  %v7263 = vpop.f32.mrb[0].mxu0
  %7264 = vdwg.mxu0
  %v7265 = vld [vmem:[%s6] sm:$0xf]
  %v7267 = vlaneseq
  %v7268 = vshrl.u32 %v7267, 7
  %v7269 = vsub.s32 0, %v7268
  %v7270 = vrot.slane %v7265, %v7269
  %v7271 = vlaneseq
  %v7272 = vshrl.u32 %v7271, 7
  %v7273 = vsub.s32 1, %v7272
  %v7274 = vrot.slane %v7265, %v7273
  %v7275 = vlaneseq
  %v7276 = vshrl.u32 %v7275, 7
  %v7277 = vsub.s32 2, %v7276
  %v7278 = vrot.slane %v7265, %v7277
  %v7279 = vlaneseq
  %v7280 = vshrl.u32 %v7279, 7
  %v7281 = vsub.s32 3, %v7280
  %v7282 = vrot.slane %v7265, %v7281
  %v7287 = vadd.f32 %v7218, %v7270
  %v7288 = vadd.f32 %v7220, %v7274
  %v7289 = vadd.f32 %v7259, %v7278
  %v7290 = vadd.f32 %v7261, %v7282
  %v7291 = vxor.u32 %v7287, 2147483648
  %v7292 = vmul.f32 %v7291, 1.442695
  %v7293 = vpow.pop %v7292
  %v7294 = vadd.f32 %v7293, 1.0
  %v7295 = vrcp.pop %v7294
  %v7296 = vmul.f32 1.0, %v7295
  %v7297 = vxor.u32 %v7288, 2147483648
  %v7298 = vmul.f32 %v7297, 1.442695
  %v7299 = vpow.pop %v7298
  %v7300 = vadd.f32 %v7299, 1.0
  %v7301 = vrcp.pop %v7300
  %v7302 = vmul.f32 1.0, %v7301
  %v7303 = vtanh.pop %v7289
  %v7304 = vxor.u32 %v7290, 2147483648
  %v7305 = vmul.f32 %v7304, 1.442695
  %v7306 = vpow.pop %v7305
  %v7307 = vadd.f32 %v7306, 1.0
  %v7308 = vrcp.pop %v7307
  %v7309 = vmul.f32 1.0, %v7308
  %v7310 = vmul.f32 %v7302, %v6491
  %v7311 = vmul.f32 %v7296, %v7303
  %v7312 = vadd.f32 %v7310, %v7311
  %v7313 = vtanh.pop %v7312
  %v7314 = vmul.f32 %v7309, %v7313
  %v7315 = vpack.c.bf16 %v7314, %v7314
  %v7316 = vld [vmem:[%s8] sm:$0xf]
  %v7317 = vld [vmem:[%s8 + $0x4] sm:$0xf]
  %v7318 = vld [vmem:[%s8 + $0x8] sm:$0xf]
  %v7319 = vld [vmem:[%s8 + $0xc] sm:$0xf]
  %v7320 = vld [vmem:[%s9] sm:$0x1]
  %v7322 = vlaneseq
  %v7323 = vshrl.u32 %v7322, 7
  %v7324 = vsub.s32 0, %v7323
  %v7325 = vrot.slane %v7320, %v7324
  %v7331 = vunpack.c.l.b16 %v7316
  %v7332 = vunpack.c.l.b16 %v7317
  %v7333 = vunpack.c.l.b16 %v7318
  %v7334 = vunpack.c.l.b16 %v7319
  %v7335 = vpack.c.b16 %v7332, %v7331
  %v7336 = vpack.c.b16 %v7334, %v7333
  %v7340 = vsel %vm91, %v7315, 0
  %7342 = vmatprep.subr.bf16.mxu0 0
  %7343 = vmatpush1.bf16.msra.mxu0 %v7335
  %7344 = vmatprep.subr.bf16.mxu0 0
  %7345 = vmatpush1.bf16.msra.mxu0 %v7336
  %7346 = vmatprep.subr.bf16.mxu0 0
  %7347 = vmatpush1.bf16.msra.mxu0 0
  %7348 = vmatprep.subr.bf16.mxu0 0
  %7349 = vmatpush1.bf16.msra.mxu0 0
  %7350 = vmatprep.subr.bf16.mxu0 0
  %7351 = vmatpush1.bf16.msra.mxu0 0
  %7352 = vmatprep.subr.bf16.mxu0 0
  %7353 = vmatpush1.bf16.msra.mxu0 0
  %7354 = vmatprep.subr.bf16.mxu0 0
  %7355 = vmatpush1.bf16.msra.mxu0 0
  %7356 = vmatprep.subr.bf16.mxu0 0
  %7357 = vmatpush1.bf16.msra.mxu0 0
  %7358 = vmatprep.subr.bf16.mxu0 0
  %7359 = vmatpush1.bf16.msra.mxu0 0
  %7360 = vmatprep.subr.bf16.mxu0 0
  %7361 = vmatpush1.bf16.msra.mxu0 0
  %7362 = vmatprep.subr.bf16.mxu0 0
  %7363 = vmatpush1.bf16.msra.mxu0 0
  %7364 = vmatprep.subr.bf16.mxu0 0
  %7365 = vmatpush1.bf16.msra.mxu0 0
  %7366 = vmatprep.subr.bf16.mxu0 0
  %7367 = vmatpush1.bf16.msra.mxu0 0
  %7368 = vmatprep.subr.bf16.mxu0 0
  %7369 = vmatpush1.bf16.msra.mxu0 0
  %7370 = vmatprep.subr.bf16.mxu0 0
  %7371 = vmatpush1.bf16.msra.mxu0 0
  %7372 = vmatprep.subr.bf16.mxu0 0
  %7373 = vmatpush1.bf16.msra.mxu0 0
  %7374 = vmatprep.mubr.bf16.mxu0 0
  %7375 = vmatmul.mubr.bf16.gmra.mrb[0].mxu0 %v7340
  %v7376 = vpop.f32.mrb[0].mxu0
  %v7377 = vadd.f32 %v7325, %v7376
  %v7378 = vpop.f32.mrb[0].mxu0
  %v7379 = vpop.f32.mrb[0].mxu0
  %v7380 = vpop.f32.mrb[0].mxu0
  %7381 = vdwg.mxu0
  %s7382 = scalar_lea.vmem %s11, 48
  %7383 = vst [vmem:[%s7382] sm:$0xff] %v7377
  %7384 = vmax.xlane.f32.xlu0 %v7377
  %v7385 = vpop.xlane.xlu0 %7384
  %vm7386 = vcmp.ge.f32.partialorder %v7377, %v7385
  %v7387 = vsel %vm7386, %v2728, 128.0
  %7388 = vmin.xlane.f32.xlu0 %v7387
  %v7389 = vpop.xlane.xlu0 %7388
  %vm7390 = vcmp.eq.f32.partialorder %v2728, %v7389
  %v7391 = vsel %vm7390, 1, 0
  %v7392 = vcvt.s32.f32 %v7391
  %v7393 = vpack.c.bf16 %v7392, %v7392
  %v7394 = vld [vmem:[%s7] sm:$0xff]
  %v7395 = vld [vmem:[%s7 + $0x8] sm:$0xff]
  %v7396 = vld [vmem:[%s7 + $0x10] sm:$0xff]
  %v7397 = vld [vmem:[%s7 + $0x18] sm:$0xff]
  %v7398 = vld [vmem:[%s7 + $0x20] sm:$0xff]
  %v7399 = vld [vmem:[%s7 + $0x28] sm:$0xff]
  %v7400 = vld [vmem:[%s7 + $0x30] sm:$0xff]
  %v7401 = vld [vmem:[%s7 + $0x38] sm:$0xff]
  %v7402 = vld [vmem:[%s7 + $0x40] sm:$0xff]
  %v7403 = vld [vmem:[%s7 + $0x48] sm:$0xff]
  %v7404 = vld [vmem:[%s7 + $0x50] sm:$0xff]
  %v7405 = vld [vmem:[%s7 + $0x58] sm:$0xff]
  %v7406 = vld [vmem:[%s7 + $0x60] sm:$0xff]
  %v7407 = vld [vmem:[%s7 + $0x68] sm:$0xff]
  %v7408 = vld [vmem:[%s7 + $0x70] sm:$0xff]
  %v7409 = vld [vmem:[%s7 + $0x78] sm:$0xff]
  %v7410 = vld [vmem:[%s7 + $0x80] sm:$0xff]
  %v7411 = vld [vmem:[%s7 + $0x88] sm:$0xff]
  %v7412 = vld [vmem:[%s7 + $0x90] sm:$0xff]
  %v7413 = vld [vmem:[%s7 + $0x98] sm:$0xff]
  %v7414 = vld [vmem:[%s7 + $0xa0] sm:$0xff]
  %v7415 = vld [vmem:[%s7 + $0xa8] sm:$0xff]
  %v7416 = vld [vmem:[%s7 + $0xb0] sm:$0xff]
  %v7417 = vld [vmem:[%s7 + $0xb8] sm:$0xff]
  %v7418 = vld [vmem:[%s7 + $0xc0] sm:$0xff]
  %v7419 = vld [vmem:[%s7 + $0xc8] sm:$0xff]
  %v7420 = vld [vmem:[%s7 + $0xd0] sm:$0xff]
  %v7421 = vld [vmem:[%s7 + $0xd8] sm:$0xff]
  %v7422 = vld [vmem:[%s7 + $0xe0] sm:$0xff]
  %v7423 = vld [vmem:[%s7 + $0xe8] sm:$0xff]
  %v7424 = vld [vmem:[%s7 + $0xf0] sm:$0xff]
  %v7425 = vld [vmem:[%s7 + $0xf8] sm:$0xff]
  %v7426 = vld [vmem:[%s4] sm:$0xff]
  %v7427 = vld [vmem:[%s4 + $0x8] sm:$0xff]
  %v7428 = vld [vmem:[%s4 + $0x10] sm:$0xff]
  %v7429 = vld [vmem:[%s4 + $0x18] sm:$0xff]
  %v7430 = vld [vmem:[%s4 + $0x20] sm:$0xff]
  %v7431 = vld [vmem:[%s4 + $0x28] sm:$0xff]
  %v7432 = vld [vmem:[%s4 + $0x30] sm:$0xff]
  %v7433 = vld [vmem:[%s4 + $0x38] sm:$0xff]
  %v7442 = vunpack.c.l.b16 %v7426
  %v7443 = vunpack.c.h.b16 %v7426
  %v7444 = vunpack.c.l.b16 %v7427
  %v7445 = vunpack.c.h.b16 %v7427
  %v7446 = vunpack.c.l.b16 %v7428
  %v7447 = vunpack.c.h.b16 %v7428
  %v7448 = vunpack.c.l.b16 %v7429
  %v7449 = vunpack.c.h.b16 %v7429
  %v7450 = vunpack.c.l.b16 %v7430
  %v7451 = vunpack.c.h.b16 %v7430
  %v7452 = vunpack.c.l.b16 %v7431
  %v7453 = vunpack.c.h.b16 %v7431
  %v7454 = vunpack.c.l.b16 %v7432
  %v7455 = vunpack.c.h.b16 %v7432
  %v7456 = vunpack.c.l.b16 %v7433
  %v7457 = vunpack.c.h.b16 %v7433
  %v7458 = vpack.c.b16 %v7446, %v7442
  %v7459 = vpack.c.b16 %v7447, %v7443
  %v7460 = vpack.c.b16 %v7448, %v7444
  %v7461 = vpack.c.b16 %v7449, %v7445
  %v7462 = vpack.c.b16 %v7454, %v7450
  %v7463 = vpack.c.b16 %v7455, %v7451
  %v7464 = vpack.c.b16 %v7456, %v7452
  %v7465 = vpack.c.b16 %v7457, %v7453
  %7474 = vmatprep.subr.bf16.mxu0 %v7459
  %7475 = vmatpush1.bf16.msra.mxu0 %v7458
  %7476 = vmatprep.subr.bf16.mxu0 %v7463
  %7477 = vmatpush1.bf16.msra.mxu0 %v7462
  %7478 = vmatprep.subr.bf16.mxu0 0
  %7479 = vmatpush1.bf16.msra.mxu0 0
  %7480 = vmatprep.subr.bf16.mxu0 0
  %7481 = vmatpush1.bf16.msra.mxu0 0
  %7482 = vmatprep.subr.bf16.mxu0 0
  %7483 = vmatpush1.bf16.msra.mxu0 0
  %7484 = vmatprep.subr.bf16.mxu0 0
  %7485 = vmatpush1.bf16.msra.mxu0 0
  %7486 = vmatprep.subr.bf16.mxu0 0
  %7487 = vmatpush1.bf16.msra.mxu0 0
  %7488 = vmatprep.subr.bf16.mxu0 0
  %7489 = vmatpush1.bf16.msra.mxu0 0
  %7490 = vmatprep.subr.bf16.mxu0 0
  %7491 = vmatpush1.bf16.msra.mxu0 0
  %7492 = vmatprep.subr.bf16.mxu0 0
  %7493 = vmatpush1.bf16.msra.mxu0 0
  %7494 = vmatprep.subr.bf16.mxu0 0
  %7495 = vmatpush1.bf16.msra.mxu0 0
  %7496 = vmatprep.subr.bf16.mxu0 0
  %7497 = vmatpush1.bf16.msra.mxu0 0
  %7498 = vmatprep.subr.bf16.mxu0 0
  %7499 = vmatpush1.bf16.msra.mxu0 0
  %7500 = vmatprep.subr.bf16.mxu0 0
  %7501 = vmatpush1.bf16.msra.mxu0 0
  %7502 = vmatprep.subr.bf16.mxu0 0
  %7503 = vmatpush1.bf16.msra.mxu0 0
  %7504 = vmatprep.subr.bf16.mxu0 0
  %7505 = vmatpush1.bf16.msra.mxu0 0
  %7506 = vmatprep.mubr.bf16.mxu0 0
  %7507 = vmatmul.mubr.bf16.gmra.mrb[0].mxu0 %v7181
  %v7508 = vpop.f32.mrb[0].mxu0
  %v7509 = vadd.f32 0.0, %v7508
  %v7510 = vpop.f32.mrb[0].mxu0
  %v7511 = vadd.f32 0.0, %v7510
  %v7512 = vpop.f32.mrb[0].mxu0
  %v7513 = vpop.f32.mrb[0].mxu0
  %7514 = vdwg.mxu0
  %7515 = vmatprep.subr.bf16.mxu0 %v7461
  %7516 = vmatpush1.bf16.msra.mxu0 %v7460
  %7517 = vmatprep.subr.bf16.mxu0 %v7465
  %7518 = vmatpush1.bf16.msra.mxu0 %v7464
  %7519 = vmatprep.subr.bf16.mxu0 0
  %7520 = vmatpush1.bf16.msra.mxu0 0
  %7521 = vmatprep.subr.bf16.mxu0 0
  %7522 = vmatpush1.bf16.msra.mxu0 0
  %7523 = vmatprep.subr.bf16.mxu0 0
  %7524 = vmatpush1.bf16.msra.mxu0 0
  %7525 = vmatprep.subr.bf16.mxu0 0
  %7526 = vmatpush1.bf16.msra.mxu0 0
  %7527 = vmatprep.subr.bf16.mxu0 0
  %7528 = vmatpush1.bf16.msra.mxu0 0
  %7529 = vmatprep.subr.bf16.mxu0 0
  %7530 = vmatpush1.bf16.msra.mxu0 0
  %7531 = vmatprep.subr.bf16.mxu0 0
  %7532 = vmatpush1.bf16.msra.mxu0 0
  %7533 = vmatprep.subr.bf16.mxu0 0
  %7534 = vmatpush1.bf16.msra.mxu0 0
  %7535 = vmatprep.subr.bf16.mxu0 0
  %7536 = vmatpush1.bf16.msra.mxu0 0
  %7537 = vmatprep.subr.bf16.mxu0 0
  %7538 = vmatpush1.bf16.msra.mxu0 0
  %7539 = vmatprep.subr.bf16.mxu0 0
  %7540 = vmatpush1.bf16.msra.mxu0 0
  %7541 = vmatprep.subr.bf16.mxu0 0
  %7542 = vmatpush1.bf16.msra.mxu0 0
  %7543 = vmatprep.subr.bf16.mxu0 0
  %7544 = vmatpush1.bf16.msra.mxu0 0
  %7545 = vmatprep.subr.bf16.mxu0 0
  %7546 = vmatpush1.bf16.msra.mxu0 0
  %7547 = vmatprep.mubr.bf16.mxu0 0
  %7548 = vmatmul.mubr.bf16.gmra.mrb[0].mxu0 %v7181
  %v7549 = vpop.f32.mrb[0].mxu0
  %v7550 = vadd.f32 0.0, %v7549
  %v7551 = vpop.f32.mrb[0].mxu0
  %v7552 = vadd.f32 0.0, %v7551
  %v7553 = vpop.f32.mrb[0].mxu0
  %v7554 = vpop.f32.mrb[0].mxu0
  %7555 = vdwg.mxu0
  %v7588 = vunpack.c.l.b16 %v7394
  %v7589 = vunpack.c.h.b16 %v7394
  %v7590 = vunpack.c.l.b16 %v7395
  %v7591 = vunpack.c.h.b16 %v7395
  %v7592 = vunpack.c.l.b16 %v7396
  %v7593 = vunpack.c.h.b16 %v7396
  %v7594 = vunpack.c.l.b16 %v7397
  %v7595 = vunpack.c.h.b16 %v7397
  %v7596 = vunpack.c.l.b16 %v7398
  %v7597 = vunpack.c.h.b16 %v7398
  %v7598 = vunpack.c.l.b16 %v7399
  %v7599 = vunpack.c.h.b16 %v7399
  %v7600 = vunpack.c.l.b16 %v7400
  %v7601 = vunpack.c.h.b16 %v7400
  %v7602 = vunpack.c.l.b16 %v7401
  %v7603 = vunpack.c.h.b16 %v7401
  %v7604 = vunpack.c.l.b16 %v7402
  %v7605 = vunpack.c.h.b16 %v7402
  %v7606 = vunpack.c.l.b16 %v7403
  %v7607 = vunpack.c.h.b16 %v7403
  %v7608 = vunpack.c.l.b16 %v7404
  %v7609 = vunpack.c.h.b16 %v7404
  %v7610 = vunpack.c.l.b16 %v7405
  %v7611 = vunpack.c.h.b16 %v7405
  %v7612 = vunpack.c.l.b16 %v7406
  %v7613 = vunpack.c.h.b16 %v7406
  %v7614 = vunpack.c.l.b16 %v7407
  %v7615 = vunpack.c.h.b16 %v7407
  %v7616 = vunpack.c.l.b16 %v7408
  %v7617 = vunpack.c.h.b16 %v7408
  %v7618 = vunpack.c.l.b16 %v7409
  %v7619 = vunpack.c.h.b16 %v7409
  %v7620 = vunpack.c.l.b16 %v7410
  %v7621 = vunpack.c.h.b16 %v7410
  %v7622 = vunpack.c.l.b16 %v7411
  %v7623 = vunpack.c.h.b16 %v7411
  %v7624 = vunpack.c.l.b16 %v7412
  %v7625 = vunpack.c.h.b16 %v7412
  %v7626 = vunpack.c.l.b16 %v7413
  %v7627 = vunpack.c.h.b16 %v7413
  %v7628 = vunpack.c.l.b16 %v7414
  %v7629 = vunpack.c.h.b16 %v7414
  %v7630 = vunpack.c.l.b16 %v7415
  %v7631 = vunpack.c.h.b16 %v7415
  %v7632 = vunpack.c.l.b16 %v7416
  %v7633 = vunpack.c.h.b16 %v7416
  %v7634 = vunpack.c.l.b16 %v7417
  %v7635 = vunpack.c.h.b16 %v7417
  %v7636 = vunpack.c.l.b16 %v7418
  %v7637 = vunpack.c.h.b16 %v7418
  %v7638 = vunpack.c.l.b16 %v7419
  %v7639 = vunpack.c.h.b16 %v7419
  %v7640 = vunpack.c.l.b16 %v7420
  %v7641 = vunpack.c.h.b16 %v7420
  %v7642 = vunpack.c.l.b16 %v7421
  %v7643 = vunpack.c.h.b16 %v7421
  %v7644 = vunpack.c.l.b16 %v7422
  %v7645 = vunpack.c.h.b16 %v7422
  %v7646 = vunpack.c.l.b16 %v7423
  %v7647 = vunpack.c.h.b16 %v7423
  %v7648 = vunpack.c.l.b16 %v7424
  %v7649 = vunpack.c.h.b16 %v7424
  %v7650 = vunpack.c.l.b16 %v7425
  %v7651 = vunpack.c.h.b16 %v7425
  %v7652 = vpack.c.b16 %v7592, %v7588
  %v7653 = vpack.c.b16 %v7593, %v7589
  %v7654 = vpack.c.b16 %v7594, %v7590
  %v7655 = vpack.c.b16 %v7595, %v7591
  %v7656 = vpack.c.b16 %v7600, %v7596
  %v7657 = vpack.c.b16 %v7601, %v7597
  %v7658 = vpack.c.b16 %v7602, %v7598
  %v7659 = vpack.c.b16 %v7603, %v7599
  %v7660 = vpack.c.b16 %v7608, %v7604
  %v7661 = vpack.c.b16 %v7609, %v7605
  %v7662 = vpack.c.b16 %v7610, %v7606
  %v7663 = vpack.c.b16 %v7611, %v7607
  %v7664 = vpack.c.b16 %v7616, %v7612
  %v7665 = vpack.c.b16 %v7617, %v7613
  %v7666 = vpack.c.b16 %v7618, %v7614
  %v7667 = vpack.c.b16 %v7619, %v7615
  %v7668 = vpack.c.b16 %v7624, %v7620
  %v7669 = vpack.c.b16 %v7625, %v7621
  %v7670 = vpack.c.b16 %v7626, %v7622
  %v7671 = vpack.c.b16 %v7627, %v7623
  %v7672 = vpack.c.b16 %v7632, %v7628
  %v7673 = vpack.c.b16 %v7633, %v7629
  %v7674 = vpack.c.b16 %v7634, %v7630
  %v7675 = vpack.c.b16 %v7635, %v7631
  %v7676 = vpack.c.b16 %v7640, %v7636
  %v7677 = vpack.c.b16 %v7641, %v7637
  %v7678 = vpack.c.b16 %v7642, %v7638
  %v7679 = vpack.c.b16 %v7643, %v7639
  %v7680 = vpack.c.b16 %v7648, %v7644
  %v7681 = vpack.c.b16 %v7649, %v7645
  %v7682 = vpack.c.b16 %v7650, %v7646
  %v7683 = vpack.c.b16 %v7651, %v7647
  %7716 = vmatprep.subr.bf16.mxu0 %v7653
  %7717 = vmatpush1.bf16.msra.mxu0 %v7652
  %7718 = vmatprep.subr.bf16.mxu0 %v7657
  %7719 = vmatpush1.bf16.msra.mxu0 %v7656
  %7720 = vmatprep.subr.bf16.mxu0 %v7661
  %7721 = vmatpush1.bf16.msra.mxu0 %v7660
  %7722 = vmatprep.subr.bf16.mxu0 %v7665
  %7723 = vmatpush1.bf16.msra.mxu0 %v7664
  %7724 = vmatprep.subr.bf16.mxu0 %v7669
  %7725 = vmatpush1.bf16.msra.mxu0 %v7668
  %7726 = vmatprep.subr.bf16.mxu0 %v7673
  %7727 = vmatpush1.bf16.msra.mxu0 %v7672
  %7728 = vmatprep.subr.bf16.mxu0 %v7677
  %7729 = vmatpush1.bf16.msra.mxu0 %v7676
  %7730 = vmatprep.subr.bf16.mxu0 %v7681
  %7731 = vmatpush1.bf16.msra.mxu0 %v7680
  %7732 = vmatprep.subr.bf16.mxu0 0
  %7733 = vmatpush1.bf16.msra.mxu0 0
  %7734 = vmatprep.subr.bf16.mxu0 0
  %7735 = vmatpush1.bf16.msra.mxu0 0
  %7736 = vmatprep.subr.bf16.mxu0 0
  %7737 = vmatpush1.bf16.msra.mxu0 0
  %7738 = vmatprep.subr.bf16.mxu0 0
  %7739 = vmatpush1.bf16.msra.mxu0 0
  %7740 = vmatprep.subr.bf16.mxu0 0
  %7741 = vmatpush1.bf16.msra.mxu0 0
  %7742 = vmatprep.subr.bf16.mxu0 0
  %7743 = vmatpush1.bf16.msra.mxu0 0
  %7744 = vmatprep.subr.bf16.mxu0 0
  %7745 = vmatpush1.bf16.msra.mxu0 0
  %7746 = vmatprep.subr.bf16.mxu0 0
  %7747 = vmatpush1.bf16.msra.mxu0 0
  %7748 = vmatprep.mubr.bf16.mxu0 0
  %7749 = vmatmul.mubr.bf16.gmra.mrb[0].mxu0 %v7393
  %v7750 = vpop.f32.mrb[0].mxu0
  %v7751 = vadd.f32 %v7509, %v7750
  %v7752 = vpop.f32.mrb[0].mxu0
  %v7753 = vadd.f32 %v7511, %v7752
  %v7754 = vpop.f32.mrb[0].mxu0
  %v7755 = vpop.f32.mrb[0].mxu0
  %7756 = vdwg.mxu0
  %7757 = vmatprep.subr.bf16.mxu0 %v7655
  %7758 = vmatpush1.bf16.msra.mxu0 %v7654
  %7759 = vmatprep.subr.bf16.mxu0 %v7659
  %7760 = vmatpush1.bf16.msra.mxu0 %v7658
  %7761 = vmatprep.subr.bf16.mxu0 %v7663
  %7762 = vmatpush1.bf16.msra.mxu0 %v7662
  %7763 = vmatprep.subr.bf16.mxu0 %v7667
  %7764 = vmatpush1.bf16.msra.mxu0 %v7666
  %7765 = vmatprep.subr.bf16.mxu0 %v7671
  %7766 = vmatpush1.bf16.msra.mxu0 %v7670
  %7767 = vmatprep.subr.bf16.mxu0 %v7675
  %7768 = vmatpush1.bf16.msra.mxu0 %v7674
  %7769 = vmatprep.subr.bf16.mxu0 %v7679
  %7770 = vmatpush1.bf16.msra.mxu0 %v7678
  %7771 = vmatprep.subr.bf16.mxu0 %v7683
  %7772 = vmatpush1.bf16.msra.mxu0 %v7682
  %7773 = vmatprep.subr.bf16.mxu0 0
  %7774 = vmatpush1.bf16.msra.mxu0 0
  %7775 = vmatprep.subr.bf16.mxu0 0
  %7776 = vmatpush1.bf16.msra.mxu0 0
  %7777 = vmatprep.subr.bf16.mxu0 0
  %7778 = vmatpush1.bf16.msra.mxu0 0
  %7779 = vmatprep.subr.bf16.mxu0 0
  %7780 = vmatpush1.bf16.msra.mxu0 0
  %7781 = vmatprep.subr.bf16.mxu0 0
  %7782 = vmatpush1.bf16.msra.mxu0 0
  %7783 = vmatprep.subr.bf16.mxu0 0
  %7784 = vmatpush1.bf16.msra.mxu0 0
  %7785 = vmatprep.subr.bf16.mxu0 0
  %7786 = vmatpush1.bf16.msra.mxu0 0
  %7787 = vmatprep.subr.bf16.mxu0 0
  %7788 = vmatpush1.bf16.msra.mxu0 0
  %7789 = vmatprep.mubr.bf16.mxu0 0
  %7790 = vmatmul.mubr.bf16.gmra.mrb[0].mxu0 %v7393
  %v7791 = vpop.f32.mrb[0].mxu0
  %v7792 = vadd.f32 %v7550, %v7791
  %v7793 = vpop.f32.mrb[0].mxu0
  %v7794 = vadd.f32 %v7552, %v7793
  %v7795 = vpop.f32.mrb[0].mxu0
  %v7796 = vpop.f32.mrb[0].mxu0
  %7797 = vdwg.mxu0
  %v7798 = vxor.u32 %v7751, 2147483648
  %v7799 = vmul.f32 %v7798, 1.442695
  %v7800 = vpow.pop %v7799
  %v7801 = vadd.f32 %v7800, 1.0
  %v7802 = vrcp.pop %v7801
  %v7803 = vmul.f32 1.0, %v7802
  %v7804 = vxor.u32 %v7753, 2147483648
  %v7805 = vmul.f32 %v7804, 1.442695
  %v7806 = vpow.pop %v7805
  %v7807 = vadd.f32 %v7806, 1.0
  %v7808 = vrcp.pop %v7807
  %v7809 = vmul.f32 1.0, %v7808
  %v7810 = vtanh.pop %v7792
  %v7811 = vxor.u32 %v7794, 2147483648
  %v7812 = vmul.f32 %v7811, 1.442695
  %v7813 = vpow.pop %v7812
  %v7814 = vadd.f32 %v7813, 1.0
  %v7815 = vrcp.pop %v7814
  %v7816 = vmul.f32 1.0, %v7815
  %v7817 = vmul.f32 %v7809, %v6998
  %v7818 = vmul.f32 %v7803, %v7810
  %v7819 = vadd.f32 %v7817, %v7818
  %v7820 = vtanh.pop %v7819
  %v7821 = vmul.f32 %v7816, %v7820
  %v7822 = vpack.c.bf16 %v7821, %v7821
  %v7823 = vld [vmem:[%s5] sm:$0xff]
  %v7824 = vld [vmem:[%s5 + $0x8] sm:$0xff]
  %v7825 = vld [vmem:[%s5 + $0x10] sm:$0xff]
  %v7826 = vld [vmem:[%s5 + $0x18] sm:$0xff]
  %v7827 = vld [vmem:[%s5 + $0x20] sm:$0xff]
  %v7828 = vld [vmem:[%s5 + $0x28] sm:$0xff]
  %v7829 = vld [vmem:[%s5 + $0x30] sm:$0xff]
  %v7830 = vld [vmem:[%s5 + $0x38] sm:$0xff]
  %v7831 = vld [vmem:[%s2901] sm:$0xff]
  %v7832 = vld [vmem:[%s2901 + $0x8] sm:$0xff]
  %v7833 = vld [vmem:[%s2901 + $0x10] sm:$0xff]
  %v7834 = vld [vmem:[%s2901 + $0x18] sm:$0xff]
  %v7835 = vld [vmem:[%s2901 + $0x20] sm:$0xff]
  %v7836 = vld [vmem:[%s2901 + $0x28] sm:$0xff]
  %v7837 = vld [vmem:[%s2901 + $0x30] sm:$0xff]
  %v7838 = vld [vmem:[%s2901 + $0x38] sm:$0xff]
  %v7847 = vunpack.c.l.b16 %v7831
  %v7848 = vunpack.c.h.b16 %v7831
  %v7849 = vunpack.c.l.b16 %v7832
  %v7850 = vunpack.c.h.b16 %v7832
  %v7851 = vunpack.c.l.b16 %v7833
  %v7852 = vunpack.c.h.b16 %v7833
  %v7853 = vunpack.c.l.b16 %v7834
  %v7854 = vunpack.c.h.b16 %v7834
  %v7855 = vunpack.c.l.b16 %v7835
  %v7856 = vunpack.c.h.b16 %v7835
  %v7857 = vunpack.c.l.b16 %v7836
  %v7858 = vunpack.c.h.b16 %v7836
  %v7859 = vunpack.c.l.b16 %v7837
  %v7860 = vunpack.c.h.b16 %v7837
  %v7861 = vunpack.c.l.b16 %v7838
  %v7862 = vunpack.c.h.b16 %v7838
  %v7863 = vpack.c.b16 %v7851, %v7847
  %v7864 = vpack.c.b16 %v7852, %v7848
  %v7865 = vpack.c.b16 %v7853, %v7849
  %v7866 = vpack.c.b16 %v7854, %v7850
  %v7867 = vpack.c.b16 %v7859, %v7855
  %v7868 = vpack.c.b16 %v7860, %v7856
  %v7869 = vpack.c.b16 %v7861, %v7857
  %v7870 = vpack.c.b16 %v7862, %v7858
  %7879 = vmatprep.subr.bf16.mxu0 %v7864
  %7880 = vmatpush1.bf16.msra.mxu0 %v7863
  %7881 = vmatprep.subr.bf16.mxu0 %v7868
  %7882 = vmatpush1.bf16.msra.mxu0 %v7867
  %7883 = vmatprep.subr.bf16.mxu0 0
  %7884 = vmatpush1.bf16.msra.mxu0 0
  %7885 = vmatprep.subr.bf16.mxu0 0
  %7886 = vmatpush1.bf16.msra.mxu0 0
  %7887 = vmatprep.subr.bf16.mxu0 0
  %7888 = vmatpush1.bf16.msra.mxu0 0
  %7889 = vmatprep.subr.bf16.mxu0 0
  %7890 = vmatpush1.bf16.msra.mxu0 0
  %7891 = vmatprep.subr.bf16.mxu0 0
  %7892 = vmatpush1.bf16.msra.mxu0 0
  %7893 = vmatprep.subr.bf16.mxu0 0
  %7894 = vmatpush1.bf16.msra.mxu0 0
  %7895 = vmatprep.subr.bf16.mxu0 0
  %7896 = vmatpush1.bf16.msra.mxu0 0
  %7897 = vmatprep.subr.bf16.mxu0 0
  %7898 = vmatpush1.bf16.msra.mxu0 0
  %7899 = vmatprep.subr.bf16.mxu0 0
  %7900 = vmatpush1.bf16.msra.mxu0 0
  %7901 = vmatprep.subr.bf16.mxu0 0
  %7902 = vmatpush1.bf16.msra.mxu0 0
  %7903 = vmatprep.subr.bf16.mxu0 0
  %7904 = vmatpush1.bf16.msra.mxu0 0
  %7905 = vmatprep.subr.bf16.mxu0 0
  %7906 = vmatpush1.bf16.msra.mxu0 0
  %7907 = vmatprep.subr.bf16.mxu0 0
  %7908 = vmatpush1.bf16.msra.mxu0 0
  %7909 = vmatprep.subr.bf16.mxu0 0
  %7910 = vmatpush1.bf16.msra.mxu0 0
  %7911 = vmatprep.mubr.bf16.mxu0 0
  %7912 = vmatmul.mubr.bf16.gmra.mrb[0].mxu0 %v7340
  %v7913 = vpop.f32.mrb[0].mxu0
  %v7914 = vadd.f32 0.0, %v7913
  %v7915 = vpop.f32.mrb[0].mxu0
  %v7916 = vadd.f32 0.0, %v7915
  %v7917 = vpop.f32.mrb[0].mxu0
  %v7918 = vpop.f32.mrb[0].mxu0
  %7919 = vdwg.mxu0
  %7920 = vmatprep.subr.bf16.mxu0 %v7866
  %7921 = vmatpush1.bf16.msra.mxu0 %v7865
  %7922 = vmatprep.subr.bf16.mxu0 %v7870
  %7923 = vmatpush1.bf16.msra.mxu0 %v7869
  %7924 = vmatprep.subr.bf16.mxu0 0
  %7925 = vmatpush1.bf16.msra.mxu0 0
  %7926 = vmatprep.subr.bf16.mxu0 0
  %7927 = vmatpush1.bf16.msra.mxu0 0
  %7928 = vmatprep.subr.bf16.mxu0 0
  %7929 = vmatpush1.bf16.msra.mxu0 0
  %7930 = vmatprep.subr.bf16.mxu0 0
  %7931 = vmatpush1.bf16.msra.mxu0 0
  %7932 = vmatprep.subr.bf16.mxu0 0
  %7933 = vmatpush1.bf16.msra.mxu0 0
  %7934 = vmatprep.subr.bf16.mxu0 0
  %7935 = vmatpush1.bf16.msra.mxu0 0
  %7936 = vmatprep.subr.bf16.mxu0 0
  %7937 = vmatpush1.bf16.msra.mxu0 0
  %7938 = vmatprep.subr.bf16.mxu0 0
  %7939 = vmatpush1.bf16.msra.mxu0 0
  %7940 = vmatprep.subr.bf16.mxu0 0
  %7941 = vmatpush1.bf16.msra.mxu0 0
  %7942 = vmatprep.subr.bf16.mxu0 0
  %7943 = vmatpush1.bf16.msra.mxu0 0
  %7944 = vmatprep.subr.bf16.mxu0 0
  %7945 = vmatpush1.bf16.msra.mxu0 0
  %7946 = vmatprep.subr.bf16.mxu0 0
  %7947 = vmatpush1.bf16.msra.mxu0 0
  %7948 = vmatprep.subr.bf16.mxu0 0
  %7949 = vmatpush1.bf16.msra.mxu0 0
  %7950 = vmatprep.subr.bf16.mxu0 0
  %7951 = vmatpush1.bf16.msra.mxu0 0
  %7952 = vmatprep.mubr.bf16.mxu0 0
  %7953 = vmatmul.mubr.bf16.gmra.mrb[0].mxu0 %v7340
  %v7954 = vpop.f32.mrb[0].mxu0
  %v7955 = vadd.f32 0.0, %v7954
  %v7956 = vpop.f32.mrb[0].mxu0
  %v7957 = vadd.f32 0.0, %v7956
  %v7958 = vpop.f32.mrb[0].mxu0
  %v7959 = vpop.f32.mrb[0].mxu0
  %7960 = vdwg.mxu0
  %v7969 = vunpack.c.l.b16 %v7823
  %v7970 = vunpack.c.h.b16 %v7823
  %v7971 = vunpack.c.l.b16 %v7824
  %v7972 = vunpack.c.h.b16 %v7824
  %v7973 = vunpack.c.l.b16 %v7825
  %v7974 = vunpack.c.h.b16 %v7825
  %v7975 = vunpack.c.l.b16 %v7826
  %v7976 = vunpack.c.h.b16 %v7826
  %v7977 = vunpack.c.l.b16 %v7827
  %v7978 = vunpack.c.h.b16 %v7827
  %v7979 = vunpack.c.l.b16 %v7828
  %v7980 = vunpack.c.h.b16 %v7828
  %v7981 = vunpack.c.l.b16 %v7829
  %v7982 = vunpack.c.h.b16 %v7829
  %v7983 = vunpack.c.l.b16 %v7830
  %v7984 = vunpack.c.h.b16 %v7830
  %v7985 = vpack.c.b16 %v7973, %v7969
  %v7986 = vpack.c.b16 %v7974, %v7970
  %v7987 = vpack.c.b16 %v7975, %v7971
  %v7988 = vpack.c.b16 %v7976, %v7972
  %v7989 = vpack.c.b16 %v7981, %v7977
  %v7990 = vpack.c.b16 %v7982, %v7978
  %v7991 = vpack.c.b16 %v7983, %v7979
  %v7992 = vpack.c.b16 %v7984, %v7980
  %v8002 = vsel %vm91, %v7822, 0
  %8004 = vmatprep.subr.bf16.mxu0 %v7986
  %8005 = vmatpush1.bf16.msra.mxu0 %v7985
  %8006 = vmatprep.subr.bf16.mxu0 %v7990
  %8007 = vmatpush1.bf16.msra.mxu0 %v7989
  %8008 = vmatprep.subr.bf16.mxu0 0
  %8009 = vmatpush1.bf16.msra.mxu0 0
  %8010 = vmatprep.subr.bf16.mxu0 0
  %8011 = vmatpush1.bf16.msra.mxu0 0
  %8012 = vmatprep.subr.bf16.mxu0 0
  %8013 = vmatpush1.bf16.msra.mxu0 0
  %8014 = vmatprep.subr.bf16.mxu0 0
  %8015 = vmatpush1.bf16.msra.mxu0 0
  %8016 = vmatprep.subr.bf16.mxu0 0
  %8017 = vmatpush1.bf16.msra.mxu0 0
  %8018 = vmatprep.subr.bf16.mxu0 0
  %8019 = vmatpush1.bf16.msra.mxu0 0
  %8020 = vmatprep.subr.bf16.mxu0 0
  %8021 = vmatpush1.bf16.msra.mxu0 0
  %8022 = vmatprep.subr.bf16.mxu0 0
  %8023 = vmatpush1.bf16.msra.mxu0 0
  %8024 = vmatprep.subr.bf16.mxu0 0
  %8025 = vmatpush1.bf16.msra.mxu0 0
  %8026 = vmatprep.subr.bf16.mxu0 0
  %8027 = vmatpush1.bf16.msra.mxu0 0
  %8028 = vmatprep.subr.bf16.mxu0 0
  %8029 = vmatpush1.bf16.msra.mxu0 0
  %8030 = vmatprep.subr.bf16.mxu0 0
  %8031 = vmatpush1.bf16.msra.mxu0 0
  %8032 = vmatprep.subr.bf16.mxu0 0
  %8033 = vmatpush1.bf16.msra.mxu0 0
  %8034 = vmatprep.subr.bf16.mxu0 0
  %8035 = vmatpush1.bf16.msra.mxu0 0
  %8036 = vmatprep.mubr.bf16.mxu0 0
  %8037 = vmatmul.mubr.bf16.gmra.mrb[0].mxu0 %v8002
  %v8038 = vpop.f32.mrb[0].mxu0
  %v8039 = vadd.f32 %v7914, %v8038
  %v8040 = vpop.f32.mrb[0].mxu0
  %v8041 = vadd.f32 %v7916, %v8040
  %v8042 = vpop.f32.mrb[0].mxu0
  %v8043 = vpop.f32.mrb[0].mxu0
  %8044 = vdwg.mxu0
  %8045 = vmatprep.subr.bf16.mxu0 %v7988
  %8046 = vmatpush1.bf16.msra.mxu0 %v7987
  %8047 = vmatprep.subr.bf16.mxu0 %v7992
  %8048 = vmatpush1.bf16.msra.mxu0 %v7991
  %8049 = vmatprep.subr.bf16.mxu0 0
  %8050 = vmatpush1.bf16.msra.mxu0 0
  %8051 = vmatprep.subr.bf16.mxu0 0
  %8052 = vmatpush1.bf16.msra.mxu0 0
  %8053 = vmatprep.subr.bf16.mxu0 0
  %8054 = vmatpush1.bf16.msra.mxu0 0
  %8055 = vmatprep.subr.bf16.mxu0 0
  %8056 = vmatpush1.bf16.msra.mxu0 0
  %8057 = vmatprep.subr.bf16.mxu0 0
  %8058 = vmatpush1.bf16.msra.mxu0 0
  %8059 = vmatprep.subr.bf16.mxu0 0
  %8060 = vmatpush1.bf16.msra.mxu0 0
  %8061 = vmatprep.subr.bf16.mxu0 0
  %8062 = vmatpush1.bf16.msra.mxu0 0
  %8063 = vmatprep.subr.bf16.mxu0 0
  %8064 = vmatpush1.bf16.msra.mxu0 0
  %8065 = vmatprep.subr.bf16.mxu0 0
  %8066 = vmatpush1.bf16.msra.mxu0 0
  %8067 = vmatprep.subr.bf16.mxu0 0
  %8068 = vmatpush1.bf16.msra.mxu0 0
  %8069 = vmatprep.subr.bf16.mxu0 0
  %8070 = vmatpush1.bf16.msra.mxu0 0
  %8071 = vmatprep.subr.bf16.mxu0 0
  %8072 = vmatpush1.bf16.msra.mxu0 0
  %8073 = vmatprep.subr.bf16.mxu0 0
  %8074 = vmatpush1.bf16.msra.mxu0 0
  %8075 = vmatprep.subr.bf16.mxu0 0
  %8076 = vmatpush1.bf16.msra.mxu0 0
  %8077 = vmatprep.mubr.bf16.mxu0 0
  %8078 = vmatmul.mubr.bf16.gmra.mrb[0].mxu0 %v8002
  %v8079 = vpop.f32.mrb[0].mxu0
  %v8080 = vadd.f32 %v7955, %v8079
  %v8081 = vpop.f32.mrb[0].mxu0
  %v8082 = vadd.f32 %v7957, %v8081
  %v8083 = vpop.f32.mrb[0].mxu0
  %v8084 = vpop.f32.mrb[0].mxu0
  %8085 = vdwg.mxu0
  %v8086 = vld [vmem:[%s6] sm:$0xf]
  %v8088 = vlaneseq
  %v8089 = vshrl.u32 %v8088, 7
  %v8090 = vsub.s32 0, %v8089
  %v8091 = vrot.slane %v8086, %v8090
  %v8092 = vlaneseq
  %v8093 = vshrl.u32 %v8092, 7
  %v8094 = vsub.s32 1, %v8093
  %v8095 = vrot.slane %v8086, %v8094
  %v8096 = vlaneseq
  %v8097 = vshrl.u32 %v8096, 7
  %v8098 = vsub.s32 2, %v8097
  %v8099 = vrot.slane %v8086, %v8098
  %v8100 = vlaneseq
  %v8101 = vshrl.u32 %v8100, 7
  %v8102 = vsub.s32 3, %v8101
  %v8103 = vrot.slane %v8086, %v8102
  %v8108 = vadd.f32 %v8039, %v8091
  %v8109 = vadd.f32 %v8041, %v8095
  %v8110 = vadd.f32 %v8080, %v8099
  %v8111 = vadd.f32 %v8082, %v8103
  %v8112 = vxor.u32 %v8108, 2147483648
  %v8113 = vmul.f32 %v8112, 1.442695
  %v8114 = vpow.pop %v8113
  %v8115 = vadd.f32 %v8114, 1.0
  %v8116 = vrcp.pop %v8115
  %v8117 = vmul.f32 1.0, %v8116
  %v8118 = vxor.u32 %v8109, 2147483648
  %v8119 = vmul.f32 %v8118, 1.442695
  %v8120 = vpow.pop %v8119
  %v8121 = vadd.f32 %v8120, 1.0
  %v8122 = vrcp.pop %v8121
  %v8123 = vmul.f32 1.0, %v8122
  %v8124 = vtanh.pop %v8110
  %v8125 = vxor.u32 %v8111, 2147483648
  %v8126 = vmul.f32 %v8125, 1.442695
  %v8127 = vpow.pop %v8126
  %v8128 = vadd.f32 %v8127, 1.0
  %v8129 = vrcp.pop %v8128
  %v8130 = vmul.f32 1.0, %v8129
  %v8131 = vmul.f32 %v8123, %v7312
  %v8132 = vmul.f32 %v8117, %v8124
  %v8133 = vadd.f32 %v8131, %v8132
  %v8134 = vtanh.pop %v8133
  %v8135 = vmul.f32 %v8130, %v8134
  %v8136 = vpack.c.bf16 %v8135, %v8135
  %v8137 = vld [vmem:[%s8] sm:$0xf]
  %v8138 = vld [vmem:[%s8 + $0x4] sm:$0xf]
  %v8139 = vld [vmem:[%s8 + $0x8] sm:$0xf]
  %v8140 = vld [vmem:[%s8 + $0xc] sm:$0xf]
  %v8141 = vld [vmem:[%s9] sm:$0x1]
  %v8143 = vlaneseq
  %v8144 = vshrl.u32 %v8143, 7
  %v8145 = vsub.s32 0, %v8144
  %v8146 = vrot.slane %v8141, %v8145
  %v8152 = vunpack.c.l.b16 %v8137
  %v8153 = vunpack.c.l.b16 %v8138
  %v8154 = vunpack.c.l.b16 %v8139
  %v8155 = vunpack.c.l.b16 %v8140
  %v8156 = vpack.c.b16 %v8153, %v8152
  %v8157 = vpack.c.b16 %v8155, %v8154
  %v8161 = vsel %vm91, %v8136, 0
  %8163 = vmatprep.subr.bf16.mxu0 0
  %8164 = vmatpush1.bf16.msra.mxu0 %v8156
  %8165 = vmatprep.subr.bf16.mxu0 0
  %8166 = vmatpush1.bf16.msra.mxu0 %v8157
  %8167 = vmatprep.subr.bf16.mxu0 0
  %8168 = vmatpush1.bf16.msra.mxu0 0
  %8169 = vmatprep.subr.bf16.mxu0 0
  %8170 = vmatpush1.bf16.msra.mxu0 0
  %8171 = vmatprep.subr.bf16.mxu0 0
  %8172 = vmatpush1.bf16.msra.mxu0 0
  %8173 = vmatprep.subr.bf16.mxu0 0
  %8174 = vmatpush1.bf16.msra.mxu0 0
  %8175 = vmatprep.subr.bf16.mxu0 0
  %8176 = vmatpush1.bf16.msra.mxu0 0
  %8177 = vmatprep.subr.bf16.mxu0 0
  %8178 = vmatpush1.bf16.msra.mxu0 0
  %8179 = vmatprep.subr.bf16.mxu0 0
  %8180 = vmatpush1.bf16.msra.mxu0 0
  %8181 = vmatprep.subr.bf16.mxu0 0
  %8182 = vmatpush1.bf16.msra.mxu0 0
  %8183 = vmatprep.subr.bf16.mxu0 0
  %8184 = vmatpush1.bf16.msra.mxu0 0
  %8185 = vmatprep.subr.bf16.mxu0 0
  %8186 = vmatpush1.bf16.msra.mxu0 0
  %8187 = vmatprep.subr.bf16.mxu0 0
  %8188 = vmatpush1.bf16.msra.mxu0 0
  %8189 = vmatprep.subr.bf16.mxu0 0
  %8190 = vmatpush1.bf16.msra.mxu0 0
  %8191 = vmatprep.subr.bf16.mxu0 0
  %8192 = vmatpush1.bf16.msra.mxu0 0
  %8193 = vmatprep.subr.bf16.mxu0 0
  %8194 = vmatpush1.bf16.msra.mxu0 0
  %8195 = vmatprep.mubr.bf16.mxu0 0
  %8196 = vmatmul.mubr.bf16.gmra.mrb[0].mxu0 %v8161
  %v8197 = vpop.f32.mrb[0].mxu0
  %v8198 = vadd.f32 %v8146, %v8197
  %v8199 = vpop.f32.mrb[0].mxu0
  %v8200 = vpop.f32.mrb[0].mxu0
  %v8201 = vpop.f32.mrb[0].mxu0
  %8202 = vdwg.mxu0
  %s8203 = scalar_lea.vmem %s11, 56
  %8204 = vst [vmem:[%s8203] sm:$0xff] %v8198
  // Predicated region
  $region46: #{seq2seq_forward.1} parent=0 // pred_check
    _
  $region47: #{seq2seq_forward.1} parent=0 // pred_check_branch
    %8206 = sbr.rel (0) target = $region49
  $region48: #{seq2seq_forward.1} parent=0 // pred_region
    _
  $region49: #{seq2seq_forward.1} parent=0 // pred_fallthru
    _
  // Predicated region
  $region50: #{seq2seq_forward.1} parent=0 // pred_check
    _
  $region51: #{seq2seq_forward.1} parent=0 // pred_check_branch
    %8208 = sbr.rel (0) target = $region53
  $region52: #{seq2seq_forward.1} parent=0 // pred_region
    _
  $region53: #{seq2seq_forward.1} parent=0 // pred_fallthru
    _

</llo_original>
